<compile_context>
chip_gen: v5e
topology: v5e:2x2
jax: 0.10.0
libtpu: 0.0.40
codegen_flags: <defaults>
</compile_context>

<pallas_src>
import functools

import jax
import jax.numpy as jnp
from jax import lax
from jax.experimental import pallas as pl
from jax.experimental.pallas import tpu as pltpu

_LANE = 128


def _round_up(x, m):
    return (x + m - 1) // m * m


def _pick_row_tile(Ho, Wo, Wp, Cx, K, Cp, *, budget_bytes=20 << 20, max_m=2048):
    """Largest divisor of Ho whose per-step VMEM footprint fits the budget."""
    def fits(th):
        m = th * Wo
        x_t = 2 * (th + K - 1) * _round_up(Wp, 8) * _round_up(Cx, _LANE) * 2  # dbl-buf bf16
        o_t = 2 * _round_up(m, 8) * Cp * 2                                    # dbl-buf bf16
        acc = 2 * _round_up(m, 8) * Cp * 4                                    # f32 scratch
        tmp = 2 * _round_up(m, 8) * Cp * 4                                    # dot temporaries
        wgt = 4 * K * K * _round_up(Cx, 8) * Cp * 2                           # w0/w1, 2 bufs
        return m <= max_m and (x_t + o_t + acc + tmp + wgt) <= budget_bytes

    best = 1
    for th in range(1, Ho + 1):
        if Ho % th == 0 and fits(th):
            best = th
    return best


# ----------------------------------------------------------------------------
# Pallas kernel: one (batch, row-tile) step of conv + bias + MFM max
# ----------------------------------------------------------------------------
def _mfm_conv_kernel(x_ref, w0_ref, w1_ref, b0_ref, b1_ref, out_ref,
                     acc0_ref, acc1_ref, *, K, TH, Wo, Cx):
    """x_ref:   (1, TH+K-1, Wp, Cx)  bf16 halo'd padded input rows
       w*_ref:  (K*K, Cx, Cp)        bf16 per-tap weights, one ref per MFM half
       b*_ref:  (1, Cp)              f32 bias halves (lane-padded)
       out_ref: (1, TH*Wo, Cp)       bf16 output rows (lane-dense last dim)
       acc*_ref:(TH*Wo, Cp)          f32 VMEM scratch accumulators"""
    m = TH * Wo
    for ki in range(K):                      # static unroll: K*K conv taps
        for kj in range(K):
            t = ki * K + kj
            xs = x_ref[0, ki:ki + TH, kj:kj + Wo, :].reshape(m, Cx)
            p0 = jnp.dot(xs, w0_ref[t], preferred_element_type=jnp.float32)
            p1 = jnp.dot(xs, w1_ref[t], preferred_element_type=jnp.float32)
            if t == 0:
                acc0_ref[...] = p0
                acc1_ref[...] = p1
            else:
                acc0_ref[...] += p0
                acc1_ref[...] += p1
    out = jnp.maximum(acc0_ref[...] + b0_ref[...],
                      acc1_ref[...] + b1_ref[...])          # lane-aligned MFM max
    out_ref[0] = out.astype(out_ref.dtype)


# ----------------------------------------------------------------------------
# mfm forward (type=1, Conv2d path), NHWC activations
# ----------------------------------------------------------------------------
def mfm_forward(x_nhwc, weight, bias, *, stride=1, padding=1, row_tile=None,
                compute_dtype=jnp.bfloat16):
    """x_nhwc: (B, H, W, Cin); weight: (2*Cout, Cin, K, K); bias: (2*Cout,).
       Returns (B, Ho, Wo, Cout) in compute_dtype (NHWC)."""
    assert stride == 1, "network_29layers_v2 only uses stride=1 convs"
    B, H, W, Cin = x_nhwc.shape
    two_cout, cin_w, K, K2 = weight.shape
    assert cin_w == Cin and K == K2
    cout = two_cout // 2
    Hp, Wp = H + 2 * padding, W + 2 * padding
    Ho, Wo = Hp - K + 1, Wp - K + 1
    cp = _round_up(cout, _LANE)              # lane-dense output stores

    th = row_tile if row_tile is not None else _pick_row_tile(Ho, Wo, Wp, Cin, K, cp)
    assert Ho % th == 0, "row_tile must divide the output height"
    n_rt = Ho // th
    m = th * Wo

    # Pad spatially once; cut overlapping (halo'd) row windows so each grid
    # step's input is a plain Blocked block (auto-pipelined, overlapped DMA).
    xp = jnp.pad(x_nhwc.astype(compute_dtype),
                 ((0, 0), (padding, padding), (padding, padding), (0, 0)))
    if n_rt == 1:
        xh = xp                                               # (B, Hp, Wp, Cin)
    else:
        xh = jnp.concatenate(
            [xp[:, None, r * th:r * th + th + K - 1] for r in range(n_rt)], axis=1)
        xh = xh.reshape(B * n_rt, th + K - 1, Wp, Cin)

    # weight (2Cout, Cin, K, K) -> (K*K, Cin, 2Cout); split into MFM halves and
    # zero-pad the output dim to a lane multiple (padded channels stay 0).
    w_t = jnp.transpose(weight, (2, 3, 1, 0)).reshape(K * K, Cin, two_cout)
    w_t = w_t.astype(compute_dtype)
    pad_c = cp - cout
    w0 = jnp.pad(w_t[..., :cout], ((0, 0), (0, 0), (0, pad_c)))
    w1 = jnp.pad(w_t[..., cout:], ((0, 0), (0, 0), (0, pad_c)))
    b0 = jnp.pad(bias[:cout].astype(jnp.float32), (0, pad_c)).reshape(1, cp)
    b1 = jnp.pad(bias[cout:].astype(jnp.float32), (0, pad_c)).reshape(1, cp)

    kernel = functools.partial(_mfm_conv_kernel, K=K, TH=th, Wo=Wo, Cx=Cin)
    out = pl.pallas_call(
        kernel,
        out_shape=jax.ShapeDtypeStruct((B * n_rt, m, cp), compute_dtype),
        grid_spec=pltpu.PrefetchScalarGridSpec(
            num_scalar_prefetch=0,
            grid=(B * n_rt,),                 # batch x row-tiles, all parallel
            in_specs=[
                pl.BlockSpec((1, th + K - 1, Wp, Cin), lambda i: (i, 0, 0, 0)),
                # constant index maps: weights / bias fetched once, stay resident
                pl.BlockSpec((K * K, Cin, cp), lambda i: (0, 0, 0)),
                pl.BlockSpec((K * K, Cin, cp), lambda i: (0, 0, 0)),
                pl.BlockSpec((1, cp), lambda i: (0, 0)),
                pl.BlockSpec((1, cp), lambda i: (0, 0)),
            ],
            out_specs=pl.BlockSpec((1, m, cp), lambda i: (i, 0, 0)),
            scratch_shapes=[pltpu.VMEM((m, cp), jnp.float32),
                            pltpu.VMEM((m, cp), jnp.float32)],
        ),
        compiler_params=pltpu.CompilerParams(
            dimension_semantics=("parallel",),
            vmem_limit_bytes=48 * 1024 * 1024),
    )(xh, w0, w1, b0, b1)

    out = out.reshape(B, Ho, Wo, cp)
    return out[..., :cout]                   # drop the lane padding


def group_forward(x_nhwc, wa, ba, wc, bc, *, padding=1,
                  compute_dtype=jnp.bfloat16):
    """group = mfm(in, in, 1, 1, 0) then mfm(in, out, k, 1, padding); NHWC in/out."""
    x = mfm_forward(x_nhwc, wa, ba, padding=0, compute_dtype=compute_dtype)
    return mfm_forward(x, wc, bc, padding=padding, compute_dtype=compute_dtype)


def mfm_forward_nchw(x_nchw, weight, bias, *, padding=1, row_tile=None):
    """Convenience wrapper matching the PyTorch NCHW interface (tests only)."""
    x = jnp.transpose(x_nchw, (0, 2, 3, 1))
    y = mfm_forward(x, weight, bias, padding=padding, row_tile=row_tile)
    return jnp.transpose(y, (0, 3, 1, 2))


# ----------------------------------------------------------------------------
# Reference (pure JAX) for sanity checks
# ----------------------------------------------------------------------------
def mfm_reference(x_nchw, weight, bias, *, padding=1):
    y = lax.conv_general_dilated(
        x_nchw, weight, window_strides=(1, 1),
        padding=((padding, padding), (padding, padding)),
        dimension_numbers=("NCHW", "OIHW", "NCHW"),
        precision=lax.Precision.HIGHEST)
    y = y + bias[None, :, None, None]
    cout = weight.shape[0] // 2
    return jnp.maximum(y[:, :cout], y[:, cout:])


if __name__ == "__main__":
    key = jax.random.PRNGKey(0)
    ks = jax.random.split(key, 8)

    def q(a):  # emulate the kernel's bf16 input quantization for the reference
        return a.astype(jnp.bfloat16).astype(jnp.float32)

    TOL = dict(atol=2e-2, rtol=2e-2)

    # --- check 1: mfm(4 -> 4, k=3, s=1, p=1), default (whole-image) row tile ---
    B, Cin, H, W, Cout, K = 2, 4, 16, 16, 4, 3
    x = jax.random.normal(ks[0], (B, Cin, H, W), dtype=jnp.float32)
    w = 0.1 * jax.random.normal(ks[1], (2 * Cout, Cin, K, K), dtype=jnp.float32)
    b = 0.1 * jax.random.normal(ks[2], (2 * Cout,), dtype=jnp.float32)
    out = jax.block_until_ready(mfm_forward_nchw(x, w, b, padding=1))
    ref = mfm_reference(q(x), q(w), b, padding=1)
    assert out.shape == (B, Cout, H, W), out.shape
    assert jnp.allclose(out.astype(jnp.float32), ref, **TOL), "mfm 3x3 mismatch"

    # --- check 1b: same layer with forced spatial row tiling (halo path) ---
    out_t = jax.block_until_ready(mfm_forward_nchw(x, w, b, padding=1, row_tile=8))
    assert jnp.allclose(out_t.astype(jnp.float32), ref, **TOL), "row-tiled mismatch"

    # --- check 2: conv1-like mfm(1 -> 8, k=5, s=1, p=2), 4 row tiles ---
    x1 = jax.random.normal(ks[3], (B, 1, H, W), dtype=jnp.float32)
    w1 = 0.1 * jax.random.normal(ks[4], (16, 1, 5, 5), dtype=jnp.float32)
    b1 = 0.1 * jax.random.normal(ks[5], (16,), dtype=jnp.float32)
    out1 = jax.block_until_ready(mfm_forward_nchw(x1, w1, b1, padding=2, row_tile=4))
    ref1 = mfm_reference(q(x1), q(w1), b1, padding=2)
    assert out1.shape == (B, 8, H, W), out1.shape
    assert jnp.allclose(out1.astype(jnp.float32), ref1, **TOL), "mfm 5x5 mismatch"

    # --- check 3: group(4 -> 6): mfm(4->4, k=1, p=0) then mfm(4->6, k=3, p=1) ---
    wa = 0.1 * jax.random.normal(ks[6], (2 * Cin, Cin, 1, 1), dtype=jnp.float32)
    ba = 0.1 * jax.random.normal(ks[7], (2 * Cin,), dtype=jnp.float32)
    wc = 0.1 * jax.random.normal(ks[1], (12, Cin, 3, 3), dtype=jnp.float32)
    bc = 0.1 * jax.random.normal(ks[2], (12,), dtype=jnp.float32)
    x_nhwc = jnp.transpose(x, (0, 2, 3, 1))
    outg = jax.block_until_ready(group_forward(x_nhwc, wa, ba, wc, bc, padding=1))
    mid = mfm_reference(q(x), q(wa), ba, padding=0)
    refg = jnp.transpose(mfm_reference(q(mid), q(wc), bc, padding=1), (0, 2, 3, 1))
    assert outg.shape == (B, H, W, 6), outg.shape
    assert jnp.allclose(outg.astype(jnp.float32), refg, atol=3e-2, rtol=3e-2), \
        "group mismatch"

    print("KERNEL_OK")
</pallas_src>

<mosaic_0001>
module attributes {stable_mosaic.version = 11 : i64} {
  func.func @_mfm_conv_kernel(%arg0: i32, %arg1: memref<1x18x18x4xbf16, #tpu.memory_space<vmem>>, %arg2: memref<9x4x128xbf16, #tpu.memory_space<vmem>>, %arg3: memref<9x4x128xbf16, #tpu.memory_space<vmem>>, %arg4: memref<1x128xf32, #tpu.memory_space<vmem>>, %arg5: memref<1x128xf32, #tpu.memory_space<vmem>>, %arg6: memref<1x256x128xbf16, #tpu.memory_space<vmem>>, %arg7: memref<256x128xf32, #tpu.memory_space<vmem>>, %arg8: memref<256x128xf32, #tpu.memory_space<vmem>>) attributes {dimension_semantics = [#tpu.dimension_semantics<parallel>], iteration_bounds = array<i64: 2>, scalar_prefetch = 0 : i64, scratch_operands = 2 : i64, tpu.core_type = #tpu.core_type<tc>, window_params = [{transform_indices = @transform_0, window_bounds = array<i64: 1, 18, 18, 4>}, {pipeline_mode = #tpu.pipeline_mode<synchronous>, transform_indices = @transform_1, window_bounds = array<i64: 9, 4, 128>}, {pipeline_mode = #tpu.pipeline_mode<synchronous>, transform_indices = @transform_2, window_bounds = array<i64: 9, 4, 128>}, {pipeline_mode = #tpu.pipeline_mode<synchronous>, transform_indices = @transform_3, window_bounds = array<i64: 1, 128>}, {pipeline_mode = #tpu.pipeline_mode<synchronous>, transform_indices = @transform_4, window_bounds = array<i64: 1, 128>}, {transform_indices = @transform_5, window_bounds = array<i64: 1, 256, 128>}]} {
    %c0 = arith.constant 0 : index
    %c0_0 = arith.constant 0 : index
    %c0_1 = arith.constant 0 : index
    %c0_2 = arith.constant 0 : index
    %0 = vector.load %arg1[%c0, %c0_0, %c0_1, %c0_2] : memref<1x18x18x4xbf16, #tpu.memory_space<vmem>>, vector<1x16x16x4xbf16>
    %1 = vector.shape_cast %0 : vector<1x16x16x4xbf16> to vector<16x16x4xbf16>
    %2 = vector.shape_cast %1 : vector<16x16x4xbf16> to vector<256x4xbf16>
    %c0_3 = arith.constant 0 : index
    %c0_4 = arith.constant 0 : index
    %c0_5 = arith.constant 0 : index
    %3 = vector.load %arg2[%c0_3, %c0_4, %c0_5] : memref<9x4x128xbf16, #tpu.memory_space<vmem>>, vector<1x4x128xbf16>
    %4 = vector.shape_cast %3 : vector<1x4x128xbf16> to vector<4x128xbf16>
    %cst = arith.constant dense<0.000000e+00> : vector<256x128xf32>
    %5 = tpu.matmul %2, %4, %cst {dimension_numbers = #tpu.dot_dimension_numbers<[1], [0], [0], [1], [0, 0, 1, 1], [], []>} : vector<256x4xbf16>, vector<4x128xbf16>, vector<256x128xf32> -> vector<256x128xf32>
    %c0_6 = arith.constant 0 : index
    %c0_7 = arith.constant 0 : index
    %c0_8 = arith.constant 0 : index
    %6 = vector.load %arg3[%c0_6, %c0_7, %c0_8] : memref<9x4x128xbf16, #tpu.memory_space<vmem>>, vector<1x4x128xbf16>
    %7 = vector.shape_cast %6 : vector<1x4x128xbf16> to vector<4x128xbf16>
    %cst_9 = arith.constant dense<0.000000e+00> : vector<256x128xf32>
    %8 = tpu.matmul %2, %7, %cst_9 {dimension_numbers = #tpu.dot_dimension_numbers<[1], [0], [0], [1], [0, 0, 1, 1], [], []>} : vector<256x4xbf16>, vector<4x128xbf16>, vector<256x128xf32> -> vector<256x128xf32>
    %c0_10 = arith.constant 0 : index
    %c0_11 = arith.constant 0 : index
    %9 = vector.load %arg7[%c0_10, %c0_11] : memref<256x128xf32, #tpu.memory_space<vmem>>, vector<256x128xf32>
    tpu.vector_store %arg7[%c0_10, %c0_11], %5 {strides = array<i32>} : memref<256x128xf32, #tpu.memory_space<vmem>>, vector<256x128xf32>,
    %c0_12 = arith.constant 0 : index
    %c0_13 = arith.constant 0 : index
    %10 = vector.load %arg8[%c0_12, %c0_13] : memref<256x128xf32, #tpu.memory_space<vmem>>, vector<256x128xf32>
    tpu.vector_store %arg8[%c0_12, %c0_13], %8 {strides = array<i32>} : memref<256x128xf32, #tpu.memory_space<vmem>>, vector<256x128xf32>,
    %c0_14 = arith.constant 0 : index
    %c0_15 = arith.constant 0 : index
    %c1 = arith.constant 1 : index
    %c0_16 = arith.constant 0 : index
    %11 = vector.load %arg1[%c0_14, %c0_15, %c1, %c0_16] : memref<1x18x18x4xbf16, #tpu.memory_space<vmem>>, vector<1x16x16x4xbf16>
    %12 = vector.shape_cast %11 : vector<1x16x16x4xbf16> to vector<16x16x4xbf16>
    %13 = vector.shape_cast %12 : vector<16x16x4xbf16> to vector<256x4xbf16>
    %c1_17 = arith.constant 1 : index
    %c0_18 = arith.constant 0 : index
    %c0_19 = arith.constant 0 : index
    %14 = vector.load %arg2[%c1_17, %c0_18, %c0_19] : memref<9x4x128xbf16, #tpu.memory_space<vmem>>, vector<1x4x128xbf16>
    %15 = vector.shape_cast %14 : vector<1x4x128xbf16> to vector<4x128xbf16>
    %cst_20 = arith.constant dense<0.000000e+00> : vector<256x128xf32>
    %16 = tpu.matmul %13, %15, %cst_20 {dimension_numbers = #tpu.dot_dimension_numbers<[1], [0], [0], [1], [0, 0, 1, 1], [], []>} : vector<256x4xbf16>, vector<4x128xbf16>, vector<256x128xf32> -> vector<256x128xf32>
    %c1_21 = arith.constant 1 : index
    %c0_22 = arith.constant 0 : index
    %c0_23 = arith.constant 0 : index
    %17 = vector.load %arg3[%c1_21, %c0_22, %c0_23] : memref<9x4x128xbf16, #tpu.memory_space<vmem>>, vector<1x4x128xbf16>
    %18 = vector.shape_cast %17 : vector<1x4x128xbf16> to vector<4x128xbf16>
    %cst_24 = arith.constant dense<0.000000e+00> : vector<256x128xf32>
    %19 = tpu.matmul %13, %18, %cst_24 {dimension_numbers = #tpu.dot_dimension_numbers<[1], [0], [0], [1], [0, 0, 1, 1], [], []>} : vector<256x4xbf16>, vector<4x128xbf16>, vector<256x128xf32> -> vector<256x128xf32>
    %c0_25 = arith.constant 0 : index
    %c0_26 = arith.constant 0 : index
    %20 = vector.load %arg7[%c0_25, %c0_26] : memref<256x128xf32, #tpu.memory_space<vmem>>, vector<256x128xf32>
    %21 = arith.addf %20, %16 : vector<256x128xf32>
    %c0_27 = arith.constant 0 : index
    %c0_28 = arith.constant 0 : index
    %22 = vector.load %arg7[%c0_27, %c0_28] : memref<256x128xf32, #tpu.memory_space<vmem>>, vector<256x128xf32>
    tpu.vector_store %arg7[%c0_27, %c0_28], %21 {strides = array<i32>} : memref<256x128xf32, #tpu.memory_space<vmem>>, vector<256x128xf32>,
    %c0_29 = arith.constant 0 : index
    %c0_30 = arith.constant 0 : index
    %23 = vector.load %arg8[%c0_29, %c0_30] : memref<256x128xf32, #tpu.memory_space<vmem>>, vector<256x128xf32>
    %24 = arith.addf %23, %19 : vector<256x128xf32>
    %c0_31 = arith.constant 0 : index
    %c0_32 = arith.constant 0 : index
    %25 = vector.load %arg8[%c0_31, %c0_32] : memref<256x128xf32, #tpu.memory_space<vmem>>, vector<256x128xf32>
    tpu.vector_store %arg8[%c0_31, %c0_32], %24 {strides = array<i32>} : memref<256x128xf32, #tpu.memory_space<vmem>>, vector<256x128xf32>,
    %c0_33 = arith.constant 0 : index
    %c0_34 = arith.constant 0 : index
    %c2 = arith.constant 2 : index
    %c0_35 = arith.constant 0 : index
    %26 = vector.load %arg1[%c0_33, %c0_34, %c2, %c0_35] : memref<1x18x18x4xbf16, #tpu.memory_space<vmem>>, vector<1x16x16x4xbf16>
    %27 = vector.shape_cast %26 : vector<1x16x16x4xbf16> to vector<16x16x4xbf16>
    %28 = vector.shape_cast %27 : vector<16x16x4xbf16> to vector<256x4xbf16>
    %c2_36 = arith.constant 2 : index
    %c0_37 = arith.constant 0 : index
    %c0_38 = arith.constant 0 : index
    %29 = vector.load %arg2[%c2_36, %c0_37, %c0_38] : memref<9x4x128xbf16, #tpu.memory_space<vmem>>, vector<1x4x128xbf16>
    %30 = vector.shape_cast %29 : vector<1x4x128xbf16> to vector<4x128xbf16>
    %cst_39 = arith.constant dense<0.000000e+00> : vector<256x128xf32>
    %31 = tpu.matmul %28, %30, %cst_39 {dimension_numbers = #tpu.dot_dimension_numbers<[1], [0], [0], [1], [0, 0, 1, 1], [], []>} : vector<256x4xbf16>, vector<4x128xbf16>, vector<256x128xf32> -> vector<256x128xf32>
    %c2_40 = arith.constant 2 : index
    %c0_41 = arith.constant 0 : index
    %c0_42 = arith.constant 0 : index
    %32 = vector.load %arg3[%c2_40, %c0_41, %c0_42] : memref<9x4x128xbf16, #tpu.memory_space<vmem>>, vector<1x4x128xbf16>
    %33 = vector.shape_cast %32 : vector<1x4x128xbf16> to vector<4x128xbf16>
    %cst_43 = arith.constant dense<0.000000e+00> : vector<256x128xf32>
    %34 = tpu.matmul %28, %33, %cst_43 {dimension_numbers = #tpu.dot_dimension_numbers<[1], [0], [0], [1], [0, 0, 1, 1], [], []>} : vector<256x4xbf16>, vector<4x128xbf16>, vector<256x128xf32> -> vector<256x128xf32>
    %c0_44 = arith.constant 0 : index
    %c0_45 = arith.constant 0 : index
    %35 = vector.load %arg7[%c0_44, %c0_45] : memref<256x128xf32, #tpu.memory_space<vmem>>, vector<256x128xf32>
    %36 = arith.addf %35, %31 : vector<256x128xf32>
    %c0_46 = arith.constant 0 : index
    %c0_47 = arith.constant 0 : index
    %37 = vector.load %arg7[%c0_46, %c0_47] : memref<256x128xf32, #tpu.memory_space<vmem>>, vector<256x128xf32>
    tpu.vector_store %arg7[%c0_46, %c0_47], %36 {strides = array<i32>} : memref<256x128xf32, #tpu.memory_space<vmem>>, vector<256x128xf32>,
    %c0_48 = arith.constant 0 : index
    %c0_49 = arith.constant 0 : index
    %38 = vector.load %arg8[%c0_48, %c0_49] : memref<256x128xf32, #tpu.memory_space<vmem>>, vector<256x128xf32>
    %39 = arith.addf %38, %34 : vector<256x128xf32>
    %c0_50 = arith.constant 0 : index
    %c0_51 = arith.constant 0 : index
    %40 = vector.load %arg8[%c0_50, %c0_51] : memref<256x128xf32, #tpu.memory_space<vmem>>, vector<256x128xf32>
    tpu.vector_store %arg8[%c0_50, %c0_51], %39 {strides = array<i32>} : memref<256x128xf32, #tpu.memory_space<vmem>>, vector<256x128xf32>,
    %c0_52 = arith.constant 0 : index
    %c1_53 = arith.constant 1 : index
    %c0_54 = arith.constant 0 : index
    %c0_55 = arith.constant 0 : index
    %41 = vector.load %arg1[%c0_52, %c1_53, %c0_54, %c0_55] : memref<1x18x18x4xbf16, #tpu.memory_space<vmem>>, vector<1x16x16x4xbf16>
    %42 = vector.shape_cast %41 : vector<1x16x16x4xbf16> to vector<16x16x4xbf16>
    %43 = vector.shape_cast %42 : vector<16x16x4xbf16> to vector<256x4xbf16>
    %c3 = arith.constant 3 : index
    %c0_56 = arith.constant 0 : index
    %c0_57 = arith.constant 0 : index
    %44 = vector.load %arg2[%c3, %c0_56, %c0_57] : memref<9x4x128xbf16, #tpu.memory_space<vmem>>, vector<1x4x128xbf16>
    %45 = vector.shape_cast %44 : vector<1x4x128xbf16> to vector<4x128xbf16>
    %cst_58 = arith.constant dense<0.000000e+00> : vector<256x128xf32>
    %46 = tpu.matmul %43, %45, %cst_58 {dimension_numbers = #tpu.dot_dimension_numbers<[1], [0], [0], [1], [0, 0, 1, 1], [], []>} : vector<256x4xbf16>, vector<4x128xbf16>, vector<256x128xf32> -> vector<256x128xf32>
    %c3_59 = arith.constant 3 : index
    %c0_60 = arith.constant 0 : index
    %c0_61 = arith.constant 0 : index
    %47 = vector.load %arg3[%c3_59, %c0_60, %c0_61] : memref<9x4x128xbf16, #tpu.memory_space<vmem>>, vector<1x4x128xbf16>
    %48 = vector.shape_cast %47 : vector<1x4x128xbf16> to vector<4x128xbf16>
    %cst_62 = arith.constant dense<0.000000e+00> : vector<256x128xf32>
    %49 = tpu.matmul %43, %48, %cst_62 {dimension_numbers = #tpu.dot_dimension_numbers<[1], [0], [0], [1], [0, 0, 1, 1], [], []>} : vector<256x4xbf16>, vector<4x128xbf16>, vector<256x128xf32> -> vector<256x128xf32>
    %c0_63 = arith.constant 0 : index
    %c0_64 = arith.constant 0 : index
    %50 = vector.load %arg7[%c0_63, %c0_64] : memref<256x128xf32, #tpu.memory_space<vmem>>, vector<256x128xf32>
    %51 = arith.addf %50, %46 : vector<256x128xf32>
    %c0_65 = arith.constant 0 : index
    %c0_66 = arith.constant 0 : index
    %52 = vector.load %arg7[%c0_65, %c0_66] : memref<256x128xf32, #tpu.memory_space<vmem>>, vector<256x128xf32>
    tpu.vector_store %arg7[%c0_65, %c0_66], %51 {strides = array<i32>} : memref<256x128xf32, #tpu.memory_space<vmem>>, vector<256x128xf32>,
    %c0_67 = arith.constant 0 : index
    %c0_68 = arith.constant 0 : index
    %53 = vector.load %arg8[%c0_67, %c0_68] : memref<256x128xf32, #tpu.memory_space<vmem>>, vector<256x128xf32>
    %54 = arith.addf %53, %49 : vector<256x128xf32>
    %c0_69 = arith.constant 0 : index
    %c0_70 = arith.constant 0 : index
    %55 = vector.load %arg8[%c0_69, %c0_70] : memref<256x128xf32, #tpu.memory_space<vmem>>, vector<256x128xf32>
    tpu.vector_store %arg8[%c0_69, %c0_70], %54 {strides = array<i32>} : memref<256x128xf32, #tpu.memory_space<vmem>>, vector<256x128xf32>,
    %c0_71 = arith.constant 0 : index
    %c1_72 = arith.constant 1 : index
    %c1_73 = arith.constant 1 : index
    %c0_74 = arith.constant 0 : index
    %56 = vector.load %arg1[%c0_71, %c1_72, %c1_73, %c0_74] : memref<1x18x18x4xbf16, #tpu.memory_space<vmem>>, vector<1x16x16x4xbf16>
    %57 = vector.shape_cast %56 : vector<1x16x16x4xbf16> to vector<16x16x4xbf16>
    %58 = vector.shape_cast %57 : vector<16x16x4xbf16> to vector<256x4xbf16>
    %c4 = arith.constant 4 : index
    %c0_75 = arith.constant 0 : index
    %c0_76 = arith.constant 0 : index
    %59 = vector.load %arg2[%c4, %c0_75, %c0_76] : memref<9x4x128xbf16, #tpu.memory_space<vmem>>, vector<1x4x128xbf16>
    %60 = vector.shape_cast %59 : vector<1x4x128xbf16> to vector<4x128xbf16>
    %cst_77 = arith.constant dense<0.000000e+00> : vector<256x128xf32>
    %61 = tpu.matmul %58, %60, %cst_77 {dimension_numbers = #tpu.dot_dimension_numbers<[1], [0], [0], [1], [0, 0, 1, 1], [], []>} : vector<256x4xbf16>, vector<4x128xbf16>, vector<256x128xf32> -> vector<256x128xf32>
    %c4_78 = arith.constant 4 : index
    %c0_79 = arith.constant 0 : index
    %c0_80 = arith.constant 0 : index
    %62 = vector.load %arg3[%c4_78, %c0_79, %c0_80] : memref<9x4x128xbf16, #tpu.memory_space<vmem>>, vector<1x4x128xbf16>
    %63 = vector.shape_cast %62 : vector<1x4x128xbf16> to vector<4x128xbf16>
    %cst_81 = arith.constant dense<0.000000e+00> : vector<256x128xf32>
    %64 = tpu.matmul %58, %63, %cst_81 {dimension_numbers = #tpu.dot_dimension_numbers<[1], [0], [0], [1], [0, 0, 1, 1], [], []>} : vector<256x4xbf16>, vector<4x128xbf16>, vector<256x128xf32> -> vector<256x128xf32>
    %c0_82 = arith.constant 0 : index
    %c0_83 = arith.constant 0 : index
    %65 = vector.load %arg7[%c0_82, %c0_83] : memref<256x128xf32, #tpu.memory_space<vmem>>, vector<256x128xf32>
    %66 = arith.addf %65, %61 : vector<256x128xf32>
    %c0_84 = arith.constant 0 : index
    %c0_85 = arith.constant 0 : index
    %67 = vector.load %arg7[%c0_84, %c0_85] : memref<256x128xf32, #tpu.memory_space<vmem>>, vector<256x128xf32>
    tpu.vector_store %arg7[%c0_84, %c0_85], %66 {strides = array<i32>} : memref<256x128xf32, #tpu.memory_space<vmem>>, vector<256x128xf32>,
    %c0_86 = arith.constant 0 : index
    %c0_87 = arith.constant 0 : index
    %68 = vector.load %arg8[%c0_86, %c0_87] : memref<256x128xf32, #tpu.memory_space<vmem>>, vector<256x128xf32>
    %69 = arith.addf %68, %64 : vector<256x128xf32>
    %c0_88 = arith.constant 0 : index
    %c0_89 = arith.constant 0 : index
    %70 = vector.load %arg8[%c0_88, %c0_89] : memref<256x128xf32, #tpu.memory_space<vmem>>, vector<256x128xf32>
    tpu.vector_store %arg8[%c0_88, %c0_89], %69 {strides = array<i32>} : memref<256x128xf32, #tpu.memory_space<vmem>>, vector<256x128xf32>,
    %c0_90 = arith.constant 0 : index
    %c1_91 = arith.constant 1 : index
    %c2_92 = arith.constant 2 : index
    %c0_93 = arith.constant 0 : index
    %71 = vector.load %arg1[%c0_90, %c1_91, %c2_92, %c0_93] : memref<1x18x18x4xbf16, #tpu.memory_space<vmem>>, vector<1x16x16x4xbf16>
    %72 = vector.shape_cast %71 : vector<1x16x16x4xbf16> to vector<16x16x4xbf16>
    %73 = vector.shape_cast %72 : vector<16x16x4xbf16> to vector<256x4xbf16>
    %c5 = arith.constant 5 : index
    %c0_94 = arith.constant 0 : index
    %c0_95 = arith.constant 0 : index
    %74 = vector.load %arg2[%c5, %c0_94, %c0_95] : memref<9x4x128xbf16, #tpu.memory_space<vmem>>, vector<1x4x128xbf16>
    %75 = vector.shape_cast %74 : vector<1x4x128xbf16> to vector<4x128xbf16>
    %cst_96 = arith.constant dense<0.000000e+00> : vector<256x128xf32>
    %76 = tpu.matmul %73, %75, %cst_96 {dimension_numbers = #tpu.dot_dimension_numbers<[1], [0], [0], [1], [0, 0, 1, 1], [], []>} : vector<256x4xbf16>, vector<4x128xbf16>, vector<256x128xf32> -> vector<256x128xf32>
    %c5_97 = arith.constant 5 : index
    %c0_98 = arith.constant 0 : index
    %c0_99 = arith.constant 0 : index
    %77 = vector.load %arg3[%c5_97, %c0_98, %c0_99] : memref<9x4x128xbf16, #tpu.memory_space<vmem>>, vector<1x4x128xbf16>
    %78 = vector.shape_cast %77 : vector<1x4x128xbf16> to vector<4x128xbf16>
    %cst_100 = arith.constant dense<0.000000e+00> : vector<256x128xf32>
    %79 = tpu.matmul %73, %78, %cst_100 {dimension_numbers = #tpu.dot_dimension_numbers<[1], [0], [0], [1], [0, 0, 1, 1], [], []>} : vector<256x4xbf16>, vector<4x128xbf16>, vector<256x128xf32> -> vector<256x128xf32>
    %c0_101 = arith.constant 0 : index
    %c0_102 = arith.constant 0 : index
    %80 = vector.load %arg7[%c0_101, %c0_102] : memref<256x128xf32, #tpu.memory_space<vmem>>, vector<256x128xf32>
    %81 = arith.addf %80, %76 : vector<256x128xf32>
    %c0_103 = arith.constant 0 : index
    %c0_104 = arith.constant 0 : index
    %82 = vector.load %arg7[%c0_103, %c0_104] : memref<256x128xf32, #tpu.memory_space<vmem>>, vector<256x128xf32>
    tpu.vector_store %arg7[%c0_103, %c0_104], %81 {strides = array<i32>} : memref<256x128xf32, #tpu.memory_space<vmem>>, vector<256x128xf32>,
    %c0_105 = arith.constant 0 : index
    %c0_106 = arith.constant 0 : index
    %83 = vector.load %arg8[%c0_105, %c0_106] : memref<256x128xf32, #tpu.memory_space<vmem>>, vector<256x128xf32>
    %84 = arith.addf %83, %79 : vector<256x128xf32>
    %c0_107 = arith.constant 0 : index
    %c0_108 = arith.constant 0 : index
    %85 = vector.load %arg8[%c0_107, %c0_108] : memref<256x128xf32, #tpu.memory_space<vmem>>, vector<256x128xf32>
    tpu.vector_store %arg8[%c0_107, %c0_108], %84 {strides = array<i32>} : memref<256x128xf32, #tpu.memory_space<vmem>>, vector<256x128xf32>,
    %c0_109 = arith.constant 0 : index
    %c2_110 = arith.constant 2 : index
    %c0_111 = arith.constant 0 : index
    %c0_112 = arith.constant 0 : index
    %86 = vector.load %arg1[%c0_109, %c2_110, %c0_111, %c0_112] : memref<1x18x18x4xbf16, #tpu.memory_space<vmem>>, vector<1x16x16x4xbf16>
    %87 = vector.shape_cast %86 : vector<1x16x16x4xbf16> to vector<16x16x4xbf16>
    %88 = vector.shape_cast %87 : vector<16x16x4xbf16> to vector<256x4xbf16>
    %c6 = arith.constant 6 : index
    %c0_113 = arith.constant 0 : index
    %c0_114 = arith.constant 0 : index
    %89 = vector.load %arg2[%c6, %c0_113, %c0_114] : memref<9x4x128xbf16, #tpu.memory_space<vmem>>, vector<1x4x128xbf16>
    %90 = vector.shape_cast %89 : vector<1x4x128xbf16> to vector<4x128xbf16>
    %cst_115 = arith.constant dense<0.000000e+00> : vector<256x128xf32>
    %91 = tpu.matmul %88, %90, %cst_115 {dimension_numbers = #tpu.dot_dimension_numbers<[1], [0], [0], [1], [0, 0, 1, 1], [], []>} : vector<256x4xbf16>, vector<4x128xbf16>, vector<256x128xf32> -> vector<256x128xf32>
    %c6_116 = arith.constant 6 : index
    %c0_117 = arith.constant 0 : index
    %c0_118 = arith.constant 0 : index
    %92 = vector.load %arg3[%c6_116, %c0_117, %c0_118] : memref<9x4x128xbf16, #tpu.memory_space<vmem>>, vector<1x4x128xbf16>
    %93 = vector.shape_cast %92 : vector<1x4x128xbf16> to vector<4x128xbf16>
    %cst_119 = arith.constant dense<0.000000e+00> : vector<256x128xf32>
    %94 = tpu.matmul %88, %93, %cst_119 {dimension_numbers = #tpu.dot_dimension_numbers<[1], [0], [0], [1], [0, 0, 1, 1], [], []>} : vector<256x4xbf16>, vector<4x128xbf16>, vector<256x128xf32> -> vector<256x128xf32>
    %c0_120 = arith.constant 0 : index
    %c0_121 = arith.constant 0 : index
    %95 = vector.load %arg7[%c0_120, %c0_121] : memref<256x128xf32, #tpu.memory_space<vmem>>, vector<256x128xf32>
    %96 = arith.addf %95, %91 : vector<256x128xf32>
    %c0_122 = arith.constant 0 : index
    %c0_123 = arith.constant 0 : index
    %97 = vector.load %arg7[%c0_122, %c0_123] : memref<256x128xf32, #tpu.memory_space<vmem>>, vector<256x128xf32>
    tpu.vector_store %arg7[%c0_122, %c0_123], %96 {strides = array<i32>} : memref<256x128xf32, #tpu.memory_space<vmem>>, vector<256x128xf32>,
    %c0_124 = arith.constant 0 : index
    %c0_125 = arith.constant 0 : index
    %98 = vector.load %arg8[%c0_124, %c0_125] : memref<256x128xf32, #tpu.memory_space<vmem>>, vector<256x128xf32>
    %99 = arith.addf %98, %94 : vector<256x128xf32>
    %c0_126 = arith.constant 0 : index
    %c0_127 = arith.constant 0 : index
    %100 = vector.load %arg8[%c0_126, %c0_127] : memref<256x128xf32, #tpu.memory_space<vmem>>, vector<256x128xf32>
    tpu.vector_store %arg8[%c0_126, %c0_127], %99 {strides = array<i32>} : memref<256x128xf32, #tpu.memory_space<vmem>>, vector<256x128xf32>,
    %c0_128 = arith.constant 0 : index
    %c2_129 = arith.constant 2 : index
    %c1_130 = arith.constant 1 : index
    %c0_131 = arith.constant 0 : index
    %101 = vector.load %arg1[%c0_128, %c2_129, %c1_130, %c0_131] : memref<1x18x18x4xbf16, #tpu.memory_space<vmem>>, vector<1x16x16x4xbf16>
    %102 = vector.shape_cast %101 : vector<1x16x16x4xbf16> to vector<16x16x4xbf16>
    %103 = vector.shape_cast %102 : vector<16x16x4xbf16> to vector<256x4xbf16>
    %c7 = arith.constant 7 : index
    %c0_132 = arith.constant 0 : index
    %c0_133 = arith.constant 0 : index
    %104 = vector.load %arg2[%c7, %c0_132, %c0_133] : memref<9x4x128xbf16, #tpu.memory_space<vmem>>, vector<1x4x128xbf16>
    %105 = vector.shape_cast %104 : vector<1x4x128xbf16> to vector<4x128xbf16>
    %cst_134 = arith.constant dense<0.000000e+00> : vector<256x128xf32>
    %106 = tpu.matmul %103, %105, %cst_134 {dimension_numbers = #tpu.dot_dimension_numbers<[1], [0], [0], [1], [0, 0, 1, 1], [], []>} : vector<256x4xbf16>, vector<4x128xbf16>, vector<256x128xf32> -> vector<256x128xf32>
    %c7_135 = arith.constant 7 : index
    %c0_136 = arith.constant 0 : index
    %c0_137 = arith.constant 0 : index
    %107 = vector.load %arg3[%c7_135, %c0_136, %c0_137] : memref<9x4x128xbf16, #tpu.memory_space<vmem>>, vector<1x4x128xbf16>
    %108 = vector.shape_cast %107 : vector<1x4x128xbf16> to vector<4x128xbf16>
    %cst_138 = arith.constant dense<0.000000e+00> : vector<256x128xf32>
    %109 = tpu.matmul %103, %108, %cst_138 {dimension_numbers = #tpu.dot_dimension_numbers<[1], [0], [0], [1], [0, 0, 1, 1], [], []>} : vector<256x4xbf16>, vector<4x128xbf16>, vector<256x128xf32> -> vector<256x128xf32>
    %c0_139 = arith.constant 0 : index
    %c0_140 = arith.constant 0 : index
    %110 = vector.load %arg7[%c0_139, %c0_140] : memref<256x128xf32, #tpu.memory_space<vmem>>, vector<256x128xf32>
    %111 = arith.addf %110, %106 : vector<256x128xf32>
    %c0_141 = arith.constant 0 : index
    %c0_142 = arith.constant 0 : index
    %112 = vector.load %arg7[%c0_141, %c0_142] : memref<256x128xf32, #tpu.memory_space<vmem>>, vector<256x128xf32>
    tpu.vector_store %arg7[%c0_141, %c0_142], %111 {strides = array<i32>} : memref<256x128xf32, #tpu.memory_space<vmem>>, vector<256x128xf32>,
    %c0_143 = arith.constant 0 : index
    %c0_144 = arith.constant 0 : index
    %113 = vector.load %arg8[%c0_143, %c0_144] : memref<256x128xf32, #tpu.memory_space<vmem>>, vector<256x128xf32>
    %114 = arith.addf %113, %109 : vector<256x128xf32>
    %c0_145 = arith.constant 0 : index
    %c0_146 = arith.constant 0 : index
    %115 = vector.load %arg8[%c0_145, %c0_146] : memref<256x128xf32, #tpu.memory_space<vmem>>, vector<256x128xf32>
    tpu.vector_store %arg8[%c0_145, %c0_146], %114 {strides = array<i32>} : memref<256x128xf32, #tpu.memory_space<vmem>>, vector<256x128xf32>,
    %c0_147 = arith.constant 0 : index
    %c2_148 = arith.constant 2 : index
    %c2_149 = arith.constant 2 : index
    %c0_150 = arith.constant 0 : index
    %116 = vector.load %arg1[%c0_147, %c2_148, %c2_149, %c0_150] : memref<1x18x18x4xbf16, #tpu.memory_space<vmem>>, vector<1x16x16x4xbf16>
    %117 = vector.shape_cast %116 : vector<1x16x16x4xbf16> to vector<16x16x4xbf16>
    %118 = vector.shape_cast %117 : vector<16x16x4xbf16> to vector<256x4xbf16>
    %c8 = arith.constant 8 : index
    %c0_151 = arith.constant 0 : index
    %c0_152 = arith.constant 0 : index
    %119 = vector.load %arg2[%c8, %c0_151, %c0_152] : memref<9x4x128xbf16, #tpu.memory_space<vmem>>, vector<1x4x128xbf16>
    %120 = vector.shape_cast %119 : vector<1x4x128xbf16> to vector<4x128xbf16>
    %cst_153 = arith.constant dense<0.000000e+00> : vector<256x128xf32>
    %121 = tpu.matmul %118, %120, %cst_153 {dimension_numbers = #tpu.dot_dimension_numbers<[1], [0], [0], [1], [0, 0, 1, 1], [], []>} : vector<256x4xbf16>, vector<4x128xbf16>, vector<256x128xf32> -> vector<256x128xf32>
    %c8_154 = arith.constant 8 : index
    %c0_155 = arith.constant 0 : index
    %c0_156 = arith.constant 0 : index
    %122 = vector.load %arg3[%c8_154, %c0_155, %c0_156] : memref<9x4x128xbf16, #tpu.memory_space<vmem>>, vector<1x4x128xbf16>
    %123 = vector.shape_cast %122 : vector<1x4x128xbf16> to vector<4x128xbf16>
    %cst_157 = arith.constant dense<0.000000e+00> : vector<256x128xf32>
    %124 = tpu.matmul %118, %123, %cst_157 {dimension_numbers = #tpu.dot_dimension_numbers<[1], [0], [0], [1], [0, 0, 1, 1], [], []>} : vector<256x4xbf16>, vector<4x128xbf16>, vector<256x128xf32> -> vector<256x128xf32>
    %c0_158 = arith.constant 0 : index
    %c0_159 = arith.constant 0 : index
    %125 = vector.load %arg7[%c0_158, %c0_159] : memref<256x128xf32, #tpu.memory_space<vmem>>, vector<256x128xf32>
    %126 = arith.addf %125, %121 : vector<256x128xf32>
    %c0_160 = arith.constant 0 : index
    %c0_161 = arith.constant 0 : index
    %127 = vector.load %arg7[%c0_160, %c0_161] : memref<256x128xf32, #tpu.memory_space<vmem>>, vector<256x128xf32>
    tpu.vector_store %arg7[%c0_160, %c0_161], %126 {strides = array<i32>} : memref<256x128xf32, #tpu.memory_space<vmem>>, vector<256x128xf32>,
    %c0_162 = arith.constant 0 : index
    %c0_163 = arith.constant 0 : index
    %128 = vector.load %arg8[%c0_162, %c0_163] : memref<256x128xf32, #tpu.memory_space<vmem>>, vector<256x128xf32>
    %129 = arith.addf %128, %124 : vector<256x128xf32>
    %c0_164 = arith.constant 0 : index
    %c0_165 = arith.constant 0 : index
    %130 = vector.load %arg8[%c0_164, %c0_165] : memref<256x128xf32, #tpu.memory_space<vmem>>, vector<256x128xf32>
    tpu.vector_store %arg8[%c0_164, %c0_165], %129 {strides = array<i32>} : memref<256x128xf32, #tpu.memory_space<vmem>>, vector<256x128xf32>,
    %c0_166 = arith.constant 0 : index
    %c0_167 = arith.constant 0 : index
    %131 = vector.load %arg7[%c0_166, %c0_167] : memref<256x128xf32, #tpu.memory_space<vmem>>, vector<256x128xf32>
    %c0_168 = arith.constant 0 : index
    %c0_169 = arith.constant 0 : index
    %132 = vector.load %arg4[%c0_168, %c0_169] : memref<1x128xf32, #tpu.memory_space<vmem>>, vector<1x128xf32>
    %133 = vector.broadcast %132 : vector<1x128xf32> to vector<256x128xf32>
    %134 = arith.addf %131, %133 : vector<256x128xf32>
    %c0_170 = arith.constant 0 : index
    %c0_171 = arith.constant 0 : index
    %135 = vector.load %arg8[%c0_170, %c0_171] : memref<256x128xf32, #tpu.memory_space<vmem>>, vector<256x128xf32>
    %c0_172 = arith.constant 0 : index
    %c0_173 = arith.constant 0 : index
    %136 = vector.load %arg5[%c0_172, %c0_173] : memref<1x128xf32, #tpu.memory_space<vmem>>, vector<1x128xf32>
    %137 = vector.broadcast %136 : vector<1x128xf32> to vector<256x128xf32>
    %138 = arith.addf %135, %137 : vector<256x128xf32>
    %139 = arith.maximumf %134, %138 : vector<256x128xf32>
    %140 = arith.truncf %139 : vector<256x128xf32> to vector<256x128xbf16>
    %c0_174 = arith.constant 0 : index
    %c0_175 = arith.constant 0 : index
    %c0_176 = arith.constant 0 : index
    %141 = vector.load %arg6[%c0_174, %c0_175, %c0_176] : memref<1x256x128xbf16, #tpu.memory_space<vmem>>, vector<1x256x128xbf16>
    %142 = vector.shape_cast %141 : vector<1x256x128xbf16> to vector<256x128xbf16>
    %143 = vector.shape_cast %140 : vector<256x128xbf16> to vector<1x256x128xbf16>
    tpu.vector_store %arg6[%c0_174, %c0_175, %c0_176], %143 {strides = array<i32>} : memref<1x256x128xbf16, #tpu.memory_space<vmem>>, vector<1x256x128xbf16>,
    return
  }
  func.func @transform_0(%arg0: i32) -> (i32, i32, i32, i32) {
    %c0_i32 = arith.constant 0 : i32
    %c0_i32_0 = arith.constant 0 : i32
    %c0_i32_1 = arith.constant 0 : i32
    %c0_i32_2 = arith.constant 0 : i32
    return %arg0, %c0_i32, %c0_i32_0, %c0_i32_1 : i32, i32, i32, i32
  }
  func.func @transform_1(%arg0: i32) -> (i32, i32, i32) {
    %c0_i32 = arith.constant 0 : i32
    %c0_i32_0 = arith.constant 0 : i32
    %c0_i32_1 = arith.constant 0 : i32
    %c0_i32_2 = arith.constant 0 : i32
    return %c0_i32, %c0_i32_0, %c0_i32_1 : i32, i32, i32
  }
  func.func @transform_2(%arg0: i32) -> (i32, i32, i32) {
    %c0_i32 = arith.constant 0 : i32
    %c0_i32_0 = arith.constant 0 : i32
    %c0_i32_1 = arith.constant 0 : i32
    %c0_i32_2 = arith.constant 0 : i32
    return %c0_i32, %c0_i32_0, %c0_i32_1 : i32, i32, i32
  }
  func.func @transform_3(%arg0: i32) -> (i32, i32) {
    %c0_i32 = arith.constant 0 : i32
    %c0_i32_0 = arith.constant 0 : i32
    %c0_i32_1 = arith.constant 0 : i32
    return %c0_i32, %c0_i32_0 : i32, i32
  }
  func.func @transform_4(%arg0: i32) -> (i32, i32) {
    %c0_i32 = arith.constant 0 : i32
    %c0_i32_0 = arith.constant 0 : i32
    %c0_i32_1 = arith.constant 0 : i32
    return %c0_i32, %c0_i32_0 : i32, i32
  }
  func.func @transform_5(%arg0: i32) -> (i32, i32, i32) {
    %c0_i32 = arith.constant 0 : i32
    %c0_i32_0 = arith.constant 0 : i32
    %c0_i32_1 = arith.constant 0 : i32
    return %arg0, %c0_i32, %c0_i32_0 : i32, i32, i32
  }
}

</mosaic_0001>

<llo_original>
// kernel: tpu_custom_call.1
$region0: #{tpu_custom_call.1}
  #allocation0 [shape = 'u32[]', space=smem, size = 0x4, offset = 0x4, fixed_abs, tag = 'smem constant byte address 0x4 - core index']
  #allocation1 [shape = 'u32[72,128]{1,0:T(1,128)}', space=vmem, size = 0x9000, scoped, tag = 'internal scratch']
  #allocation2 [shape = 'f32[256,128]{1,0:T(8,128)}', space=vmem, size = 0x20000, scoped, tag = 'scratch operand']
  #allocation3 [shape = 'f32[256,128]{1,0:T(8,128)}', space=vmem, size = 0x20000, scoped, tag = 'scratch operand']
  %s0 = inlined_call_operand.vmem [shape: bf16[2,18,18,4], index: 0, kind: input, shape index: {}]
  %s1 = inlined_call_operand.vmem [shape: bf16[9,4,128], index: 1, kind: input, shape index: {}]
  %s2 = inlined_call_operand.vmem [shape: bf16[9,4,128], index: 2, kind: input, shape index: {}]
  %s3 = inlined_call_operand.vmem [shape: f32[1,128], index: 3, kind: input, shape index: {}]
  %s4 = inlined_call_operand.vmem [shape: f32[1,128], index: 4, kind: input, shape index: {}]
  %s5 = inlined_call_operand.hbm [shape: bf16[2,256,128], index: 5, kind: output, shape index: {}]
  %s6 = sld [smem:[#allocation0]]
  $region53: #{tpu_custom_call.1} parent=0
    _
  %s8 = ssub.s32 1, %s6
  %s9 = scalar_select 0, %s8, %s6
  $region1: #{tpu_custom_call.1} parent=0
    #allocation4 [shape = 'u8[131072]{0}', space=vmem, size = 0x20000, scoped, tag = 'output window, operand 0']
    #allocation5 [shape = 's32[2]{0}', space=sflag, size = 0x8, scoped, tag = 'scoped memory for tpu_custom_call.1']
    %10 = vsyncpa [#allocation5], 0
    %s11 = scalar_lea.sflag [#allocation5], 1
    %12 = vsyncpa %s11, 0
    loop: start=0, step=1, limit=4
    $region2: #{tpu_custom_call.1} parent=1 // loop_pre_header
      _
    $region3: #{tpu_custom_call.1} parent=1 // loop_header
      %s14 = sphi 0, %s18
      %p15 = scmp.ge.s32.totalorder %s14, 4
      %s24 = sphi 0, %s26
      %s27 = sphi 0, %s24
      %s28 = sphi 0, %s27
      %s44 = sphi 0, %s28
      %s48 = sphi 0, %s48
      %s50 = sphi 0, %s48
      %s51 = sphi 0, %s50
      %s65 = sphi 0, %s51
      %s69 = sphi 0, %s69
      %s71 = sphi 0, %s69
      %s72 = sphi 0, %s71
      %s86 = sphi 0, %s72
      %s90 = sphi 0, %s90
      %s92 = sphi 0, %s90
      %s93 = sphi 0, %s92
      %s107 = sphi 0, %s93
      %s111 = sphi 0, %s111
      %s113 = sphi 0, %s111
      %s114 = sphi 0, %s113
      %s128 = sphi 0, %s114
      %s134 = sphi 0, %s136
      %s137 = sphi 0, %s134
      %s138 = sphi 0, %s137
      %s154 = sphi 0, %s138
    $region4: #{tpu_custom_call.1} parent=1 // loop_header_branch
      %17 = sbr.rel (%p15) target = $region8
    $region5: #{tpu_custom_call.1} parent=1 // loop_body
      %s19 = ssub.s32 %s14, 1
      %s20 = ssub.s32 %s14, 2
      %s21 = sadd.s32 %s14, 1
      %s22 = ssub.s32 %s14, %s21
      %p23 = scmp.eq.s32.totalorder %s22, 0
      %s25 = sadd.s32 %s24, 1
      %s26 = scalar_select %p23, %s24, %s25
      %p29 = pneg %p23
      %p30 = scmp.eq.s32.totalorder %s14, 1
      %p31 = por %p29, %p30
      %p32 = scmp.ne.s32.totalorder %s24, %s27
      %p33 = scmp.eq.s32.totalorder %s14, 0
      %p34 = por %p32, %p33
      %p35 = scmp.ne.s32.totalorder %s24, %s27
      %p36 = scmp.eq.s32.totalorder %s19, 1
      %p37 = por %p35, %p36
      %p38 = scmp.ne.s32.totalorder %s27, %s28
      %p39 = scmp.eq.s32.totalorder %s19, 0
      %p40 = por %p38, %p39
      %p41 = scmp.ne.s32.totalorder %s27, %s28
      %p42 = scmp.eq.s32.totalorder %s20, 1
      %p43 = por %p41, %p42
      %p45 = scmp.ne.s32.totalorder %s28, %s44
      %p46 = scmp.eq.s32.totalorder %s20, 0
      %p47 = por %p45, %p46
      %s49 = sadd.s32 %s48, 1
      %p52 = scmp.eq.s32.totalorder %s14, 1
      %p53 = scmp.ne.s32.totalorder %s48, %s50
      %p54 = scmp.eq.s32.totalorder %s14, 0
      %p55 = por %p53, %p54
      %p56 = scmp.ne.s32.totalorder %s48, %s50
      %p57 = scmp.eq.s32.totalorder %s19, 1
      %p58 = por %p56, %p57
      %p59 = scmp.ne.s32.totalorder %s50, %s51
      %p60 = scmp.eq.s32.totalorder %s19, 0
      %p61 = por %p59, %p60
      %p62 = scmp.ne.s32.totalorder %s50, %s51
      %p63 = scmp.eq.s32.totalorder %s20, 1
      %p64 = por %p62, %p63
      %p66 = scmp.ne.s32.totalorder %s51, %s65
      %p67 = scmp.eq.s32.totalorder %s20, 0
      %p68 = por %p66, %p67
      %s70 = sadd.s32 %s69, 1
      %p73 = scmp.eq.s32.totalorder %s14, 1
      %p74 = scmp.ne.s32.totalorder %s69, %s71
      %p75 = scmp.eq.s32.totalorder %s14, 0
      %p76 = por %p74, %p75
      %p77 = scmp.ne.s32.totalorder %s69, %s71
      %p78 = scmp.eq.s32.totalorder %s19, 1
      %p79 = por %p77, %p78
      %p80 = scmp.ne.s32.totalorder %s71, %s72
      %p81 = scmp.eq.s32.totalorder %s19, 0
      %p82 = por %p80, %p81
      %p83 = scmp.ne.s32.totalorder %s71, %s72
      %p84 = scmp.eq.s32.totalorder %s20, 1
      %p85 = por %p83, %p84
      %p87 = scmp.ne.s32.totalorder %s72, %s86
      %p88 = scmp.eq.s32.totalorder %s20, 0
      %p89 = por %p87, %p88
      %s91 = sadd.s32 %s90, 1
      %p94 = scmp.eq.s32.totalorder %s14, 1
      %p95 = scmp.ne.s32.totalorder %s90, %s92
      %p96 = scmp.eq.s32.totalorder %s14, 0
      %p97 = por %p95, %p96
      %p98 = scmp.ne.s32.totalorder %s90, %s92
      %p99 = scmp.eq.s32.totalorder %s19, 1
      %p100 = por %p98, %p99
      %p101 = scmp.ne.s32.totalorder %s92, %s93
      %p102 = scmp.eq.s32.totalorder %s19, 0
      %p103 = por %p101, %p102
      %p104 = scmp.ne.s32.totalorder %s92, %s93
      %p105 = scmp.eq.s32.totalorder %s20, 1
      %p106 = por %p104, %p105
      %p108 = scmp.ne.s32.totalorder %s93, %s107
      %p109 = scmp.eq.s32.totalorder %s20, 0
      %p110 = por %p108, %p109
      %s112 = sadd.s32 %s111, 1
      %p115 = scmp.eq.s32.totalorder %s14, 1
      %p116 = scmp.ne.s32.totalorder %s111, %s113
      %p117 = scmp.eq.s32.totalorder %s14, 0
      %p118 = por %p116, %p117
      %p119 = scmp.ne.s32.totalorder %s111, %s113
      %p120 = scmp.eq.s32.totalorder %s19, 1
      %p121 = por %p119, %p120
      %p122 = scmp.ne.s32.totalorder %s113, %s114
      %p123 = scmp.eq.s32.totalorder %s19, 0
      %p124 = por %p122, %p123
      %p125 = scmp.ne.s32.totalorder %s113, %s114
      %p126 = scmp.eq.s32.totalorder %s20, 1
      %p127 = por %p125, %p126
      %p129 = scmp.ne.s32.totalorder %s114, %s128
      %p130 = scmp.eq.s32.totalorder %s20, 0
      %p131 = por %p129, %p130
      %s132 = ssub.s32 %s14, %s21
      %p133 = scmp.eq.s32.totalorder %s132, 0
      %s135 = sadd.s32 %s134, 1
      %s136 = scalar_select %p133, %s134, %s135
      %p139 = pneg %p133
      %p140 = scmp.eq.s32.totalorder %s14, 1
      %p141 = por %p139, %p140
      %p142 = scmp.ne.s32.totalorder %s134, %s137
      %p143 = scmp.eq.s32.totalorder %s14, 0
      %p144 = por %p142, %p143
      %p145 = scmp.ne.s32.totalorder %s134, %s137
      %p146 = scmp.eq.s32.totalorder %s19, 1
      %p147 = por %p145, %p146
      %p148 = scmp.ne.s32.totalorder %s137, %s138
      %p149 = scmp.eq.s32.totalorder %s19, 0
      %p150 = por %p148, %p149
      %p151 = scmp.ne.s32.totalorder %s137, %s138
      %p152 = scmp.eq.s32.totalorder %s20, 1
      %p153 = por %p151, %p152
      %p155 = scmp.ne.s32.totalorder %s138, %s154
      %p156 = scmp.eq.s32.totalorder %s20, 0
      %p157 = por %p155, %p156
      %p158 = scmp.le.s32.totalorder 1, %s14
      %p159 = scmp.lt.s32.totalorder %s14, 3
      %p160 = pnand %p158, %p159
      %p161 = pneg %p160
      // Predicated region
      $region9: #{tpu_custom_call.1} parent=5 // pred_check
        _
      $region10: #{tpu_custom_call.1} parent=5 // pred_check_branch
        %163 = sbr.rel (%p160) target = $region12
      $region11: #{tpu_custom_call.1} parent=5 // pred_region
        %s164 = ssub.s32 %s14, 1
        // Predicated region
        $region13: #{tpu_custom_call.1} parent=11 // pred_check
          %p165 = pneg %p61
        $region14: #{tpu_custom_call.1} parent=11 // pred_check_branch
          %167 = sbr.rel (%p165) target = $region16
        $region15: #{tpu_custom_call.1} parent=11 // pred_region
          _
        $region16: #{tpu_custom_call.1} parent=11 // pred_fallthru
          _
        // Predicated region
        $region17: #{tpu_custom_call.1} parent=11 // pred_check
          %p168 = pneg %p82
        $region18: #{tpu_custom_call.1} parent=11 // pred_check_branch
          %170 = sbr.rel (%p168) target = $region20
        $region19: #{tpu_custom_call.1} parent=11 // pred_region
          _
        $region20: #{tpu_custom_call.1} parent=11 // pred_fallthru
          _
        // Predicated region
        $region21: #{tpu_custom_call.1} parent=11 // pred_check
          %p171 = pneg %p103
        $region22: #{tpu_custom_call.1} parent=11 // pred_check_branch
          %173 = sbr.rel (%p171) target = $region24
        $region23: #{tpu_custom_call.1} parent=11 // pred_region
          _
        $region24: #{tpu_custom_call.1} parent=11 // pred_fallthru
          _
        // Predicated region
        $region25: #{tpu_custom_call.1} parent=11 // pred_check
          %p174 = pneg %p124
        $region26: #{tpu_custom_call.1} parent=11 // pred_check_branch
          %176 = sbr.rel (%p174) target = $region28
        $region27: #{tpu_custom_call.1} parent=11 // pred_region
          _
        $region28: #{tpu_custom_call.1} parent=11 // pred_fallthru
          _
      $region12: #{tpu_custom_call.1} parent=5 // pred_fallthru
        _
      %p177 = scmp.lt.s32.totalorder %s14, 2
      // Predicated region
      $region29: #{tpu_custom_call.1} parent=5 // pred_check
        %p178 = pneg %p177
      $region30: #{tpu_custom_call.1} parent=5 // pred_check_branch
        %180 = sbr.rel (%p178) target = $region32
      $region31: #{tpu_custom_call.1} parent=5 // pred_region
        // Predicated region
        $region33: #{tpu_custom_call.1} parent=31 // pred_check
          %p181 = pneg %p34
        $region34: #{tpu_custom_call.1} parent=31 // pred_check_branch
          %183 = sbr.rel (%p181) target = $region36
        $region35: #{tpu_custom_call.1} parent=31 // pred_region
          %p184 = scmp.lt.s32.totalorder %s14, 1
          %s185 = scalar_select %p184, %s14, 1
          %s186 = smul.addr %s185, 54
          %s187 = smul.addr %s186, 4
          %s188 = scalar_lea.vmem %s0, %s187
        $region36: #{tpu_custom_call.1} parent=31 // pred_fallthru
          _
      $region32: #{tpu_custom_call.1} parent=5 // pred_fallthru
        _
      %p189 = scmp.le.s32.totalorder 1, %s14
      %p190 = scmp.lt.s32.totalorder %s14, 3
      %p191 = pnand %p189, %p190
      %p192 = pneg %p191
      // Predicated region
      $region37: #{tpu_custom_call.1} parent=5 // pred_check
        _
      $region38: #{tpu_custom_call.1} parent=5 // pred_check_branch
        %194 = sbr.rel (%p191) target = $region40
      $region39: #{tpu_custom_call.1} parent=5 // pred_region
        %s195 = ssub.s32 %s14, 1
        %p196 = scmp.lt.s32.totalorder %s19, 1
        %s197 = scalar_select %p196, %s19, 1
        %s198 = smul.addr %s197, 54
        %s199 = smul.addr %s198, 4
        %s200 = scalar_lea.vmem %s0, %s199
        %p201 = pneg %p40
        %p202 = pneg %p37
        %p203 = pneg %p61
        %p204 = pneg %p58
        %p205 = pneg %p82
        %p206 = pneg %p79
        %p207 = pneg %p103
        %p208 = pneg %p100
        %p209 = pneg %p124
        %p210 = pneg %p121
        %p211 = pneg %p150
        %p212 = pneg %p147
        %s213 = sand.u32 %s137, 1
        %s214 = scalar_lea.sflag [#allocation5], %s213
        %s215 = sand.u32 %s137, 1
        %s216 = smul.addr %s215, 128
        %s217 = scalar_lea.vmem [#allocation4], %s216
        %p218 = scmp.lt.s32.totalorder %s19, 1
        %s219 = scalar_select %p218, %s19, 1
        %s220 = smul.addr %s219, 54
        %s221 = smul.addr %s220, 4
        %s222 = scalar_lea.vmem %s0, %s221
        %v224 = vld [vmem:[%s222] sm:$0xf]
        %v225 = vld [vmem:[%s222 + $0x4] sm:$0xf]
        %v226 = vld [vmem:[%s222 + $0xc] sm:$0xf]
        %v227 = vld [vmem:[%s222 + $0x10] sm:$0xf]
        %v228 = vld [vmem:[%s222 + $0x18] sm:$0xf]
        %v229 = vld [vmem:[%s222 + $0x1c] sm:$0xf]
        %v230 = vld [vmem:[%s222 + $0x24] sm:$0xf]
        %v231 = vld [vmem:[%s222 + $0x28] sm:$0xf]
        %v232 = vld [vmem:[%s222 + $0x30] sm:$0xf]
        %v233 = vld [vmem:[%s222 + $0x34] sm:$0xf]
        %v234 = vld [vmem:[%s222 + $0x3c] sm:$0xf]
        %v235 = vld [vmem:[%s222 + $0x40] sm:$0xf]
        %v236 = vld [vmem:[%s222 + $0x48] sm:$0xf]
        %v237 = vld [vmem:[%s222 + $0x4c] sm:$0xf]
        %v238 = vld [vmem:[%s222 + $0x54] sm:$0xf]
        %v239 = vld [vmem:[%s222 + $0x58] sm:$0xf]
        %v240 = vld [vmem:[%s222 + $0x60] sm:$0xf]
        %v241 = vld [vmem:[%s222 + $0x64] sm:$0xf]
        %v242 = vld [vmem:[%s222 + $0x6c] sm:$0xf]
        %v243 = vld [vmem:[%s222 + $0x70] sm:$0xf]
        %v244 = vld [vmem:[%s222 + $0x78] sm:$0xf]
        %v245 = vld [vmem:[%s222 + $0x7c] sm:$0xf]
        %v246 = vld [vmem:[%s222 + $0x84] sm:$0xf]
        %v247 = vld [vmem:[%s222 + $0x88] sm:$0xf]
        %v248 = vld [vmem:[%s222 + $0x90] sm:$0xf]
        %v249 = vld [vmem:[%s222 + $0x94] sm:$0xf]
        %v250 = vld [vmem:[%s222 + $0x9c] sm:$0xf]
        %v251 = vld [vmem:[%s222 + $0xa0] sm:$0xf]
        %v252 = vld [vmem:[%s222 + $0xa8] sm:$0xf]
        %v253 = vld [vmem:[%s222 + $0xac] sm:$0xf]
        %v254 = vld [vmem:[%s222 + $0xb4] sm:$0xf]
        %v255 = vld [vmem:[%s222 + $0xb8] sm:$0xf]
        %v256 = vld [vmem:[%s1] sm:$0x3]
        %v289 = vunpack.c.l.b16 %v224
        %v290 = vunpack.c.l.b16 %v225
        %v291 = vunpack.c.l.b16 %v226
        %v292 = vunpack.c.l.b16 %v227
        %v293 = vunpack.c.l.b16 %v228
        %v294 = vunpack.c.l.b16 %v229
        %v295 = vunpack.c.l.b16 %v230
        %v296 = vunpack.c.l.b16 %v231
        %v297 = vunpack.c.l.b16 %v232
        %v298 = vunpack.c.l.b16 %v233
        %v299 = vunpack.c.l.b16 %v234
        %v300 = vunpack.c.l.b16 %v235
        %v301 = vunpack.c.l.b16 %v236
        %v302 = vunpack.c.l.b16 %v237
        %v303 = vunpack.c.l.b16 %v238
        %v304 = vunpack.c.l.b16 %v239
        %v305 = vunpack.c.l.b16 %v240
        %v306 = vunpack.c.l.b16 %v241
        %v307 = vunpack.c.l.b16 %v242
        %v308 = vunpack.c.l.b16 %v243
        %v309 = vunpack.c.l.b16 %v244
        %v310 = vunpack.c.l.b16 %v245
        %v311 = vunpack.c.l.b16 %v246
        %v312 = vunpack.c.l.b16 %v247
        %v313 = vunpack.c.l.b16 %v248
        %v314 = vunpack.c.l.b16 %v249
        %v315 = vunpack.c.l.b16 %v250
        %v316 = vunpack.c.l.b16 %v251
        %v317 = vunpack.c.l.b16 %v252
        %v318 = vunpack.c.l.b16 %v253
        %v319 = vunpack.c.l.b16 %v254
        %v320 = vunpack.c.l.b16 %v255
        %v321 = vpack.c.b16 %v290, %v289
        %v322 = vpack.c.b16 %v292, %v291
        %v323 = vpack.c.b16 %v294, %v293
        %v324 = vpack.c.b16 %v296, %v295
        %v325 = vpack.c.b16 %v298, %v297
        %v326 = vpack.c.b16 %v300, %v299
        %v327 = vpack.c.b16 %v302, %v301
        %v328 = vpack.c.b16 %v304, %v303
        %v329 = vpack.c.b16 %v306, %v305
        %v330 = vpack.c.b16 %v308, %v307
        %v331 = vpack.c.b16 %v310, %v309
        %v332 = vpack.c.b16 %v312, %v311
        %v333 = vpack.c.b16 %v314, %v313
        %v334 = vpack.c.b16 %v316, %v315
        %v335 = vpack.c.b16 %v318, %v317
        %v336 = vpack.c.b16 %v320, %v319
        %vm337 = vcmask 31744
        %v339 = vsel %vm337, %v321, 0
        %v342 = vsel %vm337, %v322, 0
        %v345 = vsel %vm337, %v323, 0
        %v348 = vsel %vm337, %v324, 0
        %v351 = vsel %vm337, %v325, 0
        %v354 = vsel %vm337, %v326, 0
        %v357 = vsel %vm337, %v327, 0
        %v360 = vsel %vm337, %v328, 0
        %v363 = vsel %vm337, %v329, 0
        %v366 = vsel %vm337, %v330, 0
        %v369 = vsel %vm337, %v331, 0
        %v372 = vsel %vm337, %v332, 0
        %v375 = vsel %vm337, %v333, 0
        %v378 = vsel %vm337, %v334, 0
        %v381 = vsel %vm337, %v335, 0
        %v384 = vsel %vm337, %v336, 0
        %vm386 = vcmask 1041408
        %v388 = vsel %vm386, %v256, 0
        %390 = vmatpush.bf16.msra.mxu0 0
        %391 = vmatpush.bf16.msra.mxu0 0
        %392 = vmatpush.bf16.msra.mxu0 0
        %393 = vmatpush.bf16.msra.mxu0 0
        %394 = vmatpush.bf16.msra.mxu0 0
        %395 = vmatpush.bf16.msra.mxu0 0
        %396 = vmatpush.bf16.msra.mxu0 0
        %397 = vmatpush.bf16.msra.mxu0 %v388
        %398 = vmatmul.bf16.gmra.mxu0 %v339
        %v399 = vpop.f32.mrf.mxu0
        %v400 = vadd.f32 0.0, %v399
        %v401 = vpop.f32.mrf.mxu0
        %v402 = vadd.f32 0.0, %v401
        %403 = vmatmul.bf16.gmra.mxu0 %v342
        %v404 = vpop.f32.mrf.mxu0
        %v405 = vadd.f32 0.0, %v404
        %v406 = vpop.f32.mrf.mxu0
        %v407 = vadd.f32 0.0, %v406
        %408 = vmatmul.bf16.gmra.mxu0 %v345
        %v409 = vpop.f32.mrf.mxu0
        %v410 = vadd.f32 0.0, %v409
        %v411 = vpop.f32.mrf.mxu0
        %v412 = vadd.f32 0.0, %v411
        %413 = vmatmul.bf16.gmra.mxu0 %v348
        %v414 = vpop.f32.mrf.mxu0
        %v415 = vadd.f32 0.0, %v414
        %v416 = vpop.f32.mrf.mxu0
        %v417 = vadd.f32 0.0, %v416
        %418 = vmatmul.bf16.gmra.mxu0 %v351
        %v419 = vpop.f32.mrf.mxu0
        %v420 = vadd.f32 0.0, %v419
        %v421 = vpop.f32.mrf.mxu0
        %v422 = vadd.f32 0.0, %v421
        %423 = vmatmul.bf16.gmra.mxu0 %v354
        %v424 = vpop.f32.mrf.mxu0
        %v425 = vadd.f32 0.0, %v424
        %v426 = vpop.f32.mrf.mxu0
        %v427 = vadd.f32 0.0, %v426
        %428 = vmatmul.bf16.gmra.mxu0 %v357
        %v429 = vpop.f32.mrf.mxu0
        %v430 = vadd.f32 0.0, %v429
        %v431 = vpop.f32.mrf.mxu0
        %v432 = vadd.f32 0.0, %v431
        %433 = vmatmul.bf16.gmra.mxu0 %v360
        %v434 = vpop.f32.mrf.mxu0
        %v435 = vadd.f32 0.0, %v434
        %v436 = vpop.f32.mrf.mxu0
        %v437 = vadd.f32 0.0, %v436
        %438 = vmatmul.bf16.gmra.mxu0 %v363
        %v439 = vpop.f32.mrf.mxu0
        %v440 = vadd.f32 0.0, %v439
        %v441 = vpop.f32.mrf.mxu0
        %v442 = vadd.f32 0.0, %v441
        %443 = vmatmul.bf16.gmra.mxu0 %v366
        %v444 = vpop.f32.mrf.mxu0
        %v445 = vadd.f32 0.0, %v444
        %v446 = vpop.f32.mrf.mxu0
        %v447 = vadd.f32 0.0, %v446
        %448 = vmatmul.bf16.gmra.mxu0 %v369
        %v449 = vpop.f32.mrf.mxu0
        %v450 = vadd.f32 0.0, %v449
        %v451 = vpop.f32.mrf.mxu0
        %v452 = vadd.f32 0.0, %v451
        %453 = vmatmul.bf16.gmra.mxu0 %v372
        %v454 = vpop.f32.mrf.mxu0
        %v455 = vadd.f32 0.0, %v454
        %v456 = vpop.f32.mrf.mxu0
        %v457 = vadd.f32 0.0, %v456
        %458 = vmatmul.bf16.gmra.mxu0 %v375
        %v459 = vpop.f32.mrf.mxu0
        %v460 = vadd.f32 0.0, %v459
        %v461 = vpop.f32.mrf.mxu0
        %v462 = vadd.f32 0.0, %v461
        %463 = vmatmul.bf16.gmra.mxu0 %v378
        %v464 = vpop.f32.mrf.mxu0
        %v465 = vadd.f32 0.0, %v464
        %v466 = vpop.f32.mrf.mxu0
        %v467 = vadd.f32 0.0, %v466
        %468 = vmatmul.bf16.gmra.mxu0 %v381
        %v469 = vpop.f32.mrf.mxu0
        %v470 = vadd.f32 0.0, %v469
        %v471 = vpop.f32.mrf.mxu0
        %v472 = vadd.f32 0.0, %v471
        %473 = vmatmul.bf16.gmra.mxu0 %v384
        %v474 = vpop.f32.mrf.mxu0
        %v475 = vadd.f32 0.0, %v474
        %v476 = vpop.f32.mrf.mxu0
        %v477 = vadd.f32 0.0, %v476
        %478 = vdwg.mxu0
        %v479 = vld [vmem:[%s2] sm:$0x3]
        %v481 = vsel %vm386, %v479, 0
        %483 = vmatpush.bf16.msra.mxu0 0
        %484 = vmatpush.bf16.msra.mxu0 0
        %485 = vmatpush.bf16.msra.mxu0 0
        %486 = vmatpush.bf16.msra.mxu0 0
        %487 = vmatpush.bf16.msra.mxu0 0
        %488 = vmatpush.bf16.msra.mxu0 0
        %489 = vmatpush.bf16.msra.mxu0 0
        %490 = vmatpush.bf16.msra.mxu0 %v481
        %491 = vmatmul.bf16.gmra.mxu0 %v339
        %v492 = vpop.f32.mrf.mxu0
        %v493 = vadd.f32 0.0, %v492
        %v494 = vpop.f32.mrf.mxu0
        %v495 = vadd.f32 0.0, %v494
        %496 = vmatmul.bf16.gmra.mxu0 %v342
        %v497 = vpop.f32.mrf.mxu0
        %v498 = vadd.f32 0.0, %v497
        %v499 = vpop.f32.mrf.mxu0
        %v500 = vadd.f32 0.0, %v499
        %501 = vmatmul.bf16.gmra.mxu0 %v345
        %v502 = vpop.f32.mrf.mxu0
        %v503 = vadd.f32 0.0, %v502
        %v504 = vpop.f32.mrf.mxu0
        %v505 = vadd.f32 0.0, %v504
        %506 = vmatmul.bf16.gmra.mxu0 %v348
        %v507 = vpop.f32.mrf.mxu0
        %v508 = vadd.f32 0.0, %v507
        %v509 = vpop.f32.mrf.mxu0
        %v510 = vadd.f32 0.0, %v509
        %511 = vmatmul.bf16.gmra.mxu0 %v351
        %v512 = vpop.f32.mrf.mxu0
        %v513 = vadd.f32 0.0, %v512
        %v514 = vpop.f32.mrf.mxu0
        %v515 = vadd.f32 0.0, %v514
        %516 = vmatmul.bf16.gmra.mxu0 %v354
        %v517 = vpop.f32.mrf.mxu0
        %v518 = vadd.f32 0.0, %v517
        %v519 = vpop.f32.mrf.mxu0
        %v520 = vadd.f32 0.0, %v519
        %521 = vmatmul.bf16.gmra.mxu0 %v357
        %v522 = vpop.f32.mrf.mxu0
        %v523 = vadd.f32 0.0, %v522
        %v524 = vpop.f32.mrf.mxu0
        %v525 = vadd.f32 0.0, %v524
        %526 = vmatmul.bf16.gmra.mxu0 %v360
        %v527 = vpop.f32.mrf.mxu0
        %v528 = vadd.f32 0.0, %v527
        %v529 = vpop.f32.mrf.mxu0
        %v530 = vadd.f32 0.0, %v529
        %531 = vmatmul.bf16.gmra.mxu0 %v363
        %v532 = vpop.f32.mrf.mxu0
        %v533 = vadd.f32 0.0, %v532
        %v534 = vpop.f32.mrf.mxu0
        %v535 = vadd.f32 0.0, %v534
        %536 = vmatmul.bf16.gmra.mxu0 %v366
        %v537 = vpop.f32.mrf.mxu0
        %v538 = vadd.f32 0.0, %v537
        %v539 = vpop.f32.mrf.mxu0
        %v540 = vadd.f32 0.0, %v539
        %541 = vmatmul.bf16.gmra.mxu0 %v369
        %v542 = vpop.f32.mrf.mxu0
        %v543 = vadd.f32 0.0, %v542
        %v544 = vpop.f32.mrf.mxu0
        %v545 = vadd.f32 0.0, %v544
        %546 = vmatmul.bf16.gmra.mxu0 %v372
        %v547 = vpop.f32.mrf.mxu0
        %v548 = vadd.f32 0.0, %v547
        %v549 = vpop.f32.mrf.mxu0
        %v550 = vadd.f32 0.0, %v549
        %551 = vmatmul.bf16.gmra.mxu0 %v375
        %v552 = vpop.f32.mrf.mxu0
        %v553 = vadd.f32 0.0, %v552
        %v554 = vpop.f32.mrf.mxu0
        %v555 = vadd.f32 0.0, %v554
        %556 = vmatmul.bf16.gmra.mxu0 %v378
        %v557 = vpop.f32.mrf.mxu0
        %v558 = vadd.f32 0.0, %v557
        %v559 = vpop.f32.mrf.mxu0
        %v560 = vadd.f32 0.0, %v559
        %561 = vmatmul.bf16.gmra.mxu0 %v381
        %v562 = vpop.f32.mrf.mxu0
        %v563 = vadd.f32 0.0, %v562
        %v564 = vpop.f32.mrf.mxu0
        %v565 = vadd.f32 0.0, %v564
        %566 = vmatmul.bf16.gmra.mxu0 %v384
        %v567 = vpop.f32.mrf.mxu0
        %v568 = vadd.f32 0.0, %v567
        %v569 = vpop.f32.mrf.mxu0
        %v570 = vadd.f32 0.0, %v569
        %571 = vdwg.mxu0
        %572 = vst [vmem:[#allocation2] sm:$0xff] %v400
        %573 = vst [vmem:[#allocation2 + $0x8] sm:$0xff] %v402
        %574 = vst [vmem:[#allocation2 + $0x10] sm:$0xff] %v405
        %575 = vst [vmem:[#allocation2 + $0x18] sm:$0xff] %v407
        %576 = vst [vmem:[#allocation2 + $0x20] sm:$0xff] %v410
        %577 = vst [vmem:[#allocation2 + $0x28] sm:$0xff] %v412
        %578 = vst [vmem:[#allocation2 + $0x30] sm:$0xff] %v415
        %579 = vst [vmem:[#allocation2 + $0x38] sm:$0xff] %v417
        %580 = vst [vmem:[#allocation2 + $0x40] sm:$0xff] %v420
        %581 = vst [vmem:[#allocation2 + $0x48] sm:$0xff] %v422
        %582 = vst [vmem:[#allocation2 + $0x50] sm:$0xff] %v425
        %583 = vst [vmem:[#allocation2 + $0x58] sm:$0xff] %v427
        %584 = vst [vmem:[#allocation2 + $0x60] sm:$0xff] %v430
        %585 = vst [vmem:[#allocation2 + $0x68] sm:$0xff] %v432
        %586 = vst [vmem:[#allocation2 + $0x70] sm:$0xff] %v435
        %587 = vst [vmem:[#allocation2 + $0x78] sm:$0xff] %v437
        %588 = vst [vmem:[#allocation2 + $0x80] sm:$0xff] %v440
        %589 = vst [vmem:[#allocation2 + $0x88] sm:$0xff] %v442
        %590 = vst [vmem:[#allocation2 + $0x90] sm:$0xff] %v445
        %591 = vst [vmem:[#allocation2 + $0x98] sm:$0xff] %v447
        %592 = vst [vmem:[#allocation2 + $0xa0] sm:$0xff] %v450
        %593 = vst [vmem:[#allocation2 + $0xa8] sm:$0xff] %v452
        %594 = vst [vmem:[#allocation2 + $0xb0] sm:$0xff] %v455
        %595 = vst [vmem:[#allocation2 + $0xb8] sm:$0xff] %v457
        %596 = vst [vmem:[#allocation2 + $0xc0] sm:$0xff] %v460
        %597 = vst [vmem:[#allocation2 + $0xc8] sm:$0xff] %v462
        %598 = vst [vmem:[#allocation2 + $0xd0] sm:$0xff] %v465
        %599 = vst [vmem:[#allocation2 + $0xd8] sm:$0xff] %v467
        %600 = vst [vmem:[#allocation2 + $0xe0] sm:$0xff] %v470
        %601 = vst [vmem:[#allocation2 + $0xe8] sm:$0xff] %v472
        %602 = vst [vmem:[#allocation2 + $0xf0] sm:$0xff] %v475
        %603 = vst [vmem:[#allocation2 + $0xf8] sm:$0xff] %v477
        %604 = vst [vmem:[#allocation3] sm:$0xff] %v493
        %605 = vst [vmem:[#allocation3 + $0x8] sm:$0xff] %v495
        %606 = vst [vmem:[#allocation3 + $0x10] sm:$0xff] %v498
        %607 = vst [vmem:[#allocation3 + $0x18] sm:$0xff] %v500
        %608 = vst [vmem:[#allocation3 + $0x20] sm:$0xff] %v503
        %609 = vst [vmem:[#allocation3 + $0x28] sm:$0xff] %v505
        %610 = vst [vmem:[#allocation3 + $0x30] sm:$0xff] %v508
        %611 = vst [vmem:[#allocation3 + $0x38] sm:$0xff] %v510
        %612 = vst [vmem:[#allocation3 + $0x40] sm:$0xff] %v513
        %613 = vst [vmem:[#allocation3 + $0x48] sm:$0xff] %v515
        %614 = vst [vmem:[#allocation3 + $0x50] sm:$0xff] %v518
        %615 = vst [vmem:[#allocation3 + $0x58] sm:$0xff] %v520
        %616 = vst [vmem:[#allocation3 + $0x60] sm:$0xff] %v523
        %617 = vst [vmem:[#allocation3 + $0x68] sm:$0xff] %v525
        %618 = vst [vmem:[#allocation3 + $0x70] sm:$0xff] %v528
        %619 = vst [vmem:[#allocation3 + $0x78] sm:$0xff] %v530
        %620 = vst [vmem:[#allocation3 + $0x80] sm:$0xff] %v533
        %621 = vst [vmem:[#allocation3 + $0x88] sm:$0xff] %v535
        %622 = vst [vmem:[#allocation3 + $0x90] sm:$0xff] %v538
        %623 = vst [vmem:[#allocation3 + $0x98] sm:$0xff] %v540
        %624 = vst [vmem:[#allocation3 + $0xa0] sm:$0xff] %v543
        %625 = vst [vmem:[#allocation3 + $0xa8] sm:$0xff] %v545
        %626 = vst [vmem:[#allocation3 + $0xb0] sm:$0xff] %v548
        %627 = vst [vmem:[#allocation3 + $0xb8] sm:$0xff] %v550
        %628 = vst [vmem:[#allocation3 + $0xc0] sm:$0xff] %v553
        %629 = vst [vmem:[#allocation3 + $0xc8] sm:$0xff] %v555
        %630 = vst [vmem:[#allocation3 + $0xd0] sm:$0xff] %v558
        %631 = vst [vmem:[#allocation3 + $0xd8] sm:$0xff] %v560
        %632 = vst [vmem:[#allocation3 + $0xe0] sm:$0xff] %v563
        %633 = vst [vmem:[#allocation3 + $0xe8] sm:$0xff] %v565
        %634 = vst [vmem:[#allocation3 + $0xf0] sm:$0xff] %v568
        %635 = vst [vmem:[#allocation3 + $0xf8] sm:$0xff] %v570
        %v636 = vld [vmem:[%s222] sm:$0xf]
        %v637 = vld [vmem:[%s222 + $0x4] sm:$0xf]
        %v638 = vld [vmem:[%s222 + $0x8] sm:$0x1]
        %v639 = vld [vmem:[%s222 + $0xc] sm:$0xf]
        %v640 = vld [vmem:[%s222 + $0x10] sm:$0xf]
        %v641 = vld [vmem:[%s222 + $0x14] sm:$0x1]
        %v642 = vld [vmem:[%s222 + $0x18] sm:$0xf]
        %v643 = vld [vmem:[%s222 + $0x1c] sm:$0xf]
        %v644 = vld [vmem:[%s222 + $0x20] sm:$0x1]
        %v645 = vld [vmem:[%s222 + $0x24] sm:$0xf]
        %v646 = vld [vmem:[%s222 + $0x28] sm:$0xf]
        %v647 = vld [vmem:[%s222 + $0x2c] sm:$0x1]
        %v648 = vld [vmem:[%s222 + $0x30] sm:$0xf]
        %v649 = vld [vmem:[%s222 + $0x34] sm:$0xf]
        %v650 = vld [vmem:[%s222 + $0x38] sm:$0x1]
        %v651 = vld [vmem:[%s222 + $0x3c] sm:$0xf]
        %v652 = vld [vmem:[%s222 + $0x40] sm:$0xf]
        %v653 = vld [vmem:[%s222 + $0x44] sm:$0x1]
        %v654 = vld [vmem:[%s222 + $0x48] sm:$0xf]
        %v655 = vld [vmem:[%s222 + $0x4c] sm:$0xf]
        %v656 = vld [vmem:[%s222 + $0x50] sm:$0x1]
        %v657 = vld [vmem:[%s222 + $0x54] sm:$0xf]
        %v658 = vld [vmem:[%s222 + $0x58] sm:$0xf]
        %v659 = vld [vmem:[%s222 + $0x5c] sm:$0x1]
        %v660 = vld [vmem:[%s222 + $0x60] sm:$0xf]
        %v661 = vld [vmem:[%s222 + $0x64] sm:$0xf]
        %v662 = vld [vmem:[%s222 + $0x68] sm:$0x1]
        %v663 = vld [vmem:[%s222 + $0x6c] sm:$0xf]
        %v664 = vld [vmem:[%s222 + $0x70] sm:$0xf]
        %v665 = vld [vmem:[%s222 + $0x74] sm:$0x1]
        %v666 = vld [vmem:[%s222 + $0x78] sm:$0xf]
        %v667 = vld [vmem:[%s222 + $0x7c] sm:$0xf]
        %v668 = vld [vmem:[%s222 + $0x80] sm:$0x1]
        %v669 = vld [vmem:[%s222 + $0x84] sm:$0xf]
        %v670 = vld [vmem:[%s222 + $0x88] sm:$0xf]
        %v671 = vld [vmem:[%s222 + $0x8c] sm:$0x1]
        %v672 = vld [vmem:[%s222 + $0x90] sm:$0xf]
        %v673 = vld [vmem:[%s222 + $0x94] sm:$0xf]
        %v674 = vld [vmem:[%s222 + $0x98] sm:$0x1]
        %v675 = vld [vmem:[%s222 + $0x9c] sm:$0xf]
        %v676 = vld [vmem:[%s222 + $0xa0] sm:$0xf]
        %v677 = vld [vmem:[%s222 + $0xa4] sm:$0x1]
        %v678 = vld [vmem:[%s222 + $0xa8] sm:$0xf]
        %v679 = vld [vmem:[%s222 + $0xac] sm:$0xf]
        %v680 = vld [vmem:[%s222 + $0xb0] sm:$0x1]
        %v681 = vld [vmem:[%s222 + $0xb4] sm:$0xf]
        %v682 = vld [vmem:[%s222 + $0xb8] sm:$0xf]
        %v683 = vld [vmem:[%s222 + $0xbc] sm:$0x1]
        %vm684 = vsmask.f32 3328
        %vm685 = vsmask.f32 7440
        %vm686 = vmor %vm684, %vm685
        %v688 = vshrl.u32 %v636, 16
        %v690 = vrot.slane %v688, 4
        %v691 = vshll.u32 %v636, 16
        %v693 = vrot.slane %v691, 5
        %v694 = vor.u32 %v690, %v693
        %v695 = vrot.slane %v694, 4
        %v697 = vshll.u32 %v637, 16
        %v699 = vrot.slane %v697, 5
        %v700 = vsel %vm686, %v695, %v699
        %v701 = vshrl.u32 %v637, 16
        %v703 = vrot.slane %v701, 4
        %v704 = vor.u32 %v703, %v699
        %v705 = vrot.slane %v704, 4
        %v707 = vshll.u32 %v638, 16
        %v709 = vrot.slane %v707, 5
        %v710 = vsel %vm686, %v705, %v709
        %v712 = vshrl.u32 %v639, 16
        %v714 = vrot.slane %v712, 4
        %v715 = vshll.u32 %v639, 16
        %v717 = vrot.slane %v715, 5
        %v718 = vor.u32 %v714, %v717
        %v719 = vrot.slane %v718, 4
        %v721 = vshll.u32 %v640, 16
        %v723 = vrot.slane %v721, 5
        %v724 = vsel %vm686, %v719, %v723
        %v725 = vshrl.u32 %v640, 16
        %v727 = vrot.slane %v725, 4
        %v728 = vor.u32 %v727, %v723
        %v729 = vrot.slane %v728, 4
        %v731 = vshll.u32 %v641, 16
        %v733 = vrot.slane %v731, 5
        %v734 = vsel %vm686, %v729, %v733
        %v736 = vshrl.u32 %v642, 16
        %v738 = vrot.slane %v736, 4
        %v739 = vshll.u32 %v642, 16
        %v741 = vrot.slane %v739, 5
        %v742 = vor.u32 %v738, %v741
        %v743 = vrot.slane %v742, 4
        %v745 = vshll.u32 %v643, 16
        %v747 = vrot.slane %v745, 5
        %v748 = vsel %vm686, %v743, %v747
        %v749 = vshrl.u32 %v643, 16
        %v751 = vrot.slane %v749, 4
        %v752 = vor.u32 %v751, %v747
        %v753 = vrot.slane %v752, 4
        %v755 = vshll.u32 %v644, 16
        %v757 = vrot.slane %v755, 5
        %v758 = vsel %vm686, %v753, %v757
        %v760 = vshrl.u32 %v645, 16
        %v762 = vrot.slane %v760, 4
        %v763 = vshll.u32 %v645, 16
        %v765 = vrot.slane %v763, 5
        %v766 = vor.u32 %v762, %v765
        %v767 = vrot.slane %v766, 4
        %v769 = vshll.u32 %v646, 16
        %v771 = vrot.slane %v769, 5
        %v772 = vsel %vm686, %v767, %v771
        %v773 = vshrl.u32 %v646, 16
        %v775 = vrot.slane %v773, 4
        %v776 = vor.u32 %v775, %v771
        %v777 = vrot.slane %v776, 4
        %v779 = vshll.u32 %v647, 16
        %v781 = vrot.slane %v779, 5
        %v782 = vsel %vm686, %v777, %v781
        %v784 = vshrl.u32 %v648, 16
        %v786 = vrot.slane %v784, 4
        %v787 = vshll.u32 %v648, 16
        %v789 = vrot.slane %v787, 5
        %v790 = vor.u32 %v786, %v789
        %v791 = vrot.slane %v790, 4
        %v793 = vshll.u32 %v649, 16
        %v795 = vrot.slane %v793, 5
        %v796 = vsel %vm686, %v791, %v795
        %v797 = vshrl.u32 %v649, 16
        %v799 = vrot.slane %v797, 4
        %v800 = vor.u32 %v799, %v795
        %v801 = vrot.slane %v800, 4
        %v803 = vshll.u32 %v650, 16
        %v805 = vrot.slane %v803, 5
        %v806 = vsel %vm686, %v801, %v805
        %v808 = vshrl.u32 %v651, 16
        %v810 = vrot.slane %v808, 4
        %v811 = vshll.u32 %v651, 16
        %v813 = vrot.slane %v811, 5
        %v814 = vor.u32 %v810, %v813
        %v815 = vrot.slane %v814, 4
        %v817 = vshll.u32 %v652, 16
        %v819 = vrot.slane %v817, 5
        %v820 = vsel %vm686, %v815, %v819
        %v821 = vshrl.u32 %v652, 16
        %v823 = vrot.slane %v821, 4
        %v824 = vor.u32 %v823, %v819
        %v825 = vrot.slane %v824, 4
        %v827 = vshll.u32 %v653, 16
        %v829 = vrot.slane %v827, 5
        %v830 = vsel %vm686, %v825, %v829
        %v832 = vshrl.u32 %v654, 16
        %v834 = vrot.slane %v832, 4
        %v835 = vshll.u32 %v654, 16
        %v837 = vrot.slane %v835, 5
        %v838 = vor.u32 %v834, %v837
        %v839 = vrot.slane %v838, 4
        %v841 = vshll.u32 %v655, 16
        %v843 = vrot.slane %v841, 5
        %v844 = vsel %vm686, %v839, %v843
        %v845 = vshrl.u32 %v655, 16
        %v847 = vrot.slane %v845, 4
        %v848 = vor.u32 %v847, %v843
        %v849 = vrot.slane %v848, 4
        %v851 = vshll.u32 %v656, 16
        %v853 = vrot.slane %v851, 5
        %v854 = vsel %vm686, %v849, %v853
        %v856 = vshrl.u32 %v657, 16
        %v858 = vrot.slane %v856, 4
        %v859 = vshll.u32 %v657, 16
        %v861 = vrot.slane %v859, 5
        %v862 = vor.u32 %v858, %v861
        %v863 = vrot.slane %v862, 4
        %v865 = vshll.u32 %v658, 16
        %v867 = vrot.slane %v865, 5
        %v868 = vsel %vm686, %v863, %v867
        %v869 = vshrl.u32 %v658, 16
        %v871 = vrot.slane %v869, 4
        %v872 = vor.u32 %v871, %v867
        %v873 = vrot.slane %v872, 4
        %v875 = vshll.u32 %v659, 16
        %v877 = vrot.slane %v875, 5
        %v878 = vsel %vm686, %v873, %v877
        %v880 = vshrl.u32 %v660, 16
        %v882 = vrot.slane %v880, 4
        %v883 = vshll.u32 %v660, 16
        %v885 = vrot.slane %v883, 5
        %v886 = vor.u32 %v882, %v885
        %v887 = vrot.slane %v886, 4
        %v889 = vshll.u32 %v661, 16
        %v891 = vrot.slane %v889, 5
        %v892 = vsel %vm686, %v887, %v891
        %v893 = vshrl.u32 %v661, 16
        %v895 = vrot.slane %v893, 4
        %v896 = vor.u32 %v895, %v891
        %v897 = vrot.slane %v896, 4
        %v899 = vshll.u32 %v662, 16
        %v901 = vrot.slane %v899, 5
        %v902 = vsel %vm686, %v897, %v901
        %v904 = vshrl.u32 %v663, 16
        %v906 = vrot.slane %v904, 4
        %v907 = vshll.u32 %v663, 16
        %v909 = vrot.slane %v907, 5
        %v910 = vor.u32 %v906, %v909
        %v911 = vrot.slane %v910, 4
        %v913 = vshll.u32 %v664, 16
        %v915 = vrot.slane %v913, 5
        %v916 = vsel %vm686, %v911, %v915
        %v917 = vshrl.u32 %v664, 16
        %v919 = vrot.slane %v917, 4
        %v920 = vor.u32 %v919, %v915
        %v921 = vrot.slane %v920, 4
        %v923 = vshll.u32 %v665, 16
        %v925 = vrot.slane %v923, 5
        %v926 = vsel %vm686, %v921, %v925
        %v928 = vshrl.u32 %v666, 16
        %v930 = vrot.slane %v928, 4
        %v931 = vshll.u32 %v666, 16
        %v933 = vrot.slane %v931, 5
        %v934 = vor.u32 %v930, %v933
        %v935 = vrot.slane %v934, 4
        %v937 = vshll.u32 %v667, 16
        %v939 = vrot.slane %v937, 5
        %v940 = vsel %vm686, %v935, %v939
        %v941 = vshrl.u32 %v667, 16
        %v943 = vrot.slane %v941, 4
        %v944 = vor.u32 %v943, %v939
        %v945 = vrot.slane %v944, 4
        %v947 = vshll.u32 %v668, 16
        %v949 = vrot.slane %v947, 5
        %v950 = vsel %vm686, %v945, %v949
        %v952 = vshrl.u32 %v669, 16
        %v954 = vrot.slane %v952, 4
        %v955 = vshll.u32 %v669, 16
        %v957 = vrot.slane %v955, 5
        %v958 = vor.u32 %v954, %v957
        %v959 = vrot.slane %v958, 4
        %v961 = vshll.u32 %v670, 16
        %v963 = vrot.slane %v961, 5
        %v964 = vsel %vm686, %v959, %v963
        %v965 = vshrl.u32 %v670, 16
        %v967 = vrot.slane %v965, 4
        %v968 = vor.u32 %v967, %v963
        %v969 = vrot.slane %v968, 4
        %v971 = vshll.u32 %v671, 16
        %v973 = vrot.slane %v971, 5
        %v974 = vsel %vm686, %v969, %v973
        %v976 = vshrl.u32 %v672, 16
        %v978 = vrot.slane %v976, 4
        %v979 = vshll.u32 %v672, 16
        %v981 = vrot.slane %v979, 5
        %v982 = vor.u32 %v978, %v981
        %v983 = vrot.slane %v982, 4
        %v985 = vshll.u32 %v673, 16
        %v987 = vrot.slane %v985, 5
        %v988 = vsel %vm686, %v983, %v987
        %v989 = vshrl.u32 %v673, 16
        %v991 = vrot.slane %v989, 4
        %v992 = vor.u32 %v991, %v987
        %v993 = vrot.slane %v992, 4
        %v995 = vshll.u32 %v674, 16
        %v997 = vrot.slane %v995, 5
        %v998 = vsel %vm686, %v993, %v997
        %v1000 = vshrl.u32 %v675, 16
        %v1002 = vrot.slane %v1000, 4
        %v1003 = vshll.u32 %v675, 16
        %v1005 = vrot.slane %v1003, 5
        %v1006 = vor.u32 %v1002, %v1005
        %v1007 = vrot.slane %v1006, 4
        %v1009 = vshll.u32 %v676, 16
        %v1011 = vrot.slane %v1009, 5
        %v1012 = vsel %vm686, %v1007, %v1011
        %v1013 = vshrl.u32 %v676, 16
        %v1015 = vrot.slane %v1013, 4
        %v1016 = vor.u32 %v1015, %v1011
        %v1017 = vrot.slane %v1016, 4
        %v1019 = vshll.u32 %v677, 16
        %v1021 = vrot.slane %v1019, 5
        %v1022 = vsel %vm686, %v1017, %v1021
        %v1024 = vshrl.u32 %v678, 16
        %v1026 = vrot.slane %v1024, 4
        %v1027 = vshll.u32 %v678, 16
        %v1029 = vrot.slane %v1027, 5
        %v1030 = vor.u32 %v1026, %v1029
        %v1031 = vrot.slane %v1030, 4
        %v1033 = vshll.u32 %v679, 16
        %v1035 = vrot.slane %v1033, 5
        %v1036 = vsel %vm686, %v1031, %v1035
        %v1037 = vshrl.u32 %v679, 16
        %v1039 = vrot.slane %v1037, 4
        %v1040 = vor.u32 %v1039, %v1035
        %v1041 = vrot.slane %v1040, 4
        %v1043 = vshll.u32 %v680, 16
        %v1045 = vrot.slane %v1043, 5
        %v1046 = vsel %vm686, %v1041, %v1045
        %v1048 = vshrl.u32 %v681, 16
        %v1050 = vrot.slane %v1048, 4
        %v1051 = vshll.u32 %v681, 16
        %v1053 = vrot.slane %v1051, 5
        %v1054 = vor.u32 %v1050, %v1053
        %v1055 = vrot.slane %v1054, 4
        %v1057 = vshll.u32 %v682, 16
        %v1059 = vrot.slane %v1057, 5
        %v1060 = vsel %vm686, %v1055, %v1059
        %v1061 = vshrl.u32 %v682, 16
        %v1063 = vrot.slane %v1061, 4
        %v1064 = vor.u32 %v1063, %v1059
        %v1065 = vrot.slane %v1064, 4
        %v1067 = vshll.u32 %v683, 16
        %v1069 = vrot.slane %v1067, 5
        %v1070 = vsel %vm686, %v1065, %v1069
        %s1071 = scalar_lea.vmem %s1, 2
        %v1072 = vld [vmem:[%s1071] sm:$0x3]
        %v1073 = vunpack.c.l.b16 %v700
        %v1074 = vunpack.c.l.b16 %v710
        %v1075 = vunpack.c.l.b16 %v724
        %v1076 = vunpack.c.l.b16 %v734
        %v1077 = vunpack.c.l.b16 %v748
        %v1078 = vunpack.c.l.b16 %v758
        %v1079 = vunpack.c.l.b16 %v772
        %v1080 = vunpack.c.l.b16 %v782
        %v1081 = vunpack.c.l.b16 %v796
        %v1082 = vunpack.c.l.b16 %v806
        %v1083 = vunpack.c.l.b16 %v820
        %v1084 = vunpack.c.l.b16 %v830
        %v1085 = vunpack.c.l.b16 %v844
        %v1086 = vunpack.c.l.b16 %v854
        %v1087 = vunpack.c.l.b16 %v868
        %v1088 = vunpack.c.l.b16 %v878
        %v1089 = vunpack.c.l.b16 %v892
        %v1090 = vunpack.c.l.b16 %v902
        %v1091 = vunpack.c.l.b16 %v916
        %v1092 = vunpack.c.l.b16 %v926
        %v1093 = vunpack.c.l.b16 %v940
        %v1094 = vunpack.c.l.b16 %v950
        %v1095 = vunpack.c.l.b16 %v964
        %v1096 = vunpack.c.l.b16 %v974
        %v1097 = vunpack.c.l.b16 %v988
        %v1098 = vunpack.c.l.b16 %v998
        %v1099 = vunpack.c.l.b16 %v1012
        %v1100 = vunpack.c.l.b16 %v1022
        %v1101 = vunpack.c.l.b16 %v1036
        %v1102 = vunpack.c.l.b16 %v1046
        %v1103 = vunpack.c.l.b16 %v1060
        %v1104 = vunpack.c.l.b16 %v1070
        %v1105 = vpack.c.b16 %v1074, %v1073
        %v1106 = vpack.c.b16 %v1076, %v1075
        %v1107 = vpack.c.b16 %v1078, %v1077
        %v1108 = vpack.c.b16 %v1080, %v1079
        %v1109 = vpack.c.b16 %v1082, %v1081
        %v1110 = vpack.c.b16 %v1084, %v1083
        %v1111 = vpack.c.b16 %v1086, %v1085
        %v1112 = vpack.c.b16 %v1088, %v1087
        %v1113 = vpack.c.b16 %v1090, %v1089
        %v1114 = vpack.c.b16 %v1092, %v1091
        %v1115 = vpack.c.b16 %v1094, %v1093
        %v1116 = vpack.c.b16 %v1096, %v1095
        %v1117 = vpack.c.b16 %v1098, %v1097
        %v1118 = vpack.c.b16 %v1100, %v1099
        %v1119 = vpack.c.b16 %v1102, %v1101
        %v1120 = vpack.c.b16 %v1104, %v1103
        %v1122 = vsel %vm337, %v1105, 0
        %v1125 = vsel %vm337, %v1106, 0
        %v1128 = vsel %vm337, %v1107, 0
        %v1131 = vsel %vm337, %v1108, 0
        %v1134 = vsel %vm337, %v1109, 0
        %v1137 = vsel %vm337, %v1110, 0
        %v1140 = vsel %vm337, %v1111, 0
        %v1143 = vsel %vm337, %v1112, 0
        %v1146 = vsel %vm337, %v1113, 0
        %v1149 = vsel %vm337, %v1114, 0
        %v1152 = vsel %vm337, %v1115, 0
        %v1155 = vsel %vm337, %v1116, 0
        %v1158 = vsel %vm337, %v1117, 0
        %v1161 = vsel %vm337, %v1118, 0
        %v1164 = vsel %vm337, %v1119, 0
        %v1167 = vsel %vm337, %v1120, 0
        %v1170 = vsel %vm386, %v1072, 0
        %1172 = vmatpush.bf16.msra.mxu0 0
        %1173 = vmatpush.bf16.msra.mxu0 0
        %1174 = vmatpush.bf16.msra.mxu0 0
        %1175 = vmatpush.bf16.msra.mxu0 0
        %1176 = vmatpush.bf16.msra.mxu0 0
        %1177 = vmatpush.bf16.msra.mxu0 0
        %1178 = vmatpush.bf16.msra.mxu0 0
        %1179 = vmatpush.bf16.msra.mxu0 %v1170
        %1180 = vmatmul.bf16.gmra.mxu0 %v1122
        %v1181 = vpop.f32.mrf.mxu0
        %v1182 = vadd.f32 0.0, %v1181
        %v1183 = vpop.f32.mrf.mxu0
        %v1184 = vadd.f32 0.0, %v1183
        %1185 = vmatmul.bf16.gmra.mxu0 %v1125
        %v1186 = vpop.f32.mrf.mxu0
        %v1187 = vadd.f32 0.0, %v1186
        %v1188 = vpop.f32.mrf.mxu0
        %v1189 = vadd.f32 0.0, %v1188
        %1190 = vmatmul.bf16.gmra.mxu0 %v1128
        %v1191 = vpop.f32.mrf.mxu0
        %v1192 = vadd.f32 0.0, %v1191
        %v1193 = vpop.f32.mrf.mxu0
        %v1194 = vadd.f32 0.0, %v1193
        %1195 = vmatmul.bf16.gmra.mxu0 %v1131
        %v1196 = vpop.f32.mrf.mxu0
        %v1197 = vadd.f32 0.0, %v1196
        %v1198 = vpop.f32.mrf.mxu0
        %v1199 = vadd.f32 0.0, %v1198
        %1200 = vmatmul.bf16.gmra.mxu0 %v1134
        %v1201 = vpop.f32.mrf.mxu0
        %v1202 = vadd.f32 0.0, %v1201
        %v1203 = vpop.f32.mrf.mxu0
        %v1204 = vadd.f32 0.0, %v1203
        %1205 = vmatmul.bf16.gmra.mxu0 %v1137
        %v1206 = vpop.f32.mrf.mxu0
        %v1207 = vadd.f32 0.0, %v1206
        %v1208 = vpop.f32.mrf.mxu0
        %v1209 = vadd.f32 0.0, %v1208
        %1210 = vmatmul.bf16.gmra.mxu0 %v1140
        %v1211 = vpop.f32.mrf.mxu0
        %v1212 = vadd.f32 0.0, %v1211
        %v1213 = vpop.f32.mrf.mxu0
        %v1214 = vadd.f32 0.0, %v1213
        %1215 = vmatmul.bf16.gmra.mxu0 %v1143
        %v1216 = vpop.f32.mrf.mxu0
        %v1217 = vadd.f32 0.0, %v1216
        %v1218 = vpop.f32.mrf.mxu0
        %v1219 = vadd.f32 0.0, %v1218
        %1220 = vmatmul.bf16.gmra.mxu0 %v1146
        %v1221 = vpop.f32.mrf.mxu0
        %v1222 = vadd.f32 0.0, %v1221
        %v1223 = vpop.f32.mrf.mxu0
        %v1224 = vadd.f32 0.0, %v1223
        %1225 = vmatmul.bf16.gmra.mxu0 %v1149
        %v1226 = vpop.f32.mrf.mxu0
        %v1227 = vadd.f32 0.0, %v1226
        %v1228 = vpop.f32.mrf.mxu0
        %v1229 = vadd.f32 0.0, %v1228
        %1230 = vmatmul.bf16.gmra.mxu0 %v1152
        %v1231 = vpop.f32.mrf.mxu0
        %v1232 = vadd.f32 0.0, %v1231
        %v1233 = vpop.f32.mrf.mxu0
        %v1234 = vadd.f32 0.0, %v1233
        %1235 = vmatmul.bf16.gmra.mxu0 %v1155
        %v1236 = vpop.f32.mrf.mxu0
        %v1237 = vadd.f32 0.0, %v1236
        %v1238 = vpop.f32.mrf.mxu0
        %v1239 = vadd.f32 0.0, %v1238
        %1240 = vmatmul.bf16.gmra.mxu0 %v1158
        %v1241 = vpop.f32.mrf.mxu0
        %v1242 = vadd.f32 0.0, %v1241
        %v1243 = vpop.f32.mrf.mxu0
        %v1244 = vadd.f32 0.0, %v1243
        %1245 = vmatmul.bf16.gmra.mxu0 %v1161
        %v1246 = vpop.f32.mrf.mxu0
        %v1247 = vadd.f32 0.0, %v1246
        %v1248 = vpop.f32.mrf.mxu0
        %v1249 = vadd.f32 0.0, %v1248
        %1250 = vmatmul.bf16.gmra.mxu0 %v1164
        %v1251 = vpop.f32.mrf.mxu0
        %v1252 = vadd.f32 0.0, %v1251
        %v1253 = vpop.f32.mrf.mxu0
        %v1254 = vadd.f32 0.0, %v1253
        %1255 = vmatmul.bf16.gmra.mxu0 %v1167
        %v1256 = vpop.f32.mrf.mxu0
        %v1257 = vadd.f32 0.0, %v1256
        %v1258 = vpop.f32.mrf.mxu0
        %v1259 = vadd.f32 0.0, %v1258
        %1260 = vdwg.mxu0
        %s1261 = scalar_lea.vmem %s2, 2
        %v1262 = vld [vmem:[%s1261] sm:$0x3]
        %v1264 = vsel %vm386, %v1262, 0
        %1266 = vmatpush.bf16.msra.mxu0 0
        %1267 = vmatpush.bf16.msra.mxu0 0
        %1268 = vmatpush.bf16.msra.mxu0 0
        %1269 = vmatpush.bf16.msra.mxu0 0
        %1270 = vmatpush.bf16.msra.mxu0 0
        %1271 = vmatpush.bf16.msra.mxu0 0
        %1272 = vmatpush.bf16.msra.mxu0 0
        %1273 = vmatpush.bf16.msra.mxu0 %v1264
        %1274 = vmatmul.bf16.gmra.mxu0 %v1122
        %v1275 = vpop.f32.mrf.mxu0
        %v1276 = vadd.f32 0.0, %v1275
        %v1277 = vpop.f32.mrf.mxu0
        %v1278 = vadd.f32 0.0, %v1277
        %1279 = vmatmul.bf16.gmra.mxu0 %v1125
        %v1280 = vpop.f32.mrf.mxu0
        %v1281 = vadd.f32 0.0, %v1280
        %v1282 = vpop.f32.mrf.mxu0
        %v1283 = vadd.f32 0.0, %v1282
        %1284 = vmatmul.bf16.gmra.mxu0 %v1128
        %v1285 = vpop.f32.mrf.mxu0
        %v1286 = vadd.f32 0.0, %v1285
        %v1287 = vpop.f32.mrf.mxu0
        %v1288 = vadd.f32 0.0, %v1287
        %1289 = vmatmul.bf16.gmra.mxu0 %v1131
        %v1290 = vpop.f32.mrf.mxu0
        %v1291 = vadd.f32 0.0, %v1290
        %v1292 = vpop.f32.mrf.mxu0
        %v1293 = vadd.f32 0.0, %v1292
        %1294 = vmatmul.bf16.gmra.mxu0 %v1134
        %v1295 = vpop.f32.mrf.mxu0
        %v1296 = vadd.f32 0.0, %v1295
        %v1297 = vpop.f32.mrf.mxu0
        %v1298 = vadd.f32 0.0, %v1297
        %1299 = vmatmul.bf16.gmra.mxu0 %v1137
        %v1300 = vpop.f32.mrf.mxu0
        %v1301 = vadd.f32 0.0, %v1300
        %v1302 = vpop.f32.mrf.mxu0
        %v1303 = vadd.f32 0.0, %v1302
        %1304 = vmatmul.bf16.gmra.mxu0 %v1140
        %v1305 = vpop.f32.mrf.mxu0
        %v1306 = vadd.f32 0.0, %v1305
        %v1307 = vpop.f32.mrf.mxu0
        %v1308 = vadd.f32 0.0, %v1307
        %1309 = vmatmul.bf16.gmra.mxu0 %v1143
        %v1310 = vpop.f32.mrf.mxu0
        %v1311 = vadd.f32 0.0, %v1310
        %v1312 = vpop.f32.mrf.mxu0
        %v1313 = vadd.f32 0.0, %v1312
        %1314 = vmatmul.bf16.gmra.mxu0 %v1146
        %v1315 = vpop.f32.mrf.mxu0
        %v1316 = vadd.f32 0.0, %v1315
        %v1317 = vpop.f32.mrf.mxu0
        %v1318 = vadd.f32 0.0, %v1317
        %1319 = vmatmul.bf16.gmra.mxu0 %v1149
        %v1320 = vpop.f32.mrf.mxu0
        %v1321 = vadd.f32 0.0, %v1320
        %v1322 = vpop.f32.mrf.mxu0
        %v1323 = vadd.f32 0.0, %v1322
        %1324 = vmatmul.bf16.gmra.mxu0 %v1152
        %v1325 = vpop.f32.mrf.mxu0
        %v1326 = vadd.f32 0.0, %v1325
        %v1327 = vpop.f32.mrf.mxu0
        %v1328 = vadd.f32 0.0, %v1327
        %1329 = vmatmul.bf16.gmra.mxu0 %v1155
        %v1330 = vpop.f32.mrf.mxu0
        %v1331 = vadd.f32 0.0, %v1330
        %v1332 = vpop.f32.mrf.mxu0
        %v1333 = vadd.f32 0.0, %v1332
        %1334 = vmatmul.bf16.gmra.mxu0 %v1158
        %v1335 = vpop.f32.mrf.mxu0
        %v1336 = vadd.f32 0.0, %v1335
        %v1337 = vpop.f32.mrf.mxu0
        %v1338 = vadd.f32 0.0, %v1337
        %1339 = vmatmul.bf16.gmra.mxu0 %v1161
        %v1340 = vpop.f32.mrf.mxu0
        %v1341 = vadd.f32 0.0, %v1340
        %v1342 = vpop.f32.mrf.mxu0
        %v1343 = vadd.f32 0.0, %v1342
        %1344 = vmatmul.bf16.gmra.mxu0 %v1164
        %v1345 = vpop.f32.mrf.mxu0
        %v1346 = vadd.f32 0.0, %v1345
        %v1347 = vpop.f32.mrf.mxu0
        %v1348 = vadd.f32 0.0, %v1347
        %1349 = vmatmul.bf16.gmra.mxu0 %v1167
        %v1350 = vpop.f32.mrf.mxu0
        %v1351 = vadd.f32 0.0, %v1350
        %v1352 = vpop.f32.mrf.mxu0
        %v1353 = vadd.f32 0.0, %v1352
        %1354 = vdwg.mxu0
        %v1355 = vld [vmem:[#allocation2] sm:$0xff]
        %v1356 = vld [vmem:[#allocation2 + $0x8] sm:$0xff]
        %v1357 = vld [vmem:[#allocation2 + $0x10] sm:$0xff]
        %v1358 = vld [vmem:[#allocation2 + $0x18] sm:$0xff]
        %v1359 = vld [vmem:[#allocation2 + $0x20] sm:$0xff]
        %v1360 = vld [vmem:[#allocation2 + $0x28] sm:$0xff]
        %v1361 = vld [vmem:[#allocation2 + $0x30] sm:$0xff]
        %v1362 = vld [vmem:[#allocation2 + $0x38] sm:$0xff]
        %v1363 = vld [vmem:[#allocation2 + $0x40] sm:$0xff]
        %v1364 = vld [vmem:[#allocation2 + $0x48] sm:$0xff]
        %v1365 = vld [vmem:[#allocation2 + $0x50] sm:$0xff]
        %v1366 = vld [vmem:[#allocation2 + $0x58] sm:$0xff]
        %v1367 = vld [vmem:[#allocation2 + $0x60] sm:$0xff]
        %v1368 = vld [vmem:[#allocation2 + $0x68] sm:$0xff]
        %v1369 = vld [vmem:[#allocation2 + $0x70] sm:$0xff]
        %v1370 = vld [vmem:[#allocation2 + $0x78] sm:$0xff]
        %v1371 = vld [vmem:[#allocation2 + $0x80] sm:$0xff]
        %v1372 = vld [vmem:[#allocation2 + $0x88] sm:$0xff]
        %v1373 = vld [vmem:[#allocation2 + $0x90] sm:$0xff]
        %v1374 = vld [vmem:[#allocation2 + $0x98] sm:$0xff]
        %v1375 = vld [vmem:[#allocation2 + $0xa0] sm:$0xff]
        %v1376 = vld [vmem:[#allocation2 + $0xa8] sm:$0xff]
        %v1377 = vld [vmem:[#allocation2 + $0xb0] sm:$0xff]
        %v1378 = vld [vmem:[#allocation2 + $0xb8] sm:$0xff]
        %v1379 = vld [vmem:[#allocation2 + $0xc0] sm:$0xff]
        %v1380 = vld [vmem:[#allocation2 + $0xc8] sm:$0xff]
        %v1381 = vld [vmem:[#allocation2 + $0xd0] sm:$0xff]
        %v1382 = vld [vmem:[#allocation2 + $0xd8] sm:$0xff]
        %v1383 = vld [vmem:[#allocation2 + $0xe0] sm:$0xff]
        %v1384 = vld [vmem:[#allocation2 + $0xe8] sm:$0xff]
        %v1385 = vld [vmem:[#allocation2 + $0xf0] sm:$0xff]
        %v1386 = vld [vmem:[#allocation2 + $0xf8] sm:$0xff]
        %v1387 = vadd.f32 %v1355, %v1182
        %v1388 = vadd.f32 %v1356, %v1184
        %v1389 = vadd.f32 %v1357, %v1187
        %v1390 = vadd.f32 %v1358, %v1189
        %v1391 = vadd.f32 %v1359, %v1192
        %v1392 = vadd.f32 %v1360, %v1194
        %v1393 = vadd.f32 %v1361, %v1197
        %v1394 = vadd.f32 %v1362, %v1199
        %v1395 = vadd.f32 %v1363, %v1202
        %v1396 = vadd.f32 %v1364, %v1204
        %v1397 = vadd.f32 %v1365, %v1207
        %v1398 = vadd.f32 %v1366, %v1209
        %v1399 = vadd.f32 %v1367, %v1212
        %v1400 = vadd.f32 %v1368, %v1214
        %v1401 = vadd.f32 %v1369, %v1217
        %v1402 = vadd.f32 %v1370, %v1219
        %v1403 = vadd.f32 %v1371, %v1222
        %v1404 = vadd.f32 %v1372, %v1224
        %v1405 = vadd.f32 %v1373, %v1227
        %v1406 = vadd.f32 %v1374, %v1229
        %v1407 = vadd.f32 %v1375, %v1232
        %v1408 = vadd.f32 %v1376, %v1234
        %v1409 = vadd.f32 %v1377, %v1237
        %v1410 = vadd.f32 %v1378, %v1239
        %v1411 = vadd.f32 %v1379, %v1242
        %v1412 = vadd.f32 %v1380, %v1244
        %v1413 = vadd.f32 %v1381, %v1247
        %v1414 = vadd.f32 %v1382, %v1249
        %v1415 = vadd.f32 %v1383, %v1252
        %v1416 = vadd.f32 %v1384, %v1254
        %v1417 = vadd.f32 %v1385, %v1257
        %v1418 = vadd.f32 %v1386, %v1259
        %1419 = vst [vmem:[#allocation2] sm:$0xff] %v1387
        %1420 = vst [vmem:[#allocation2 + $0x8] sm:$0xff] %v1388
        %1421 = vst [vmem:[#allocation2 + $0x10] sm:$0xff] %v1389
        %1422 = vst [vmem:[#allocation2 + $0x18] sm:$0xff] %v1390
        %1423 = vst [vmem:[#allocation2 + $0x20] sm:$0xff] %v1391
        %1424 = vst [vmem:[#allocation2 + $0x28] sm:$0xff] %v1392
        %1425 = vst [vmem:[#allocation2 + $0x30] sm:$0xff] %v1393
        %1426 = vst [vmem:[#allocation2 + $0x38] sm:$0xff] %v1394
        %1427 = vst [vmem:[#allocation2 + $0x40] sm:$0xff] %v1395
        %1428 = vst [vmem:[#allocation2 + $0x48] sm:$0xff] %v1396
        %1429 = vst [vmem:[#allocation2 + $0x50] sm:$0xff] %v1397
        %1430 = vst [vmem:[#allocation2 + $0x58] sm:$0xff] %v1398
        %1431 = vst [vmem:[#allocation2 + $0x60] sm:$0xff] %v1399
        %1432 = vst [vmem:[#allocation2 + $0x68] sm:$0xff] %v1400
        %1433 = vst [vmem:[#allocation2 + $0x70] sm:$0xff] %v1401
        %1434 = vst [vmem:[#allocation2 + $0x78] sm:$0xff] %v1402
        %1435 = vst [vmem:[#allocation2 + $0x80] sm:$0xff] %v1403
        %1436 = vst [vmem:[#allocation2 + $0x88] sm:$0xff] %v1404
        %1437 = vst [vmem:[#allocation2 + $0x90] sm:$0xff] %v1405
        %1438 = vst [vmem:[#allocation2 + $0x98] sm:$0xff] %v1406
        %1439 = vst [vmem:[#allocation2 + $0xa0] sm:$0xff] %v1407
        %1440 = vst [vmem:[#allocation2 + $0xa8] sm:$0xff] %v1408
        %1441 = vst [vmem:[#allocation2 + $0xb0] sm:$0xff] %v1409
        %1442 = vst [vmem:[#allocation2 + $0xb8] sm:$0xff] %v1410
        %1443 = vst [vmem:[#allocation2 + $0xc0] sm:$0xff] %v1411
        %1444 = vst [vmem:[#allocation2 + $0xc8] sm:$0xff] %v1412
        %1445 = vst [vmem:[#allocation2 + $0xd0] sm:$0xff] %v1413
        %1446 = vst [vmem:[#allocation2 + $0xd8] sm:$0xff] %v1414
        %1447 = vst [vmem:[#allocation2 + $0xe0] sm:$0xff] %v1415
        %1448 = vst [vmem:[#allocation2 + $0xe8] sm:$0xff] %v1416
        %1449 = vst [vmem:[#allocation2 + $0xf0] sm:$0xff] %v1417
        %1450 = vst [vmem:[#allocation2 + $0xf8] sm:$0xff] %v1418
        %v1451 = vld [vmem:[#allocation3] sm:$0xff]
        %v1452 = vld [vmem:[#allocation3 + $0x8] sm:$0xff]
        %v1453 = vld [vmem:[#allocation3 + $0x10] sm:$0xff]
        %v1454 = vld [vmem:[#allocation3 + $0x18] sm:$0xff]
        %v1455 = vld [vmem:[#allocation3 + $0x20] sm:$0xff]
        %v1456 = vld [vmem:[#allocation3 + $0x28] sm:$0xff]
        %v1457 = vld [vmem:[#allocation3 + $0x30] sm:$0xff]
        %v1458 = vld [vmem:[#allocation3 + $0x38] sm:$0xff]
        %v1459 = vld [vmem:[#allocation3 + $0x40] sm:$0xff]
        %v1460 = vld [vmem:[#allocation3 + $0x48] sm:$0xff]
        %v1461 = vld [vmem:[#allocation3 + $0x50] sm:$0xff]
        %v1462 = vld [vmem:[#allocation3 + $0x58] sm:$0xff]
        %v1463 = vld [vmem:[#allocation3 + $0x60] sm:$0xff]
        %v1464 = vld [vmem:[#allocation3 + $0x68] sm:$0xff]
        %v1465 = vld [vmem:[#allocation3 + $0x70] sm:$0xff]
        %v1466 = vld [vmem:[#allocation3 + $0x78] sm:$0xff]
        %v1467 = vld [vmem:[#allocation3 + $0x80] sm:$0xff]
        %v1468 = vld [vmem:[#allocation3 + $0x88] sm:$0xff]
        %v1469 = vld [vmem:[#allocation3 + $0x90] sm:$0xff]
        %v1470 = vld [vmem:[#allocation3 + $0x98] sm:$0xff]
        %v1471 = vld [vmem:[#allocation3 + $0xa0] sm:$0xff]
        %v1472 = vld [vmem:[#allocation3 + $0xa8] sm:$0xff]
        %v1473 = vld [vmem:[#allocation3 + $0xb0] sm:$0xff]
        %v1474 = vld [vmem:[#allocation3 + $0xb8] sm:$0xff]
        %v1475 = vld [vmem:[#allocation3 + $0xc0] sm:$0xff]
        %v1476 = vld [vmem:[#allocation3 + $0xc8] sm:$0xff]
        %v1477 = vld [vmem:[#allocation3 + $0xd0] sm:$0xff]
        %v1478 = vld [vmem:[#allocation3 + $0xd8] sm:$0xff]
        %v1479 = vld [vmem:[#allocation3 + $0xe0] sm:$0xff]
        %v1480 = vld [vmem:[#allocation3 + $0xe8] sm:$0xff]
        %v1481 = vld [vmem:[#allocation3 + $0xf0] sm:$0xff]
        %v1482 = vld [vmem:[#allocation3 + $0xf8] sm:$0xff]
        %v1483 = vadd.f32 %v1451, %v1276
        %v1484 = vadd.f32 %v1452, %v1278
        %v1485 = vadd.f32 %v1453, %v1281
        %v1486 = vadd.f32 %v1454, %v1283
        %v1487 = vadd.f32 %v1455, %v1286
        %v1488 = vadd.f32 %v1456, %v1288
        %v1489 = vadd.f32 %v1457, %v1291
        %v1490 = vadd.f32 %v1458, %v1293
        %v1491 = vadd.f32 %v1459, %v1296
        %v1492 = vadd.f32 %v1460, %v1298
        %v1493 = vadd.f32 %v1461, %v1301
        %v1494 = vadd.f32 %v1462, %v1303
        %v1495 = vadd.f32 %v1463, %v1306
        %v1496 = vadd.f32 %v1464, %v1308
        %v1497 = vadd.f32 %v1465, %v1311
        %v1498 = vadd.f32 %v1466, %v1313
        %v1499 = vadd.f32 %v1467, %v1316
        %v1500 = vadd.f32 %v1468, %v1318
        %v1501 = vadd.f32 %v1469, %v1321
        %v1502 = vadd.f32 %v1470, %v1323
        %v1503 = vadd.f32 %v1471, %v1326
        %v1504 = vadd.f32 %v1472, %v1328
        %v1505 = vadd.f32 %v1473, %v1331
        %v1506 = vadd.f32 %v1474, %v1333
        %v1507 = vadd.f32 %v1475, %v1336
        %v1508 = vadd.f32 %v1476, %v1338
        %v1509 = vadd.f32 %v1477, %v1341
        %v1510 = vadd.f32 %v1478, %v1343
        %v1511 = vadd.f32 %v1479, %v1346
        %v1512 = vadd.f32 %v1480, %v1348
        %v1513 = vadd.f32 %v1481, %v1351
        %v1514 = vadd.f32 %v1482, %v1353
        %1515 = vst [vmem:[#allocation3] sm:$0xff] %v1483
        %1516 = vst [vmem:[#allocation3 + $0x8] sm:$0xff] %v1484
        %1517 = vst [vmem:[#allocation3 + $0x10] sm:$0xff] %v1485
        %1518 = vst [vmem:[#allocation3 + $0x18] sm:$0xff] %v1486
        %1519 = vst [vmem:[#allocation3 + $0x20] sm:$0xff] %v1487
        %1520 = vst [vmem:[#allocation3 + $0x28] sm:$0xff] %v1488
        %1521 = vst [vmem:[#allocation3 + $0x30] sm:$0xff] %v1489
        %1522 = vst [vmem:[#allocation3 + $0x38] sm:$0xff] %v1490
        %1523 = vst [vmem:[#allocation3 + $0x40] sm:$0xff] %v1491
        %1524 = vst [vmem:[#allocation3 + $0x48] sm:$0xff] %v1492
        %1525 = vst [vmem:[#allocation3 + $0x50] sm:$0xff] %v1493
        %1526 = vst [vmem:[#allocation3 + $0x58] sm:$0xff] %v1494
        %1527 = vst [vmem:[#allocation3 + $0x60] sm:$0xff] %v1495
        %1528 = vst [vmem:[#allocation3 + $0x68] sm:$0xff] %v1496
        %1529 = vst [vmem:[#allocation3 + $0x70] sm:$0xff] %v1497
        %1530 = vst [vmem:[#allocation3 + $0x78] sm:$0xff] %v1498
        %1531 = vst [vmem:[#allocation3 + $0x80] sm:$0xff] %v1499
        %1532 = vst [vmem:[#allocation3 + $0x88] sm:$0xff] %v1500
        %1533 = vst [vmem:[#allocation3 + $0x90] sm:$0xff] %v1501
        %1534 = vst [vmem:[#allocation3 + $0x98] sm:$0xff] %v1502
        %1535 = vst [vmem:[#allocation3 + $0xa0] sm:$0xff] %v1503
        %1536 = vst [vmem:[#allocation3 + $0xa8] sm:$0xff] %v1504
        %1537 = vst [vmem:[#allocation3 + $0xb0] sm:$0xff] %v1505
        %1538 = vst [vmem:[#allocation3 + $0xb8] sm:$0xff] %v1506
        %1539 = vst [vmem:[#allocation3 + $0xc0] sm:$0xff] %v1507
        %1540 = vst [vmem:[#allocation3 + $0xc8] sm:$0xff] %v1508
        %1541 = vst [vmem:[#allocation3 + $0xd0] sm:$0xff] %v1509
        %1542 = vst [vmem:[#allocation3 + $0xd8] sm:$0xff] %v1510
        %1543 = vst [vmem:[#allocation3 + $0xe0] sm:$0xff] %v1511
        %1544 = vst [vmem:[#allocation3 + $0xe8] sm:$0xff] %v1512
        %1545 = vst [vmem:[#allocation3 + $0xf0] sm:$0xff] %v1513
        %1546 = vst [vmem:[#allocation3 + $0xf8] sm:$0xff] %v1514
        %v1547 = vld [vmem:[%s222] sm:$0xe]
        %v1548 = vld [vmem:[%s222 + $0x4] sm:$0xf]
        %v1549 = vld [vmem:[%s222 + $0x8] sm:$0x1]
        %v1550 = vld [vmem:[%s222 + $0xc] sm:$0xe]
        %v1551 = vld [vmem:[%s222 + $0x10] sm:$0xf]
        %v1552 = vld [vmem:[%s222 + $0x14] sm:$0x1]
        %v1553 = vld [vmem:[%s222 + $0x18] sm:$0xe]
        %v1554 = vld [vmem:[%s222 + $0x1c] sm:$0xf]
        %v1555 = vld [vmem:[%s222 + $0x20] sm:$0x1]
        %v1556 = vld [vmem:[%s222 + $0x24] sm:$0xe]
        %v1557 = vld [vmem:[%s222 + $0x28] sm:$0xf]
        %v1558 = vld [vmem:[%s222 + $0x2c] sm:$0x1]
        %v1559 = vld [vmem:[%s222 + $0x30] sm:$0xe]
        %v1560 = vld [vmem:[%s222 + $0x34] sm:$0xf]
        %v1561 = vld [vmem:[%s222 + $0x38] sm:$0x1]
        %v1562 = vld [vmem:[%s222 + $0x3c] sm:$0xe]
        %v1563 = vld [vmem:[%s222 + $0x40] sm:$0xf]
        %v1564 = vld [vmem:[%s222 + $0x44] sm:$0x1]
        %v1565 = vld [vmem:[%s222 + $0x48] sm:$0xe]
        %v1566 = vld [vmem:[%s222 + $0x4c] sm:$0xf]
        %v1567 = vld [vmem:[%s222 + $0x50] sm:$0x1]
        %v1568 = vld [vmem:[%s222 + $0x54] sm:$0xe]
        %v1569 = vld [vmem:[%s222 + $0x58] sm:$0xf]
        %v1570 = vld [vmem:[%s222 + $0x5c] sm:$0x1]
        %v1571 = vld [vmem:[%s222 + $0x60] sm:$0xe]
        %v1572 = vld [vmem:[%s222 + $0x64] sm:$0xf]
        %v1573 = vld [vmem:[%s222 + $0x68] sm:$0x1]
        %v1574 = vld [vmem:[%s222 + $0x6c] sm:$0xe]
        %v1575 = vld [vmem:[%s222 + $0x70] sm:$0xf]
        %v1576 = vld [vmem:[%s222 + $0x74] sm:$0x1]
        %v1577 = vld [vmem:[%s222 + $0x78] sm:$0xe]
        %v1578 = vld [vmem:[%s222 + $0x7c] sm:$0xf]
        %v1579 = vld [vmem:[%s222 + $0x80] sm:$0x1]
        %v1580 = vld [vmem:[%s222 + $0x84] sm:$0xe]
        %v1581 = vld [vmem:[%s222 + $0x88] sm:$0xf]
        %v1582 = vld [vmem:[%s222 + $0x8c] sm:$0x1]
        %v1583 = vld [vmem:[%s222 + $0x90] sm:$0xe]
        %v1584 = vld [vmem:[%s222 + $0x94] sm:$0xf]
        %v1585 = vld [vmem:[%s222 + $0x98] sm:$0x1]
        %v1586 = vld [vmem:[%s222 + $0x9c] sm:$0xe]
        %v1587 = vld [vmem:[%s222 + $0xa0] sm:$0xf]
        %v1588 = vld [vmem:[%s222 + $0xa4] sm:$0x1]
        %v1589 = vld [vmem:[%s222 + $0xa8] sm:$0xe]
        %v1590 = vld [vmem:[%s222 + $0xac] sm:$0xf]
        %v1591 = vld [vmem:[%s222 + $0xb0] sm:$0x1]
        %v1592 = vld [vmem:[%s222 + $0xb4] sm:$0xe]
        %v1593 = vld [vmem:[%s222 + $0xb8] sm:$0xf]
        %v1594 = vld [vmem:[%s222 + $0xbc] sm:$0x1]
        %vm1643 = vcmask 1042432
        %vm1644 = vcmask 1046532
        %vm1645 = vmor %vm1643, %vm1644
        %v1646 = vrot.slane %v1547, 5
        %v1647 = vrot.slane %v1646, 4
        %v1648 = vrot.slane %v1548, 5
        %v1649 = vsel %vm1645, %v1647, %v1648
        %v1650 = vrot.slane %v1648, 4
        %v1651 = vrot.slane %v1549, 5
        %v1652 = vsel %vm1645, %v1650, %v1651
        %v1653 = vrot.slane %v1550, 5
        %v1654 = vrot.slane %v1653, 4
        %v1655 = vrot.slane %v1551, 5
        %v1656 = vsel %vm1645, %v1654, %v1655
        %v1657 = vrot.slane %v1655, 4
        %v1658 = vrot.slane %v1552, 5
        %v1659 = vsel %vm1645, %v1657, %v1658
        %v1660 = vrot.slane %v1553, 5
        %v1661 = vrot.slane %v1660, 4
        %v1662 = vrot.slane %v1554, 5
        %v1663 = vsel %vm1645, %v1661, %v1662
        %v1664 = vrot.slane %v1662, 4
        %v1665 = vrot.slane %v1555, 5
        %v1666 = vsel %vm1645, %v1664, %v1665
        %v1667 = vrot.slane %v1556, 5
        %v1668 = vrot.slane %v1667, 4
        %v1669 = vrot.slane %v1557, 5
        %v1670 = vsel %vm1645, %v1668, %v1669
        %v1671 = vrot.slane %v1669, 4
        %v1672 = vrot.slane %v1558, 5
        %v1673 = vsel %vm1645, %v1671, %v1672
        %v1674 = vrot.slane %v1559, 5
        %v1675 = vrot.slane %v1674, 4
        %v1676 = vrot.slane %v1560, 5
        %v1677 = vsel %vm1645, %v1675, %v1676
        %v1678 = vrot.slane %v1676, 4
        %v1679 = vrot.slane %v1561, 5
        %v1680 = vsel %vm1645, %v1678, %v1679
        %v1681 = vrot.slane %v1562, 5
        %v1682 = vrot.slane %v1681, 4
        %v1683 = vrot.slane %v1563, 5
        %v1684 = vsel %vm1645, %v1682, %v1683
        %v1685 = vrot.slane %v1683, 4
        %v1686 = vrot.slane %v1564, 5
        %v1687 = vsel %vm1645, %v1685, %v1686
        %v1688 = vrot.slane %v1565, 5
        %v1689 = vrot.slane %v1688, 4
        %v1690 = vrot.slane %v1566, 5
        %v1691 = vsel %vm1645, %v1689, %v1690
        %v1692 = vrot.slane %v1690, 4
        %v1693 = vrot.slane %v1567, 5
        %v1694 = vsel %vm1645, %v1692, %v1693
        %v1695 = vrot.slane %v1568, 5
        %v1696 = vrot.slane %v1695, 4
        %v1697 = vrot.slane %v1569, 5
        %v1698 = vsel %vm1645, %v1696, %v1697
        %v1699 = vrot.slane %v1697, 4
        %v1700 = vrot.slane %v1570, 5
        %v1701 = vsel %vm1645, %v1699, %v1700
        %v1702 = vrot.slane %v1571, 5
        %v1703 = vrot.slane %v1702, 4
        %v1704 = vrot.slane %v1572, 5
        %v1705 = vsel %vm1645, %v1703, %v1704
        %v1706 = vrot.slane %v1704, 4
        %v1707 = vrot.slane %v1573, 5
        %v1708 = vsel %vm1645, %v1706, %v1707
        %v1709 = vrot.slane %v1574, 5
        %v1710 = vrot.slane %v1709, 4
        %v1711 = vrot.slane %v1575, 5
        %v1712 = vsel %vm1645, %v1710, %v1711
        %v1713 = vrot.slane %v1711, 4
        %v1714 = vrot.slane %v1576, 5
        %v1715 = vsel %vm1645, %v1713, %v1714
        %v1716 = vrot.slane %v1577, 5
        %v1717 = vrot.slane %v1716, 4
        %v1718 = vrot.slane %v1578, 5
        %v1719 = vsel %vm1645, %v1717, %v1718
        %v1720 = vrot.slane %v1718, 4
        %v1721 = vrot.slane %v1579, 5
        %v1722 = vsel %vm1645, %v1720, %v1721
        %v1723 = vrot.slane %v1580, 5
        %v1724 = vrot.slane %v1723, 4
        %v1725 = vrot.slane %v1581, 5
        %v1726 = vsel %vm1645, %v1724, %v1725
        %v1727 = vrot.slane %v1725, 4
        %v1728 = vrot.slane %v1582, 5
        %v1729 = vsel %vm1645, %v1727, %v1728
        %v1730 = vrot.slane %v1583, 5
        %v1731 = vrot.slane %v1730, 4
        %v1732 = vrot.slane %v1584, 5
        %v1733 = vsel %vm1645, %v1731, %v1732
        %v1734 = vrot.slane %v1732, 4
        %v1735 = vrot.slane %v1585, 5
        %v1736 = vsel %vm1645, %v1734, %v1735
        %v1737 = vrot.slane %v1586, 5
        %v1738 = vrot.slane %v1737, 4
        %v1739 = vrot.slane %v1587, 5
        %v1740 = vsel %vm1645, %v1738, %v1739
        %v1741 = vrot.slane %v1739, 4
        %v1742 = vrot.slane %v1588, 5
        %v1743 = vsel %vm1645, %v1741, %v1742
        %v1744 = vrot.slane %v1589, 5
        %v1745 = vrot.slane %v1744, 4
        %v1746 = vrot.slane %v1590, 5
        %v1747 = vsel %vm1645, %v1745, %v1746
        %v1748 = vrot.slane %v1746, 4
        %v1749 = vrot.slane %v1591, 5
        %v1750 = vsel %vm1645, %v1748, %v1749
        %v1751 = vrot.slane %v1592, 5
        %v1752 = vrot.slane %v1751, 4
        %v1753 = vrot.slane %v1593, 5
        %v1754 = vsel %vm1645, %v1752, %v1753
        %v1755 = vrot.slane %v1753, 4
        %v1756 = vrot.slane %v1594, 5
        %v1757 = vsel %vm1645, %v1755, %v1756
        %s1758 = scalar_lea.vmem %s1, 4
        %v1759 = vld [vmem:[%s1758] sm:$0x3]
        %v1760 = vunpack.c.l.b16 %v1649
        %v1761 = vunpack.c.l.b16 %v1652
        %v1762 = vunpack.c.l.b16 %v1656
        %v1763 = vunpack.c.l.b16 %v1659
        %v1764 = vunpack.c.l.b16 %v1663
        %v1765 = vunpack.c.l.b16 %v1666
        %v1766 = vunpack.c.l.b16 %v1670
        %v1767 = vunpack.c.l.b16 %v1673
        %v1768 = vunpack.c.l.b16 %v1677
        %v1769 = vunpack.c.l.b16 %v1680
        %v1770 = vunpack.c.l.b16 %v1684
        %v1771 = vunpack.c.l.b16 %v1687
        %v1772 = vunpack.c.l.b16 %v1691
        %v1773 = vunpack.c.l.b16 %v1694
        %v1774 = vunpack.c.l.b16 %v1698
        %v1775 = vunpack.c.l.b16 %v1701
        %v1776 = vunpack.c.l.b16 %v1705
        %v1777 = vunpack.c.l.b16 %v1708
        %v1778 = vunpack.c.l.b16 %v1712
        %v1779 = vunpack.c.l.b16 %v1715
        %v1780 = vunpack.c.l.b16 %v1719
        %v1781 = vunpack.c.l.b16 %v1722
        %v1782 = vunpack.c.l.b16 %v1726
        %v1783 = vunpack.c.l.b16 %v1729
        %v1784 = vunpack.c.l.b16 %v1733
        %v1785 = vunpack.c.l.b16 %v1736
        %v1786 = vunpack.c.l.b16 %v1740
        %v1787 = vunpack.c.l.b16 %v1743
        %v1788 = vunpack.c.l.b16 %v1747
        %v1789 = vunpack.c.l.b16 %v1750
        %v1790 = vunpack.c.l.b16 %v1754
        %v1791 = vunpack.c.l.b16 %v1757
        %v1792 = vpack.c.b16 %v1761, %v1760
        %v1793 = vpack.c.b16 %v1763, %v1762
        %v1794 = vpack.c.b16 %v1765, %v1764
        %v1795 = vpack.c.b16 %v1767, %v1766
        %v1796 = vpack.c.b16 %v1769, %v1768
        %v1797 = vpack.c.b16 %v1771, %v1770
        %v1798 = vpack.c.b16 %v1773, %v1772
        %v1799 = vpack.c.b16 %v1775, %v1774
        %v1800 = vpack.c.b16 %v1777, %v1776
        %v1801 = vpack.c.b16 %v1779, %v1778
        %v1802 = vpack.c.b16 %v1781, %v1780
        %v1803 = vpack.c.b16 %v1783, %v1782
        %v1804 = vpack.c.b16 %v1785, %v1784
        %v1805 = vpack.c.b16 %v1787, %v1786
        %v1806 = vpack.c.b16 %v1789, %v1788
        %v1807 = vpack.c.b16 %v1791, %v1790
        %v1809 = vsel %vm337, %v1792, 0
        %v1812 = vsel %vm337, %v1793, 0
        %v1815 = vsel %vm337, %v1794, 0
        %v1818 = vsel %vm337, %v1795, 0
        %v1821 = vsel %vm337, %v1796, 0
        %v1824 = vsel %vm337, %v1797, 0
        %v1827 = vsel %vm337, %v1798, 0
        %v1830 = vsel %vm337, %v1799, 0
        %v1833 = vsel %vm337, %v1800, 0
        %v1836 = vsel %vm337, %v1801, 0
        %v1839 = vsel %vm337, %v1802, 0
        %v1842 = vsel %vm337, %v1803, 0
        %v1845 = vsel %vm337, %v1804, 0
        %v1848 = vsel %vm337, %v1805, 0
        %v1851 = vsel %vm337, %v1806, 0
        %v1854 = vsel %vm337, %v1807, 0
        %v1857 = vsel %vm386, %v1759, 0
        %1859 = vmatpush.bf16.msra.mxu0 0
        %1860 = vmatpush.bf16.msra.mxu0 0
        %1861 = vmatpush.bf16.msra.mxu0 0
        %1862 = vmatpush.bf16.msra.mxu0 0
        %1863 = vmatpush.bf16.msra.mxu0 0
        %1864 = vmatpush.bf16.msra.mxu0 0
        %1865 = vmatpush.bf16.msra.mxu0 0
        %1866 = vmatpush.bf16.msra.mxu0 %v1857
        %1867 = vmatmul.bf16.gmra.mxu0 %v1809
        %v1868 = vpop.f32.mrf.mxu0
        %v1869 = vadd.f32 0.0, %v1868
        %v1870 = vpop.f32.mrf.mxu0
        %v1871 = vadd.f32 0.0, %v1870
        %1872 = vmatmul.bf16.gmra.mxu0 %v1812
        %v1873 = vpop.f32.mrf.mxu0
        %v1874 = vadd.f32 0.0, %v1873
        %v1875 = vpop.f32.mrf.mxu0
        %v1876 = vadd.f32 0.0, %v1875
        %1877 = vmatmul.bf16.gmra.mxu0 %v1815
        %v1878 = vpop.f32.mrf.mxu0
        %v1879 = vadd.f32 0.0, %v1878
        %v1880 = vpop.f32.mrf.mxu0
        %v1881 = vadd.f32 0.0, %v1880
        %1882 = vmatmul.bf16.gmra.mxu0 %v1818
        %v1883 = vpop.f32.mrf.mxu0
        %v1884 = vadd.f32 0.0, %v1883
        %v1885 = vpop.f32.mrf.mxu0
        %v1886 = vadd.f32 0.0, %v1885
        %1887 = vmatmul.bf16.gmra.mxu0 %v1821
        %v1888 = vpop.f32.mrf.mxu0
        %v1889 = vadd.f32 0.0, %v1888
        %v1890 = vpop.f32.mrf.mxu0
        %v1891 = vadd.f32 0.0, %v1890
        %1892 = vmatmul.bf16.gmra.mxu0 %v1824
        %v1893 = vpop.f32.mrf.mxu0
        %v1894 = vadd.f32 0.0, %v1893
        %v1895 = vpop.f32.mrf.mxu0
        %v1896 = vadd.f32 0.0, %v1895
        %1897 = vmatmul.bf16.gmra.mxu0 %v1827
        %v1898 = vpop.f32.mrf.mxu0
        %v1899 = vadd.f32 0.0, %v1898
        %v1900 = vpop.f32.mrf.mxu0
        %v1901 = vadd.f32 0.0, %v1900
        %1902 = vmatmul.bf16.gmra.mxu0 %v1830
        %v1903 = vpop.f32.mrf.mxu0
        %v1904 = vadd.f32 0.0, %v1903
        %v1905 = vpop.f32.mrf.mxu0
        %v1906 = vadd.f32 0.0, %v1905
        %1907 = vmatmul.bf16.gmra.mxu0 %v1833
        %v1908 = vpop.f32.mrf.mxu0
        %v1909 = vadd.f32 0.0, %v1908
        %v1910 = vpop.f32.mrf.mxu0
        %v1911 = vadd.f32 0.0, %v1910
        %1912 = vmatmul.bf16.gmra.mxu0 %v1836
        %v1913 = vpop.f32.mrf.mxu0
        %v1914 = vadd.f32 0.0, %v1913
        %v1915 = vpop.f32.mrf.mxu0
        %v1916 = vadd.f32 0.0, %v1915
        %1917 = vmatmul.bf16.gmra.mxu0 %v1839
        %v1918 = vpop.f32.mrf.mxu0
        %v1919 = vadd.f32 0.0, %v1918
        %v1920 = vpop.f32.mrf.mxu0
        %v1921 = vadd.f32 0.0, %v1920
        %1922 = vmatmul.bf16.gmra.mxu0 %v1842
        %v1923 = vpop.f32.mrf.mxu0
        %v1924 = vadd.f32 0.0, %v1923
        %v1925 = vpop.f32.mrf.mxu0
        %v1926 = vadd.f32 0.0, %v1925
        %1927 = vmatmul.bf16.gmra.mxu0 %v1845
        %v1928 = vpop.f32.mrf.mxu0
        %v1929 = vadd.f32 0.0, %v1928
        %v1930 = vpop.f32.mrf.mxu0
        %v1931 = vadd.f32 0.0, %v1930
        %1932 = vmatmul.bf16.gmra.mxu0 %v1848
        %v1933 = vpop.f32.mrf.mxu0
        %v1934 = vadd.f32 0.0, %v1933
        %v1935 = vpop.f32.mrf.mxu0
        %v1936 = vadd.f32 0.0, %v1935
        %1937 = vmatmul.bf16.gmra.mxu0 %v1851
        %v1938 = vpop.f32.mrf.mxu0
        %v1939 = vadd.f32 0.0, %v1938
        %v1940 = vpop.f32.mrf.mxu0
        %v1941 = vadd.f32 0.0, %v1940
        %1942 = vmatmul.bf16.gmra.mxu0 %v1854
        %v1943 = vpop.f32.mrf.mxu0
        %v1944 = vadd.f32 0.0, %v1943
        %v1945 = vpop.f32.mrf.mxu0
        %v1946 = vadd.f32 0.0, %v1945
        %1947 = vdwg.mxu0
        %s1948 = scalar_lea.vmem %s2, 4
        %v1949 = vld [vmem:[%s1948] sm:$0x3]
        %v1951 = vsel %vm386, %v1949, 0
        %1953 = vmatpush.bf16.msra.mxu0 0
        %1954 = vmatpush.bf16.msra.mxu0 0
        %1955 = vmatpush.bf16.msra.mxu0 0
        %1956 = vmatpush.bf16.msra.mxu0 0
        %1957 = vmatpush.bf16.msra.mxu0 0
        %1958 = vmatpush.bf16.msra.mxu0 0
        %1959 = vmatpush.bf16.msra.mxu0 0
        %1960 = vmatpush.bf16.msra.mxu0 %v1951
        %1961 = vmatmul.bf16.gmra.mxu0 %v1809
        %v1962 = vpop.f32.mrf.mxu0
        %v1963 = vadd.f32 0.0, %v1962
        %v1964 = vpop.f32.mrf.mxu0
        %v1965 = vadd.f32 0.0, %v1964
        %1966 = vmatmul.bf16.gmra.mxu0 %v1812
        %v1967 = vpop.f32.mrf.mxu0
        %v1968 = vadd.f32 0.0, %v1967
        %v1969 = vpop.f32.mrf.mxu0
        %v1970 = vadd.f32 0.0, %v1969
        %1971 = vmatmul.bf16.gmra.mxu0 %v1815
        %v1972 = vpop.f32.mrf.mxu0
        %v1973 = vadd.f32 0.0, %v1972
        %v1974 = vpop.f32.mrf.mxu0
        %v1975 = vadd.f32 0.0, %v1974
        %1976 = vmatmul.bf16.gmra.mxu0 %v1818
        %v1977 = vpop.f32.mrf.mxu0
        %v1978 = vadd.f32 0.0, %v1977
        %v1979 = vpop.f32.mrf.mxu0
        %v1980 = vadd.f32 0.0, %v1979
        %1981 = vmatmul.bf16.gmra.mxu0 %v1821
        %v1982 = vpop.f32.mrf.mxu0
        %v1983 = vadd.f32 0.0, %v1982
        %v1984 = vpop.f32.mrf.mxu0
        %v1985 = vadd.f32 0.0, %v1984
        %1986 = vmatmul.bf16.gmra.mxu0 %v1824
        %v1987 = vpop.f32.mrf.mxu0
        %v1988 = vadd.f32 0.0, %v1987
        %v1989 = vpop.f32.mrf.mxu0
        %v1990 = vadd.f32 0.0, %v1989
        %1991 = vmatmul.bf16.gmra.mxu0 %v1827
        %v1992 = vpop.f32.mrf.mxu0
        %v1993 = vadd.f32 0.0, %v1992
        %v1994 = vpop.f32.mrf.mxu0
        %v1995 = vadd.f32 0.0, %v1994
        %1996 = vmatmul.bf16.gmra.mxu0 %v1830
        %v1997 = vpop.f32.mrf.mxu0
        %v1998 = vadd.f32 0.0, %v1997
        %v1999 = vpop.f32.mrf.mxu0
        %v2000 = vadd.f32 0.0, %v1999
        %2001 = vmatmul.bf16.gmra.mxu0 %v1833
        %v2002 = vpop.f32.mrf.mxu0
        %v2003 = vadd.f32 0.0, %v2002
        %v2004 = vpop.f32.mrf.mxu0
        %v2005 = vadd.f32 0.0, %v2004
        %2006 = vmatmul.bf16.gmra.mxu0 %v1836
        %v2007 = vpop.f32.mrf.mxu0
        %v2008 = vadd.f32 0.0, %v2007
        %v2009 = vpop.f32.mrf.mxu0
        %v2010 = vadd.f32 0.0, %v2009
        %2011 = vmatmul.bf16.gmra.mxu0 %v1839
        %v2012 = vpop.f32.mrf.mxu0
        %v2013 = vadd.f32 0.0, %v2012
        %v2014 = vpop.f32.mrf.mxu0
        %v2015 = vadd.f32 0.0, %v2014
        %2016 = vmatmul.bf16.gmra.mxu0 %v1842
        %v2017 = vpop.f32.mrf.mxu0
        %v2018 = vadd.f32 0.0, %v2017
        %v2019 = vpop.f32.mrf.mxu0
        %v2020 = vadd.f32 0.0, %v2019
        %2021 = vmatmul.bf16.gmra.mxu0 %v1845
        %v2022 = vpop.f32.mrf.mxu0
        %v2023 = vadd.f32 0.0, %v2022
        %v2024 = vpop.f32.mrf.mxu0
        %v2025 = vadd.f32 0.0, %v2024
        %2026 = vmatmul.bf16.gmra.mxu0 %v1848
        %v2027 = vpop.f32.mrf.mxu0
        %v2028 = vadd.f32 0.0, %v2027
        %v2029 = vpop.f32.mrf.mxu0
        %v2030 = vadd.f32 0.0, %v2029
        %2031 = vmatmul.bf16.gmra.mxu0 %v1851
        %v2032 = vpop.f32.mrf.mxu0
        %v2033 = vadd.f32 0.0, %v2032
        %v2034 = vpop.f32.mrf.mxu0
        %v2035 = vadd.f32 0.0, %v2034
        %2036 = vmatmul.bf16.gmra.mxu0 %v1854
        %v2037 = vpop.f32.mrf.mxu0
        %v2038 = vadd.f32 0.0, %v2037
        %v2039 = vpop.f32.mrf.mxu0
        %v2040 = vadd.f32 0.0, %v2039
        %2041 = vdwg.mxu0
        %v2042 = vld [vmem:[#allocation2] sm:$0xff]
        %v2043 = vld [vmem:[#allocation2 + $0x8] sm:$0xff]
        %v2044 = vld [vmem:[#allocation2 + $0x10] sm:$0xff]
        %v2045 = vld [vmem:[#allocation2 + $0x18] sm:$0xff]
        %v2046 = vld [vmem:[#allocation2 + $0x20] sm:$0xff]
        %v2047 = vld [vmem:[#allocation2 + $0x28] sm:$0xff]
        %v2048 = vld [vmem:[#allocation2 + $0x30] sm:$0xff]
        %v2049 = vld [vmem:[#allocation2 + $0x38] sm:$0xff]
        %v2050 = vld [vmem:[#allocation2 + $0x40] sm:$0xff]
        %v2051 = vld [vmem:[#allocation2 + $0x48] sm:$0xff]
        %v2052 = vld [vmem:[#allocation2 + $0x50] sm:$0xff]
        %v2053 = vld [vmem:[#allocation2 + $0x58] sm:$0xff]
        %v2054 = vld [vmem:[#allocation2 + $0x60] sm:$0xff]
        %v2055 = vld [vmem:[#allocation2 + $0x68] sm:$0xff]
        %v2056 = vld [vmem:[#allocation2 + $0x70] sm:$0xff]
        %v2057 = vld [vmem:[#allocation2 + $0x78] sm:$0xff]
        %v2058 = vld [vmem:[#allocation2 + $0x80] sm:$0xff]
        %v2059 = vld [vmem:[#allocation2 + $0x88] sm:$0xff]
        %v2060 = vld [vmem:[#allocation2 + $0x90] sm:$0xff]
        %v2061 = vld [vmem:[#allocation2 + $0x98] sm:$0xff]
        %v2062 = vld [vmem:[#allocation2 + $0xa0] sm:$0xff]
        %v2063 = vld [vmem:[#allocation2 + $0xa8] sm:$0xff]
        %v2064 = vld [vmem:[#allocation2 + $0xb0] sm:$0xff]
        %v2065 = vld [vmem:[#allocation2 + $0xb8] sm:$0xff]
        %v2066 = vld [vmem:[#allocation2 + $0xc0] sm:$0xff]
        %v2067 = vld [vmem:[#allocation2 + $0xc8] sm:$0xff]
        %v2068 = vld [vmem:[#allocation2 + $0xd0] sm:$0xff]
        %v2069 = vld [vmem:[#allocation2 + $0xd8] sm:$0xff]
        %v2070 = vld [vmem:[#allocation2 + $0xe0] sm:$0xff]
        %v2071 = vld [vmem:[#allocation2 + $0xe8] sm:$0xff]
        %v2072 = vld [vmem:[#allocation2 + $0xf0] sm:$0xff]
        %v2073 = vld [vmem:[#allocation2 + $0xf8] sm:$0xff]
        %v2074 = vadd.f32 %v2042, %v1869
        %v2075 = vadd.f32 %v2043, %v1871
        %v2076 = vadd.f32 %v2044, %v1874
        %v2077 = vadd.f32 %v2045, %v1876
        %v2078 = vadd.f32 %v2046, %v1879
        %v2079 = vadd.f32 %v2047, %v1881
        %v2080 = vadd.f32 %v2048, %v1884
        %v2081 = vadd.f32 %v2049, %v1886
        %v2082 = vadd.f32 %v2050, %v1889
        %v2083 = vadd.f32 %v2051, %v1891
        %v2084 = vadd.f32 %v2052, %v1894
        %v2085 = vadd.f32 %v2053, %v1896
        %v2086 = vadd.f32 %v2054, %v1899
        %v2087 = vadd.f32 %v2055, %v1901
        %v2088 = vadd.f32 %v2056, %v1904
        %v2089 = vadd.f32 %v2057, %v1906
        %v2090 = vadd.f32 %v2058, %v1909
        %v2091 = vadd.f32 %v2059, %v1911
        %v2092 = vadd.f32 %v2060, %v1914
        %v2093 = vadd.f32 %v2061, %v1916
        %v2094 = vadd.f32 %v2062, %v1919
        %v2095 = vadd.f32 %v2063, %v1921
        %v2096 = vadd.f32 %v2064, %v1924
        %v2097 = vadd.f32 %v2065, %v1926
        %v2098 = vadd.f32 %v2066, %v1929
        %v2099 = vadd.f32 %v2067, %v1931
        %v2100 = vadd.f32 %v2068, %v1934
        %v2101 = vadd.f32 %v2069, %v1936
        %v2102 = vadd.f32 %v2070, %v1939
        %v2103 = vadd.f32 %v2071, %v1941
        %v2104 = vadd.f32 %v2072, %v1944
        %v2105 = vadd.f32 %v2073, %v1946
        %2106 = vst [vmem:[#allocation2] sm:$0xff] %v2074
        %2107 = vst [vmem:[#allocation2 + $0x8] sm:$0xff] %v2075
        %2108 = vst [vmem:[#allocation2 + $0x10] sm:$0xff] %v2076
        %2109 = vst [vmem:[#allocation2 + $0x18] sm:$0xff] %v2077
        %2110 = vst [vmem:[#allocation2 + $0x20] sm:$0xff] %v2078
        %2111 = vst [vmem:[#allocation2 + $0x28] sm:$0xff] %v2079
        %2112 = vst [vmem:[#allocation2 + $0x30] sm:$0xff] %v2080
        %2113 = vst [vmem:[#allocation2 + $0x38] sm:$0xff] %v2081
        %2114 = vst [vmem:[#allocation2 + $0x40] sm:$0xff] %v2082
        %2115 = vst [vmem:[#allocation2 + $0x48] sm:$0xff] %v2083
        %2116 = vst [vmem:[#allocation2 + $0x50] sm:$0xff] %v2084
        %2117 = vst [vmem:[#allocation2 + $0x58] sm:$0xff] %v2085
        %2118 = vst [vmem:[#allocation2 + $0x60] sm:$0xff] %v2086
        %2119 = vst [vmem:[#allocation2 + $0x68] sm:$0xff] %v2087
        %2120 = vst [vmem:[#allocation2 + $0x70] sm:$0xff] %v2088
        %2121 = vst [vmem:[#allocation2 + $0x78] sm:$0xff] %v2089
        %2122 = vst [vmem:[#allocation2 + $0x80] sm:$0xff] %v2090
        %2123 = vst [vmem:[#allocation2 + $0x88] sm:$0xff] %v2091
        %2124 = vst [vmem:[#allocation2 + $0x90] sm:$0xff] %v2092
        %2125 = vst [vmem:[#allocation2 + $0x98] sm:$0xff] %v2093
        %2126 = vst [vmem:[#allocation2 + $0xa0] sm:$0xff] %v2094
        %2127 = vst [vmem:[#allocation2 + $0xa8] sm:$0xff] %v2095
        %2128 = vst [vmem:[#allocation2 + $0xb0] sm:$0xff] %v2096
        %2129 = vst [vmem:[#allocation2 + $0xb8] sm:$0xff] %v2097
        %2130 = vst [vmem:[#allocation2 + $0xc0] sm:$0xff] %v2098
        %2131 = vst [vmem:[#allocation2 + $0xc8] sm:$0xff] %v2099
        %2132 = vst [vmem:[#allocation2 + $0xd0] sm:$0xff] %v2100
        %2133 = vst [vmem:[#allocation2 + $0xd8] sm:$0xff] %v2101
        %2134 = vst [vmem:[#allocation2 + $0xe0] sm:$0xff] %v2102
        %2135 = vst [vmem:[#allocation2 + $0xe8] sm:$0xff] %v2103
        %2136 = vst [vmem:[#allocation2 + $0xf0] sm:$0xff] %v2104
        %2137 = vst [vmem:[#allocation2 + $0xf8] sm:$0xff] %v2105
        %v2138 = vld [vmem:[#allocation3] sm:$0xff]
        %v2139 = vld [vmem:[#allocation3 + $0x8] sm:$0xff]
        %v2140 = vld [vmem:[#allocation3 + $0x10] sm:$0xff]
        %v2141 = vld [vmem:[#allocation3 + $0x18] sm:$0xff]
        %v2142 = vld [vmem:[#allocation3 + $0x20] sm:$0xff]
        %v2143 = vld [vmem:[#allocation3 + $0x28] sm:$0xff]
        %v2144 = vld [vmem:[#allocation3 + $0x30] sm:$0xff]
        %v2145 = vld [vmem:[#allocation3 + $0x38] sm:$0xff]
        %v2146 = vld [vmem:[#allocation3 + $0x40] sm:$0xff]
        %v2147 = vld [vmem:[#allocation3 + $0x48] sm:$0xff]
        %v2148 = vld [vmem:[#allocation3 + $0x50] sm:$0xff]
        %v2149 = vld [vmem:[#allocation3 + $0x58] sm:$0xff]
        %v2150 = vld [vmem:[#allocation3 + $0x60] sm:$0xff]
        %v2151 = vld [vmem:[#allocation3 + $0x68] sm:$0xff]
        %v2152 = vld [vmem:[#allocation3 + $0x70] sm:$0xff]
        %v2153 = vld [vmem:[#allocation3 + $0x78] sm:$0xff]
        %v2154 = vld [vmem:[#allocation3 + $0x80] sm:$0xff]
        %v2155 = vld [vmem:[#allocation3 + $0x88] sm:$0xff]
        %v2156 = vld [vmem:[#allocation3 + $0x90] sm:$0xff]
        %v2157 = vld [vmem:[#allocation3 + $0x98] sm:$0xff]
        %v2158 = vld [vmem:[#allocation3 + $0xa0] sm:$0xff]
        %v2159 = vld [vmem:[#allocation3 + $0xa8] sm:$0xff]
        %v2160 = vld [vmem:[#allocation3 + $0xb0] sm:$0xff]
        %v2161 = vld [vmem:[#allocation3 + $0xb8] sm:$0xff]
        %v2162 = vld [vmem:[#allocation3 + $0xc0] sm:$0xff]
        %v2163 = vld [vmem:[#allocation3 + $0xc8] sm:$0xff]
        %v2164 = vld [vmem:[#allocation3 + $0xd0] sm:$0xff]
        %v2165 = vld [vmem:[#allocation3 + $0xd8] sm:$0xff]
        %v2166 = vld [vmem:[#allocation3 + $0xe0] sm:$0xff]
        %v2167 = vld [vmem:[#allocation3 + $0xe8] sm:$0xff]
        %v2168 = vld [vmem:[#allocation3 + $0xf0] sm:$0xff]
        %v2169 = vld [vmem:[#allocation3 + $0xf8] sm:$0xff]
        %v2170 = vadd.f32 %v2138, %v1963
        %v2171 = vadd.f32 %v2139, %v1965
        %v2172 = vadd.f32 %v2140, %v1968
        %v2173 = vadd.f32 %v2141, %v1970
        %v2174 = vadd.f32 %v2142, %v1973
        %v2175 = vadd.f32 %v2143, %v1975
        %v2176 = vadd.f32 %v2144, %v1978
        %v2177 = vadd.f32 %v2145, %v1980
        %v2178 = vadd.f32 %v2146, %v1983
        %v2179 = vadd.f32 %v2147, %v1985
        %v2180 = vadd.f32 %v2148, %v1988
        %v2181 = vadd.f32 %v2149, %v1990
        %v2182 = vadd.f32 %v2150, %v1993
        %v2183 = vadd.f32 %v2151, %v1995
        %v2184 = vadd.f32 %v2152, %v1998
        %v2185 = vadd.f32 %v2153, %v2000
        %v2186 = vadd.f32 %v2154, %v2003
        %v2187 = vadd.f32 %v2155, %v2005
        %v2188 = vadd.f32 %v2156, %v2008
        %v2189 = vadd.f32 %v2157, %v2010
        %v2190 = vadd.f32 %v2158, %v2013
        %v2191 = vadd.f32 %v2159, %v2015
        %v2192 = vadd.f32 %v2160, %v2018
        %v2193 = vadd.f32 %v2161, %v2020
        %v2194 = vadd.f32 %v2162, %v2023
        %v2195 = vadd.f32 %v2163, %v2025
        %v2196 = vadd.f32 %v2164, %v2028
        %v2197 = vadd.f32 %v2165, %v2030
        %v2198 = vadd.f32 %v2166, %v2033
        %v2199 = vadd.f32 %v2167, %v2035
        %v2200 = vadd.f32 %v2168, %v2038
        %v2201 = vadd.f32 %v2169, %v2040
        %2202 = vst [vmem:[#allocation3] sm:$0xff] %v2170
        %2203 = vst [vmem:[#allocation3 + $0x8] sm:$0xff] %v2171
        %2204 = vst [vmem:[#allocation3 + $0x10] sm:$0xff] %v2172
        %2205 = vst [vmem:[#allocation3 + $0x18] sm:$0xff] %v2173
        %2206 = vst [vmem:[#allocation3 + $0x20] sm:$0xff] %v2174
        %2207 = vst [vmem:[#allocation3 + $0x28] sm:$0xff] %v2175
        %2208 = vst [vmem:[#allocation3 + $0x30] sm:$0xff] %v2176
        %2209 = vst [vmem:[#allocation3 + $0x38] sm:$0xff] %v2177
        %2210 = vst [vmem:[#allocation3 + $0x40] sm:$0xff] %v2178
        %2211 = vst [vmem:[#allocation3 + $0x48] sm:$0xff] %v2179
        %2212 = vst [vmem:[#allocation3 + $0x50] sm:$0xff] %v2180
        %2213 = vst [vmem:[#allocation3 + $0x58] sm:$0xff] %v2181
        %2214 = vst [vmem:[#allocation3 + $0x60] sm:$0xff] %v2182
        %2215 = vst [vmem:[#allocation3 + $0x68] sm:$0xff] %v2183
        %2216 = vst [vmem:[#allocation3 + $0x70] sm:$0xff] %v2184
        %2217 = vst [vmem:[#allocation3 + $0x78] sm:$0xff] %v2185
        %2218 = vst [vmem:[#allocation3 + $0x80] sm:$0xff] %v2186
        %2219 = vst [vmem:[#allocation3 + $0x88] sm:$0xff] %v2187
        %2220 = vst [vmem:[#allocation3 + $0x90] sm:$0xff] %v2188
        %2221 = vst [vmem:[#allocation3 + $0x98] sm:$0xff] %v2189
        %2222 = vst [vmem:[#allocation3 + $0xa0] sm:$0xff] %v2190
        %2223 = vst [vmem:[#allocation3 + $0xa8] sm:$0xff] %v2191
        %2224 = vst [vmem:[#allocation3 + $0xb0] sm:$0xff] %v2192
        %2225 = vst [vmem:[#allocation3 + $0xb8] sm:$0xff] %v2193
        %2226 = vst [vmem:[#allocation3 + $0xc0] sm:$0xff] %v2194
        %2227 = vst [vmem:[#allocation3 + $0xc8] sm:$0xff] %v2195
        %2228 = vst [vmem:[#allocation3 + $0xd0] sm:$0xff] %v2196
        %2229 = vst [vmem:[#allocation3 + $0xd8] sm:$0xff] %v2197
        %2230 = vst [vmem:[#allocation3 + $0xe0] sm:$0xff] %v2198
        %2231 = vst [vmem:[#allocation3 + $0xe8] sm:$0xff] %v2199
        %2232 = vst [vmem:[#allocation3 + $0xf0] sm:$0xff] %v2200
        %2233 = vst [vmem:[#allocation3 + $0xf8] sm:$0xff] %v2201
        %s2234 = scalar_lea.vmem %s222, 12
        %v2235 = vld [vmem:[%s2234] sm:$0xf]
        %v2236 = vld [vmem:[%s2234 + $0x4] sm:$0xf]
        %v2237 = vld [vmem:[%s2234 + $0xc] sm:$0xf]
        %v2238 = vld [vmem:[%s2234 + $0x10] sm:$0xf]
        %v2239 = vld [vmem:[%s2234 + $0x18] sm:$0xf]
        %v2240 = vld [vmem:[%s2234 + $0x1c] sm:$0xf]
        %v2241 = vld [vmem:[%s2234 + $0x24] sm:$0xf]
        %v2242 = vld [vmem:[%s2234 + $0x28] sm:$0xf]
        %v2243 = vld [vmem:[%s2234 + $0x30] sm:$0xf]
        %v2244 = vld [vmem:[%s2234 + $0x34] sm:$0xf]
        %v2245 = vld [vmem:[%s2234 + $0x3c] sm:$0xf]
        %v2246 = vld [vmem:[%s2234 + $0x40] sm:$0xf]
        %v2247 = vld [vmem:[%s2234 + $0x48] sm:$0xf]
        %v2248 = vld [vmem:[%s2234 + $0x4c] sm:$0xf]
        %v2249 = vld [vmem:[%s2234 + $0x54] sm:$0xf]
        %v2250 = vld [vmem:[%s2234 + $0x58] sm:$0xf]
        %v2251 = vld [vmem:[%s2234 + $0x60] sm:$0xf]
        %v2252 = vld [vmem:[%s2234 + $0x64] sm:$0xf]
        %v2253 = vld [vmem:[%s2234 + $0x6c] sm:$0xf]
        %v2254 = vld [vmem:[%s2234 + $0x70] sm:$0xf]
        %v2255 = vld [vmem:[%s2234 + $0x78] sm:$0xf]
        %v2256 = vld [vmem:[%s2234 + $0x7c] sm:$0xf]
        %v2257 = vld [vmem:[%s2234 + $0x84] sm:$0xf]
        %v2258 = vld [vmem:[%s2234 + $0x88] sm:$0xf]
        %v2259 = vld [vmem:[%s2234 + $0x90] sm:$0xf]
        %v2260 = vld [vmem:[%s2234 + $0x94] sm:$0xf]
        %v2261 = vld [vmem:[%s2234 + $0x9c] sm:$0xf]
        %v2262 = vld [vmem:[%s2234 + $0xa0] sm:$0xf]
        %v2263 = vld [vmem:[%s2234 + $0xa8] sm:$0xf]
        %v2264 = vld [vmem:[%s2234 + $0xac] sm:$0xf]
        %v2265 = vld [vmem:[%s2234 + $0xb4] sm:$0xf]
        %v2266 = vld [vmem:[%s2234 + $0xb8] sm:$0xf]
        %s2267 = scalar_lea.vmem %s1, 6
        %v2268 = vld [vmem:[%s2267] sm:$0x3]
        %v2301 = vunpack.c.l.b16 %v2235
        %v2302 = vunpack.c.l.b16 %v2236
        %v2303 = vunpack.c.l.b16 %v2237
        %v2304 = vunpack.c.l.b16 %v2238
        %v2305 = vunpack.c.l.b16 %v2239
        %v2306 = vunpack.c.l.b16 %v2240
        %v2307 = vunpack.c.l.b16 %v2241
        %v2308 = vunpack.c.l.b16 %v2242
        %v2309 = vunpack.c.l.b16 %v2243
        %v2310 = vunpack.c.l.b16 %v2244
        %v2311 = vunpack.c.l.b16 %v2245
        %v2312 = vunpack.c.l.b16 %v2246
        %v2313 = vunpack.c.l.b16 %v2247
        %v2314 = vunpack.c.l.b16 %v2248
        %v2315 = vunpack.c.l.b16 %v2249
        %v2316 = vunpack.c.l.b16 %v2250
        %v2317 = vunpack.c.l.b16 %v2251
        %v2318 = vunpack.c.l.b16 %v2252
        %v2319 = vunpack.c.l.b16 %v2253
        %v2320 = vunpack.c.l.b16 %v2254
        %v2321 = vunpack.c.l.b16 %v2255
        %v2322 = vunpack.c.l.b16 %v2256
        %v2323 = vunpack.c.l.b16 %v2257
        %v2324 = vunpack.c.l.b16 %v2258
        %v2325 = vunpack.c.l.b16 %v2259
        %v2326 = vunpack.c.l.b16 %v2260
        %v2327 = vunpack.c.l.b16 %v2261
        %v2328 = vunpack.c.l.b16 %v2262
        %v2329 = vunpack.c.l.b16 %v2263
        %v2330 = vunpack.c.l.b16 %v2264
        %v2331 = vunpack.c.l.b16 %v2265
        %v2332 = vunpack.c.l.b16 %v2266
        %v2333 = vpack.c.b16 %v2302, %v2301
        %v2334 = vpack.c.b16 %v2304, %v2303
        %v2335 = vpack.c.b16 %v2306, %v2305
        %v2336 = vpack.c.b16 %v2308, %v2307
        %v2337 = vpack.c.b16 %v2310, %v2309
        %v2338 = vpack.c.b16 %v2312, %v2311
        %v2339 = vpack.c.b16 %v2314, %v2313
        %v2340 = vpack.c.b16 %v2316, %v2315
        %v2341 = vpack.c.b16 %v2318, %v2317
        %v2342 = vpack.c.b16 %v2320, %v2319
        %v2343 = vpack.c.b16 %v2322, %v2321
        %v2344 = vpack.c.b16 %v2324, %v2323
        %v2345 = vpack.c.b16 %v2326, %v2325
        %v2346 = vpack.c.b16 %v2328, %v2327
        %v2347 = vpack.c.b16 %v2330, %v2329
        %v2348 = vpack.c.b16 %v2332, %v2331
        %v2350 = vsel %vm337, %v2333, 0
        %v2353 = vsel %vm337, %v2334, 0
        %v2356 = vsel %vm337, %v2335, 0
        %v2359 = vsel %vm337, %v2336, 0
        %v2362 = vsel %vm337, %v2337, 0
        %v2365 = vsel %vm337, %v2338, 0
        %v2368 = vsel %vm337, %v2339, 0
        %v2371 = vsel %vm337, %v2340, 0
        %v2374 = vsel %vm337, %v2341, 0
        %v2377 = vsel %vm337, %v2342, 0
        %v2380 = vsel %vm337, %v2343, 0
        %v2383 = vsel %vm337, %v2344, 0
        %v2386 = vsel %vm337, %v2345, 0
        %v2389 = vsel %vm337, %v2346, 0
        %v2392 = vsel %vm337, %v2347, 0
        %v2395 = vsel %vm337, %v2348, 0
        %v2398 = vsel %vm386, %v2268, 0
        %2400 = vmatpush.bf16.msra.mxu0 0
        %2401 = vmatpush.bf16.msra.mxu0 0
        %2402 = vmatpush.bf16.msra.mxu0 0
        %2403 = vmatpush.bf16.msra.mxu0 0
        %2404 = vmatpush.bf16.msra.mxu0 0
        %2405 = vmatpush.bf16.msra.mxu0 0
        %2406 = vmatpush.bf16.msra.mxu0 0
        %2407 = vmatpush.bf16.msra.mxu0 %v2398
        %2408 = vmatmul.bf16.gmra.mxu0 %v2350
        %v2409 = vpop.f32.mrf.mxu0
        %v2410 = vadd.f32 0.0, %v2409
        %v2411 = vpop.f32.mrf.mxu0
        %v2412 = vadd.f32 0.0, %v2411
        %2413 = vmatmul.bf16.gmra.mxu0 %v2353
        %v2414 = vpop.f32.mrf.mxu0
        %v2415 = vadd.f32 0.0, %v2414
        %v2416 = vpop.f32.mrf.mxu0
        %v2417 = vadd.f32 0.0, %v2416
        %2418 = vmatmul.bf16.gmra.mxu0 %v2356
        %v2419 = vpop.f32.mrf.mxu0
        %v2420 = vadd.f32 0.0, %v2419
        %v2421 = vpop.f32.mrf.mxu0
        %v2422 = vadd.f32 0.0, %v2421
        %2423 = vmatmul.bf16.gmra.mxu0 %v2359
        %v2424 = vpop.f32.mrf.mxu0
        %v2425 = vadd.f32 0.0, %v2424
        %v2426 = vpop.f32.mrf.mxu0
        %v2427 = vadd.f32 0.0, %v2426
        %2428 = vmatmul.bf16.gmra.mxu0 %v2362
        %v2429 = vpop.f32.mrf.mxu0
        %v2430 = vadd.f32 0.0, %v2429
        %v2431 = vpop.f32.mrf.mxu0
        %v2432 = vadd.f32 0.0, %v2431
        %2433 = vmatmul.bf16.gmra.mxu0 %v2365
        %v2434 = vpop.f32.mrf.mxu0
        %v2435 = vadd.f32 0.0, %v2434
        %v2436 = vpop.f32.mrf.mxu0
        %v2437 = vadd.f32 0.0, %v2436
        %2438 = vmatmul.bf16.gmra.mxu0 %v2368
        %v2439 = vpop.f32.mrf.mxu0
        %v2440 = vadd.f32 0.0, %v2439
        %v2441 = vpop.f32.mrf.mxu0
        %v2442 = vadd.f32 0.0, %v2441
        %2443 = vmatmul.bf16.gmra.mxu0 %v2371
        %v2444 = vpop.f32.mrf.mxu0
        %v2445 = vadd.f32 0.0, %v2444
        %v2446 = vpop.f32.mrf.mxu0
        %v2447 = vadd.f32 0.0, %v2446
        %2448 = vmatmul.bf16.gmra.mxu0 %v2374
        %v2449 = vpop.f32.mrf.mxu0
        %v2450 = vadd.f32 0.0, %v2449
        %v2451 = vpop.f32.mrf.mxu0
        %v2452 = vadd.f32 0.0, %v2451
        %2453 = vmatmul.bf16.gmra.mxu0 %v2377
        %v2454 = vpop.f32.mrf.mxu0
        %v2455 = vadd.f32 0.0, %v2454
        %v2456 = vpop.f32.mrf.mxu0
        %v2457 = vadd.f32 0.0, %v2456
        %2458 = vmatmul.bf16.gmra.mxu0 %v2380
        %v2459 = vpop.f32.mrf.mxu0
        %v2460 = vadd.f32 0.0, %v2459
        %v2461 = vpop.f32.mrf.mxu0
        %v2462 = vadd.f32 0.0, %v2461
        %2463 = vmatmul.bf16.gmra.mxu0 %v2383
        %v2464 = vpop.f32.mrf.mxu0
        %v2465 = vadd.f32 0.0, %v2464
        %v2466 = vpop.f32.mrf.mxu0
        %v2467 = vadd.f32 0.0, %v2466
        %2468 = vmatmul.bf16.gmra.mxu0 %v2386
        %v2469 = vpop.f32.mrf.mxu0
        %v2470 = vadd.f32 0.0, %v2469
        %v2471 = vpop.f32.mrf.mxu0
        %v2472 = vadd.f32 0.0, %v2471
        %2473 = vmatmul.bf16.gmra.mxu0 %v2389
        %v2474 = vpop.f32.mrf.mxu0
        %v2475 = vadd.f32 0.0, %v2474
        %v2476 = vpop.f32.mrf.mxu0
        %v2477 = vadd.f32 0.0, %v2476
        %2478 = vmatmul.bf16.gmra.mxu0 %v2392
        %v2479 = vpop.f32.mrf.mxu0
        %v2480 = vadd.f32 0.0, %v2479
        %v2481 = vpop.f32.mrf.mxu0
        %v2482 = vadd.f32 0.0, %v2481
        %2483 = vmatmul.bf16.gmra.mxu0 %v2395
        %v2484 = vpop.f32.mrf.mxu0
        %v2485 = vadd.f32 0.0, %v2484
        %v2486 = vpop.f32.mrf.mxu0
        %v2487 = vadd.f32 0.0, %v2486
        %2488 = vdwg.mxu0
        %s2489 = scalar_lea.vmem %s2, 6
        %v2490 = vld [vmem:[%s2489] sm:$0x3]
        %v2492 = vsel %vm386, %v2490, 0
        %2494 = vmatpush.bf16.msra.mxu0 0
        %2495 = vmatpush.bf16.msra.mxu0 0
        %2496 = vmatpush.bf16.msra.mxu0 0
        %2497 = vmatpush.bf16.msra.mxu0 0
        %2498 = vmatpush.bf16.msra.mxu0 0
        %2499 = vmatpush.bf16.msra.mxu0 0
        %2500 = vmatpush.bf16.msra.mxu0 0
        %2501 = vmatpush.bf16.msra.mxu0 %v2492
        %2502 = vmatmul.bf16.gmra.mxu0 %v2350
        %v2503 = vpop.f32.mrf.mxu0
        %v2504 = vadd.f32 0.0, %v2503
        %v2505 = vpop.f32.mrf.mxu0
        %v2506 = vadd.f32 0.0, %v2505
        %2507 = vmatmul.bf16.gmra.mxu0 %v2353
        %v2508 = vpop.f32.mrf.mxu0
        %v2509 = vadd.f32 0.0, %v2508
        %v2510 = vpop.f32.mrf.mxu0
        %v2511 = vadd.f32 0.0, %v2510
        %2512 = vmatmul.bf16.gmra.mxu0 %v2356
        %v2513 = vpop.f32.mrf.mxu0
        %v2514 = vadd.f32 0.0, %v2513
        %v2515 = vpop.f32.mrf.mxu0
        %v2516 = vadd.f32 0.0, %v2515
        %2517 = vmatmul.bf16.gmra.mxu0 %v2359
        %v2518 = vpop.f32.mrf.mxu0
        %v2519 = vadd.f32 0.0, %v2518
        %v2520 = vpop.f32.mrf.mxu0
        %v2521 = vadd.f32 0.0, %v2520
        %2522 = vmatmul.bf16.gmra.mxu0 %v2362
        %v2523 = vpop.f32.mrf.mxu0
        %v2524 = vadd.f32 0.0, %v2523
        %v2525 = vpop.f32.mrf.mxu0
        %v2526 = vadd.f32 0.0, %v2525
        %2527 = vmatmul.bf16.gmra.mxu0 %v2365
        %v2528 = vpop.f32.mrf.mxu0
        %v2529 = vadd.f32 0.0, %v2528
        %v2530 = vpop.f32.mrf.mxu0
        %v2531 = vadd.f32 0.0, %v2530
        %2532 = vmatmul.bf16.gmra.mxu0 %v2368
        %v2533 = vpop.f32.mrf.mxu0
        %v2534 = vadd.f32 0.0, %v2533
        %v2535 = vpop.f32.mrf.mxu0
        %v2536 = vadd.f32 0.0, %v2535
        %2537 = vmatmul.bf16.gmra.mxu0 %v2371
        %v2538 = vpop.f32.mrf.mxu0
        %v2539 = vadd.f32 0.0, %v2538
        %v2540 = vpop.f32.mrf.mxu0
        %v2541 = vadd.f32 0.0, %v2540
        %2542 = vmatmul.bf16.gmra.mxu0 %v2374
        %v2543 = vpop.f32.mrf.mxu0
        %v2544 = vadd.f32 0.0, %v2543
        %v2545 = vpop.f32.mrf.mxu0
        %v2546 = vadd.f32 0.0, %v2545
        %2547 = vmatmul.bf16.gmra.mxu0 %v2377
        %v2548 = vpop.f32.mrf.mxu0
        %v2549 = vadd.f32 0.0, %v2548
        %v2550 = vpop.f32.mrf.mxu0
        %v2551 = vadd.f32 0.0, %v2550
        %2552 = vmatmul.bf16.gmra.mxu0 %v2380
        %v2553 = vpop.f32.mrf.mxu0
        %v2554 = vadd.f32 0.0, %v2553
        %v2555 = vpop.f32.mrf.mxu0
        %v2556 = vadd.f32 0.0, %v2555
        %2557 = vmatmul.bf16.gmra.mxu0 %v2383
        %v2558 = vpop.f32.mrf.mxu0
        %v2559 = vadd.f32 0.0, %v2558
        %v2560 = vpop.f32.mrf.mxu0
        %v2561 = vadd.f32 0.0, %v2560
        %2562 = vmatmul.bf16.gmra.mxu0 %v2386
        %v2563 = vpop.f32.mrf.mxu0
        %v2564 = vadd.f32 0.0, %v2563
        %v2565 = vpop.f32.mrf.mxu0
        %v2566 = vadd.f32 0.0, %v2565
        %2567 = vmatmul.bf16.gmra.mxu0 %v2389
        %v2568 = vpop.f32.mrf.mxu0
        %v2569 = vadd.f32 0.0, %v2568
        %v2570 = vpop.f32.mrf.mxu0
        %v2571 = vadd.f32 0.0, %v2570
        %2572 = vmatmul.bf16.gmra.mxu0 %v2392
        %v2573 = vpop.f32.mrf.mxu0
        %v2574 = vadd.f32 0.0, %v2573
        %v2575 = vpop.f32.mrf.mxu0
        %v2576 = vadd.f32 0.0, %v2575
        %2577 = vmatmul.bf16.gmra.mxu0 %v2395
        %v2578 = vpop.f32.mrf.mxu0
        %v2579 = vadd.f32 0.0, %v2578
        %v2580 = vpop.f32.mrf.mxu0
        %v2581 = vadd.f32 0.0, %v2580
        %2582 = vdwg.mxu0
        %v2583 = vld [vmem:[#allocation2] sm:$0xff]
        %v2584 = vld [vmem:[#allocation2 + $0x8] sm:$0xff]
        %v2585 = vld [vmem:[#allocation2 + $0x10] sm:$0xff]
        %v2586 = vld [vmem:[#allocation2 + $0x18] sm:$0xff]
        %v2587 = vld [vmem:[#allocation2 + $0x20] sm:$0xff]
        %v2588 = vld [vmem:[#allocation2 + $0x28] sm:$0xff]
        %v2589 = vld [vmem:[#allocation2 + $0x30] sm:$0xff]
        %v2590 = vld [vmem:[#allocation2 + $0x38] sm:$0xff]
        %v2591 = vld [vmem:[#allocation2 + $0x40] sm:$0xff]
        %v2592 = vld [vmem:[#allocation2 + $0x48] sm:$0xff]
        %v2593 = vld [vmem:[#allocation2 + $0x50] sm:$0xff]
        %v2594 = vld [vmem:[#allocation2 + $0x58] sm:$0xff]
        %v2595 = vld [vmem:[#allocation2 + $0x60] sm:$0xff]
        %v2596 = vld [vmem:[#allocation2 + $0x68] sm:$0xff]
        %v2597 = vld [vmem:[#allocation2 + $0x70] sm:$0xff]
        %v2598 = vld [vmem:[#allocation2 + $0x78] sm:$0xff]
        %v2599 = vld [vmem:[#allocation2 + $0x80] sm:$0xff]
        %v2600 = vld [vmem:[#allocation2 + $0x88] sm:$0xff]
        %v2601 = vld [vmem:[#allocation2 + $0x90] sm:$0xff]
        %v2602 = vld [vmem:[#allocation2 + $0x98] sm:$0xff]
        %v2603 = vld [vmem:[#allocation2 + $0xa0] sm:$0xff]
        %v2604 = vld [vmem:[#allocation2 + $0xa8] sm:$0xff]
        %v2605 = vld [vmem:[#allocation2 + $0xb0] sm:$0xff]
        %v2606 = vld [vmem:[#allocation2 + $0xb8] sm:$0xff]
        %v2607 = vld [vmem:[#allocation2 + $0xc0] sm:$0xff]
        %v2608 = vld [vmem:[#allocation2 + $0xc8] sm:$0xff]
        %v2609 = vld [vmem:[#allocation2 + $0xd0] sm:$0xff]
        %v2610 = vld [vmem:[#allocation2 + $0xd8] sm:$0xff]
        %v2611 = vld [vmem:[#allocation2 + $0xe0] sm:$0xff]
        %v2612 = vld [vmem:[#allocation2 + $0xe8] sm:$0xff]
        %v2613 = vld [vmem:[#allocation2 + $0xf0] sm:$0xff]
        %v2614 = vld [vmem:[#allocation2 + $0xf8] sm:$0xff]
        %v2615 = vadd.f32 %v2583, %v2410
        %v2616 = vadd.f32 %v2584, %v2412
        %v2617 = vadd.f32 %v2585, %v2415
        %v2618 = vadd.f32 %v2586, %v2417
        %v2619 = vadd.f32 %v2587, %v2420
        %v2620 = vadd.f32 %v2588, %v2422
        %v2621 = vadd.f32 %v2589, %v2425
        %v2622 = vadd.f32 %v2590, %v2427
        %v2623 = vadd.f32 %v2591, %v2430
        %v2624 = vadd.f32 %v2592, %v2432
        %v2625 = vadd.f32 %v2593, %v2435
        %v2626 = vadd.f32 %v2594, %v2437
        %v2627 = vadd.f32 %v2595, %v2440
        %v2628 = vadd.f32 %v2596, %v2442
        %v2629 = vadd.f32 %v2597, %v2445
        %v2630 = vadd.f32 %v2598, %v2447
        %v2631 = vadd.f32 %v2599, %v2450
        %v2632 = vadd.f32 %v2600, %v2452
        %v2633 = vadd.f32 %v2601, %v2455
        %v2634 = vadd.f32 %v2602, %v2457
        %v2635 = vadd.f32 %v2603, %v2460
        %v2636 = vadd.f32 %v2604, %v2462
        %v2637 = vadd.f32 %v2605, %v2465
        %v2638 = vadd.f32 %v2606, %v2467
        %v2639 = vadd.f32 %v2607, %v2470
        %v2640 = vadd.f32 %v2608, %v2472
        %v2641 = vadd.f32 %v2609, %v2475
        %v2642 = vadd.f32 %v2610, %v2477
        %v2643 = vadd.f32 %v2611, %v2480
        %v2644 = vadd.f32 %v2612, %v2482
        %v2645 = vadd.f32 %v2613, %v2485
        %v2646 = vadd.f32 %v2614, %v2487
        %2647 = vst [vmem:[#allocation2] sm:$0xff] %v2615
        %2648 = vst [vmem:[#allocation2 + $0x8] sm:$0xff] %v2616
        %2649 = vst [vmem:[#allocation2 + $0x10] sm:$0xff] %v2617
        %2650 = vst [vmem:[#allocation2 + $0x18] sm:$0xff] %v2618
        %2651 = vst [vmem:[#allocation2 + $0x20] sm:$0xff] %v2619
        %2652 = vst [vmem:[#allocation2 + $0x28] sm:$0xff] %v2620
        %2653 = vst [vmem:[#allocation2 + $0x30] sm:$0xff] %v2621
        %2654 = vst [vmem:[#allocation2 + $0x38] sm:$0xff] %v2622
        %2655 = vst [vmem:[#allocation2 + $0x40] sm:$0xff] %v2623
        %2656 = vst [vmem:[#allocation2 + $0x48] sm:$0xff] %v2624
        %2657 = vst [vmem:[#allocation2 + $0x50] sm:$0xff] %v2625
        %2658 = vst [vmem:[#allocation2 + $0x58] sm:$0xff] %v2626
        %2659 = vst [vmem:[#allocation2 + $0x60] sm:$0xff] %v2627
        %2660 = vst [vmem:[#allocation2 + $0x68] sm:$0xff] %v2628
        %2661 = vst [vmem:[#allocation2 + $0x70] sm:$0xff] %v2629
        %2662 = vst [vmem:[#allocation2 + $0x78] sm:$0xff] %v2630
        %2663 = vst [vmem:[#allocation2 + $0x80] sm:$0xff] %v2631
        %2664 = vst [vmem:[#allocation2 + $0x88] sm:$0xff] %v2632
        %2665 = vst [vmem:[#allocation2 + $0x90] sm:$0xff] %v2633
        %2666 = vst [vmem:[#allocation2 + $0x98] sm:$0xff] %v2634
        %2667 = vst [vmem:[#allocation2 + $0xa0] sm:$0xff] %v2635
        %2668 = vst [vmem:[#allocation2 + $0xa8] sm:$0xff] %v2636
        %2669 = vst [vmem:[#allocation2 + $0xb0] sm:$0xff] %v2637
        %2670 = vst [vmem:[#allocation2 + $0xb8] sm:$0xff] %v2638
        %2671 = vst [vmem:[#allocation2 + $0xc0] sm:$0xff] %v2639
        %2672 = vst [vmem:[#allocation2 + $0xc8] sm:$0xff] %v2640
        %2673 = vst [vmem:[#allocation2 + $0xd0] sm:$0xff] %v2641
        %2674 = vst [vmem:[#allocation2 + $0xd8] sm:$0xff] %v2642
        %2675 = vst [vmem:[#allocation2 + $0xe0] sm:$0xff] %v2643
        %2676 = vst [vmem:[#allocation2 + $0xe8] sm:$0xff] %v2644
        %2677 = vst [vmem:[#allocation2 + $0xf0] sm:$0xff] %v2645
        %2678 = vst [vmem:[#allocation2 + $0xf8] sm:$0xff] %v2646
        %v2679 = vld [vmem:[#allocation3] sm:$0xff]
        %v2680 = vld [vmem:[#allocation3 + $0x8] sm:$0xff]
        %v2681 = vld [vmem:[#allocation3 + $0x10] sm:$0xff]
        %v2682 = vld [vmem:[#allocation3 + $0x18] sm:$0xff]
        %v2683 = vld [vmem:[#allocation3 + $0x20] sm:$0xff]
        %v2684 = vld [vmem:[#allocation3 + $0x28] sm:$0xff]
        %v2685 = vld [vmem:[#allocation3 + $0x30] sm:$0xff]
        %v2686 = vld [vmem:[#allocation3 + $0x38] sm:$0xff]
        %v2687 = vld [vmem:[#allocation3 + $0x40] sm:$0xff]
        %v2688 = vld [vmem:[#allocation3 + $0x48] sm:$0xff]
        %v2689 = vld [vmem:[#allocation3 + $0x50] sm:$0xff]
        %v2690 = vld [vmem:[#allocation3 + $0x58] sm:$0xff]
        %v2691 = vld [vmem:[#allocation3 + $0x60] sm:$0xff]
        %v2692 = vld [vmem:[#allocation3 + $0x68] sm:$0xff]
        %v2693 = vld [vmem:[#allocation3 + $0x70] sm:$0xff]
        %v2694 = vld [vmem:[#allocation3 + $0x78] sm:$0xff]
        %v2695 = vld [vmem:[#allocation3 + $0x80] sm:$0xff]
        %v2696 = vld [vmem:[#allocation3 + $0x88] sm:$0xff]
        %v2697 = vld [vmem:[#allocation3 + $0x90] sm:$0xff]
        %v2698 = vld [vmem:[#allocation3 + $0x98] sm:$0xff]
        %v2699 = vld [vmem:[#allocation3 + $0xa0] sm:$0xff]
        %v2700 = vld [vmem:[#allocation3 + $0xa8] sm:$0xff]
        %v2701 = vld [vmem:[#allocation3 + $0xb0] sm:$0xff]
        %v2702 = vld [vmem:[#allocation3 + $0xb8] sm:$0xff]
        %v2703 = vld [vmem:[#allocation3 + $0xc0] sm:$0xff]
        %v2704 = vld [vmem:[#allocation3 + $0xc8] sm:$0xff]
        %v2705 = vld [vmem:[#allocation3 + $0xd0] sm:$0xff]
        %v2706 = vld [vmem:[#allocation3 + $0xd8] sm:$0xff]
        %v2707 = vld [vmem:[#allocation3 + $0xe0] sm:$0xff]
        %v2708 = vld [vmem:[#allocation3 + $0xe8] sm:$0xff]
        %v2709 = vld [vmem:[#allocation3 + $0xf0] sm:$0xff]
        %v2710 = vld [vmem:[#allocation3 + $0xf8] sm:$0xff]
        %v2711 = vadd.f32 %v2679, %v2504
        %v2712 = vadd.f32 %v2680, %v2506
        %v2713 = vadd.f32 %v2681, %v2509
        %v2714 = vadd.f32 %v2682, %v2511
        %v2715 = vadd.f32 %v2683, %v2514
        %v2716 = vadd.f32 %v2684, %v2516
        %v2717 = vadd.f32 %v2685, %v2519
        %v2718 = vadd.f32 %v2686, %v2521
        %v2719 = vadd.f32 %v2687, %v2524
        %v2720 = vadd.f32 %v2688, %v2526
        %v2721 = vadd.f32 %v2689, %v2529
        %v2722 = vadd.f32 %v2690, %v2531
        %v2723 = vadd.f32 %v2691, %v2534
        %v2724 = vadd.f32 %v2692, %v2536
        %v2725 = vadd.f32 %v2693, %v2539
        %v2726 = vadd.f32 %v2694, %v2541
        %v2727 = vadd.f32 %v2695, %v2544
        %v2728 = vadd.f32 %v2696, %v2546
        %v2729 = vadd.f32 %v2697, %v2549
        %v2730 = vadd.f32 %v2698, %v2551
        %v2731 = vadd.f32 %v2699, %v2554
        %v2732 = vadd.f32 %v2700, %v2556
        %v2733 = vadd.f32 %v2701, %v2559
        %v2734 = vadd.f32 %v2702, %v2561
        %v2735 = vadd.f32 %v2703, %v2564
        %v2736 = vadd.f32 %v2704, %v2566
        %v2737 = vadd.f32 %v2705, %v2569
        %v2738 = vadd.f32 %v2706, %v2571
        %v2739 = vadd.f32 %v2707, %v2574
        %v2740 = vadd.f32 %v2708, %v2576
        %v2741 = vadd.f32 %v2709, %v2579
        %v2742 = vadd.f32 %v2710, %v2581
        %2743 = vst [vmem:[#allocation3] sm:$0xff] %v2711
        %2744 = vst [vmem:[#allocation3 + $0x8] sm:$0xff] %v2712
        %2745 = vst [vmem:[#allocation3 + $0x10] sm:$0xff] %v2713
        %2746 = vst [vmem:[#allocation3 + $0x18] sm:$0xff] %v2714
        %2747 = vst [vmem:[#allocation3 + $0x20] sm:$0xff] %v2715
        %2748 = vst [vmem:[#allocation3 + $0x28] sm:$0xff] %v2716
        %2749 = vst [vmem:[#allocation3 + $0x30] sm:$0xff] %v2717
        %2750 = vst [vmem:[#allocation3 + $0x38] sm:$0xff] %v2718
        %2751 = vst [vmem:[#allocation3 + $0x40] sm:$0xff] %v2719
        %2752 = vst [vmem:[#allocation3 + $0x48] sm:$0xff] %v2720
        %2753 = vst [vmem:[#allocation3 + $0x50] sm:$0xff] %v2721
        %2754 = vst [vmem:[#allocation3 + $0x58] sm:$0xff] %v2722
        %2755 = vst [vmem:[#allocation3 + $0x60] sm:$0xff] %v2723
        %2756 = vst [vmem:[#allocation3 + $0x68] sm:$0xff] %v2724
        %2757 = vst [vmem:[#allocation3 + $0x70] sm:$0xff] %v2725
        %2758 = vst [vmem:[#allocation3 + $0x78] sm:$0xff] %v2726
        %2759 = vst [vmem:[#allocation3 + $0x80] sm:$0xff] %v2727
        %2760 = vst [vmem:[#allocation3 + $0x88] sm:$0xff] %v2728
        %2761 = vst [vmem:[#allocation3 + $0x90] sm:$0xff] %v2729
        %2762 = vst [vmem:[#allocation3 + $0x98] sm:$0xff] %v2730
        %2763 = vst [vmem:[#allocation3 + $0xa0] sm:$0xff] %v2731
        %2764 = vst [vmem:[#allocation3 + $0xa8] sm:$0xff] %v2732
        %2765 = vst [vmem:[#allocation3 + $0xb0] sm:$0xff] %v2733
        %2766 = vst [vmem:[#allocation3 + $0xb8] sm:$0xff] %v2734
        %2767 = vst [vmem:[#allocation3 + $0xc0] sm:$0xff] %v2735
        %2768 = vst [vmem:[#allocation3 + $0xc8] sm:$0xff] %v2736
        %2769 = vst [vmem:[#allocation3 + $0xd0] sm:$0xff] %v2737
        %2770 = vst [vmem:[#allocation3 + $0xd8] sm:$0xff] %v2738
        %2771 = vst [vmem:[#allocation3 + $0xe0] sm:$0xff] %v2739
        %2772 = vst [vmem:[#allocation3 + $0xe8] sm:$0xff] %v2740
        %2773 = vst [vmem:[#allocation3 + $0xf0] sm:$0xff] %v2741
        %2774 = vst [vmem:[#allocation3 + $0xf8] sm:$0xff] %v2742
        %v2775 = vld [vmem:[%s2234] sm:$0xf]
        %v2776 = vld [vmem:[%s2234 + $0x4] sm:$0xf]
        %v2777 = vld [vmem:[%s2234 + $0x8] sm:$0x1]
        %v2778 = vld [vmem:[%s2234 + $0xc] sm:$0xf]
        %v2779 = vld [vmem:[%s2234 + $0x10] sm:$0xf]
        %v2780 = vld [vmem:[%s2234 + $0x14] sm:$0x1]
        %v2781 = vld [vmem:[%s2234 + $0x18] sm:$0xf]
        %v2782 = vld [vmem:[%s2234 + $0x1c] sm:$0xf]
        %v2783 = vld [vmem:[%s2234 + $0x20] sm:$0x1]
        %v2784 = vld [vmem:[%s2234 + $0x24] sm:$0xf]
        %v2785 = vld [vmem:[%s2234 + $0x28] sm:$0xf]
        %v2786 = vld [vmem:[%s2234 + $0x2c] sm:$0x1]
        %v2787 = vld [vmem:[%s2234 + $0x30] sm:$0xf]
        %v2788 = vld [vmem:[%s2234 + $0x34] sm:$0xf]
        %v2789 = vld [vmem:[%s2234 + $0x38] sm:$0x1]
        %v2790 = vld [vmem:[%s2234 + $0x3c] sm:$0xf]
        %v2791 = vld [vmem:[%s2234 + $0x40] sm:$0xf]
        %v2792 = vld [vmem:[%s2234 + $0x44] sm:$0x1]
        %v2793 = vld [vmem:[%s2234 + $0x48] sm:$0xf]
        %v2794 = vld [vmem:[%s2234 + $0x4c] sm:$0xf]
        %v2795 = vld [vmem:[%s2234 + $0x50] sm:$0x1]
        %v2796 = vld [vmem:[%s2234 + $0x54] sm:$0xf]
        %v2797 = vld [vmem:[%s2234 + $0x58] sm:$0xf]
        %v2798 = vld [vmem:[%s2234 + $0x5c] sm:$0x1]
        %v2799 = vld [vmem:[%s2234 + $0x60] sm:$0xf]
        %v2800 = vld [vmem:[%s2234 + $0x64] sm:$0xf]
        %v2801 = vld [vmem:[%s2234 + $0x68] sm:$0x1]
        %v2802 = vld [vmem:[%s2234 + $0x6c] sm:$0xf]
        %v2803 = vld [vmem:[%s2234 + $0x70] sm:$0xf]
        %v2804 = vld [vmem:[%s2234 + $0x74] sm:$0x1]
        %v2805 = vld [vmem:[%s2234 + $0x78] sm:$0xf]
        %v2806 = vld [vmem:[%s2234 + $0x7c] sm:$0xf]
        %v2807 = vld [vmem:[%s2234 + $0x80] sm:$0x1]
        %v2808 = vld [vmem:[%s2234 + $0x84] sm:$0xf]
        %v2809 = vld [vmem:[%s2234 + $0x88] sm:$0xf]
        %v2810 = vld [vmem:[%s2234 + $0x8c] sm:$0x1]
        %v2811 = vld [vmem:[%s2234 + $0x90] sm:$0xf]
        %v2812 = vld [vmem:[%s2234 + $0x94] sm:$0xf]
        %v2813 = vld [vmem:[%s2234 + $0x98] sm:$0x1]
        %v2814 = vld [vmem:[%s2234 + $0x9c] sm:$0xf]
        %v2815 = vld [vmem:[%s2234 + $0xa0] sm:$0xf]
        %v2816 = vld [vmem:[%s2234 + $0xa4] sm:$0x1]
        %v2817 = vld [vmem:[%s2234 + $0xa8] sm:$0xf]
        %v2818 = vld [vmem:[%s2234 + $0xac] sm:$0xf]
        %v2819 = vld [vmem:[%s2234 + $0xb0] sm:$0x1]
        %v2820 = vld [vmem:[%s2234 + $0xb4] sm:$0xf]
        %v2821 = vld [vmem:[%s2234 + $0xb8] sm:$0xf]
        %v2822 = vld [vmem:[%s2234 + $0xbc] sm:$0x1]
        %v2824 = vshrl.u32 %v2775, 16
        %v2826 = vrot.slane %v2824, 4
        %v2827 = vshll.u32 %v2775, 16
        %v2829 = vrot.slane %v2827, 5
        %v2830 = vor.u32 %v2826, %v2829
        %v2831 = vrot.slane %v2830, 4
        %v2833 = vshll.u32 %v2776, 16
        %v2835 = vrot.slane %v2833, 5
        %v2836 = vsel %vm686, %v2831, %v2835
        %v2837 = vshrl.u32 %v2776, 16
        %v2839 = vrot.slane %v2837, 4
        %v2840 = vor.u32 %v2839, %v2835
        %v2841 = vrot.slane %v2840, 4
        %v2843 = vshll.u32 %v2777, 16
        %v2845 = vrot.slane %v2843, 5
        %v2846 = vsel %vm686, %v2841, %v2845
        %v2848 = vshrl.u32 %v2778, 16
        %v2850 = vrot.slane %v2848, 4
        %v2851 = vshll.u32 %v2778, 16
        %v2853 = vrot.slane %v2851, 5
        %v2854 = vor.u32 %v2850, %v2853
        %v2855 = vrot.slane %v2854, 4
        %v2857 = vshll.u32 %v2779, 16
        %v2859 = vrot.slane %v2857, 5
        %v2860 = vsel %vm686, %v2855, %v2859
        %v2861 = vshrl.u32 %v2779, 16
        %v2863 = vrot.slane %v2861, 4
        %v2864 = vor.u32 %v2863, %v2859
        %v2865 = vrot.slane %v2864, 4
        %v2867 = vshll.u32 %v2780, 16
        %v2869 = vrot.slane %v2867, 5
        %v2870 = vsel %vm686, %v2865, %v2869
        %v2872 = vshrl.u32 %v2781, 16
        %v2874 = vrot.slane %v2872, 4
        %v2875 = vshll.u32 %v2781, 16
        %v2877 = vrot.slane %v2875, 5
        %v2878 = vor.u32 %v2874, %v2877
        %v2879 = vrot.slane %v2878, 4
        %v2881 = vshll.u32 %v2782, 16
        %v2883 = vrot.slane %v2881, 5
        %v2884 = vsel %vm686, %v2879, %v2883
        %v2885 = vshrl.u32 %v2782, 16
        %v2887 = vrot.slane %v2885, 4
        %v2888 = vor.u32 %v2887, %v2883
        %v2889 = vrot.slane %v2888, 4
        %v2891 = vshll.u32 %v2783, 16
        %v2893 = vrot.slane %v2891, 5
        %v2894 = vsel %vm686, %v2889, %v2893
        %v2896 = vshrl.u32 %v2784, 16
        %v2898 = vrot.slane %v2896, 4
        %v2899 = vshll.u32 %v2784, 16
        %v2901 = vrot.slane %v2899, 5
        %v2902 = vor.u32 %v2898, %v2901
        %v2903 = vrot.slane %v2902, 4
        %v2905 = vshll.u32 %v2785, 16
        %v2907 = vrot.slane %v2905, 5
        %v2908 = vsel %vm686, %v2903, %v2907
        %v2909 = vshrl.u32 %v2785, 16
        %v2911 = vrot.slane %v2909, 4
        %v2912 = vor.u32 %v2911, %v2907
        %v2913 = vrot.slane %v2912, 4
        %v2915 = vshll.u32 %v2786, 16
        %v2917 = vrot.slane %v2915, 5
        %v2918 = vsel %vm686, %v2913, %v2917
        %v2920 = vshrl.u32 %v2787, 16
        %v2922 = vrot.slane %v2920, 4
        %v2923 = vshll.u32 %v2787, 16
        %v2925 = vrot.slane %v2923, 5
        %v2926 = vor.u32 %v2922, %v2925
        %v2927 = vrot.slane %v2926, 4
        %v2929 = vshll.u32 %v2788, 16
        %v2931 = vrot.slane %v2929, 5
        %v2932 = vsel %vm686, %v2927, %v2931
        %v2933 = vshrl.u32 %v2788, 16
        %v2935 = vrot.slane %v2933, 4
        %v2936 = vor.u32 %v2935, %v2931
        %v2937 = vrot.slane %v2936, 4
        %v2939 = vshll.u32 %v2789, 16
        %v2941 = vrot.slane %v2939, 5
        %v2942 = vsel %vm686, %v2937, %v2941
        %v2944 = vshrl.u32 %v2790, 16
        %v2946 = vrot.slane %v2944, 4
        %v2947 = vshll.u32 %v2790, 16
        %v2949 = vrot.slane %v2947, 5
        %v2950 = vor.u32 %v2946, %v2949
        %v2951 = vrot.slane %v2950, 4
        %v2953 = vshll.u32 %v2791, 16
        %v2955 = vrot.slane %v2953, 5
        %v2956 = vsel %vm686, %v2951, %v2955
        %v2957 = vshrl.u32 %v2791, 16
        %v2959 = vrot.slane %v2957, 4
        %v2960 = vor.u32 %v2959, %v2955
        %v2961 = vrot.slane %v2960, 4
        %v2963 = vshll.u32 %v2792, 16
        %v2965 = vrot.slane %v2963, 5
        %v2966 = vsel %vm686, %v2961, %v2965
        %v2968 = vshrl.u32 %v2793, 16
        %v2970 = vrot.slane %v2968, 4
        %v2971 = vshll.u32 %v2793, 16
        %v2973 = vrot.slane %v2971, 5
        %v2974 = vor.u32 %v2970, %v2973
        %v2975 = vrot.slane %v2974, 4
        %v2977 = vshll.u32 %v2794, 16
        %v2979 = vrot.slane %v2977, 5
        %v2980 = vsel %vm686, %v2975, %v2979
        %v2981 = vshrl.u32 %v2794, 16
        %v2983 = vrot.slane %v2981, 4
        %v2984 = vor.u32 %v2983, %v2979
        %v2985 = vrot.slane %v2984, 4
        %v2987 = vshll.u32 %v2795, 16
        %v2989 = vrot.slane %v2987, 5
        %v2990 = vsel %vm686, %v2985, %v2989
        %v2992 = vshrl.u32 %v2796, 16
        %v2994 = vrot.slane %v2992, 4
        %v2995 = vshll.u32 %v2796, 16
        %v2997 = vrot.slane %v2995, 5
        %v2998 = vor.u32 %v2994, %v2997
        %v2999 = vrot.slane %v2998, 4
        %v3001 = vshll.u32 %v2797, 16
        %v3003 = vrot.slane %v3001, 5
        %v3004 = vsel %vm686, %v2999, %v3003
        %v3005 = vshrl.u32 %v2797, 16
        %v3007 = vrot.slane %v3005, 4
        %v3008 = vor.u32 %v3007, %v3003
        %v3009 = vrot.slane %v3008, 4
        %v3011 = vshll.u32 %v2798, 16
        %v3013 = vrot.slane %v3011, 5
        %v3014 = vsel %vm686, %v3009, %v3013
        %v3016 = vshrl.u32 %v2799, 16
        %v3018 = vrot.slane %v3016, 4
        %v3019 = vshll.u32 %v2799, 16
        %v3021 = vrot.slane %v3019, 5
        %v3022 = vor.u32 %v3018, %v3021
        %v3023 = vrot.slane %v3022, 4
        %v3025 = vshll.u32 %v2800, 16
        %v3027 = vrot.slane %v3025, 5
        %v3028 = vsel %vm686, %v3023, %v3027
        %v3029 = vshrl.u32 %v2800, 16
        %v3031 = vrot.slane %v3029, 4
        %v3032 = vor.u32 %v3031, %v3027
        %v3033 = vrot.slane %v3032, 4
        %v3035 = vshll.u32 %v2801, 16
        %v3037 = vrot.slane %v3035, 5
        %v3038 = vsel %vm686, %v3033, %v3037
        %v3040 = vshrl.u32 %v2802, 16
        %v3042 = vrot.slane %v3040, 4
        %v3043 = vshll.u32 %v2802, 16
        %v3045 = vrot.slane %v3043, 5
        %v3046 = vor.u32 %v3042, %v3045
        %v3047 = vrot.slane %v3046, 4
        %v3049 = vshll.u32 %v2803, 16
        %v3051 = vrot.slane %v3049, 5
        %v3052 = vsel %vm686, %v3047, %v3051
        %v3053 = vshrl.u32 %v2803, 16
        %v3055 = vrot.slane %v3053, 4
        %v3056 = vor.u32 %v3055, %v3051
        %v3057 = vrot.slane %v3056, 4
        %v3059 = vshll.u32 %v2804, 16
        %v3061 = vrot.slane %v3059, 5
        %v3062 = vsel %vm686, %v3057, %v3061
        %v3064 = vshrl.u32 %v2805, 16
        %v3066 = vrot.slane %v3064, 4
        %v3067 = vshll.u32 %v2805, 16
        %v3069 = vrot.slane %v3067, 5
        %v3070 = vor.u32 %v3066, %v3069
        %v3071 = vrot.slane %v3070, 4
        %v3073 = vshll.u32 %v2806, 16
        %v3075 = vrot.slane %v3073, 5
        %v3076 = vsel %vm686, %v3071, %v3075
        %v3077 = vshrl.u32 %v2806, 16
        %v3079 = vrot.slane %v3077, 4
        %v3080 = vor.u32 %v3079, %v3075
        %v3081 = vrot.slane %v3080, 4
        %v3083 = vshll.u32 %v2807, 16
        %v3085 = vrot.slane %v3083, 5
        %v3086 = vsel %vm686, %v3081, %v3085
        %v3088 = vshrl.u32 %v2808, 16
        %v3090 = vrot.slane %v3088, 4
        %v3091 = vshll.u32 %v2808, 16
        %v3093 = vrot.slane %v3091, 5
        %v3094 = vor.u32 %v3090, %v3093
        %v3095 = vrot.slane %v3094, 4
        %v3097 = vshll.u32 %v2809, 16
        %v3099 = vrot.slane %v3097, 5
        %v3100 = vsel %vm686, %v3095, %v3099
        %v3101 = vshrl.u32 %v2809, 16
        %v3103 = vrot.slane %v3101, 4
        %v3104 = vor.u32 %v3103, %v3099
        %v3105 = vrot.slane %v3104, 4
        %v3107 = vshll.u32 %v2810, 16
        %v3109 = vrot.slane %v3107, 5
        %v3110 = vsel %vm686, %v3105, %v3109
        %v3112 = vshrl.u32 %v2811, 16
        %v3114 = vrot.slane %v3112, 4
        %v3115 = vshll.u32 %v2811, 16
        %v3117 = vrot.slane %v3115, 5
        %v3118 = vor.u32 %v3114, %v3117
        %v3119 = vrot.slane %v3118, 4
        %v3121 = vshll.u32 %v2812, 16
        %v3123 = vrot.slane %v3121, 5
        %v3124 = vsel %vm686, %v3119, %v3123
        %v3125 = vshrl.u32 %v2812, 16
        %v3127 = vrot.slane %v3125, 4
        %v3128 = vor.u32 %v3127, %v3123
        %v3129 = vrot.slane %v3128, 4
        %v3131 = vshll.u32 %v2813, 16
        %v3133 = vrot.slane %v3131, 5
        %v3134 = vsel %vm686, %v3129, %v3133
        %v3136 = vshrl.u32 %v2814, 16
        %v3138 = vrot.slane %v3136, 4
        %v3139 = vshll.u32 %v2814, 16
        %v3141 = vrot.slane %v3139, 5
        %v3142 = vor.u32 %v3138, %v3141
        %v3143 = vrot.slane %v3142, 4
        %v3145 = vshll.u32 %v2815, 16
        %v3147 = vrot.slane %v3145, 5
        %v3148 = vsel %vm686, %v3143, %v3147
        %v3149 = vshrl.u32 %v2815, 16
        %v3151 = vrot.slane %v3149, 4
        %v3152 = vor.u32 %v3151, %v3147
        %v3153 = vrot.slane %v3152, 4
        %v3155 = vshll.u32 %v2816, 16
        %v3157 = vrot.slane %v3155, 5
        %v3158 = vsel %vm686, %v3153, %v3157
        %v3160 = vshrl.u32 %v2817, 16
        %v3162 = vrot.slane %v3160, 4
        %v3163 = vshll.u32 %v2817, 16
        %v3165 = vrot.slane %v3163, 5
        %v3166 = vor.u32 %v3162, %v3165
        %v3167 = vrot.slane %v3166, 4
        %v3169 = vshll.u32 %v2818, 16
        %v3171 = vrot.slane %v3169, 5
        %v3172 = vsel %vm686, %v3167, %v3171
        %v3173 = vshrl.u32 %v2818, 16
        %v3175 = vrot.slane %v3173, 4
        %v3176 = vor.u32 %v3175, %v3171
        %v3177 = vrot.slane %v3176, 4
        %v3179 = vshll.u32 %v2819, 16
        %v3181 = vrot.slane %v3179, 5
        %v3182 = vsel %vm686, %v3177, %v3181
        %v3184 = vshrl.u32 %v2820, 16
        %v3186 = vrot.slane %v3184, 4
        %v3187 = vshll.u32 %v2820, 16
        %v3189 = vrot.slane %v3187, 5
        %v3190 = vor.u32 %v3186, %v3189
        %v3191 = vrot.slane %v3190, 4
        %v3193 = vshll.u32 %v2821, 16
        %v3195 = vrot.slane %v3193, 5
        %v3196 = vsel %vm686, %v3191, %v3195
        %v3197 = vshrl.u32 %v2821, 16
        %v3199 = vrot.slane %v3197, 4
        %v3200 = vor.u32 %v3199, %v3195
        %v3201 = vrot.slane %v3200, 4
        %v3203 = vshll.u32 %v2822, 16
        %v3205 = vrot.slane %v3203, 5
        %v3206 = vsel %vm686, %v3201, %v3205
        %s3207 = scalar_lea.vmem %s1, 8
        %v3208 = vld [vmem:[%s3207] sm:$0x3]
        %v3209 = vunpack.c.l.b16 %v2836
        %v3210 = vunpack.c.l.b16 %v2846
        %v3211 = vunpack.c.l.b16 %v2860
        %v3212 = vunpack.c.l.b16 %v2870
        %v3213 = vunpack.c.l.b16 %v2884
        %v3214 = vunpack.c.l.b16 %v2894
        %v3215 = vunpack.c.l.b16 %v2908
        %v3216 = vunpack.c.l.b16 %v2918
        %v3217 = vunpack.c.l.b16 %v2932
        %v3218 = vunpack.c.l.b16 %v2942
        %v3219 = vunpack.c.l.b16 %v2956
        %v3220 = vunpack.c.l.b16 %v2966
        %v3221 = vunpack.c.l.b16 %v2980
        %v3222 = vunpack.c.l.b16 %v2990
        %v3223 = vunpack.c.l.b16 %v3004
        %v3224 = vunpack.c.l.b16 %v3014
        %v3225 = vunpack.c.l.b16 %v3028
        %v3226 = vunpack.c.l.b16 %v3038
        %v3227 = vunpack.c.l.b16 %v3052
        %v3228 = vunpack.c.l.b16 %v3062
        %v3229 = vunpack.c.l.b16 %v3076
        %v3230 = vunpack.c.l.b16 %v3086
        %v3231 = vunpack.c.l.b16 %v3100
        %v3232 = vunpack.c.l.b16 %v3110
        %v3233 = vunpack.c.l.b16 %v3124
        %v3234 = vunpack.c.l.b16 %v3134
        %v3235 = vunpack.c.l.b16 %v3148
        %v3236 = vunpack.c.l.b16 %v3158
        %v3237 = vunpack.c.l.b16 %v3172
        %v3238 = vunpack.c.l.b16 %v3182
        %v3239 = vunpack.c.l.b16 %v3196
        %v3240 = vunpack.c.l.b16 %v3206
        %v3241 = vpack.c.b16 %v3210, %v3209
        %v3242 = vpack.c.b16 %v3212, %v3211
        %v3243 = vpack.c.b16 %v3214, %v3213
        %v3244 = vpack.c.b16 %v3216, %v3215
        %v3245 = vpack.c.b16 %v3218, %v3217
        %v3246 = vpack.c.b16 %v3220, %v3219
        %v3247 = vpack.c.b16 %v3222, %v3221
        %v3248 = vpack.c.b16 %v3224, %v3223
        %v3249 = vpack.c.b16 %v3226, %v3225
        %v3250 = vpack.c.b16 %v3228, %v3227
        %v3251 = vpack.c.b16 %v3230, %v3229
        %v3252 = vpack.c.b16 %v3232, %v3231
        %v3253 = vpack.c.b16 %v3234, %v3233
        %v3254 = vpack.c.b16 %v3236, %v3235
        %v3255 = vpack.c.b16 %v3238, %v3237
        %v3256 = vpack.c.b16 %v3240, %v3239
        %v3258 = vsel %vm337, %v3241, 0
        %v3261 = vsel %vm337, %v3242, 0
        %v3264 = vsel %vm337, %v3243, 0
        %v3267 = vsel %vm337, %v3244, 0
        %v3270 = vsel %vm337, %v3245, 0
        %v3273 = vsel %vm337, %v3246, 0
        %v3276 = vsel %vm337, %v3247, 0
        %v3279 = vsel %vm337, %v3248, 0
        %v3282 = vsel %vm337, %v3249, 0
        %v3285 = vsel %vm337, %v3250, 0
        %v3288 = vsel %vm337, %v3251, 0
        %v3291 = vsel %vm337, %v3252, 0
        %v3294 = vsel %vm337, %v3253, 0
        %v3297 = vsel %vm337, %v3254, 0
        %v3300 = vsel %vm337, %v3255, 0
        %v3303 = vsel %vm337, %v3256, 0
        %v3306 = vsel %vm386, %v3208, 0
        %3308 = vmatpush.bf16.msra.mxu0 0
        %3309 = vmatpush.bf16.msra.mxu0 0
        %3310 = vmatpush.bf16.msra.mxu0 0
        %3311 = vmatpush.bf16.msra.mxu0 0
        %3312 = vmatpush.bf16.msra.mxu0 0
        %3313 = vmatpush.bf16.msra.mxu0 0
        %3314 = vmatpush.bf16.msra.mxu0 0
        %3315 = vmatpush.bf16.msra.mxu0 %v3306
        %3316 = vmatmul.bf16.gmra.mxu0 %v3258
        %v3317 = vpop.f32.mrf.mxu0
        %v3318 = vadd.f32 0.0, %v3317
        %v3319 = vpop.f32.mrf.mxu0
        %v3320 = vadd.f32 0.0, %v3319
        %3321 = vmatmul.bf16.gmra.mxu0 %v3261
        %v3322 = vpop.f32.mrf.mxu0
        %v3323 = vadd.f32 0.0, %v3322
        %v3324 = vpop.f32.mrf.mxu0
        %v3325 = vadd.f32 0.0, %v3324
        %3326 = vmatmul.bf16.gmra.mxu0 %v3264
        %v3327 = vpop.f32.mrf.mxu0
        %v3328 = vadd.f32 0.0, %v3327
        %v3329 = vpop.f32.mrf.mxu0
        %v3330 = vadd.f32 0.0, %v3329
        %3331 = vmatmul.bf16.gmra.mxu0 %v3267
        %v3332 = vpop.f32.mrf.mxu0
        %v3333 = vadd.f32 0.0, %v3332
        %v3334 = vpop.f32.mrf.mxu0
        %v3335 = vadd.f32 0.0, %v3334
        %3336 = vmatmul.bf16.gmra.mxu0 %v3270
        %v3337 = vpop.f32.mrf.mxu0
        %v3338 = vadd.f32 0.0, %v3337
        %v3339 = vpop.f32.mrf.mxu0
        %v3340 = vadd.f32 0.0, %v3339
        %3341 = vmatmul.bf16.gmra.mxu0 %v3273
        %v3342 = vpop.f32.mrf.mxu0
        %v3343 = vadd.f32 0.0, %v3342
        %v3344 = vpop.f32.mrf.mxu0
        %v3345 = vadd.f32 0.0, %v3344
        %3346 = vmatmul.bf16.gmra.mxu0 %v3276
        %v3347 = vpop.f32.mrf.mxu0
        %v3348 = vadd.f32 0.0, %v3347
        %v3349 = vpop.f32.mrf.mxu0
        %v3350 = vadd.f32 0.0, %v3349
        %3351 = vmatmul.bf16.gmra.mxu0 %v3279
        %v3352 = vpop.f32.mrf.mxu0
        %v3353 = vadd.f32 0.0, %v3352
        %v3354 = vpop.f32.mrf.mxu0
        %v3355 = vadd.f32 0.0, %v3354
        %3356 = vmatmul.bf16.gmra.mxu0 %v3282
        %v3357 = vpop.f32.mrf.mxu0
        %v3358 = vadd.f32 0.0, %v3357
        %v3359 = vpop.f32.mrf.mxu0
        %v3360 = vadd.f32 0.0, %v3359
        %3361 = vmatmul.bf16.gmra.mxu0 %v3285
        %v3362 = vpop.f32.mrf.mxu0
        %v3363 = vadd.f32 0.0, %v3362
        %v3364 = vpop.f32.mrf.mxu0
        %v3365 = vadd.f32 0.0, %v3364
        %3366 = vmatmul.bf16.gmra.mxu0 %v3288
        %v3367 = vpop.f32.mrf.mxu0
        %v3368 = vadd.f32 0.0, %v3367
        %v3369 = vpop.f32.mrf.mxu0
        %v3370 = vadd.f32 0.0, %v3369
        %3371 = vmatmul.bf16.gmra.mxu0 %v3291
        %v3372 = vpop.f32.mrf.mxu0
        %v3373 = vadd.f32 0.0, %v3372
        %v3374 = vpop.f32.mrf.mxu0
        %v3375 = vadd.f32 0.0, %v3374
        %3376 = vmatmul.bf16.gmra.mxu0 %v3294
        %v3377 = vpop.f32.mrf.mxu0
        %v3378 = vadd.f32 0.0, %v3377
        %v3379 = vpop.f32.mrf.mxu0
        %v3380 = vadd.f32 0.0, %v3379
        %3381 = vmatmul.bf16.gmra.mxu0 %v3297
        %v3382 = vpop.f32.mrf.mxu0
        %v3383 = vadd.f32 0.0, %v3382
        %v3384 = vpop.f32.mrf.mxu0
        %v3385 = vadd.f32 0.0, %v3384
        %3386 = vmatmul.bf16.gmra.mxu0 %v3300
        %v3387 = vpop.f32.mrf.mxu0
        %v3388 = vadd.f32 0.0, %v3387
        %v3389 = vpop.f32.mrf.mxu0
        %v3390 = vadd.f32 0.0, %v3389
        %3391 = vmatmul.bf16.gmra.mxu0 %v3303
        %v3392 = vpop.f32.mrf.mxu0
        %v3393 = vadd.f32 0.0, %v3392
        %v3394 = vpop.f32.mrf.mxu0
        %v3395 = vadd.f32 0.0, %v3394
        %3396 = vdwg.mxu0
        %s3397 = scalar_lea.vmem %s2, 8
        %v3398 = vld [vmem:[%s3397] sm:$0x3]
        %v3400 = vsel %vm386, %v3398, 0
        %3402 = vmatpush.bf16.msra.mxu0 0
        %3403 = vmatpush.bf16.msra.mxu0 0
        %3404 = vmatpush.bf16.msra.mxu0 0
        %3405 = vmatpush.bf16.msra.mxu0 0
        %3406 = vmatpush.bf16.msra.mxu0 0
        %3407 = vmatpush.bf16.msra.mxu0 0
        %3408 = vmatpush.bf16.msra.mxu0 0
        %3409 = vmatpush.bf16.msra.mxu0 %v3400
        %3410 = vmatmul.bf16.gmra.mxu0 %v3258
        %v3411 = vpop.f32.mrf.mxu0
        %v3412 = vadd.f32 0.0, %v3411
        %v3413 = vpop.f32.mrf.mxu0
        %v3414 = vadd.f32 0.0, %v3413
        %3415 = vmatmul.bf16.gmra.mxu0 %v3261
        %v3416 = vpop.f32.mrf.mxu0
        %v3417 = vadd.f32 0.0, %v3416
        %v3418 = vpop.f32.mrf.mxu0
        %v3419 = vadd.f32 0.0, %v3418
        %3420 = vmatmul.bf16.gmra.mxu0 %v3264
        %v3421 = vpop.f32.mrf.mxu0
        %v3422 = vadd.f32 0.0, %v3421
        %v3423 = vpop.f32.mrf.mxu0
        %v3424 = vadd.f32 0.0, %v3423
        %3425 = vmatmul.bf16.gmra.mxu0 %v3267
        %v3426 = vpop.f32.mrf.mxu0
        %v3427 = vadd.f32 0.0, %v3426
        %v3428 = vpop.f32.mrf.mxu0
        %v3429 = vadd.f32 0.0, %v3428
        %3430 = vmatmul.bf16.gmra.mxu0 %v3270
        %v3431 = vpop.f32.mrf.mxu0
        %v3432 = vadd.f32 0.0, %v3431
        %v3433 = vpop.f32.mrf.mxu0
        %v3434 = vadd.f32 0.0, %v3433
        %3435 = vmatmul.bf16.gmra.mxu0 %v3273
        %v3436 = vpop.f32.mrf.mxu0
        %v3437 = vadd.f32 0.0, %v3436
        %v3438 = vpop.f32.mrf.mxu0
        %v3439 = vadd.f32 0.0, %v3438
        %3440 = vmatmul.bf16.gmra.mxu0 %v3276
        %v3441 = vpop.f32.mrf.mxu0
        %v3442 = vadd.f32 0.0, %v3441
        %v3443 = vpop.f32.mrf.mxu0
        %v3444 = vadd.f32 0.0, %v3443
        %3445 = vmatmul.bf16.gmra.mxu0 %v3279
        %v3446 = vpop.f32.mrf.mxu0
        %v3447 = vadd.f32 0.0, %v3446
        %v3448 = vpop.f32.mrf.mxu0
        %v3449 = vadd.f32 0.0, %v3448
        %3450 = vmatmul.bf16.gmra.mxu0 %v3282
        %v3451 = vpop.f32.mrf.mxu0
        %v3452 = vadd.f32 0.0, %v3451
        %v3453 = vpop.f32.mrf.mxu0
        %v3454 = vadd.f32 0.0, %v3453
        %3455 = vmatmul.bf16.gmra.mxu0 %v3285
        %v3456 = vpop.f32.mrf.mxu0
        %v3457 = vadd.f32 0.0, %v3456
        %v3458 = vpop.f32.mrf.mxu0
        %v3459 = vadd.f32 0.0, %v3458
        %3460 = vmatmul.bf16.gmra.mxu0 %v3288
        %v3461 = vpop.f32.mrf.mxu0
        %v3462 = vadd.f32 0.0, %v3461
        %v3463 = vpop.f32.mrf.mxu0
        %v3464 = vadd.f32 0.0, %v3463
        %3465 = vmatmul.bf16.gmra.mxu0 %v3291
        %v3466 = vpop.f32.mrf.mxu0
        %v3467 = vadd.f32 0.0, %v3466
        %v3468 = vpop.f32.mrf.mxu0
        %v3469 = vadd.f32 0.0, %v3468
        %3470 = vmatmul.bf16.gmra.mxu0 %v3294
        %v3471 = vpop.f32.mrf.mxu0
        %v3472 = vadd.f32 0.0, %v3471
        %v3473 = vpop.f32.mrf.mxu0
        %v3474 = vadd.f32 0.0, %v3473
        %3475 = vmatmul.bf16.gmra.mxu0 %v3297
        %v3476 = vpop.f32.mrf.mxu0
        %v3477 = vadd.f32 0.0, %v3476
        %v3478 = vpop.f32.mrf.mxu0
        %v3479 = vadd.f32 0.0, %v3478
        %3480 = vmatmul.bf16.gmra.mxu0 %v3300
        %v3481 = vpop.f32.mrf.mxu0
        %v3482 = vadd.f32 0.0, %v3481
        %v3483 = vpop.f32.mrf.mxu0
        %v3484 = vadd.f32 0.0, %v3483
        %3485 = vmatmul.bf16.gmra.mxu0 %v3303
        %v3486 = vpop.f32.mrf.mxu0
        %v3487 = vadd.f32 0.0, %v3486
        %v3488 = vpop.f32.mrf.mxu0
        %v3489 = vadd.f32 0.0, %v3488
        %3490 = vdwg.mxu0
        %v3491 = vld [vmem:[#allocation2] sm:$0xff]
        %v3492 = vld [vmem:[#allocation2 + $0x8] sm:$0xff]
        %v3493 = vld [vmem:[#allocation2 + $0x10] sm:$0xff]
        %v3494 = vld [vmem:[#allocation2 + $0x18] sm:$0xff]
        %v3495 = vld [vmem:[#allocation2 + $0x20] sm:$0xff]
        %v3496 = vld [vmem:[#allocation2 + $0x28] sm:$0xff]
        %v3497 = vld [vmem:[#allocation2 + $0x30] sm:$0xff]
        %v3498 = vld [vmem:[#allocation2 + $0x38] sm:$0xff]
        %v3499 = vld [vmem:[#allocation2 + $0x40] sm:$0xff]
        %v3500 = vld [vmem:[#allocation2 + $0x48] sm:$0xff]
        %v3501 = vld [vmem:[#allocation2 + $0x50] sm:$0xff]
        %v3502 = vld [vmem:[#allocation2 + $0x58] sm:$0xff]
        %v3503 = vld [vmem:[#allocation2 + $0x60] sm:$0xff]
        %v3504 = vld [vmem:[#allocation2 + $0x68] sm:$0xff]
        %v3505 = vld [vmem:[#allocation2 + $0x70] sm:$0xff]
        %v3506 = vld [vmem:[#allocation2 + $0x78] sm:$0xff]
        %v3507 = vld [vmem:[#allocation2 + $0x80] sm:$0xff]
        %v3508 = vld [vmem:[#allocation2 + $0x88] sm:$0xff]
        %v3509 = vld [vmem:[#allocation2 + $0x90] sm:$0xff]
        %v3510 = vld [vmem:[#allocation2 + $0x98] sm:$0xff]
        %v3511 = vld [vmem:[#allocation2 + $0xa0] sm:$0xff]
        %v3512 = vld [vmem:[#allocation2 + $0xa8] sm:$0xff]
        %v3513 = vld [vmem:[#allocation2 + $0xb0] sm:$0xff]
        %v3514 = vld [vmem:[#allocation2 + $0xb8] sm:$0xff]
        %v3515 = vld [vmem:[#allocation2 + $0xc0] sm:$0xff]
        %v3516 = vld [vmem:[#allocation2 + $0xc8] sm:$0xff]
        %v3517 = vld [vmem:[#allocation2 + $0xd0] sm:$0xff]
        %v3518 = vld [vmem:[#allocation2 + $0xd8] sm:$0xff]
        %v3519 = vld [vmem:[#allocation2 + $0xe0] sm:$0xff]
        %v3520 = vld [vmem:[#allocation2 + $0xe8] sm:$0xff]
        %v3521 = vld [vmem:[#allocation2 + $0xf0] sm:$0xff]
        %v3522 = vld [vmem:[#allocation2 + $0xf8] sm:$0xff]
        %v3523 = vadd.f32 %v3491, %v3318
        %v3524 = vadd.f32 %v3492, %v3320
        %v3525 = vadd.f32 %v3493, %v3323
        %v3526 = vadd.f32 %v3494, %v3325
        %v3527 = vadd.f32 %v3495, %v3328
        %v3528 = vadd.f32 %v3496, %v3330
        %v3529 = vadd.f32 %v3497, %v3333
        %v3530 = vadd.f32 %v3498, %v3335
        %v3531 = vadd.f32 %v3499, %v3338
        %v3532 = vadd.f32 %v3500, %v3340
        %v3533 = vadd.f32 %v3501, %v3343
        %v3534 = vadd.f32 %v3502, %v3345
        %v3535 = vadd.f32 %v3503, %v3348
        %v3536 = vadd.f32 %v3504, %v3350
        %v3537 = vadd.f32 %v3505, %v3353
        %v3538 = vadd.f32 %v3506, %v3355
        %v3539 = vadd.f32 %v3507, %v3358
        %v3540 = vadd.f32 %v3508, %v3360
        %v3541 = vadd.f32 %v3509, %v3363
        %v3542 = vadd.f32 %v3510, %v3365
        %v3543 = vadd.f32 %v3511, %v3368
        %v3544 = vadd.f32 %v3512, %v3370
        %v3545 = vadd.f32 %v3513, %v3373
        %v3546 = vadd.f32 %v3514, %v3375
        %v3547 = vadd.f32 %v3515, %v3378
        %v3548 = vadd.f32 %v3516, %v3380
        %v3549 = vadd.f32 %v3517, %v3383
        %v3550 = vadd.f32 %v3518, %v3385
        %v3551 = vadd.f32 %v3519, %v3388
        %v3552 = vadd.f32 %v3520, %v3390
        %v3553 = vadd.f32 %v3521, %v3393
        %v3554 = vadd.f32 %v3522, %v3395
        %3555 = vst [vmem:[#allocation2] sm:$0xff] %v3523
        %3556 = vst [vmem:[#allocation2 + $0x8] sm:$0xff] %v3524
        %3557 = vst [vmem:[#allocation2 + $0x10] sm:$0xff] %v3525
        %3558 = vst [vmem:[#allocation2 + $0x18] sm:$0xff] %v3526
        %3559 = vst [vmem:[#allocation2 + $0x20] sm:$0xff] %v3527
        %3560 = vst [vmem:[#allocation2 + $0x28] sm:$0xff] %v3528
        %3561 = vst [vmem:[#allocation2 + $0x30] sm:$0xff] %v3529
        %3562 = vst [vmem:[#allocation2 + $0x38] sm:$0xff] %v3530
        %3563 = vst [vmem:[#allocation2 + $0x40] sm:$0xff] %v3531
        %3564 = vst [vmem:[#allocation2 + $0x48] sm:$0xff] %v3532
        %3565 = vst [vmem:[#allocation2 + $0x50] sm:$0xff] %v3533
        %3566 = vst [vmem:[#allocation2 + $0x58] sm:$0xff] %v3534
        %3567 = vst [vmem:[#allocation2 + $0x60] sm:$0xff] %v3535
        %3568 = vst [vmem:[#allocation2 + $0x68] sm:$0xff] %v3536
        %3569 = vst [vmem:[#allocation2 + $0x70] sm:$0xff] %v3537
        %3570 = vst [vmem:[#allocation2 + $0x78] sm:$0xff] %v3538
        %3571 = vst [vmem:[#allocation2 + $0x80] sm:$0xff] %v3539
        %3572 = vst [vmem:[#allocation2 + $0x88] sm:$0xff] %v3540
        %3573 = vst [vmem:[#allocation2 + $0x90] sm:$0xff] %v3541
        %3574 = vst [vmem:[#allocation2 + $0x98] sm:$0xff] %v3542
        %3575 = vst [vmem:[#allocation2 + $0xa0] sm:$0xff] %v3543
        %3576 = vst [vmem:[#allocation2 + $0xa8] sm:$0xff] %v3544
        %3577 = vst [vmem:[#allocation2 + $0xb0] sm:$0xff] %v3545
        %3578 = vst [vmem:[#allocation2 + $0xb8] sm:$0xff] %v3546
        %3579 = vst [vmem:[#allocation2 + $0xc0] sm:$0xff] %v3547
        %3580 = vst [vmem:[#allocation2 + $0xc8] sm:$0xff] %v3548
        %3581 = vst [vmem:[#allocation2 + $0xd0] sm:$0xff] %v3549
        %3582 = vst [vmem:[#allocation2 + $0xd8] sm:$0xff] %v3550
        %3583 = vst [vmem:[#allocation2 + $0xe0] sm:$0xff] %v3551
        %3584 = vst [vmem:[#allocation2 + $0xe8] sm:$0xff] %v3552
        %3585 = vst [vmem:[#allocation2 + $0xf0] sm:$0xff] %v3553
        %3586 = vst [vmem:[#allocation2 + $0xf8] sm:$0xff] %v3554
        %v3587 = vld [vmem:[#allocation3] sm:$0xff]
        %v3588 = vld [vmem:[#allocation3 + $0x8] sm:$0xff]
        %v3589 = vld [vmem:[#allocation3 + $0x10] sm:$0xff]
        %v3590 = vld [vmem:[#allocation3 + $0x18] sm:$0xff]
        %v3591 = vld [vmem:[#allocation3 + $0x20] sm:$0xff]
        %v3592 = vld [vmem:[#allocation3 + $0x28] sm:$0xff]
        %v3593 = vld [vmem:[#allocation3 + $0x30] sm:$0xff]
        %v3594 = vld [vmem:[#allocation3 + $0x38] sm:$0xff]
        %v3595 = vld [vmem:[#allocation3 + $0x40] sm:$0xff]
        %v3596 = vld [vmem:[#allocation3 + $0x48] sm:$0xff]
        %v3597 = vld [vmem:[#allocation3 + $0x50] sm:$0xff]
        %v3598 = vld [vmem:[#allocation3 + $0x58] sm:$0xff]
        %v3599 = vld [vmem:[#allocation3 + $0x60] sm:$0xff]
        %v3600 = vld [vmem:[#allocation3 + $0x68] sm:$0xff]
        %v3601 = vld [vmem:[#allocation3 + $0x70] sm:$0xff]
        %v3602 = vld [vmem:[#allocation3 + $0x78] sm:$0xff]
        %v3603 = vld [vmem:[#allocation3 + $0x80] sm:$0xff]
        %v3604 = vld [vmem:[#allocation3 + $0x88] sm:$0xff]
        %v3605 = vld [vmem:[#allocation3 + $0x90] sm:$0xff]
        %v3606 = vld [vmem:[#allocation3 + $0x98] sm:$0xff]
        %v3607 = vld [vmem:[#allocation3 + $0xa0] sm:$0xff]
        %v3608 = vld [vmem:[#allocation3 + $0xa8] sm:$0xff]
        %v3609 = vld [vmem:[#allocation3 + $0xb0] sm:$0xff]
        %v3610 = vld [vmem:[#allocation3 + $0xb8] sm:$0xff]
        %v3611 = vld [vmem:[#allocation3 + $0xc0] sm:$0xff]
        %v3612 = vld [vmem:[#allocation3 + $0xc8] sm:$0xff]
        %v3613 = vld [vmem:[#allocation3 + $0xd0] sm:$0xff]
        %v3614 = vld [vmem:[#allocation3 + $0xd8] sm:$0xff]
        %v3615 = vld [vmem:[#allocation3 + $0xe0] sm:$0xff]
        %v3616 = vld [vmem:[#allocation3 + $0xe8] sm:$0xff]
        %v3617 = vld [vmem:[#allocation3 + $0xf0] sm:$0xff]
        %v3618 = vld [vmem:[#allocation3 + $0xf8] sm:$0xff]
        %v3619 = vadd.f32 %v3587, %v3412
        %v3620 = vadd.f32 %v3588, %v3414
        %v3621 = vadd.f32 %v3589, %v3417
        %v3622 = vadd.f32 %v3590, %v3419
        %v3623 = vadd.f32 %v3591, %v3422
        %v3624 = vadd.f32 %v3592, %v3424
        %v3625 = vadd.f32 %v3593, %v3427
        %v3626 = vadd.f32 %v3594, %v3429
        %v3627 = vadd.f32 %v3595, %v3432
        %v3628 = vadd.f32 %v3596, %v3434
        %v3629 = vadd.f32 %v3597, %v3437
        %v3630 = vadd.f32 %v3598, %v3439
        %v3631 = vadd.f32 %v3599, %v3442
        %v3632 = vadd.f32 %v3600, %v3444
        %v3633 = vadd.f32 %v3601, %v3447
        %v3634 = vadd.f32 %v3602, %v3449
        %v3635 = vadd.f32 %v3603, %v3452
        %v3636 = vadd.f32 %v3604, %v3454
        %v3637 = vadd.f32 %v3605, %v3457
        %v3638 = vadd.f32 %v3606, %v3459
        %v3639 = vadd.f32 %v3607, %v3462
        %v3640 = vadd.f32 %v3608, %v3464
        %v3641 = vadd.f32 %v3609, %v3467
        %v3642 = vadd.f32 %v3610, %v3469
        %v3643 = vadd.f32 %v3611, %v3472
        %v3644 = vadd.f32 %v3612, %v3474
        %v3645 = vadd.f32 %v3613, %v3477
        %v3646 = vadd.f32 %v3614, %v3479
        %v3647 = vadd.f32 %v3615, %v3482
        %v3648 = vadd.f32 %v3616, %v3484
        %v3649 = vadd.f32 %v3617, %v3487
        %v3650 = vadd.f32 %v3618, %v3489
        %3651 = vst [vmem:[#allocation3] sm:$0xff] %v3619
        %3652 = vst [vmem:[#allocation3 + $0x8] sm:$0xff] %v3620
        %3653 = vst [vmem:[#allocation3 + $0x10] sm:$0xff] %v3621
        %3654 = vst [vmem:[#allocation3 + $0x18] sm:$0xff] %v3622
        %3655 = vst [vmem:[#allocation3 + $0x20] sm:$0xff] %v3623
        %3656 = vst [vmem:[#allocation3 + $0x28] sm:$0xff] %v3624
        %3657 = vst [vmem:[#allocation3 + $0x30] sm:$0xff] %v3625
        %3658 = vst [vmem:[#allocation3 + $0x38] sm:$0xff] %v3626
        %3659 = vst [vmem:[#allocation3 + $0x40] sm:$0xff] %v3627
        %3660 = vst [vmem:[#allocation3 + $0x48] sm:$0xff] %v3628
        %3661 = vst [vmem:[#allocation3 + $0x50] sm:$0xff] %v3629
        %3662 = vst [vmem:[#allocation3 + $0x58] sm:$0xff] %v3630
        %3663 = vst [vmem:[#allocation3 + $0x60] sm:$0xff] %v3631
        %3664 = vst [vmem:[#allocation3 + $0x68] sm:$0xff] %v3632
        %3665 = vst [vmem:[#allocation3 + $0x70] sm:$0xff] %v3633
        %3666 = vst [vmem:[#allocation3 + $0x78] sm:$0xff] %v3634
        %3667 = vst [vmem:[#allocation3 + $0x80] sm:$0xff] %v3635
        %3668 = vst [vmem:[#allocation3 + $0x88] sm:$0xff] %v3636
        %3669 = vst [vmem:[#allocation3 + $0x90] sm:$0xff] %v3637
        %3670 = vst [vmem:[#allocation3 + $0x98] sm:$0xff] %v3638
        %3671 = vst [vmem:[#allocation3 + $0xa0] sm:$0xff] %v3639
        %3672 = vst [vmem:[#allocation3 + $0xa8] sm:$0xff] %v3640
        %3673 = vst [vmem:[#allocation3 + $0xb0] sm:$0xff] %v3641
        %3674 = vst [vmem:[#allocation3 + $0xb8] sm:$0xff] %v3642
        %3675 = vst [vmem:[#allocation3 + $0xc0] sm:$0xff] %v3643
        %3676 = vst [vmem:[#allocation3 + $0xc8] sm:$0xff] %v3644
        %3677 = vst [vmem:[#allocation3 + $0xd0] sm:$0xff] %v3645
        %3678 = vst [vmem:[#allocation3 + $0xd8] sm:$0xff] %v3646
        %3679 = vst [vmem:[#allocation3 + $0xe0] sm:$0xff] %v3647
        %3680 = vst [vmem:[#allocation3 + $0xe8] sm:$0xff] %v3648
        %3681 = vst [vmem:[#allocation3 + $0xf0] sm:$0xff] %v3649
        %3682 = vst [vmem:[#allocation3 + $0xf8] sm:$0xff] %v3650
        %v3683 = vld [vmem:[%s2234] sm:$0xe]
        %v3684 = vld [vmem:[%s2234 + $0x4] sm:$0xf]
        %v3685 = vld [vmem:[%s2234 + $0x8] sm:$0x1]
        %v3686 = vld [vmem:[%s2234 + $0xc] sm:$0xe]
        %v3687 = vld [vmem:[%s2234 + $0x10] sm:$0xf]
        %v3688 = vld [vmem:[%s2234 + $0x14] sm:$0x1]
        %v3689 = vld [vmem:[%s2234 + $0x18] sm:$0xe]
        %v3690 = vld [vmem:[%s2234 + $0x1c] sm:$0xf]
        %v3691 = vld [vmem:[%s2234 + $0x20] sm:$0x1]
        %v3692 = vld [vmem:[%s2234 + $0x24] sm:$0xe]
        %v3693 = vld [vmem:[%s2234 + $0x28] sm:$0xf]
        %v3694 = vld [vmem:[%s2234 + $0x2c] sm:$0x1]
        %v3695 = vld [vmem:[%s2234 + $0x30] sm:$0xe]
        %v3696 = vld [vmem:[%s2234 + $0x34] sm:$0xf]
        %v3697 = vld [vmem:[%s2234 + $0x38] sm:$0x1]
        %v3698 = vld [vmem:[%s2234 + $0x3c] sm:$0xe]
        %v3699 = vld [vmem:[%s2234 + $0x40] sm:$0xf]
        %v3700 = vld [vmem:[%s2234 + $0x44] sm:$0x1]
        %v3701 = vld [vmem:[%s2234 + $0x48] sm:$0xe]
        %v3702 = vld [vmem:[%s2234 + $0x4c] sm:$0xf]
        %v3703 = vld [vmem:[%s2234 + $0x50] sm:$0x1]
        %v3704 = vld [vmem:[%s2234 + $0x54] sm:$0xe]
        %v3705 = vld [vmem:[%s2234 + $0x58] sm:$0xf]
        %v3706 = vld [vmem:[%s2234 + $0x5c] sm:$0x1]
        %v3707 = vld [vmem:[%s2234 + $0x60] sm:$0xe]
        %v3708 = vld [vmem:[%s2234 + $0x64] sm:$0xf]
        %v3709 = vld [vmem:[%s2234 + $0x68] sm:$0x1]
        %v3710 = vld [vmem:[%s2234 + $0x6c] sm:$0xe]
        %v3711 = vld [vmem:[%s2234 + $0x70] sm:$0xf]
        %v3712 = vld [vmem:[%s2234 + $0x74] sm:$0x1]
        %v3713 = vld [vmem:[%s2234 + $0x78] sm:$0xe]
        %v3714 = vld [vmem:[%s2234 + $0x7c] sm:$0xf]
        %v3715 = vld [vmem:[%s2234 + $0x80] sm:$0x1]
        %v3716 = vld [vmem:[%s2234 + $0x84] sm:$0xe]
        %v3717 = vld [vmem:[%s2234 + $0x88] sm:$0xf]
        %v3718 = vld [vmem:[%s2234 + $0x8c] sm:$0x1]
        %v3719 = vld [vmem:[%s2234 + $0x90] sm:$0xe]
        %v3720 = vld [vmem:[%s2234 + $0x94] sm:$0xf]
        %v3721 = vld [vmem:[%s2234 + $0x98] sm:$0x1]
        %v3722 = vld [vmem:[%s2234 + $0x9c] sm:$0xe]
        %v3723 = vld [vmem:[%s2234 + $0xa0] sm:$0xf]
        %v3724 = vld [vmem:[%s2234 + $0xa4] sm:$0x1]
        %v3725 = vld [vmem:[%s2234 + $0xa8] sm:$0xe]
        %v3726 = vld [vmem:[%s2234 + $0xac] sm:$0xf]
        %v3727 = vld [vmem:[%s2234 + $0xb0] sm:$0x1]
        %v3728 = vld [vmem:[%s2234 + $0xb4] sm:$0xe]
        %v3729 = vld [vmem:[%s2234 + $0xb8] sm:$0xf]
        %v3730 = vld [vmem:[%s2234 + $0xbc] sm:$0x1]
        %v3779 = vrot.slane %v3683, 5
        %v3780 = vrot.slane %v3779, 4
        %v3781 = vrot.slane %v3684, 5
        %v3782 = vsel %vm1645, %v3780, %v3781
        %v3783 = vrot.slane %v3781, 4
        %v3784 = vrot.slane %v3685, 5
        %v3785 = vsel %vm1645, %v3783, %v3784
        %v3786 = vrot.slane %v3686, 5
        %v3787 = vrot.slane %v3786, 4
        %v3788 = vrot.slane %v3687, 5
        %v3789 = vsel %vm1645, %v3787, %v3788
        %v3790 = vrot.slane %v3788, 4
        %v3791 = vrot.slane %v3688, 5
        %v3792 = vsel %vm1645, %v3790, %v3791
        %v3793 = vrot.slane %v3689, 5
        %v3794 = vrot.slane %v3793, 4
        %v3795 = vrot.slane %v3690, 5
        %v3796 = vsel %vm1645, %v3794, %v3795
        %v3797 = vrot.slane %v3795, 4
        %v3798 = vrot.slane %v3691, 5
        %v3799 = vsel %vm1645, %v3797, %v3798
        %v3800 = vrot.slane %v3692, 5
        %v3801 = vrot.slane %v3800, 4
        %v3802 = vrot.slane %v3693, 5
        %v3803 = vsel %vm1645, %v3801, %v3802
        %v3804 = vrot.slane %v3802, 4
        %v3805 = vrot.slane %v3694, 5
        %v3806 = vsel %vm1645, %v3804, %v3805
        %v3807 = vrot.slane %v3695, 5
        %v3808 = vrot.slane %v3807, 4
        %v3809 = vrot.slane %v3696, 5
        %v3810 = vsel %vm1645, %v3808, %v3809
        %v3811 = vrot.slane %v3809, 4
        %v3812 = vrot.slane %v3697, 5
        %v3813 = vsel %vm1645, %v3811, %v3812
        %v3814 = vrot.slane %v3698, 5
        %v3815 = vrot.slane %v3814, 4
        %v3816 = vrot.slane %v3699, 5
        %v3817 = vsel %vm1645, %v3815, %v3816
        %v3818 = vrot.slane %v3816, 4
        %v3819 = vrot.slane %v3700, 5
        %v3820 = vsel %vm1645, %v3818, %v3819
        %v3821 = vrot.slane %v3701, 5
        %v3822 = vrot.slane %v3821, 4
        %v3823 = vrot.slane %v3702, 5
        %v3824 = vsel %vm1645, %v3822, %v3823
        %v3825 = vrot.slane %v3823, 4
        %v3826 = vrot.slane %v3703, 5
        %v3827 = vsel %vm1645, %v3825, %v3826
        %v3828 = vrot.slane %v3704, 5
        %v3829 = vrot.slane %v3828, 4
        %v3830 = vrot.slane %v3705, 5
        %v3831 = vsel %vm1645, %v3829, %v3830
        %v3832 = vrot.slane %v3830, 4
        %v3833 = vrot.slane %v3706, 5
        %v3834 = vsel %vm1645, %v3832, %v3833
        %v3835 = vrot.slane %v3707, 5
        %v3836 = vrot.slane %v3835, 4
        %v3837 = vrot.slane %v3708, 5
        %v3838 = vsel %vm1645, %v3836, %v3837
        %v3839 = vrot.slane %v3837, 4
        %v3840 = vrot.slane %v3709, 5
        %v3841 = vsel %vm1645, %v3839, %v3840
        %v3842 = vrot.slane %v3710, 5
        %v3843 = vrot.slane %v3842, 4
        %v3844 = vrot.slane %v3711, 5
        %v3845 = vsel %vm1645, %v3843, %v3844
        %v3846 = vrot.slane %v3844, 4
        %v3847 = vrot.slane %v3712, 5
        %v3848 = vsel %vm1645, %v3846, %v3847
        %v3849 = vrot.slane %v3713, 5
        %v3850 = vrot.slane %v3849, 4
        %v3851 = vrot.slane %v3714, 5
        %v3852 = vsel %vm1645, %v3850, %v3851
        %v3853 = vrot.slane %v3851, 4
        %v3854 = vrot.slane %v3715, 5
        %v3855 = vsel %vm1645, %v3853, %v3854
        %v3856 = vrot.slane %v3716, 5
        %v3857 = vrot.slane %v3856, 4
        %v3858 = vrot.slane %v3717, 5
        %v3859 = vsel %vm1645, %v3857, %v3858
        %v3860 = vrot.slane %v3858, 4
        %v3861 = vrot.slane %v3718, 5
        %v3862 = vsel %vm1645, %v3860, %v3861
        %v3863 = vrot.slane %v3719, 5
        %v3864 = vrot.slane %v3863, 4
        %v3865 = vrot.slane %v3720, 5
        %v3866 = vsel %vm1645, %v3864, %v3865
        %v3867 = vrot.slane %v3865, 4
        %v3868 = vrot.slane %v3721, 5
        %v3869 = vsel %vm1645, %v3867, %v3868
        %v3870 = vrot.slane %v3722, 5
        %v3871 = vrot.slane %v3870, 4
        %v3872 = vrot.slane %v3723, 5
        %v3873 = vsel %vm1645, %v3871, %v3872
        %v3874 = vrot.slane %v3872, 4
        %v3875 = vrot.slane %v3724, 5
        %v3876 = vsel %vm1645, %v3874, %v3875
        %v3877 = vrot.slane %v3725, 5
        %v3878 = vrot.slane %v3877, 4
        %v3879 = vrot.slane %v3726, 5
        %v3880 = vsel %vm1645, %v3878, %v3879
        %v3881 = vrot.slane %v3879, 4
        %v3882 = vrot.slane %v3727, 5
        %v3883 = vsel %vm1645, %v3881, %v3882
        %v3884 = vrot.slane %v3728, 5
        %v3885 = vrot.slane %v3884, 4
        %v3886 = vrot.slane %v3729, 5
        %v3887 = vsel %vm1645, %v3885, %v3886
        %v3888 = vrot.slane %v3886, 4
        %v3889 = vrot.slane %v3730, 5
        %v3890 = vsel %vm1645, %v3888, %v3889
        %s3891 = scalar_lea.vmem %s1, 10
        %v3892 = vld [vmem:[%s3891] sm:$0x3]
        %v3893 = vunpack.c.l.b16 %v3782
        %v3894 = vunpack.c.l.b16 %v3785
        %v3895 = vunpack.c.l.b16 %v3789
        %v3896 = vunpack.c.l.b16 %v3792
        %v3897 = vunpack.c.l.b16 %v3796
        %v3898 = vunpack.c.l.b16 %v3799
        %v3899 = vunpack.c.l.b16 %v3803
        %v3900 = vunpack.c.l.b16 %v3806
        %v3901 = vunpack.c.l.b16 %v3810
        %v3902 = vunpack.c.l.b16 %v3813
        %v3903 = vunpack.c.l.b16 %v3817
        %v3904 = vunpack.c.l.b16 %v3820
        %v3905 = vunpack.c.l.b16 %v3824
        %v3906 = vunpack.c.l.b16 %v3827
        %v3907 = vunpack.c.l.b16 %v3831
        %v3908 = vunpack.c.l.b16 %v3834
        %v3909 = vunpack.c.l.b16 %v3838
        %v3910 = vunpack.c.l.b16 %v3841
        %v3911 = vunpack.c.l.b16 %v3845
        %v3912 = vunpack.c.l.b16 %v3848
        %v3913 = vunpack.c.l.b16 %v3852
        %v3914 = vunpack.c.l.b16 %v3855
        %v3915 = vunpack.c.l.b16 %v3859
        %v3916 = vunpack.c.l.b16 %v3862
        %v3917 = vunpack.c.l.b16 %v3866
        %v3918 = vunpack.c.l.b16 %v3869
        %v3919 = vunpack.c.l.b16 %v3873
        %v3920 = vunpack.c.l.b16 %v3876
        %v3921 = vunpack.c.l.b16 %v3880
        %v3922 = vunpack.c.l.b16 %v3883
        %v3923 = vunpack.c.l.b16 %v3887
        %v3924 = vunpack.c.l.b16 %v3890
        %v3925 = vpack.c.b16 %v3894, %v3893
        %v3926 = vpack.c.b16 %v3896, %v3895
        %v3927 = vpack.c.b16 %v3898, %v3897
        %v3928 = vpack.c.b16 %v3900, %v3899
        %v3929 = vpack.c.b16 %v3902, %v3901
        %v3930 = vpack.c.b16 %v3904, %v3903
        %v3931 = vpack.c.b16 %v3906, %v3905
        %v3932 = vpack.c.b16 %v3908, %v3907
        %v3933 = vpack.c.b16 %v3910, %v3909
        %v3934 = vpack.c.b16 %v3912, %v3911
        %v3935 = vpack.c.b16 %v3914, %v3913
        %v3936 = vpack.c.b16 %v3916, %v3915
        %v3937 = vpack.c.b16 %v3918, %v3917
        %v3938 = vpack.c.b16 %v3920, %v3919
        %v3939 = vpack.c.b16 %v3922, %v3921
        %v3940 = vpack.c.b16 %v3924, %v3923
        %v3942 = vsel %vm337, %v3925, 0
        %v3945 = vsel %vm337, %v3926, 0
        %v3948 = vsel %vm337, %v3927, 0
        %v3951 = vsel %vm337, %v3928, 0
        %v3954 = vsel %vm337, %v3929, 0
        %v3957 = vsel %vm337, %v3930, 0
        %v3960 = vsel %vm337, %v3931, 0
        %v3963 = vsel %vm337, %v3932, 0
        %v3966 = vsel %vm337, %v3933, 0
        %v3969 = vsel %vm337, %v3934, 0
        %v3972 = vsel %vm337, %v3935, 0
        %v3975 = vsel %vm337, %v3936, 0
        %v3978 = vsel %vm337, %v3937, 0
        %v3981 = vsel %vm337, %v3938, 0
        %v3984 = vsel %vm337, %v3939, 0
        %v3987 = vsel %vm337, %v3940, 0
        %v3990 = vsel %vm386, %v3892, 0
        %3992 = vmatpush.bf16.msra.mxu0 0
        %3993 = vmatpush.bf16.msra.mxu0 0
        %3994 = vmatpush.bf16.msra.mxu0 0
        %3995 = vmatpush.bf16.msra.mxu0 0
        %3996 = vmatpush.bf16.msra.mxu0 0
        %3997 = vmatpush.bf16.msra.mxu0 0
        %3998 = vmatpush.bf16.msra.mxu0 0
        %3999 = vmatpush.bf16.msra.mxu0 %v3990
        %4000 = vmatmul.bf16.gmra.mxu0 %v3942
        %v4001 = vpop.f32.mrf.mxu0
        %v4002 = vadd.f32 0.0, %v4001
        %v4003 = vpop.f32.mrf.mxu0
        %v4004 = vadd.f32 0.0, %v4003
        %4005 = vmatmul.bf16.gmra.mxu0 %v3945
        %v4006 = vpop.f32.mrf.mxu0
        %v4007 = vadd.f32 0.0, %v4006
        %v4008 = vpop.f32.mrf.mxu0
        %v4009 = vadd.f32 0.0, %v4008
        %4010 = vmatmul.bf16.gmra.mxu0 %v3948
        %v4011 = vpop.f32.mrf.mxu0
        %v4012 = vadd.f32 0.0, %v4011
        %v4013 = vpop.f32.mrf.mxu0
        %v4014 = vadd.f32 0.0, %v4013
        %4015 = vmatmul.bf16.gmra.mxu0 %v3951
        %v4016 = vpop.f32.mrf.mxu0
        %v4017 = vadd.f32 0.0, %v4016
        %v4018 = vpop.f32.mrf.mxu0
        %v4019 = vadd.f32 0.0, %v4018
        %4020 = vmatmul.bf16.gmra.mxu0 %v3954
        %v4021 = vpop.f32.mrf.mxu0
        %v4022 = vadd.f32 0.0, %v4021
        %v4023 = vpop.f32.mrf.mxu0
        %v4024 = vadd.f32 0.0, %v4023
        %4025 = vmatmul.bf16.gmra.mxu0 %v3957
        %v4026 = vpop.f32.mrf.mxu0
        %v4027 = vadd.f32 0.0, %v4026
        %v4028 = vpop.f32.mrf.mxu0
        %v4029 = vadd.f32 0.0, %v4028
        %4030 = vmatmul.bf16.gmra.mxu0 %v3960
        %v4031 = vpop.f32.mrf.mxu0
        %v4032 = vadd.f32 0.0, %v4031
        %v4033 = vpop.f32.mrf.mxu0
        %v4034 = vadd.f32 0.0, %v4033
        %4035 = vmatmul.bf16.gmra.mxu0 %v3963
        %v4036 = vpop.f32.mrf.mxu0
        %v4037 = vadd.f32 0.0, %v4036
        %v4038 = vpop.f32.mrf.mxu0
        %v4039 = vadd.f32 0.0, %v4038
        %4040 = vmatmul.bf16.gmra.mxu0 %v3966
        %v4041 = vpop.f32.mrf.mxu0
        %v4042 = vadd.f32 0.0, %v4041
        %v4043 = vpop.f32.mrf.mxu0
        %v4044 = vadd.f32 0.0, %v4043
        %4045 = vmatmul.bf16.gmra.mxu0 %v3969
        %v4046 = vpop.f32.mrf.mxu0
        %v4047 = vadd.f32 0.0, %v4046
        %v4048 = vpop.f32.mrf.mxu0
        %v4049 = vadd.f32 0.0, %v4048
        %4050 = vmatmul.bf16.gmra.mxu0 %v3972
        %v4051 = vpop.f32.mrf.mxu0
        %v4052 = vadd.f32 0.0, %v4051
        %v4053 = vpop.f32.mrf.mxu0
        %v4054 = vadd.f32 0.0, %v4053
        %4055 = vmatmul.bf16.gmra.mxu0 %v3975
        %v4056 = vpop.f32.mrf.mxu0
        %v4057 = vadd.f32 0.0, %v4056
        %v4058 = vpop.f32.mrf.mxu0
        %v4059 = vadd.f32 0.0, %v4058
        %4060 = vmatmul.bf16.gmra.mxu0 %v3978
        %v4061 = vpop.f32.mrf.mxu0
        %v4062 = vadd.f32 0.0, %v4061
        %v4063 = vpop.f32.mrf.mxu0
        %v4064 = vadd.f32 0.0, %v4063
        %4065 = vmatmul.bf16.gmra.mxu0 %v3981
        %v4066 = vpop.f32.mrf.mxu0
        %v4067 = vadd.f32 0.0, %v4066
        %v4068 = vpop.f32.mrf.mxu0
        %v4069 = vadd.f32 0.0, %v4068
        %4070 = vmatmul.bf16.gmra.mxu0 %v3984
        %v4071 = vpop.f32.mrf.mxu0
        %v4072 = vadd.f32 0.0, %v4071
        %v4073 = vpop.f32.mrf.mxu0
        %v4074 = vadd.f32 0.0, %v4073
        %4075 = vmatmul.bf16.gmra.mxu0 %v3987
        %v4076 = vpop.f32.mrf.mxu0
        %v4077 = vadd.f32 0.0, %v4076
        %v4078 = vpop.f32.mrf.mxu0
        %v4079 = vadd.f32 0.0, %v4078
        %4080 = vdwg.mxu0
        %s4081 = scalar_lea.vmem %s2, 10
        %v4082 = vld [vmem:[%s4081] sm:$0x3]
        %v4084 = vsel %vm386, %v4082, 0
        %4086 = vmatpush.bf16.msra.mxu0 0
        %4087 = vmatpush.bf16.msra.mxu0 0
        %4088 = vmatpush.bf16.msra.mxu0 0
        %4089 = vmatpush.bf16.msra.mxu0 0
        %4090 = vmatpush.bf16.msra.mxu0 0
        %4091 = vmatpush.bf16.msra.mxu0 0
        %4092 = vmatpush.bf16.msra.mxu0 0
        %4093 = vmatpush.bf16.msra.mxu0 %v4084
        %4094 = vmatmul.bf16.gmra.mxu0 %v3942
        %v4095 = vpop.f32.mrf.mxu0
        %v4096 = vadd.f32 0.0, %v4095
        %v4097 = vpop.f32.mrf.mxu0
        %v4098 = vadd.f32 0.0, %v4097
        %4099 = vmatmul.bf16.gmra.mxu0 %v3945
        %v4100 = vpop.f32.mrf.mxu0
        %v4101 = vadd.f32 0.0, %v4100
        %v4102 = vpop.f32.mrf.mxu0
        %v4103 = vadd.f32 0.0, %v4102
        %4104 = vmatmul.bf16.gmra.mxu0 %v3948
        %v4105 = vpop.f32.mrf.mxu0
        %v4106 = vadd.f32 0.0, %v4105
        %v4107 = vpop.f32.mrf.mxu0
        %v4108 = vadd.f32 0.0, %v4107
        %4109 = vmatmul.bf16.gmra.mxu0 %v3951
        %v4110 = vpop.f32.mrf.mxu0
        %v4111 = vadd.f32 0.0, %v4110
        %v4112 = vpop.f32.mrf.mxu0
        %v4113 = vadd.f32 0.0, %v4112
        %4114 = vmatmul.bf16.gmra.mxu0 %v3954
        %v4115 = vpop.f32.mrf.mxu0
        %v4116 = vadd.f32 0.0, %v4115
        %v4117 = vpop.f32.mrf.mxu0
        %v4118 = vadd.f32 0.0, %v4117
        %4119 = vmatmul.bf16.gmra.mxu0 %v3957
        %v4120 = vpop.f32.mrf.mxu0
        %v4121 = vadd.f32 0.0, %v4120
        %v4122 = vpop.f32.mrf.mxu0
        %v4123 = vadd.f32 0.0, %v4122
        %4124 = vmatmul.bf16.gmra.mxu0 %v3960
        %v4125 = vpop.f32.mrf.mxu0
        %v4126 = vadd.f32 0.0, %v4125
        %v4127 = vpop.f32.mrf.mxu0
        %v4128 = vadd.f32 0.0, %v4127
        %4129 = vmatmul.bf16.gmra.mxu0 %v3963
        %v4130 = vpop.f32.mrf.mxu0
        %v4131 = vadd.f32 0.0, %v4130
        %v4132 = vpop.f32.mrf.mxu0
        %v4133 = vadd.f32 0.0, %v4132
        %4134 = vmatmul.bf16.gmra.mxu0 %v3966
        %v4135 = vpop.f32.mrf.mxu0
        %v4136 = vadd.f32 0.0, %v4135
        %v4137 = vpop.f32.mrf.mxu0
        %v4138 = vadd.f32 0.0, %v4137
        %4139 = vmatmul.bf16.gmra.mxu0 %v3969
        %v4140 = vpop.f32.mrf.mxu0
        %v4141 = vadd.f32 0.0, %v4140
        %v4142 = vpop.f32.mrf.mxu0
        %v4143 = vadd.f32 0.0, %v4142
        %4144 = vmatmul.bf16.gmra.mxu0 %v3972
        %v4145 = vpop.f32.mrf.mxu0
        %v4146 = vadd.f32 0.0, %v4145
        %v4147 = vpop.f32.mrf.mxu0
        %v4148 = vadd.f32 0.0, %v4147
        %4149 = vmatmul.bf16.gmra.mxu0 %v3975
        %v4150 = vpop.f32.mrf.mxu0
        %v4151 = vadd.f32 0.0, %v4150
        %v4152 = vpop.f32.mrf.mxu0
        %v4153 = vadd.f32 0.0, %v4152
        %4154 = vmatmul.bf16.gmra.mxu0 %v3978
        %v4155 = vpop.f32.mrf.mxu0
        %v4156 = vadd.f32 0.0, %v4155
        %v4157 = vpop.f32.mrf.mxu0
        %v4158 = vadd.f32 0.0, %v4157
        %4159 = vmatmul.bf16.gmra.mxu0 %v3981
        %v4160 = vpop.f32.mrf.mxu0
        %v4161 = vadd.f32 0.0, %v4160
        %v4162 = vpop.f32.mrf.mxu0
        %v4163 = vadd.f32 0.0, %v4162
        %4164 = vmatmul.bf16.gmra.mxu0 %v3984
        %v4165 = vpop.f32.mrf.mxu0
        %v4166 = vadd.f32 0.0, %v4165
        %v4167 = vpop.f32.mrf.mxu0
        %v4168 = vadd.f32 0.0, %v4167
        %4169 = vmatmul.bf16.gmra.mxu0 %v3987
        %v4170 = vpop.f32.mrf.mxu0
        %v4171 = vadd.f32 0.0, %v4170
        %v4172 = vpop.f32.mrf.mxu0
        %v4173 = vadd.f32 0.0, %v4172
        %4174 = vdwg.mxu0
        %v4175 = vld [vmem:[#allocation2] sm:$0xff]
        %v4176 = vld [vmem:[#allocation2 + $0x8] sm:$0xff]
        %v4177 = vld [vmem:[#allocation2 + $0x10] sm:$0xff]
        %v4178 = vld [vmem:[#allocation2 + $0x18] sm:$0xff]
        %v4179 = vld [vmem:[#allocation2 + $0x20] sm:$0xff]
        %v4180 = vld [vmem:[#allocation2 + $0x28] sm:$0xff]
        %v4181 = vld [vmem:[#allocation2 + $0x30] sm:$0xff]
        %v4182 = vld [vmem:[#allocation2 + $0x38] sm:$0xff]
        %v4183 = vld [vmem:[#allocation2 + $0x40] sm:$0xff]
        %v4184 = vld [vmem:[#allocation2 + $0x48] sm:$0xff]
        %v4185 = vld [vmem:[#allocation2 + $0x50] sm:$0xff]
        %v4186 = vld [vmem:[#allocation2 + $0x58] sm:$0xff]
        %v4187 = vld [vmem:[#allocation2 + $0x60] sm:$0xff]
        %v4188 = vld [vmem:[#allocation2 + $0x68] sm:$0xff]
        %v4189 = vld [vmem:[#allocation2 + $0x70] sm:$0xff]
        %v4190 = vld [vmem:[#allocation2 + $0x78] sm:$0xff]
        %v4191 = vld [vmem:[#allocation2 + $0x80] sm:$0xff]
        %v4192 = vld [vmem:[#allocation2 + $0x88] sm:$0xff]
        %v4193 = vld [vmem:[#allocation2 + $0x90] sm:$0xff]
        %v4194 = vld [vmem:[#allocation2 + $0x98] sm:$0xff]
        %v4195 = vld [vmem:[#allocation2 + $0xa0] sm:$0xff]
        %v4196 = vld [vmem:[#allocation2 + $0xa8] sm:$0xff]
        %v4197 = vld [vmem:[#allocation2 + $0xb0] sm:$0xff]
        %v4198 = vld [vmem:[#allocation2 + $0xb8] sm:$0xff]
        %v4199 = vld [vmem:[#allocation2 + $0xc0] sm:$0xff]
        %v4200 = vld [vmem:[#allocation2 + $0xc8] sm:$0xff]
        %v4201 = vld [vmem:[#allocation2 + $0xd0] sm:$0xff]
        %v4202 = vld [vmem:[#allocation2 + $0xd8] sm:$0xff]
        %v4203 = vld [vmem:[#allocation2 + $0xe0] sm:$0xff]
        %v4204 = vld [vmem:[#allocation2 + $0xe8] sm:$0xff]
        %v4205 = vld [vmem:[#allocation2 + $0xf0] sm:$0xff]
        %v4206 = vld [vmem:[#allocation2 + $0xf8] sm:$0xff]
        %v4207 = vadd.f32 %v4175, %v4002
        %v4208 = vadd.f32 %v4176, %v4004
        %v4209 = vadd.f32 %v4177, %v4007
        %v4210 = vadd.f32 %v4178, %v4009
        %v4211 = vadd.f32 %v4179, %v4012
        %v4212 = vadd.f32 %v4180, %v4014
        %v4213 = vadd.f32 %v4181, %v4017
        %v4214 = vadd.f32 %v4182, %v4019
        %v4215 = vadd.f32 %v4183, %v4022
        %v4216 = vadd.f32 %v4184, %v4024
        %v4217 = vadd.f32 %v4185, %v4027
        %v4218 = vadd.f32 %v4186, %v4029
        %v4219 = vadd.f32 %v4187, %v4032
        %v4220 = vadd.f32 %v4188, %v4034
        %v4221 = vadd.f32 %v4189, %v4037
        %v4222 = vadd.f32 %v4190, %v4039
        %v4223 = vadd.f32 %v4191, %v4042
        %v4224 = vadd.f32 %v4192, %v4044
        %v4225 = vadd.f32 %v4193, %v4047
        %v4226 = vadd.f32 %v4194, %v4049
        %v4227 = vadd.f32 %v4195, %v4052
        %v4228 = vadd.f32 %v4196, %v4054
        %v4229 = vadd.f32 %v4197, %v4057
        %v4230 = vadd.f32 %v4198, %v4059
        %v4231 = vadd.f32 %v4199, %v4062
        %v4232 = vadd.f32 %v4200, %v4064
        %v4233 = vadd.f32 %v4201, %v4067
        %v4234 = vadd.f32 %v4202, %v4069
        %v4235 = vadd.f32 %v4203, %v4072
        %v4236 = vadd.f32 %v4204, %v4074
        %v4237 = vadd.f32 %v4205, %v4077
        %v4238 = vadd.f32 %v4206, %v4079
        %4239 = vst [vmem:[#allocation2] sm:$0xff] %v4207
        %4240 = vst [vmem:[#allocation2 + $0x8] sm:$0xff] %v4208
        %4241 = vst [vmem:[#allocation2 + $0x10] sm:$0xff] %v4209
        %4242 = vst [vmem:[#allocation2 + $0x18] sm:$0xff] %v4210
        %4243 = vst [vmem:[#allocation2 + $0x20] sm:$0xff] %v4211
        %4244 = vst [vmem:[#allocation2 + $0x28] sm:$0xff] %v4212
        %4245 = vst [vmem:[#allocation2 + $0x30] sm:$0xff] %v4213
        %4246 = vst [vmem:[#allocation2 + $0x38] sm:$0xff] %v4214
        %4247 = vst [vmem:[#allocation2 + $0x40] sm:$0xff] %v4215
        %4248 = vst [vmem:[#allocation2 + $0x48] sm:$0xff] %v4216
        %4249 = vst [vmem:[#allocation2 + $0x50] sm:$0xff] %v4217
        %4250 = vst [vmem:[#allocation2 + $0x58] sm:$0xff] %v4218
        %4251 = vst [vmem:[#allocation2 + $0x60] sm:$0xff] %v4219
        %4252 = vst [vmem:[#allocation2 + $0x68] sm:$0xff] %v4220
        %4253 = vst [vmem:[#allocation2 + $0x70] sm:$0xff] %v4221
        %4254 = vst [vmem:[#allocation2 + $0x78] sm:$0xff] %v4222
        %4255 = vst [vmem:[#allocation2 + $0x80] sm:$0xff] %v4223
        %4256 = vst [vmem:[#allocation2 + $0x88] sm:$0xff] %v4224
        %4257 = vst [vmem:[#allocation2 + $0x90] sm:$0xff] %v4225
        %4258 = vst [vmem:[#allocation2 + $0x98] sm:$0xff] %v4226
        %4259 = vst [vmem:[#allocation2 + $0xa0] sm:$0xff] %v4227
        %4260 = vst [vmem:[#allocation2 + $0xa8] sm:$0xff] %v4228
        %4261 = vst [vmem:[#allocation2 + $0xb0] sm:$0xff] %v4229
        %4262 = vst [vmem:[#allocation2 + $0xb8] sm:$0xff] %v4230
        %4263 = vst [vmem:[#allocation2 + $0xc0] sm:$0xff] %v4231
        %4264 = vst [vmem:[#allocation2 + $0xc8] sm:$0xff] %v4232
        %4265 = vst [vmem:[#allocation2 + $0xd0] sm:$0xff] %v4233
        %4266 = vst [vmem:[#allocation2 + $0xd8] sm:$0xff] %v4234
        %4267 = vst [vmem:[#allocation2 + $0xe0] sm:$0xff] %v4235
        %4268 = vst [vmem:[#allocation2 + $0xe8] sm:$0xff] %v4236
        %4269 = vst [vmem:[#allocation2 + $0xf0] sm:$0xff] %v4237
        %4270 = vst [vmem:[#allocation2 + $0xf8] sm:$0xff] %v4238
        %v4271 = vld [vmem:[#allocation3] sm:$0xff]
        %v4272 = vld [vmem:[#allocation3 + $0x8] sm:$0xff]
        %v4273 = vld [vmem:[#allocation3 + $0x10] sm:$0xff]
        %v4274 = vld [vmem:[#allocation3 + $0x18] sm:$0xff]
        %v4275 = vld [vmem:[#allocation3 + $0x20] sm:$0xff]
        %v4276 = vld [vmem:[#allocation3 + $0x28] sm:$0xff]
        %v4277 = vld [vmem:[#allocation3 + $0x30] sm:$0xff]
        %v4278 = vld [vmem:[#allocation3 + $0x38] sm:$0xff]
        %v4279 = vld [vmem:[#allocation3 + $0x40] sm:$0xff]
        %v4280 = vld [vmem:[#allocation3 + $0x48] sm:$0xff]
        %v4281 = vld [vmem:[#allocation3 + $0x50] sm:$0xff]
        %v4282 = vld [vmem:[#allocation3 + $0x58] sm:$0xff]
        %v4283 = vld [vmem:[#allocation3 + $0x60] sm:$0xff]
        %v4284 = vld [vmem:[#allocation3 + $0x68] sm:$0xff]
        %v4285 = vld [vmem:[#allocation3 + $0x70] sm:$0xff]
        %v4286 = vld [vmem:[#allocation3 + $0x78] sm:$0xff]
        %v4287 = vld [vmem:[#allocation3 + $0x80] sm:$0xff]
        %v4288 = vld [vmem:[#allocation3 + $0x88] sm:$0xff]
        %v4289 = vld [vmem:[#allocation3 + $0x90] sm:$0xff]
        %v4290 = vld [vmem:[#allocation3 + $0x98] sm:$0xff]
        %v4291 = vld [vmem:[#allocation3 + $0xa0] sm:$0xff]
        %v4292 = vld [vmem:[#allocation3 + $0xa8] sm:$0xff]
        %v4293 = vld [vmem:[#allocation3 + $0xb0] sm:$0xff]
        %v4294 = vld [vmem:[#allocation3 + $0xb8] sm:$0xff]
        %v4295 = vld [vmem:[#allocation3 + $0xc0] sm:$0xff]
        %v4296 = vld [vmem:[#allocation3 + $0xc8] sm:$0xff]
        %v4297 = vld [vmem:[#allocation3 + $0xd0] sm:$0xff]
        %v4298 = vld [vmem:[#allocation3 + $0xd8] sm:$0xff]
        %v4299 = vld [vmem:[#allocation3 + $0xe0] sm:$0xff]
        %v4300 = vld [vmem:[#allocation3 + $0xe8] sm:$0xff]
        %v4301 = vld [vmem:[#allocation3 + $0xf0] sm:$0xff]
        %v4302 = vld [vmem:[#allocation3 + $0xf8] sm:$0xff]
        %v4303 = vadd.f32 %v4271, %v4096
        %v4304 = vadd.f32 %v4272, %v4098
        %v4305 = vadd.f32 %v4273, %v4101
        %v4306 = vadd.f32 %v4274, %v4103
        %v4307 = vadd.f32 %v4275, %v4106
        %v4308 = vadd.f32 %v4276, %v4108
        %v4309 = vadd.f32 %v4277, %v4111
        %v4310 = vadd.f32 %v4278, %v4113
        %v4311 = vadd.f32 %v4279, %v4116
        %v4312 = vadd.f32 %v4280, %v4118
        %v4313 = vadd.f32 %v4281, %v4121
        %v4314 = vadd.f32 %v4282, %v4123
        %v4315 = vadd.f32 %v4283, %v4126
        %v4316 = vadd.f32 %v4284, %v4128
        %v4317 = vadd.f32 %v4285, %v4131
        %v4318 = vadd.f32 %v4286, %v4133
        %v4319 = vadd.f32 %v4287, %v4136
        %v4320 = vadd.f32 %v4288, %v4138
        %v4321 = vadd.f32 %v4289, %v4141
        %v4322 = vadd.f32 %v4290, %v4143
        %v4323 = vadd.f32 %v4291, %v4146
        %v4324 = vadd.f32 %v4292, %v4148
        %v4325 = vadd.f32 %v4293, %v4151
        %v4326 = vadd.f32 %v4294, %v4153
        %v4327 = vadd.f32 %v4295, %v4156
        %v4328 = vadd.f32 %v4296, %v4158
        %v4329 = vadd.f32 %v4297, %v4161
        %v4330 = vadd.f32 %v4298, %v4163
        %v4331 = vadd.f32 %v4299, %v4166
        %v4332 = vadd.f32 %v4300, %v4168
        %v4333 = vadd.f32 %v4301, %v4171
        %v4334 = vadd.f32 %v4302, %v4173
        %4335 = vst [vmem:[#allocation3] sm:$0xff] %v4303
        %4336 = vst [vmem:[#allocation3 + $0x8] sm:$0xff] %v4304
        %4337 = vst [vmem:[#allocation3 + $0x10] sm:$0xff] %v4305
        %4338 = vst [vmem:[#allocation3 + $0x18] sm:$0xff] %v4306
        %4339 = vst [vmem:[#allocation3 + $0x20] sm:$0xff] %v4307
        %4340 = vst [vmem:[#allocation3 + $0x28] sm:$0xff] %v4308
        %4341 = vst [vmem:[#allocation3 + $0x30] sm:$0xff] %v4309
        %4342 = vst [vmem:[#allocation3 + $0x38] sm:$0xff] %v4310
        %4343 = vst [vmem:[#allocation3 + $0x40] sm:$0xff] %v4311
        %4344 = vst [vmem:[#allocation3 + $0x48] sm:$0xff] %v4312
        %4345 = vst [vmem:[#allocation3 + $0x50] sm:$0xff] %v4313
        %4346 = vst [vmem:[#allocation3 + $0x58] sm:$0xff] %v4314
        %4347 = vst [vmem:[#allocation3 + $0x60] sm:$0xff] %v4315
        %4348 = vst [vmem:[#allocation3 + $0x68] sm:$0xff] %v4316
        %4349 = vst [vmem:[#allocation3 + $0x70] sm:$0xff] %v4317
        %4350 = vst [vmem:[#allocation3 + $0x78] sm:$0xff] %v4318
        %4351 = vst [vmem:[#allocation3 + $0x80] sm:$0xff] %v4319
        %4352 = vst [vmem:[#allocation3 + $0x88] sm:$0xff] %v4320
        %4353 = vst [vmem:[#allocation3 + $0x90] sm:$0xff] %v4321
        %4354 = vst [vmem:[#allocation3 + $0x98] sm:$0xff] %v4322
        %4355 = vst [vmem:[#allocation3 + $0xa0] sm:$0xff] %v4323
        %4356 = vst [vmem:[#allocation3 + $0xa8] sm:$0xff] %v4324
        %4357 = vst [vmem:[#allocation3 + $0xb0] sm:$0xff] %v4325
        %4358 = vst [vmem:[#allocation3 + $0xb8] sm:$0xff] %v4326
        %4359 = vst [vmem:[#allocation3 + $0xc0] sm:$0xff] %v4327
        %4360 = vst [vmem:[#allocation3 + $0xc8] sm:$0xff] %v4328
        %4361 = vst [vmem:[#allocation3 + $0xd0] sm:$0xff] %v4329
        %4362 = vst [vmem:[#allocation3 + $0xd8] sm:$0xff] %v4330
        %4363 = vst [vmem:[#allocation3 + $0xe0] sm:$0xff] %v4331
        %4364 = vst [vmem:[#allocation3 + $0xe8] sm:$0xff] %v4332
        %4365 = vst [vmem:[#allocation3 + $0xf0] sm:$0xff] %v4333
        %4366 = vst [vmem:[#allocation3 + $0xf8] sm:$0xff] %v4334
        %s4367 = scalar_lea.vmem %s222, 24
        %v4368 = vld [vmem:[%s4367] sm:$0xf]
        %v4369 = vld [vmem:[%s4367 + $0x4] sm:$0xf]
        %v4370 = vld [vmem:[%s4367 + $0xc] sm:$0xf]
        %v4371 = vld [vmem:[%s4367 + $0x10] sm:$0xf]
        %v4372 = vld [vmem:[%s4367 + $0x18] sm:$0xf]
        %v4373 = vld [vmem:[%s4367 + $0x1c] sm:$0xf]
        %v4374 = vld [vmem:[%s4367 + $0x24] sm:$0xf]
        %v4375 = vld [vmem:[%s4367 + $0x28] sm:$0xf]
        %v4376 = vld [vmem:[%s4367 + $0x30] sm:$0xf]
        %v4377 = vld [vmem:[%s4367 + $0x34] sm:$0xf]
        %v4378 = vld [vmem:[%s4367 + $0x3c] sm:$0xf]
        %v4379 = vld [vmem:[%s4367 + $0x40] sm:$0xf]
        %v4380 = vld [vmem:[%s4367 + $0x48] sm:$0xf]
        %v4381 = vld [vmem:[%s4367 + $0x4c] sm:$0xf]
        %v4382 = vld [vmem:[%s4367 + $0x54] sm:$0xf]
        %v4383 = vld [vmem:[%s4367 + $0x58] sm:$0xf]
        %v4384 = vld [vmem:[%s4367 + $0x60] sm:$0xf]
        %v4385 = vld [vmem:[%s4367 + $0x64] sm:$0xf]
        %v4386 = vld [vmem:[%s4367 + $0x6c] sm:$0xf]
        %v4387 = vld [vmem:[%s4367 + $0x70] sm:$0xf]
        %v4388 = vld [vmem:[%s4367 + $0x78] sm:$0xf]
        %v4389 = vld [vmem:[%s4367 + $0x7c] sm:$0xf]
        %v4390 = vld [vmem:[%s4367 + $0x84] sm:$0xf]
        %v4391 = vld [vmem:[%s4367 + $0x88] sm:$0xf]
        %v4392 = vld [vmem:[%s4367 + $0x90] sm:$0xf]
        %v4393 = vld [vmem:[%s4367 + $0x94] sm:$0xf]
        %v4394 = vld [vmem:[%s4367 + $0x9c] sm:$0xf]
        %v4395 = vld [vmem:[%s4367 + $0xa0] sm:$0xf]
        %v4396 = vld [vmem:[%s4367 + $0xa8] sm:$0xf]
        %v4397 = vld [vmem:[%s4367 + $0xac] sm:$0xf]
        %v4398 = vld [vmem:[%s4367 + $0xb4] sm:$0xf]
        %v4399 = vld [vmem:[%s4367 + $0xb8] sm:$0xf]
        %s4400 = scalar_lea.vmem %s1, 12
        %v4401 = vld [vmem:[%s4400] sm:$0x3]
        %v4434 = vunpack.c.l.b16 %v4368
        %v4435 = vunpack.c.l.b16 %v4369
        %v4436 = vunpack.c.l.b16 %v4370
        %v4437 = vunpack.c.l.b16 %v4371
        %v4438 = vunpack.c.l.b16 %v4372
        %v4439 = vunpack.c.l.b16 %v4373
        %v4440 = vunpack.c.l.b16 %v4374
        %v4441 = vunpack.c.l.b16 %v4375
        %v4442 = vunpack.c.l.b16 %v4376
        %v4443 = vunpack.c.l.b16 %v4377
        %v4444 = vunpack.c.l.b16 %v4378
        %v4445 = vunpack.c.l.b16 %v4379
        %v4446 = vunpack.c.l.b16 %v4380
        %v4447 = vunpack.c.l.b16 %v4381
        %v4448 = vunpack.c.l.b16 %v4382
        %v4449 = vunpack.c.l.b16 %v4383
        %v4450 = vunpack.c.l.b16 %v4384
        %v4451 = vunpack.c.l.b16 %v4385
        %v4452 = vunpack.c.l.b16 %v4386
        %v4453 = vunpack.c.l.b16 %v4387
        %v4454 = vunpack.c.l.b16 %v4388
        %v4455 = vunpack.c.l.b16 %v4389
        %v4456 = vunpack.c.l.b16 %v4390
        %v4457 = vunpack.c.l.b16 %v4391
        %v4458 = vunpack.c.l.b16 %v4392
        %v4459 = vunpack.c.l.b16 %v4393
        %v4460 = vunpack.c.l.b16 %v4394
        %v4461 = vunpack.c.l.b16 %v4395
        %v4462 = vunpack.c.l.b16 %v4396
        %v4463 = vunpack.c.l.b16 %v4397
        %v4464 = vunpack.c.l.b16 %v4398
        %v4465 = vunpack.c.l.b16 %v4399
        %v4466 = vpack.c.b16 %v4435, %v4434
        %v4467 = vpack.c.b16 %v4437, %v4436
        %v4468 = vpack.c.b16 %v4439, %v4438
        %v4469 = vpack.c.b16 %v4441, %v4440
        %v4470 = vpack.c.b16 %v4443, %v4442
        %v4471 = vpack.c.b16 %v4445, %v4444
        %v4472 = vpack.c.b16 %v4447, %v4446
        %v4473 = vpack.c.b16 %v4449, %v4448
        %v4474 = vpack.c.b16 %v4451, %v4450
        %v4475 = vpack.c.b16 %v4453, %v4452
        %v4476 = vpack.c.b16 %v4455, %v4454
        %v4477 = vpack.c.b16 %v4457, %v4456
        %v4478 = vpack.c.b16 %v4459, %v4458
        %v4479 = vpack.c.b16 %v4461, %v4460
        %v4480 = vpack.c.b16 %v4463, %v4462
        %v4481 = vpack.c.b16 %v4465, %v4464
        %v4483 = vsel %vm337, %v4466, 0
        %v4486 = vsel %vm337, %v4467, 0
        %v4489 = vsel %vm337, %v4468, 0
        %v4492 = vsel %vm337, %v4469, 0
        %v4495 = vsel %vm337, %v4470, 0
        %v4498 = vsel %vm337, %v4471, 0
        %v4501 = vsel %vm337, %v4472, 0
        %v4504 = vsel %vm337, %v4473, 0
        %v4507 = vsel %vm337, %v4474, 0
        %v4510 = vsel %vm337, %v4475, 0
        %v4513 = vsel %vm337, %v4476, 0
        %v4516 = vsel %vm337, %v4477, 0
        %v4519 = vsel %vm337, %v4478, 0
        %v4522 = vsel %vm337, %v4479, 0
        %v4525 = vsel %vm337, %v4480, 0
        %v4528 = vsel %vm337, %v4481, 0
        %v4531 = vsel %vm386, %v4401, 0
        %4533 = vmatpush.bf16.msra.mxu0 0
        %4534 = vmatpush.bf16.msra.mxu0 0
        %4535 = vmatpush.bf16.msra.mxu0 0
        %4536 = vmatpush.bf16.msra.mxu0 0
        %4537 = vmatpush.bf16.msra.mxu0 0
        %4538 = vmatpush.bf16.msra.mxu0 0
        %4539 = vmatpush.bf16.msra.mxu0 0
        %4540 = vmatpush.bf16.msra.mxu0 %v4531
        %4541 = vmatmul.bf16.gmra.mxu0 %v4483
        %v4542 = vpop.f32.mrf.mxu0
        %v4543 = vadd.f32 0.0, %v4542
        %v4544 = vpop.f32.mrf.mxu0
        %v4545 = vadd.f32 0.0, %v4544
        %4546 = vmatmul.bf16.gmra.mxu0 %v4486
        %v4547 = vpop.f32.mrf.mxu0
        %v4548 = vadd.f32 0.0, %v4547
        %v4549 = vpop.f32.mrf.mxu0
        %v4550 = vadd.f32 0.0, %v4549
        %4551 = vmatmul.bf16.gmra.mxu0 %v4489
        %v4552 = vpop.f32.mrf.mxu0
        %v4553 = vadd.f32 0.0, %v4552
        %v4554 = vpop.f32.mrf.mxu0
        %v4555 = vadd.f32 0.0, %v4554
        %4556 = vmatmul.bf16.gmra.mxu0 %v4492
        %v4557 = vpop.f32.mrf.mxu0
        %v4558 = vadd.f32 0.0, %v4557
        %v4559 = vpop.f32.mrf.mxu0
        %v4560 = vadd.f32 0.0, %v4559
        %4561 = vmatmul.bf16.gmra.mxu0 %v4495
        %v4562 = vpop.f32.mrf.mxu0
        %v4563 = vadd.f32 0.0, %v4562
        %v4564 = vpop.f32.mrf.mxu0
        %v4565 = vadd.f32 0.0, %v4564
        %4566 = vmatmul.bf16.gmra.mxu0 %v4498
        %v4567 = vpop.f32.mrf.mxu0
        %v4568 = vadd.f32 0.0, %v4567
        %v4569 = vpop.f32.mrf.mxu0
        %v4570 = vadd.f32 0.0, %v4569
        %4571 = vmatmul.bf16.gmra.mxu0 %v4501
        %v4572 = vpop.f32.mrf.mxu0
        %v4573 = vadd.f32 0.0, %v4572
        %v4574 = vpop.f32.mrf.mxu0
        %v4575 = vadd.f32 0.0, %v4574
        %4576 = vmatmul.bf16.gmra.mxu0 %v4504
        %v4577 = vpop.f32.mrf.mxu0
        %v4578 = vadd.f32 0.0, %v4577
        %v4579 = vpop.f32.mrf.mxu0
        %v4580 = vadd.f32 0.0, %v4579
        %4581 = vmatmul.bf16.gmra.mxu0 %v4507
        %v4582 = vpop.f32.mrf.mxu0
        %v4583 = vadd.f32 0.0, %v4582
        %v4584 = vpop.f32.mrf.mxu0
        %v4585 = vadd.f32 0.0, %v4584
        %4586 = vmatmul.bf16.gmra.mxu0 %v4510
        %v4587 = vpop.f32.mrf.mxu0
        %v4588 = vadd.f32 0.0, %v4587
        %v4589 = vpop.f32.mrf.mxu0
        %v4590 = vadd.f32 0.0, %v4589
        %4591 = vmatmul.bf16.gmra.mxu0 %v4513
        %v4592 = vpop.f32.mrf.mxu0
        %v4593 = vadd.f32 0.0, %v4592
        %v4594 = vpop.f32.mrf.mxu0
        %v4595 = vadd.f32 0.0, %v4594
        %4596 = vmatmul.bf16.gmra.mxu0 %v4516
        %v4597 = vpop.f32.mrf.mxu0
        %v4598 = vadd.f32 0.0, %v4597
        %v4599 = vpop.f32.mrf.mxu0
        %v4600 = vadd.f32 0.0, %v4599
        %4601 = vmatmul.bf16.gmra.mxu0 %v4519
        %v4602 = vpop.f32.mrf.mxu0
        %v4603 = vadd.f32 0.0, %v4602
        %v4604 = vpop.f32.mrf.mxu0
        %v4605 = vadd.f32 0.0, %v4604
        %4606 = vmatmul.bf16.gmra.mxu0 %v4522
        %v4607 = vpop.f32.mrf.mxu0
        %v4608 = vadd.f32 0.0, %v4607
        %v4609 = vpop.f32.mrf.mxu0
        %v4610 = vadd.f32 0.0, %v4609
        %4611 = vmatmul.bf16.gmra.mxu0 %v4525
        %v4612 = vpop.f32.mrf.mxu0
        %v4613 = vadd.f32 0.0, %v4612
        %v4614 = vpop.f32.mrf.mxu0
        %v4615 = vadd.f32 0.0, %v4614
        %4616 = vmatmul.bf16.gmra.mxu0 %v4528
        %v4617 = vpop.f32.mrf.mxu0
        %v4618 = vadd.f32 0.0, %v4617
        %v4619 = vpop.f32.mrf.mxu0
        %v4620 = vadd.f32 0.0, %v4619
        %4621 = vdwg.mxu0
        %s4622 = scalar_lea.vmem %s2, 12
        %v4623 = vld [vmem:[%s4622] sm:$0x3]
        %v4625 = vsel %vm386, %v4623, 0
        %4627 = vmatpush.bf16.msra.mxu0 0
        %4628 = vmatpush.bf16.msra.mxu0 0
        %4629 = vmatpush.bf16.msra.mxu0 0
        %4630 = vmatpush.bf16.msra.mxu0 0
        %4631 = vmatpush.bf16.msra.mxu0 0
        %4632 = vmatpush.bf16.msra.mxu0 0
        %4633 = vmatpush.bf16.msra.mxu0 0
        %4634 = vmatpush.bf16.msra.mxu0 %v4625
        %4635 = vmatmul.bf16.gmra.mxu0 %v4483
        %v4636 = vpop.f32.mrf.mxu0
        %v4637 = vadd.f32 0.0, %v4636
        %v4638 = vpop.f32.mrf.mxu0
        %v4639 = vadd.f32 0.0, %v4638
        %4640 = vmatmul.bf16.gmra.mxu0 %v4486
        %v4641 = vpop.f32.mrf.mxu0
        %v4642 = vadd.f32 0.0, %v4641
        %v4643 = vpop.f32.mrf.mxu0
        %v4644 = vadd.f32 0.0, %v4643
        %4645 = vmatmul.bf16.gmra.mxu0 %v4489
        %v4646 = vpop.f32.mrf.mxu0
        %v4647 = vadd.f32 0.0, %v4646
        %v4648 = vpop.f32.mrf.mxu0
        %v4649 = vadd.f32 0.0, %v4648
        %4650 = vmatmul.bf16.gmra.mxu0 %v4492
        %v4651 = vpop.f32.mrf.mxu0
        %v4652 = vadd.f32 0.0, %v4651
        %v4653 = vpop.f32.mrf.mxu0
        %v4654 = vadd.f32 0.0, %v4653
        %4655 = vmatmul.bf16.gmra.mxu0 %v4495
        %v4656 = vpop.f32.mrf.mxu0
        %v4657 = vadd.f32 0.0, %v4656
        %v4658 = vpop.f32.mrf.mxu0
        %v4659 = vadd.f32 0.0, %v4658
        %4660 = vmatmul.bf16.gmra.mxu0 %v4498
        %v4661 = vpop.f32.mrf.mxu0
        %v4662 = vadd.f32 0.0, %v4661
        %v4663 = vpop.f32.mrf.mxu0
        %v4664 = vadd.f32 0.0, %v4663
        %4665 = vmatmul.bf16.gmra.mxu0 %v4501
        %v4666 = vpop.f32.mrf.mxu0
        %v4667 = vadd.f32 0.0, %v4666
        %v4668 = vpop.f32.mrf.mxu0
        %v4669 = vadd.f32 0.0, %v4668
        %4670 = vmatmul.bf16.gmra.mxu0 %v4504
        %v4671 = vpop.f32.mrf.mxu0
        %v4672 = vadd.f32 0.0, %v4671
        %v4673 = vpop.f32.mrf.mxu0
        %v4674 = vadd.f32 0.0, %v4673
        %4675 = vmatmul.bf16.gmra.mxu0 %v4507
        %v4676 = vpop.f32.mrf.mxu0
        %v4677 = vadd.f32 0.0, %v4676
        %v4678 = vpop.f32.mrf.mxu0
        %v4679 = vadd.f32 0.0, %v4678
        %4680 = vmatmul.bf16.gmra.mxu0 %v4510
        %v4681 = vpop.f32.mrf.mxu0
        %v4682 = vadd.f32 0.0, %v4681
        %v4683 = vpop.f32.mrf.mxu0
        %v4684 = vadd.f32 0.0, %v4683
        %4685 = vmatmul.bf16.gmra.mxu0 %v4513
        %v4686 = vpop.f32.mrf.mxu0
        %v4687 = vadd.f32 0.0, %v4686
        %v4688 = vpop.f32.mrf.mxu0
        %v4689 = vadd.f32 0.0, %v4688
        %4690 = vmatmul.bf16.gmra.mxu0 %v4516
        %v4691 = vpop.f32.mrf.mxu0
        %v4692 = vadd.f32 0.0, %v4691
        %v4693 = vpop.f32.mrf.mxu0
        %v4694 = vadd.f32 0.0, %v4693
        %4695 = vmatmul.bf16.gmra.mxu0 %v4519
        %v4696 = vpop.f32.mrf.mxu0
        %v4697 = vadd.f32 0.0, %v4696
        %v4698 = vpop.f32.mrf.mxu0
        %v4699 = vadd.f32 0.0, %v4698
        %4700 = vmatmul.bf16.gmra.mxu0 %v4522
        %v4701 = vpop.f32.mrf.mxu0
        %v4702 = vadd.f32 0.0, %v4701
        %v4703 = vpop.f32.mrf.mxu0
        %v4704 = vadd.f32 0.0, %v4703
        %4705 = vmatmul.bf16.gmra.mxu0 %v4525
        %v4706 = vpop.f32.mrf.mxu0
        %v4707 = vadd.f32 0.0, %v4706
        %v4708 = vpop.f32.mrf.mxu0
        %v4709 = vadd.f32 0.0, %v4708
        %4710 = vmatmul.bf16.gmra.mxu0 %v4528
        %v4711 = vpop.f32.mrf.mxu0
        %v4712 = vadd.f32 0.0, %v4711
        %v4713 = vpop.f32.mrf.mxu0
        %v4714 = vadd.f32 0.0, %v4713
        %4715 = vdwg.mxu0
        %v4716 = vld [vmem:[#allocation2] sm:$0xff]
        %v4717 = vld [vmem:[#allocation2 + $0x8] sm:$0xff]
        %v4718 = vld [vmem:[#allocation2 + $0x10] sm:$0xff]
        %v4719 = vld [vmem:[#allocation2 + $0x18] sm:$0xff]
        %v4720 = vld [vmem:[#allocation2 + $0x20] sm:$0xff]
        %v4721 = vld [vmem:[#allocation2 + $0x28] sm:$0xff]
        %v4722 = vld [vmem:[#allocation2 + $0x30] sm:$0xff]
        %v4723 = vld [vmem:[#allocation2 + $0x38] sm:$0xff]
        %v4724 = vld [vmem:[#allocation2 + $0x40] sm:$0xff]
        %v4725 = vld [vmem:[#allocation2 + $0x48] sm:$0xff]
        %v4726 = vld [vmem:[#allocation2 + $0x50] sm:$0xff]
        %v4727 = vld [vmem:[#allocation2 + $0x58] sm:$0xff]
        %v4728 = vld [vmem:[#allocation2 + $0x60] sm:$0xff]
        %v4729 = vld [vmem:[#allocation2 + $0x68] sm:$0xff]
        %v4730 = vld [vmem:[#allocation2 + $0x70] sm:$0xff]
        %v4731 = vld [vmem:[#allocation2 + $0x78] sm:$0xff]
        %v4732 = vld [vmem:[#allocation2 + $0x80] sm:$0xff]
        %v4733 = vld [vmem:[#allocation2 + $0x88] sm:$0xff]
        %v4734 = vld [vmem:[#allocation2 + $0x90] sm:$0xff]
        %v4735 = vld [vmem:[#allocation2 + $0x98] sm:$0xff]
        %v4736 = vld [vmem:[#allocation2 + $0xa0] sm:$0xff]
        %v4737 = vld [vmem:[#allocation2 + $0xa8] sm:$0xff]
        %v4738 = vld [vmem:[#allocation2 + $0xb0] sm:$0xff]
        %v4739 = vld [vmem:[#allocation2 + $0xb8] sm:$0xff]
        %v4740 = vld [vmem:[#allocation2 + $0xc0] sm:$0xff]
        %v4741 = vld [vmem:[#allocation2 + $0xc8] sm:$0xff]
        %v4742 = vld [vmem:[#allocation2 + $0xd0] sm:$0xff]
        %v4743 = vld [vmem:[#allocation2 + $0xd8] sm:$0xff]
        %v4744 = vld [vmem:[#allocation2 + $0xe0] sm:$0xff]
        %v4745 = vld [vmem:[#allocation2 + $0xe8] sm:$0xff]
        %v4746 = vld [vmem:[#allocation2 + $0xf0] sm:$0xff]
        %v4747 = vld [vmem:[#allocation2 + $0xf8] sm:$0xff]
        %v4748 = vadd.f32 %v4716, %v4543
        %v4749 = vadd.f32 %v4717, %v4545
        %v4750 = vadd.f32 %v4718, %v4548
        %v4751 = vadd.f32 %v4719, %v4550
        %v4752 = vadd.f32 %v4720, %v4553
        %v4753 = vadd.f32 %v4721, %v4555
        %v4754 = vadd.f32 %v4722, %v4558
        %v4755 = vadd.f32 %v4723, %v4560
        %v4756 = vadd.f32 %v4724, %v4563
        %v4757 = vadd.f32 %v4725, %v4565
        %v4758 = vadd.f32 %v4726, %v4568
        %v4759 = vadd.f32 %v4727, %v4570
        %v4760 = vadd.f32 %v4728, %v4573
        %v4761 = vadd.f32 %v4729, %v4575
        %v4762 = vadd.f32 %v4730, %v4578
        %v4763 = vadd.f32 %v4731, %v4580
        %v4764 = vadd.f32 %v4732, %v4583
        %v4765 = vadd.f32 %v4733, %v4585
        %v4766 = vadd.f32 %v4734, %v4588
        %v4767 = vadd.f32 %v4735, %v4590
        %v4768 = vadd.f32 %v4736, %v4593
        %v4769 = vadd.f32 %v4737, %v4595
        %v4770 = vadd.f32 %v4738, %v4598
        %v4771 = vadd.f32 %v4739, %v4600
        %v4772 = vadd.f32 %v4740, %v4603
        %v4773 = vadd.f32 %v4741, %v4605
        %v4774 = vadd.f32 %v4742, %v4608
        %v4775 = vadd.f32 %v4743, %v4610
        %v4776 = vadd.f32 %v4744, %v4613
        %v4777 = vadd.f32 %v4745, %v4615
        %v4778 = vadd.f32 %v4746, %v4618
        %v4779 = vadd.f32 %v4747, %v4620
        %4780 = vst [vmem:[#allocation2] sm:$0xff] %v4748
        %4781 = vst [vmem:[#allocation2 + $0x8] sm:$0xff] %v4749
        %4782 = vst [vmem:[#allocation2 + $0x10] sm:$0xff] %v4750
        %4783 = vst [vmem:[#allocation2 + $0x18] sm:$0xff] %v4751
        %4784 = vst [vmem:[#allocation2 + $0x20] sm:$0xff] %v4752
        %4785 = vst [vmem:[#allocation2 + $0x28] sm:$0xff] %v4753
        %4786 = vst [vmem:[#allocation2 + $0x30] sm:$0xff] %v4754
        %4787 = vst [vmem:[#allocation2 + $0x38] sm:$0xff] %v4755
        %4788 = vst [vmem:[#allocation2 + $0x40] sm:$0xff] %v4756
        %4789 = vst [vmem:[#allocation2 + $0x48] sm:$0xff] %v4757
        %4790 = vst [vmem:[#allocation2 + $0x50] sm:$0xff] %v4758
        %4791 = vst [vmem:[#allocation2 + $0x58] sm:$0xff] %v4759
        %4792 = vst [vmem:[#allocation2 + $0x60] sm:$0xff] %v4760
        %4793 = vst [vmem:[#allocation2 + $0x68] sm:$0xff] %v4761
        %4794 = vst [vmem:[#allocation2 + $0x70] sm:$0xff] %v4762
        %4795 = vst [vmem:[#allocation2 + $0x78] sm:$0xff] %v4763
        %4796 = vst [vmem:[#allocation2 + $0x80] sm:$0xff] %v4764
        %4797 = vst [vmem:[#allocation2 + $0x88] sm:$0xff] %v4765
        %4798 = vst [vmem:[#allocation2 + $0x90] sm:$0xff] %v4766
        %4799 = vst [vmem:[#allocation2 + $0x98] sm:$0xff] %v4767
        %4800 = vst [vmem:[#allocation2 + $0xa0] sm:$0xff] %v4768
        %4801 = vst [vmem:[#allocation2 + $0xa8] sm:$0xff] %v4769
        %4802 = vst [vmem:[#allocation2 + $0xb0] sm:$0xff] %v4770
        %4803 = vst [vmem:[#allocation2 + $0xb8] sm:$0xff] %v4771
        %4804 = vst [vmem:[#allocation2 + $0xc0] sm:$0xff] %v4772
        %4805 = vst [vmem:[#allocation2 + $0xc8] sm:$0xff] %v4773
        %4806 = vst [vmem:[#allocation2 + $0xd0] sm:$0xff] %v4774
        %4807 = vst [vmem:[#allocation2 + $0xd8] sm:$0xff] %v4775
        %4808 = vst [vmem:[#allocation2 + $0xe0] sm:$0xff] %v4776
        %4809 = vst [vmem:[#allocation2 + $0xe8] sm:$0xff] %v4777
        %4810 = vst [vmem:[#allocation2 + $0xf0] sm:$0xff] %v4778
        %4811 = vst [vmem:[#allocation2 + $0xf8] sm:$0xff] %v4779
        %v4812 = vld [vmem:[#allocation3] sm:$0xff]
        %v4813 = vld [vmem:[#allocation3 + $0x8] sm:$0xff]
        %v4814 = vld [vmem:[#allocation3 + $0x10] sm:$0xff]
        %v4815 = vld [vmem:[#allocation3 + $0x18] sm:$0xff]
        %v4816 = vld [vmem:[#allocation3 + $0x20] sm:$0xff]
        %v4817 = vld [vmem:[#allocation3 + $0x28] sm:$0xff]
        %v4818 = vld [vmem:[#allocation3 + $0x30] sm:$0xff]
        %v4819 = vld [vmem:[#allocation3 + $0x38] sm:$0xff]
        %v4820 = vld [vmem:[#allocation3 + $0x40] sm:$0xff]
        %v4821 = vld [vmem:[#allocation3 + $0x48] sm:$0xff]
        %v4822 = vld [vmem:[#allocation3 + $0x50] sm:$0xff]
        %v4823 = vld [vmem:[#allocation3 + $0x58] sm:$0xff]
        %v4824 = vld [vmem:[#allocation3 + $0x60] sm:$0xff]
        %v4825 = vld [vmem:[#allocation3 + $0x68] sm:$0xff]
        %v4826 = vld [vmem:[#allocation3 + $0x70] sm:$0xff]
        %v4827 = vld [vmem:[#allocation3 + $0x78] sm:$0xff]
        %v4828 = vld [vmem:[#allocation3 + $0x80] sm:$0xff]
        %v4829 = vld [vmem:[#allocation3 + $0x88] sm:$0xff]
        %v4830 = vld [vmem:[#allocation3 + $0x90] sm:$0xff]
        %v4831 = vld [vmem:[#allocation3 + $0x98] sm:$0xff]
        %v4832 = vld [vmem:[#allocation3 + $0xa0] sm:$0xff]
        %v4833 = vld [vmem:[#allocation3 + $0xa8] sm:$0xff]
        %v4834 = vld [vmem:[#allocation3 + $0xb0] sm:$0xff]
        %v4835 = vld [vmem:[#allocation3 + $0xb8] sm:$0xff]
        %v4836 = vld [vmem:[#allocation3 + $0xc0] sm:$0xff]
        %v4837 = vld [vmem:[#allocation3 + $0xc8] sm:$0xff]
        %v4838 = vld [vmem:[#allocation3 + $0xd0] sm:$0xff]
        %v4839 = vld [vmem:[#allocation3 + $0xd8] sm:$0xff]
        %v4840 = vld [vmem:[#allocation3 + $0xe0] sm:$0xff]
        %v4841 = vld [vmem:[#allocation3 + $0xe8] sm:$0xff]
        %v4842 = vld [vmem:[#allocation3 + $0xf0] sm:$0xff]
        %v4843 = vld [vmem:[#allocation3 + $0xf8] sm:$0xff]
        %v4844 = vadd.f32 %v4812, %v4637
        %v4845 = vadd.f32 %v4813, %v4639
        %v4846 = vadd.f32 %v4814, %v4642
        %v4847 = vadd.f32 %v4815, %v4644
        %v4848 = vadd.f32 %v4816, %v4647
        %v4849 = vadd.f32 %v4817, %v4649
        %v4850 = vadd.f32 %v4818, %v4652
        %v4851 = vadd.f32 %v4819, %v4654
        %v4852 = vadd.f32 %v4820, %v4657
        %v4853 = vadd.f32 %v4821, %v4659
        %v4854 = vadd.f32 %v4822, %v4662
        %v4855 = vadd.f32 %v4823, %v4664
        %v4856 = vadd.f32 %v4824, %v4667
        %v4857 = vadd.f32 %v4825, %v4669
        %v4858 = vadd.f32 %v4826, %v4672
        %v4859 = vadd.f32 %v4827, %v4674
        %v4860 = vadd.f32 %v4828, %v4677
        %v4861 = vadd.f32 %v4829, %v4679
        %v4862 = vadd.f32 %v4830, %v4682
        %v4863 = vadd.f32 %v4831, %v4684
        %v4864 = vadd.f32 %v4832, %v4687
        %v4865 = vadd.f32 %v4833, %v4689
        %v4866 = vadd.f32 %v4834, %v4692
        %v4867 = vadd.f32 %v4835, %v4694
        %v4868 = vadd.f32 %v4836, %v4697
        %v4869 = vadd.f32 %v4837, %v4699
        %v4870 = vadd.f32 %v4838, %v4702
        %v4871 = vadd.f32 %v4839, %v4704
        %v4872 = vadd.f32 %v4840, %v4707
        %v4873 = vadd.f32 %v4841, %v4709
        %v4874 = vadd.f32 %v4842, %v4712
        %v4875 = vadd.f32 %v4843, %v4714
        %4876 = vst [vmem:[#allocation3] sm:$0xff] %v4844
        %4877 = vst [vmem:[#allocation3 + $0x8] sm:$0xff] %v4845
        %4878 = vst [vmem:[#allocation3 + $0x10] sm:$0xff] %v4846
        %4879 = vst [vmem:[#allocation3 + $0x18] sm:$0xff] %v4847
        %4880 = vst [vmem:[#allocation3 + $0x20] sm:$0xff] %v4848
        %4881 = vst [vmem:[#allocation3 + $0x28] sm:$0xff] %v4849
        %4882 = vst [vmem:[#allocation3 + $0x30] sm:$0xff] %v4850
        %4883 = vst [vmem:[#allocation3 + $0x38] sm:$0xff] %v4851
        %4884 = vst [vmem:[#allocation3 + $0x40] sm:$0xff] %v4852
        %4885 = vst [vmem:[#allocation3 + $0x48] sm:$0xff] %v4853
        %4886 = vst [vmem:[#allocation3 + $0x50] sm:$0xff] %v4854
        %4887 = vst [vmem:[#allocation3 + $0x58] sm:$0xff] %v4855
        %4888 = vst [vmem:[#allocation3 + $0x60] sm:$0xff] %v4856
        %4889 = vst [vmem:[#allocation3 + $0x68] sm:$0xff] %v4857
        %4890 = vst [vmem:[#allocation3 + $0x70] sm:$0xff] %v4858
        %4891 = vst [vmem:[#allocation3 + $0x78] sm:$0xff] %v4859
        %4892 = vst [vmem:[#allocation3 + $0x80] sm:$0xff] %v4860
        %4893 = vst [vmem:[#allocation3 + $0x88] sm:$0xff] %v4861
        %4894 = vst [vmem:[#allocation3 + $0x90] sm:$0xff] %v4862
        %4895 = vst [vmem:[#allocation3 + $0x98] sm:$0xff] %v4863
        %4896 = vst [vmem:[#allocation3 + $0xa0] sm:$0xff] %v4864
        %4897 = vst [vmem:[#allocation3 + $0xa8] sm:$0xff] %v4865
        %4898 = vst [vmem:[#allocation3 + $0xb0] sm:$0xff] %v4866
        %4899 = vst [vmem:[#allocation3 + $0xb8] sm:$0xff] %v4867
        %4900 = vst [vmem:[#allocation3 + $0xc0] sm:$0xff] %v4868
        %4901 = vst [vmem:[#allocation3 + $0xc8] sm:$0xff] %v4869
        %4902 = vst [vmem:[#allocation3 + $0xd0] sm:$0xff] %v4870
        %4903 = vst [vmem:[#allocation3 + $0xd8] sm:$0xff] %v4871
        %4904 = vst [vmem:[#allocation3 + $0xe0] sm:$0xff] %v4872
        %4905 = vst [vmem:[#allocation3 + $0xe8] sm:$0xff] %v4873
        %4906 = vst [vmem:[#allocation3 + $0xf0] sm:$0xff] %v4874
        %4907 = vst [vmem:[#allocation3 + $0xf8] sm:$0xff] %v4875
        %v4908 = vld [vmem:[%s4367] sm:$0xf]
        %v4909 = vld [vmem:[%s4367 + $0x4] sm:$0xf]
        %v4910 = vld [vmem:[%s4367 + $0x8] sm:$0x1]
        %v4911 = vld [vmem:[%s4367 + $0xc] sm:$0xf]
        %v4912 = vld [vmem:[%s4367 + $0x10] sm:$0xf]
        %v4913 = vld [vmem:[%s4367 + $0x14] sm:$0x1]
        %v4914 = vld [vmem:[%s4367 + $0x18] sm:$0xf]
        %v4915 = vld [vmem:[%s4367 + $0x1c] sm:$0xf]
        %v4916 = vld [vmem:[%s4367 + $0x20] sm:$0x1]
        %v4917 = vld [vmem:[%s4367 + $0x24] sm:$0xf]
        %v4918 = vld [vmem:[%s4367 + $0x28] sm:$0xf]
        %v4919 = vld [vmem:[%s4367 + $0x2c] sm:$0x1]
        %v4920 = vld [vmem:[%s4367 + $0x30] sm:$0xf]
        %v4921 = vld [vmem:[%s4367 + $0x34] sm:$0xf]
        %v4922 = vld [vmem:[%s4367 + $0x38] sm:$0x1]
        %v4923 = vld [vmem:[%s4367 + $0x3c] sm:$0xf]
        %v4924 = vld [vmem:[%s4367 + $0x40] sm:$0xf]
        %v4925 = vld [vmem:[%s4367 + $0x44] sm:$0x1]
        %v4926 = vld [vmem:[%s4367 + $0x48] sm:$0xf]
        %v4927 = vld [vmem:[%s4367 + $0x4c] sm:$0xf]
        %v4928 = vld [vmem:[%s4367 + $0x50] sm:$0x1]
        %v4929 = vld [vmem:[%s4367 + $0x54] sm:$0xf]
        %v4930 = vld [vmem:[%s4367 + $0x58] sm:$0xf]
        %v4931 = vld [vmem:[%s4367 + $0x5c] sm:$0x1]
        %v4932 = vld [vmem:[%s4367 + $0x60] sm:$0xf]
        %v4933 = vld [vmem:[%s4367 + $0x64] sm:$0xf]
        %v4934 = vld [vmem:[%s4367 + $0x68] sm:$0x1]
        %v4935 = vld [vmem:[%s4367 + $0x6c] sm:$0xf]
        %v4936 = vld [vmem:[%s4367 + $0x70] sm:$0xf]
        %v4937 = vld [vmem:[%s4367 + $0x74] sm:$0x1]
        %v4938 = vld [vmem:[%s4367 + $0x78] sm:$0xf]
        %v4939 = vld [vmem:[%s4367 + $0x7c] sm:$0xf]
        %v4940 = vld [vmem:[%s4367 + $0x80] sm:$0x1]
        %v4941 = vld [vmem:[%s4367 + $0x84] sm:$0xf]
        %v4942 = vld [vmem:[%s4367 + $0x88] sm:$0xf]
        %v4943 = vld [vmem:[%s4367 + $0x8c] sm:$0x1]
        %v4944 = vld [vmem:[%s4367 + $0x90] sm:$0xf]
        %v4945 = vld [vmem:[%s4367 + $0x94] sm:$0xf]
        %v4946 = vld [vmem:[%s4367 + $0x98] sm:$0x1]
        %v4947 = vld [vmem:[%s4367 + $0x9c] sm:$0xf]
        %v4948 = vld [vmem:[%s4367 + $0xa0] sm:$0xf]
        %v4949 = vld [vmem:[%s4367 + $0xa4] sm:$0x1]
        %v4950 = vld [vmem:[%s4367 + $0xa8] sm:$0xf]
        %v4951 = vld [vmem:[%s4367 + $0xac] sm:$0xf]
        %v4952 = vld [vmem:[%s4367 + $0xb0] sm:$0x1]
        %v4953 = vld [vmem:[%s4367 + $0xb4] sm:$0xf]
        %v4954 = vld [vmem:[%s4367 + $0xb8] sm:$0xf]
        %v4955 = vld [vmem:[%s4367 + $0xbc] sm:$0x1]
        %v4957 = vshrl.u32 %v4908, 16
        %v4959 = vrot.slane %v4957, 4
        %v4960 = vshll.u32 %v4908, 16
        %v4962 = vrot.slane %v4960, 5
        %v4963 = vor.u32 %v4959, %v4962
        %v4964 = vrot.slane %v4963, 4
        %v4966 = vshll.u32 %v4909, 16
        %v4968 = vrot.slane %v4966, 5
        %v4969 = vsel %vm686, %v4964, %v4968
        %v4970 = vshrl.u32 %v4909, 16
        %v4972 = vrot.slane %v4970, 4
        %v4973 = vor.u32 %v4972, %v4968
        %v4974 = vrot.slane %v4973, 4
        %v4976 = vshll.u32 %v4910, 16
        %v4978 = vrot.slane %v4976, 5
        %v4979 = vsel %vm686, %v4974, %v4978
        %v4981 = vshrl.u32 %v4911, 16
        %v4983 = vrot.slane %v4981, 4
        %v4984 = vshll.u32 %v4911, 16
        %v4986 = vrot.slane %v4984, 5
        %v4987 = vor.u32 %v4983, %v4986
        %v4988 = vrot.slane %v4987, 4
        %v4990 = vshll.u32 %v4912, 16
        %v4992 = vrot.slane %v4990, 5
        %v4993 = vsel %vm686, %v4988, %v4992
        %v4994 = vshrl.u32 %v4912, 16
        %v4996 = vrot.slane %v4994, 4
        %v4997 = vor.u32 %v4996, %v4992
        %v4998 = vrot.slane %v4997, 4
        %v5000 = vshll.u32 %v4913, 16
        %v5002 = vrot.slane %v5000, 5
        %v5003 = vsel %vm686, %v4998, %v5002
        %v5005 = vshrl.u32 %v4914, 16
        %v5007 = vrot.slane %v5005, 4
        %v5008 = vshll.u32 %v4914, 16
        %v5010 = vrot.slane %v5008, 5
        %v5011 = vor.u32 %v5007, %v5010
        %v5012 = vrot.slane %v5011, 4
        %v5014 = vshll.u32 %v4915, 16
        %v5016 = vrot.slane %v5014, 5
        %v5017 = vsel %vm686, %v5012, %v5016
        %v5018 = vshrl.u32 %v4915, 16
        %v5020 = vrot.slane %v5018, 4
        %v5021 = vor.u32 %v5020, %v5016
        %v5022 = vrot.slane %v5021, 4
        %v5024 = vshll.u32 %v4916, 16
        %v5026 = vrot.slane %v5024, 5
        %v5027 = vsel %vm686, %v5022, %v5026
        %v5029 = vshrl.u32 %v4917, 16
        %v5031 = vrot.slane %v5029, 4
        %v5032 = vshll.u32 %v4917, 16
        %v5034 = vrot.slane %v5032, 5
        %v5035 = vor.u32 %v5031, %v5034
        %v5036 = vrot.slane %v5035, 4
        %v5038 = vshll.u32 %v4918, 16
        %v5040 = vrot.slane %v5038, 5
        %v5041 = vsel %vm686, %v5036, %v5040
        %v5042 = vshrl.u32 %v4918, 16
        %v5044 = vrot.slane %v5042, 4
        %v5045 = vor.u32 %v5044, %v5040
        %v5046 = vrot.slane %v5045, 4
        %v5048 = vshll.u32 %v4919, 16
        %v5050 = vrot.slane %v5048, 5
        %v5051 = vsel %vm686, %v5046, %v5050
        %v5053 = vshrl.u32 %v4920, 16
        %v5055 = vrot.slane %v5053, 4
        %v5056 = vshll.u32 %v4920, 16
        %v5058 = vrot.slane %v5056, 5
        %v5059 = vor.u32 %v5055, %v5058
        %v5060 = vrot.slane %v5059, 4
        %v5062 = vshll.u32 %v4921, 16
        %v5064 = vrot.slane %v5062, 5
        %v5065 = vsel %vm686, %v5060, %v5064
        %v5066 = vshrl.u32 %v4921, 16
        %v5068 = vrot.slane %v5066, 4
        %v5069 = vor.u32 %v5068, %v5064
        %v5070 = vrot.slane %v5069, 4
        %v5072 = vshll.u32 %v4922, 16
        %v5074 = vrot.slane %v5072, 5
        %v5075 = vsel %vm686, %v5070, %v5074
        %v5077 = vshrl.u32 %v4923, 16
        %v5079 = vrot.slane %v5077, 4
        %v5080 = vshll.u32 %v4923, 16
        %v5082 = vrot.slane %v5080, 5
        %v5083 = vor.u32 %v5079, %v5082
        %v5084 = vrot.slane %v5083, 4
        %v5086 = vshll.u32 %v4924, 16
        %v5088 = vrot.slane %v5086, 5
        %v5089 = vsel %vm686, %v5084, %v5088
        %v5090 = vshrl.u32 %v4924, 16
        %v5092 = vrot.slane %v5090, 4
        %v5093 = vor.u32 %v5092, %v5088
        %v5094 = vrot.slane %v5093, 4
        %v5096 = vshll.u32 %v4925, 16
        %v5098 = vrot.slane %v5096, 5
        %v5099 = vsel %vm686, %v5094, %v5098
        %v5101 = vshrl.u32 %v4926, 16
        %v5103 = vrot.slane %v5101, 4
        %v5104 = vshll.u32 %v4926, 16
        %v5106 = vrot.slane %v5104, 5
        %v5107 = vor.u32 %v5103, %v5106
        %v5108 = vrot.slane %v5107, 4
        %v5110 = vshll.u32 %v4927, 16
        %v5112 = vrot.slane %v5110, 5
        %v5113 = vsel %vm686, %v5108, %v5112
        %v5114 = vshrl.u32 %v4927, 16
        %v5116 = vrot.slane %v5114, 4
        %v5117 = vor.u32 %v5116, %v5112
        %v5118 = vrot.slane %v5117, 4
        %v5120 = vshll.u32 %v4928, 16
        %v5122 = vrot.slane %v5120, 5
        %v5123 = vsel %vm686, %v5118, %v5122
        %v5125 = vshrl.u32 %v4929, 16
        %v5127 = vrot.slane %v5125, 4
        %v5128 = vshll.u32 %v4929, 16
        %v5130 = vrot.slane %v5128, 5
        %v5131 = vor.u32 %v5127, %v5130
        %v5132 = vrot.slane %v5131, 4
        %v5134 = vshll.u32 %v4930, 16
        %v5136 = vrot.slane %v5134, 5
        %v5137 = vsel %vm686, %v5132, %v5136
        %v5138 = vshrl.u32 %v4930, 16
        %v5140 = vrot.slane %v5138, 4
        %v5141 = vor.u32 %v5140, %v5136
        %v5142 = vrot.slane %v5141, 4
        %v5144 = vshll.u32 %v4931, 16
        %v5146 = vrot.slane %v5144, 5
        %v5147 = vsel %vm686, %v5142, %v5146
        %v5149 = vshrl.u32 %v4932, 16
        %v5151 = vrot.slane %v5149, 4
        %v5152 = vshll.u32 %v4932, 16
        %v5154 = vrot.slane %v5152, 5
        %v5155 = vor.u32 %v5151, %v5154
        %v5156 = vrot.slane %v5155, 4
        %v5158 = vshll.u32 %v4933, 16
        %v5160 = vrot.slane %v5158, 5
        %v5161 = vsel %vm686, %v5156, %v5160
        %v5162 = vshrl.u32 %v4933, 16
        %v5164 = vrot.slane %v5162, 4
        %v5165 = vor.u32 %v5164, %v5160
        %v5166 = vrot.slane %v5165, 4
        %v5168 = vshll.u32 %v4934, 16
        %v5170 = vrot.slane %v5168, 5
        %v5171 = vsel %vm686, %v5166, %v5170
        %v5173 = vshrl.u32 %v4935, 16
        %v5175 = vrot.slane %v5173, 4
        %v5176 = vshll.u32 %v4935, 16
        %v5178 = vrot.slane %v5176, 5
        %v5179 = vor.u32 %v5175, %v5178
        %v5180 = vrot.slane %v5179, 4
        %v5182 = vshll.u32 %v4936, 16
        %v5184 = vrot.slane %v5182, 5
        %v5185 = vsel %vm686, %v5180, %v5184
        %v5186 = vshrl.u32 %v4936, 16
        %v5188 = vrot.slane %v5186, 4
        %v5189 = vor.u32 %v5188, %v5184
        %v5190 = vrot.slane %v5189, 4
        %v5192 = vshll.u32 %v4937, 16
        %v5194 = vrot.slane %v5192, 5
        %v5195 = vsel %vm686, %v5190, %v5194
        %v5197 = vshrl.u32 %v4938, 16
        %v5199 = vrot.slane %v5197, 4
        %v5200 = vshll.u32 %v4938, 16
        %v5202 = vrot.slane %v5200, 5
        %v5203 = vor.u32 %v5199, %v5202
        %v5204 = vrot.slane %v5203, 4
        %v5206 = vshll.u32 %v4939, 16
        %v5208 = vrot.slane %v5206, 5
        %v5209 = vsel %vm686, %v5204, %v5208
        %v5210 = vshrl.u32 %v4939, 16
        %v5212 = vrot.slane %v5210, 4
        %v5213 = vor.u32 %v5212, %v5208
        %v5214 = vrot.slane %v5213, 4
        %v5216 = vshll.u32 %v4940, 16
        %v5218 = vrot.slane %v5216, 5
        %v5219 = vsel %vm686, %v5214, %v5218
        %v5221 = vshrl.u32 %v4941, 16
        %v5223 = vrot.slane %v5221, 4
        %v5224 = vshll.u32 %v4941, 16
        %v5226 = vrot.slane %v5224, 5
        %v5227 = vor.u32 %v5223, %v5226
        %v5228 = vrot.slane %v5227, 4
        %v5230 = vshll.u32 %v4942, 16
        %v5232 = vrot.slane %v5230, 5
        %v5233 = vsel %vm686, %v5228, %v5232
        %v5234 = vshrl.u32 %v4942, 16
        %v5236 = vrot.slane %v5234, 4
        %v5237 = vor.u32 %v5236, %v5232
        %v5238 = vrot.slane %v5237, 4
        %v5240 = vshll.u32 %v4943, 16
        %v5242 = vrot.slane %v5240, 5
        %v5243 = vsel %vm686, %v5238, %v5242
        %v5245 = vshrl.u32 %v4944, 16
        %v5247 = vrot.slane %v5245, 4
        %v5248 = vshll.u32 %v4944, 16
        %v5250 = vrot.slane %v5248, 5
        %v5251 = vor.u32 %v5247, %v5250
        %v5252 = vrot.slane %v5251, 4
        %v5254 = vshll.u32 %v4945, 16
        %v5256 = vrot.slane %v5254, 5
        %v5257 = vsel %vm686, %v5252, %v5256
        %v5258 = vshrl.u32 %v4945, 16
        %v5260 = vrot.slane %v5258, 4
        %v5261 = vor.u32 %v5260, %v5256
        %v5262 = vrot.slane %v5261, 4
        %v5264 = vshll.u32 %v4946, 16
        %v5266 = vrot.slane %v5264, 5
        %v5267 = vsel %vm686, %v5262, %v5266
        %v5269 = vshrl.u32 %v4947, 16
        %v5271 = vrot.slane %v5269, 4
        %v5272 = vshll.u32 %v4947, 16
        %v5274 = vrot.slane %v5272, 5
        %v5275 = vor.u32 %v5271, %v5274
        %v5276 = vrot.slane %v5275, 4
        %v5278 = vshll.u32 %v4948, 16
        %v5280 = vrot.slane %v5278, 5
        %v5281 = vsel %vm686, %v5276, %v5280
        %v5282 = vshrl.u32 %v4948, 16
        %v5284 = vrot.slane %v5282, 4
        %v5285 = vor.u32 %v5284, %v5280
        %v5286 = vrot.slane %v5285, 4
        %v5288 = vshll.u32 %v4949, 16
        %v5290 = vrot.slane %v5288, 5
        %v5291 = vsel %vm686, %v5286, %v5290
        %v5293 = vshrl.u32 %v4950, 16
        %v5295 = vrot.slane %v5293, 4
        %v5296 = vshll.u32 %v4950, 16
        %v5298 = vrot.slane %v5296, 5
        %v5299 = vor.u32 %v5295, %v5298
        %v5300 = vrot.slane %v5299, 4
        %v5302 = vshll.u32 %v4951, 16
        %v5304 = vrot.slane %v5302, 5
        %v5305 = vsel %vm686, %v5300, %v5304
        %v5306 = vshrl.u32 %v4951, 16
        %v5308 = vrot.slane %v5306, 4
        %v5309 = vor.u32 %v5308, %v5304
        %v5310 = vrot.slane %v5309, 4
        %v5312 = vshll.u32 %v4952, 16
        %v5314 = vrot.slane %v5312, 5
        %v5315 = vsel %vm686, %v5310, %v5314
        %v5317 = vshrl.u32 %v4953, 16
        %v5319 = vrot.slane %v5317, 4
        %v5320 = vshll.u32 %v4953, 16
        %v5322 = vrot.slane %v5320, 5
        %v5323 = vor.u32 %v5319, %v5322
        %v5324 = vrot.slane %v5323, 4
        %v5326 = vshll.u32 %v4954, 16
        %v5328 = vrot.slane %v5326, 5
        %v5329 = vsel %vm686, %v5324, %v5328
        %v5330 = vshrl.u32 %v4954, 16
        %v5332 = vrot.slane %v5330, 4
        %v5333 = vor.u32 %v5332, %v5328
        %v5334 = vrot.slane %v5333, 4
        %v5336 = vshll.u32 %v4955, 16
        %v5338 = vrot.slane %v5336, 5
        %v5339 = vsel %vm686, %v5334, %v5338
        %s5340 = scalar_lea.vmem %s1, 14
        %v5341 = vld [vmem:[%s5340] sm:$0x3]
        %v5342 = vunpack.c.l.b16 %v4969
        %v5343 = vunpack.c.l.b16 %v4979
        %v5344 = vunpack.c.l.b16 %v4993
        %v5345 = vunpack.c.l.b16 %v5003
        %v5346 = vunpack.c.l.b16 %v5017
        %v5347 = vunpack.c.l.b16 %v5027
        %v5348 = vunpack.c.l.b16 %v5041
        %v5349 = vunpack.c.l.b16 %v5051
        %v5350 = vunpack.c.l.b16 %v5065
        %v5351 = vunpack.c.l.b16 %v5075
        %v5352 = vunpack.c.l.b16 %v5089
        %v5353 = vunpack.c.l.b16 %v5099
        %v5354 = vunpack.c.l.b16 %v5113
        %v5355 = vunpack.c.l.b16 %v5123
        %v5356 = vunpack.c.l.b16 %v5137
        %v5357 = vunpack.c.l.b16 %v5147
        %v5358 = vunpack.c.l.b16 %v5161
        %v5359 = vunpack.c.l.b16 %v5171
        %v5360 = vunpack.c.l.b16 %v5185
        %v5361 = vunpack.c.l.b16 %v5195
        %v5362 = vunpack.c.l.b16 %v5209
        %v5363 = vunpack.c.l.b16 %v5219
        %v5364 = vunpack.c.l.b16 %v5233
        %v5365 = vunpack.c.l.b16 %v5243
        %v5366 = vunpack.c.l.b16 %v5257
        %v5367 = vunpack.c.l.b16 %v5267
        %v5368 = vunpack.c.l.b16 %v5281
        %v5369 = vunpack.c.l.b16 %v5291
        %v5370 = vunpack.c.l.b16 %v5305
        %v5371 = vunpack.c.l.b16 %v5315
        %v5372 = vunpack.c.l.b16 %v5329
        %v5373 = vunpack.c.l.b16 %v5339
        %v5374 = vpack.c.b16 %v5343, %v5342
        %v5375 = vpack.c.b16 %v5345, %v5344
        %v5376 = vpack.c.b16 %v5347, %v5346
        %v5377 = vpack.c.b16 %v5349, %v5348
        %v5378 = vpack.c.b16 %v5351, %v5350
        %v5379 = vpack.c.b16 %v5353, %v5352
        %v5380 = vpack.c.b16 %v5355, %v5354
        %v5381 = vpack.c.b16 %v5357, %v5356
        %v5382 = vpack.c.b16 %v5359, %v5358
        %v5383 = vpack.c.b16 %v5361, %v5360
        %v5384 = vpack.c.b16 %v5363, %v5362
        %v5385 = vpack.c.b16 %v5365, %v5364
        %v5386 = vpack.c.b16 %v5367, %v5366
        %v5387 = vpack.c.b16 %v5369, %v5368
        %v5388 = vpack.c.b16 %v5371, %v5370
        %v5389 = vpack.c.b16 %v5373, %v5372
        %v5391 = vsel %vm337, %v5374, 0
        %v5394 = vsel %vm337, %v5375, 0
        %v5397 = vsel %vm337, %v5376, 0
        %v5400 = vsel %vm337, %v5377, 0
        %v5403 = vsel %vm337, %v5378, 0
        %v5406 = vsel %vm337, %v5379, 0
        %v5409 = vsel %vm337, %v5380, 0
        %v5412 = vsel %vm337, %v5381, 0
        %v5415 = vsel %vm337, %v5382, 0
        %v5418 = vsel %vm337, %v5383, 0
        %v5421 = vsel %vm337, %v5384, 0
        %v5424 = vsel %vm337, %v5385, 0
        %v5427 = vsel %vm337, %v5386, 0
        %v5430 = vsel %vm337, %v5387, 0
        %v5433 = vsel %vm337, %v5388, 0
        %v5436 = vsel %vm337, %v5389, 0
        %v5439 = vsel %vm386, %v5341, 0
        %5441 = vmatpush.bf16.msra.mxu0 0
        %5442 = vmatpush.bf16.msra.mxu0 0
        %5443 = vmatpush.bf16.msra.mxu0 0
        %5444 = vmatpush.bf16.msra.mxu0 0
        %5445 = vmatpush.bf16.msra.mxu0 0
        %5446 = vmatpush.bf16.msra.mxu0 0
        %5447 = vmatpush.bf16.msra.mxu0 0
        %5448 = vmatpush.bf16.msra.mxu0 %v5439
        %5449 = vmatmul.bf16.gmra.mxu0 %v5391
        %v5450 = vpop.f32.mrf.mxu0
        %v5451 = vadd.f32 0.0, %v5450
        %v5452 = vpop.f32.mrf.mxu0
        %v5453 = vadd.f32 0.0, %v5452
        %5454 = vmatmul.bf16.gmra.mxu0 %v5394
        %v5455 = vpop.f32.mrf.mxu0
        %v5456 = vadd.f32 0.0, %v5455
        %v5457 = vpop.f32.mrf.mxu0
        %v5458 = vadd.f32 0.0, %v5457
        %5459 = vmatmul.bf16.gmra.mxu0 %v5397
        %v5460 = vpop.f32.mrf.mxu0
        %v5461 = vadd.f32 0.0, %v5460
        %v5462 = vpop.f32.mrf.mxu0
        %v5463 = vadd.f32 0.0, %v5462
        %5464 = vmatmul.bf16.gmra.mxu0 %v5400
        %v5465 = vpop.f32.mrf.mxu0
        %v5466 = vadd.f32 0.0, %v5465
        %v5467 = vpop.f32.mrf.mxu0
        %v5468 = vadd.f32 0.0, %v5467
        %5469 = vmatmul.bf16.gmra.mxu0 %v5403
        %v5470 = vpop.f32.mrf.mxu0
        %v5471 = vadd.f32 0.0, %v5470
        %v5472 = vpop.f32.mrf.mxu0
        %v5473 = vadd.f32 0.0, %v5472
        %5474 = vmatmul.bf16.gmra.mxu0 %v5406
        %v5475 = vpop.f32.mrf.mxu0
        %v5476 = vadd.f32 0.0, %v5475
        %v5477 = vpop.f32.mrf.mxu0
        %v5478 = vadd.f32 0.0, %v5477
        %5479 = vmatmul.bf16.gmra.mxu0 %v5409
        %v5480 = vpop.f32.mrf.mxu0
        %v5481 = vadd.f32 0.0, %v5480
        %v5482 = vpop.f32.mrf.mxu0
        %v5483 = vadd.f32 0.0, %v5482
        %5484 = vmatmul.bf16.gmra.mxu0 %v5412
        %v5485 = vpop.f32.mrf.mxu0
        %v5486 = vadd.f32 0.0, %v5485
        %v5487 = vpop.f32.mrf.mxu0
        %v5488 = vadd.f32 0.0, %v5487
        %5489 = vmatmul.bf16.gmra.mxu0 %v5415
        %v5490 = vpop.f32.mrf.mxu0
        %v5491 = vadd.f32 0.0, %v5490
        %v5492 = vpop.f32.mrf.mxu0
        %v5493 = vadd.f32 0.0, %v5492
        %5494 = vmatmul.bf16.gmra.mxu0 %v5418
        %v5495 = vpop.f32.mrf.mxu0
        %v5496 = vadd.f32 0.0, %v5495
        %v5497 = vpop.f32.mrf.mxu0
        %v5498 = vadd.f32 0.0, %v5497
        %5499 = vmatmul.bf16.gmra.mxu0 %v5421
        %v5500 = vpop.f32.mrf.mxu0
        %v5501 = vadd.f32 0.0, %v5500
        %v5502 = vpop.f32.mrf.mxu0
        %v5503 = vadd.f32 0.0, %v5502
        %5504 = vmatmul.bf16.gmra.mxu0 %v5424
        %v5505 = vpop.f32.mrf.mxu0
        %v5506 = vadd.f32 0.0, %v5505
        %v5507 = vpop.f32.mrf.mxu0
        %v5508 = vadd.f32 0.0, %v5507
        %5509 = vmatmul.bf16.gmra.mxu0 %v5427
        %v5510 = vpop.f32.mrf.mxu0
        %v5511 = vadd.f32 0.0, %v5510
        %v5512 = vpop.f32.mrf.mxu0
        %v5513 = vadd.f32 0.0, %v5512
        %5514 = vmatmul.bf16.gmra.mxu0 %v5430
        %v5515 = vpop.f32.mrf.mxu0
        %v5516 = vadd.f32 0.0, %v5515
        %v5517 = vpop.f32.mrf.mxu0
        %v5518 = vadd.f32 0.0, %v5517
        %5519 = vmatmul.bf16.gmra.mxu0 %v5433
        %v5520 = vpop.f32.mrf.mxu0
        %v5521 = vadd.f32 0.0, %v5520
        %v5522 = vpop.f32.mrf.mxu0
        %v5523 = vadd.f32 0.0, %v5522
        %5524 = vmatmul.bf16.gmra.mxu0 %v5436
        %v5525 = vpop.f32.mrf.mxu0
        %v5526 = vadd.f32 0.0, %v5525
        %v5527 = vpop.f32.mrf.mxu0
        %v5528 = vadd.f32 0.0, %v5527
        %5529 = vdwg.mxu0
        %s5530 = scalar_lea.vmem %s2, 14
        %v5531 = vld [vmem:[%s5530] sm:$0x3]
        %v5533 = vsel %vm386, %v5531, 0
        %5535 = vmatpush.bf16.msra.mxu0 0
        %5536 = vmatpush.bf16.msra.mxu0 0
        %5537 = vmatpush.bf16.msra.mxu0 0
        %5538 = vmatpush.bf16.msra.mxu0 0
        %5539 = vmatpush.bf16.msra.mxu0 0
        %5540 = vmatpush.bf16.msra.mxu0 0
        %5541 = vmatpush.bf16.msra.mxu0 0
        %5542 = vmatpush.bf16.msra.mxu0 %v5533
        %5543 = vmatmul.bf16.gmra.mxu0 %v5391
        %v5544 = vpop.f32.mrf.mxu0
        %v5545 = vadd.f32 0.0, %v5544
        %v5546 = vpop.f32.mrf.mxu0
        %v5547 = vadd.f32 0.0, %v5546
        %5548 = vmatmul.bf16.gmra.mxu0 %v5394
        %v5549 = vpop.f32.mrf.mxu0
        %v5550 = vadd.f32 0.0, %v5549
        %v5551 = vpop.f32.mrf.mxu0
        %v5552 = vadd.f32 0.0, %v5551
        %5553 = vmatmul.bf16.gmra.mxu0 %v5397
        %v5554 = vpop.f32.mrf.mxu0
        %v5555 = vadd.f32 0.0, %v5554
        %v5556 = vpop.f32.mrf.mxu0
        %v5557 = vadd.f32 0.0, %v5556
        %5558 = vmatmul.bf16.gmra.mxu0 %v5400
        %v5559 = vpop.f32.mrf.mxu0
        %v5560 = vadd.f32 0.0, %v5559
        %v5561 = vpop.f32.mrf.mxu0
        %v5562 = vadd.f32 0.0, %v5561
        %5563 = vmatmul.bf16.gmra.mxu0 %v5403
        %v5564 = vpop.f32.mrf.mxu0
        %v5565 = vadd.f32 0.0, %v5564
        %v5566 = vpop.f32.mrf.mxu0
        %v5567 = vadd.f32 0.0, %v5566
        %5568 = vmatmul.bf16.gmra.mxu0 %v5406
        %v5569 = vpop.f32.mrf.mxu0
        %v5570 = vadd.f32 0.0, %v5569
        %v5571 = vpop.f32.mrf.mxu0
        %v5572 = vadd.f32 0.0, %v5571
        %5573 = vmatmul.bf16.gmra.mxu0 %v5409
        %v5574 = vpop.f32.mrf.mxu0
        %v5575 = vadd.f32 0.0, %v5574
        %v5576 = vpop.f32.mrf.mxu0
        %v5577 = vadd.f32 0.0, %v5576
        %5578 = vmatmul.bf16.gmra.mxu0 %v5412
        %v5579 = vpop.f32.mrf.mxu0
        %v5580 = vadd.f32 0.0, %v5579
        %v5581 = vpop.f32.mrf.mxu0
        %v5582 = vadd.f32 0.0, %v5581
        %5583 = vmatmul.bf16.gmra.mxu0 %v5415
        %v5584 = vpop.f32.mrf.mxu0
        %v5585 = vadd.f32 0.0, %v5584
        %v5586 = vpop.f32.mrf.mxu0
        %v5587 = vadd.f32 0.0, %v5586
        %5588 = vmatmul.bf16.gmra.mxu0 %v5418
        %v5589 = vpop.f32.mrf.mxu0
        %v5590 = vadd.f32 0.0, %v5589
        %v5591 = vpop.f32.mrf.mxu0
        %v5592 = vadd.f32 0.0, %v5591
        %5593 = vmatmul.bf16.gmra.mxu0 %v5421
        %v5594 = vpop.f32.mrf.mxu0
        %v5595 = vadd.f32 0.0, %v5594
        %v5596 = vpop.f32.mrf.mxu0
        %v5597 = vadd.f32 0.0, %v5596
        %5598 = vmatmul.bf16.gmra.mxu0 %v5424
        %v5599 = vpop.f32.mrf.mxu0
        %v5600 = vadd.f32 0.0, %v5599
        %v5601 = vpop.f32.mrf.mxu0
        %v5602 = vadd.f32 0.0, %v5601
        %5603 = vmatmul.bf16.gmra.mxu0 %v5427
        %v5604 = vpop.f32.mrf.mxu0
        %v5605 = vadd.f32 0.0, %v5604
        %v5606 = vpop.f32.mrf.mxu0
        %v5607 = vadd.f32 0.0, %v5606
        %5608 = vmatmul.bf16.gmra.mxu0 %v5430
        %v5609 = vpop.f32.mrf.mxu0
        %v5610 = vadd.f32 0.0, %v5609
        %v5611 = vpop.f32.mrf.mxu0
        %v5612 = vadd.f32 0.0, %v5611
        %5613 = vmatmul.bf16.gmra.mxu0 %v5433
        %v5614 = vpop.f32.mrf.mxu0
        %v5615 = vadd.f32 0.0, %v5614
        %v5616 = vpop.f32.mrf.mxu0
        %v5617 = vadd.f32 0.0, %v5616
        %5618 = vmatmul.bf16.gmra.mxu0 %v5436
        %v5619 = vpop.f32.mrf.mxu0
        %v5620 = vadd.f32 0.0, %v5619
        %v5621 = vpop.f32.mrf.mxu0
        %v5622 = vadd.f32 0.0, %v5621
        %5623 = vdwg.mxu0
        %v5624 = vld [vmem:[#allocation2] sm:$0xff]
        %v5625 = vld [vmem:[#allocation2 + $0x8] sm:$0xff]
        %v5626 = vld [vmem:[#allocation2 + $0x10] sm:$0xff]
        %v5627 = vld [vmem:[#allocation2 + $0x18] sm:$0xff]
        %v5628 = vld [vmem:[#allocation2 + $0x20] sm:$0xff]
        %v5629 = vld [vmem:[#allocation2 + $0x28] sm:$0xff]
        %v5630 = vld [vmem:[#allocation2 + $0x30] sm:$0xff]
        %v5631 = vld [vmem:[#allocation2 + $0x38] sm:$0xff]
        %v5632 = vld [vmem:[#allocation2 + $0x40] sm:$0xff]
        %v5633 = vld [vmem:[#allocation2 + $0x48] sm:$0xff]
        %v5634 = vld [vmem:[#allocation2 + $0x50] sm:$0xff]
        %v5635 = vld [vmem:[#allocation2 + $0x58] sm:$0xff]
        %v5636 = vld [vmem:[#allocation2 + $0x60] sm:$0xff]
        %v5637 = vld [vmem:[#allocation2 + $0x68] sm:$0xff]
        %v5638 = vld [vmem:[#allocation2 + $0x70] sm:$0xff]
        %v5639 = vld [vmem:[#allocation2 + $0x78] sm:$0xff]
        %v5640 = vld [vmem:[#allocation2 + $0x80] sm:$0xff]
        %v5641 = vld [vmem:[#allocation2 + $0x88] sm:$0xff]
        %v5642 = vld [vmem:[#allocation2 + $0x90] sm:$0xff]
        %v5643 = vld [vmem:[#allocation2 + $0x98] sm:$0xff]
        %v5644 = vld [vmem:[#allocation2 + $0xa0] sm:$0xff]
        %v5645 = vld [vmem:[#allocation2 + $0xa8] sm:$0xff]
        %v5646 = vld [vmem:[#allocation2 + $0xb0] sm:$0xff]
        %v5647 = vld [vmem:[#allocation2 + $0xb8] sm:$0xff]
        %v5648 = vld [vmem:[#allocation2 + $0xc0] sm:$0xff]
        %v5649 = vld [vmem:[#allocation2 + $0xc8] sm:$0xff]
        %v5650 = vld [vmem:[#allocation2 + $0xd0] sm:$0xff]
        %v5651 = vld [vmem:[#allocation2 + $0xd8] sm:$0xff]
        %v5652 = vld [vmem:[#allocation2 + $0xe0] sm:$0xff]
        %v5653 = vld [vmem:[#allocation2 + $0xe8] sm:$0xff]
        %v5654 = vld [vmem:[#allocation2 + $0xf0] sm:$0xff]
        %v5655 = vld [vmem:[#allocation2 + $0xf8] sm:$0xff]
        %v5656 = vadd.f32 %v5624, %v5451
        %v5657 = vadd.f32 %v5625, %v5453
        %v5658 = vadd.f32 %v5626, %v5456
        %v5659 = vadd.f32 %v5627, %v5458
        %v5660 = vadd.f32 %v5628, %v5461
        %v5661 = vadd.f32 %v5629, %v5463
        %v5662 = vadd.f32 %v5630, %v5466
        %v5663 = vadd.f32 %v5631, %v5468
        %v5664 = vadd.f32 %v5632, %v5471
        %v5665 = vadd.f32 %v5633, %v5473
        %v5666 = vadd.f32 %v5634, %v5476
        %v5667 = vadd.f32 %v5635, %v5478
        %v5668 = vadd.f32 %v5636, %v5481
        %v5669 = vadd.f32 %v5637, %v5483
        %v5670 = vadd.f32 %v5638, %v5486
        %v5671 = vadd.f32 %v5639, %v5488
        %v5672 = vadd.f32 %v5640, %v5491
        %v5673 = vadd.f32 %v5641, %v5493
        %v5674 = vadd.f32 %v5642, %v5496
        %v5675 = vadd.f32 %v5643, %v5498
        %v5676 = vadd.f32 %v5644, %v5501
        %v5677 = vadd.f32 %v5645, %v5503
        %v5678 = vadd.f32 %v5646, %v5506
        %v5679 = vadd.f32 %v5647, %v5508
        %v5680 = vadd.f32 %v5648, %v5511
        %v5681 = vadd.f32 %v5649, %v5513
        %v5682 = vadd.f32 %v5650, %v5516
        %v5683 = vadd.f32 %v5651, %v5518
        %v5684 = vadd.f32 %v5652, %v5521
        %v5685 = vadd.f32 %v5653, %v5523
        %v5686 = vadd.f32 %v5654, %v5526
        %v5687 = vadd.f32 %v5655, %v5528
        %5688 = vst [vmem:[#allocation2] sm:$0xff] %v5656
        %5689 = vst [vmem:[#allocation2 + $0x8] sm:$0xff] %v5657
        %5690 = vst [vmem:[#allocation2 + $0x10] sm:$0xff] %v5658
        %5691 = vst [vmem:[#allocation2 + $0x18] sm:$0xff] %v5659
        %5692 = vst [vmem:[#allocation2 + $0x20] sm:$0xff] %v5660
        %5693 = vst [vmem:[#allocation2 + $0x28] sm:$0xff] %v5661
        %5694 = vst [vmem:[#allocation2 + $0x30] sm:$0xff] %v5662
        %5695 = vst [vmem:[#allocation2 + $0x38] sm:$0xff] %v5663
        %5696 = vst [vmem:[#allocation2 + $0x40] sm:$0xff] %v5664
        %5697 = vst [vmem:[#allocation2 + $0x48] sm:$0xff] %v5665
        %5698 = vst [vmem:[#allocation2 + $0x50] sm:$0xff] %v5666
        %5699 = vst [vmem:[#allocation2 + $0x58] sm:$0xff] %v5667
        %5700 = vst [vmem:[#allocation2 + $0x60] sm:$0xff] %v5668
        %5701 = vst [vmem:[#allocation2 + $0x68] sm:$0xff] %v5669
        %5702 = vst [vmem:[#allocation2 + $0x70] sm:$0xff] %v5670
        %5703 = vst [vmem:[#allocation2 + $0x78] sm:$0xff] %v5671
        %5704 = vst [vmem:[#allocation2 + $0x80] sm:$0xff] %v5672
        %5705 = vst [vmem:[#allocation2 + $0x88] sm:$0xff] %v5673
        %5706 = vst [vmem:[#allocation2 + $0x90] sm:$0xff] %v5674
        %5707 = vst [vmem:[#allocation2 + $0x98] sm:$0xff] %v5675
        %5708 = vst [vmem:[#allocation2 + $0xa0] sm:$0xff] %v5676
        %5709 = vst [vmem:[#allocation2 + $0xa8] sm:$0xff] %v5677
        %5710 = vst [vmem:[#allocation2 + $0xb0] sm:$0xff] %v5678
        %5711 = vst [vmem:[#allocation2 + $0xb8] sm:$0xff] %v5679
        %5712 = vst [vmem:[#allocation2 + $0xc0] sm:$0xff] %v5680
        %5713 = vst [vmem:[#allocation2 + $0xc8] sm:$0xff] %v5681
        %5714 = vst [vmem:[#allocation2 + $0xd0] sm:$0xff] %v5682
        %5715 = vst [vmem:[#allocation2 + $0xd8] sm:$0xff] %v5683
        %5716 = vst [vmem:[#allocation2 + $0xe0] sm:$0xff] %v5684
        %5717 = vst [vmem:[#allocation2 + $0xe8] sm:$0xff] %v5685
        %5718 = vst [vmem:[#allocation2 + $0xf0] sm:$0xff] %v5686
        %5719 = vst [vmem:[#allocation2 + $0xf8] sm:$0xff] %v5687
        %v5720 = vld [vmem:[#allocation3] sm:$0xff]
        %v5721 = vld [vmem:[#allocation3 + $0x8] sm:$0xff]
        %v5722 = vld [vmem:[#allocation3 + $0x10] sm:$0xff]
        %v5723 = vld [vmem:[#allocation3 + $0x18] sm:$0xff]
        %v5724 = vld [vmem:[#allocation3 + $0x20] sm:$0xff]
        %v5725 = vld [vmem:[#allocation3 + $0x28] sm:$0xff]
        %v5726 = vld [vmem:[#allocation3 + $0x30] sm:$0xff]
        %v5727 = vld [vmem:[#allocation3 + $0x38] sm:$0xff]
        %v5728 = vld [vmem:[#allocation3 + $0x40] sm:$0xff]
        %v5729 = vld [vmem:[#allocation3 + $0x48] sm:$0xff]
        %v5730 = vld [vmem:[#allocation3 + $0x50] sm:$0xff]
        %v5731 = vld [vmem:[#allocation3 + $0x58] sm:$0xff]
        %v5732 = vld [vmem:[#allocation3 + $0x60] sm:$0xff]
        %v5733 = vld [vmem:[#allocation3 + $0x68] sm:$0xff]
        %v5734 = vld [vmem:[#allocation3 + $0x70] sm:$0xff]
        %v5735 = vld [vmem:[#allocation3 + $0x78] sm:$0xff]
        %v5736 = vld [vmem:[#allocation3 + $0x80] sm:$0xff]
        %v5737 = vld [vmem:[#allocation3 + $0x88] sm:$0xff]
        %v5738 = vld [vmem:[#allocation3 + $0x90] sm:$0xff]
        %v5739 = vld [vmem:[#allocation3 + $0x98] sm:$0xff]
        %v5740 = vld [vmem:[#allocation3 + $0xa0] sm:$0xff]
        %v5741 = vld [vmem:[#allocation3 + $0xa8] sm:$0xff]
        %v5742 = vld [vmem:[#allocation3 + $0xb0] sm:$0xff]
        %v5743 = vld [vmem:[#allocation3 + $0xb8] sm:$0xff]
        %v5744 = vld [vmem:[#allocation3 + $0xc0] sm:$0xff]
        %v5745 = vld [vmem:[#allocation3 + $0xc8] sm:$0xff]
        %v5746 = vld [vmem:[#allocation3 + $0xd0] sm:$0xff]
        %v5747 = vld [vmem:[#allocation3 + $0xd8] sm:$0xff]
        %v5748 = vld [vmem:[#allocation3 + $0xe0] sm:$0xff]
        %v5749 = vld [vmem:[#allocation3 + $0xe8] sm:$0xff]
        %v5750 = vld [vmem:[#allocation3 + $0xf0] sm:$0xff]
        %v5751 = vld [vmem:[#allocation3 + $0xf8] sm:$0xff]
        %v5752 = vadd.f32 %v5720, %v5545
        %v5753 = vadd.f32 %v5721, %v5547
        %v5754 = vadd.f32 %v5722, %v5550
        %v5755 = vadd.f32 %v5723, %v5552
        %v5756 = vadd.f32 %v5724, %v5555
        %v5757 = vadd.f32 %v5725, %v5557
        %v5758 = vadd.f32 %v5726, %v5560
        %v5759 = vadd.f32 %v5727, %v5562
        %v5760 = vadd.f32 %v5728, %v5565
        %v5761 = vadd.f32 %v5729, %v5567
        %v5762 = vadd.f32 %v5730, %v5570
        %v5763 = vadd.f32 %v5731, %v5572
        %v5764 = vadd.f32 %v5732, %v5575
        %v5765 = vadd.f32 %v5733, %v5577
        %v5766 = vadd.f32 %v5734, %v5580
        %v5767 = vadd.f32 %v5735, %v5582
        %v5768 = vadd.f32 %v5736, %v5585
        %v5769 = vadd.f32 %v5737, %v5587
        %v5770 = vadd.f32 %v5738, %v5590
        %v5771 = vadd.f32 %v5739, %v5592
        %v5772 = vadd.f32 %v5740, %v5595
        %v5773 = vadd.f32 %v5741, %v5597
        %v5774 = vadd.f32 %v5742, %v5600
        %v5775 = vadd.f32 %v5743, %v5602
        %v5776 = vadd.f32 %v5744, %v5605
        %v5777 = vadd.f32 %v5745, %v5607
        %v5778 = vadd.f32 %v5746, %v5610
        %v5779 = vadd.f32 %v5747, %v5612
        %v5780 = vadd.f32 %v5748, %v5615
        %v5781 = vadd.f32 %v5749, %v5617
        %v5782 = vadd.f32 %v5750, %v5620
        %v5783 = vadd.f32 %v5751, %v5622
        %5784 = vst [vmem:[#allocation3] sm:$0xff] %v5752
        %5785 = vst [vmem:[#allocation3 + $0x8] sm:$0xff] %v5753
        %5786 = vst [vmem:[#allocation3 + $0x10] sm:$0xff] %v5754
        %5787 = vst [vmem:[#allocation3 + $0x18] sm:$0xff] %v5755
        %5788 = vst [vmem:[#allocation3 + $0x20] sm:$0xff] %v5756
        %5789 = vst [vmem:[#allocation3 + $0x28] sm:$0xff] %v5757
        %5790 = vst [vmem:[#allocation3 + $0x30] sm:$0xff] %v5758
        %5791 = vst [vmem:[#allocation3 + $0x38] sm:$0xff] %v5759
        %5792 = vst [vmem:[#allocation3 + $0x40] sm:$0xff] %v5760
        %5793 = vst [vmem:[#allocation3 + $0x48] sm:$0xff] %v5761
        %5794 = vst [vmem:[#allocation3 + $0x50] sm:$0xff] %v5762
        %5795 = vst [vmem:[#allocation3 + $0x58] sm:$0xff] %v5763
        %5796 = vst [vmem:[#allocation3 + $0x60] sm:$0xff] %v5764
        %5797 = vst [vmem:[#allocation3 + $0x68] sm:$0xff] %v5765
        %5798 = vst [vmem:[#allocation3 + $0x70] sm:$0xff] %v5766
        %5799 = vst [vmem:[#allocation3 + $0x78] sm:$0xff] %v5767
        %5800 = vst [vmem:[#allocation3 + $0x80] sm:$0xff] %v5768
        %5801 = vst [vmem:[#allocation3 + $0x88] sm:$0xff] %v5769
        %5802 = vst [vmem:[#allocation3 + $0x90] sm:$0xff] %v5770
        %5803 = vst [vmem:[#allocation3 + $0x98] sm:$0xff] %v5771
        %5804 = vst [vmem:[#allocation3 + $0xa0] sm:$0xff] %v5772
        %5805 = vst [vmem:[#allocation3 + $0xa8] sm:$0xff] %v5773
        %5806 = vst [vmem:[#allocation3 + $0xb0] sm:$0xff] %v5774
        %5807 = vst [vmem:[#allocation3 + $0xb8] sm:$0xff] %v5775
        %5808 = vst [vmem:[#allocation3 + $0xc0] sm:$0xff] %v5776
        %5809 = vst [vmem:[#allocation3 + $0xc8] sm:$0xff] %v5777
        %5810 = vst [vmem:[#allocation3 + $0xd0] sm:$0xff] %v5778
        %5811 = vst [vmem:[#allocation3 + $0xd8] sm:$0xff] %v5779
        %5812 = vst [vmem:[#allocation3 + $0xe0] sm:$0xff] %v5780
        %5813 = vst [vmem:[#allocation3 + $0xe8] sm:$0xff] %v5781
        %5814 = vst [vmem:[#allocation3 + $0xf0] sm:$0xff] %v5782
        %5815 = vst [vmem:[#allocation3 + $0xf8] sm:$0xff] %v5783
        %v5816 = vld [vmem:[%s4367] sm:$0xe]
        %v5817 = vld [vmem:[%s4367 + $0x4] sm:$0xf]
        %v5818 = vld [vmem:[%s4367 + $0x8] sm:$0x1]
        %v5819 = vld [vmem:[%s4367 + $0xc] sm:$0xe]
        %v5820 = vld [vmem:[%s4367 + $0x10] sm:$0xf]
        %v5821 = vld [vmem:[%s4367 + $0x14] sm:$0x1]
        %v5822 = vld [vmem:[%s4367 + $0x18] sm:$0xe]
        %v5823 = vld [vmem:[%s4367 + $0x1c] sm:$0xf]
        %v5824 = vld [vmem:[%s4367 + $0x20] sm:$0x1]
        %v5825 = vld [vmem:[%s4367 + $0x24] sm:$0xe]
        %v5826 = vld [vmem:[%s4367 + $0x28] sm:$0xf]
        %v5827 = vld [vmem:[%s4367 + $0x2c] sm:$0x1]
        %v5828 = vld [vmem:[%s4367 + $0x30] sm:$0xe]
        %v5829 = vld [vmem:[%s4367 + $0x34] sm:$0xf]
        %v5830 = vld [vmem:[%s4367 + $0x38] sm:$0x1]
        %v5831 = vld [vmem:[%s4367 + $0x3c] sm:$0xe]
        %v5832 = vld [vmem:[%s4367 + $0x40] sm:$0xf]
        %v5833 = vld [vmem:[%s4367 + $0x44] sm:$0x1]
        %v5834 = vld [vmem:[%s4367 + $0x48] sm:$0xe]
        %v5835 = vld [vmem:[%s4367 + $0x4c] sm:$0xf]
        %v5836 = vld [vmem:[%s4367 + $0x50] sm:$0x1]
        %v5837 = vld [vmem:[%s4367 + $0x54] sm:$0xe]
        %v5838 = vld [vmem:[%s4367 + $0x58] sm:$0xf]
        %v5839 = vld [vmem:[%s4367 + $0x5c] sm:$0x1]
        %v5840 = vld [vmem:[%s4367 + $0x60] sm:$0xe]
        %v5841 = vld [vmem:[%s4367 + $0x64] sm:$0xf]
        %v5842 = vld [vmem:[%s4367 + $0x68] sm:$0x1]
        %v5843 = vld [vmem:[%s4367 + $0x6c] sm:$0xe]
        %v5844 = vld [vmem:[%s4367 + $0x70] sm:$0xf]
        %v5845 = vld [vmem:[%s4367 + $0x74] sm:$0x1]
        %v5846 = vld [vmem:[%s4367 + $0x78] sm:$0xe]
        %v5847 = vld [vmem:[%s4367 + $0x7c] sm:$0xf]
        %v5848 = vld [vmem:[%s4367 + $0x80] sm:$0x1]
        %v5849 = vld [vmem:[%s4367 + $0x84] sm:$0xe]
        %v5850 = vld [vmem:[%s4367 + $0x88] sm:$0xf]
        %v5851 = vld [vmem:[%s4367 + $0x8c] sm:$0x1]
        %v5852 = vld [vmem:[%s4367 + $0x90] sm:$0xe]
        %v5853 = vld [vmem:[%s4367 + $0x94] sm:$0xf]
        %v5854 = vld [vmem:[%s4367 + $0x98] sm:$0x1]
        %v5855 = vld [vmem:[%s4367 + $0x9c] sm:$0xe]
        %v5856 = vld [vmem:[%s4367 + $0xa0] sm:$0xf]
        %v5857 = vld [vmem:[%s4367 + $0xa4] sm:$0x1]
        %v5858 = vld [vmem:[%s4367 + $0xa8] sm:$0xe]
        %v5859 = vld [vmem:[%s4367 + $0xac] sm:$0xf]
        %v5860 = vld [vmem:[%s4367 + $0xb0] sm:$0x1]
        %v5861 = vld [vmem:[%s4367 + $0xb4] sm:$0xe]
        %v5862 = vld [vmem:[%s4367 + $0xb8] sm:$0xf]
        %v5863 = vld [vmem:[%s4367 + $0xbc] sm:$0x1]
        %v5912 = vrot.slane %v5816, 5
        %v5913 = vrot.slane %v5912, 4
        %v5914 = vrot.slane %v5817, 5
        %v5915 = vsel %vm1645, %v5913, %v5914
        %v5916 = vrot.slane %v5914, 4
        %v5917 = vrot.slane %v5818, 5
        %v5918 = vsel %vm1645, %v5916, %v5917
        %v5919 = vrot.slane %v5819, 5
        %v5920 = vrot.slane %v5919, 4
        %v5921 = vrot.slane %v5820, 5
        %v5922 = vsel %vm1645, %v5920, %v5921
        %v5923 = vrot.slane %v5921, 4
        %v5924 = vrot.slane %v5821, 5
        %v5925 = vsel %vm1645, %v5923, %v5924
        %v5926 = vrot.slane %v5822, 5
        %v5927 = vrot.slane %v5926, 4
        %v5928 = vrot.slane %v5823, 5
        %v5929 = vsel %vm1645, %v5927, %v5928
        %v5930 = vrot.slane %v5928, 4
        %v5931 = vrot.slane %v5824, 5
        %v5932 = vsel %vm1645, %v5930, %v5931
        %v5933 = vrot.slane %v5825, 5
        %v5934 = vrot.slane %v5933, 4
        %v5935 = vrot.slane %v5826, 5
        %v5936 = vsel %vm1645, %v5934, %v5935
        %v5937 = vrot.slane %v5935, 4
        %v5938 = vrot.slane %v5827, 5
        %v5939 = vsel %vm1645, %v5937, %v5938
        %v5940 = vrot.slane %v5828, 5
        %v5941 = vrot.slane %v5940, 4
        %v5942 = vrot.slane %v5829, 5
        %v5943 = vsel %vm1645, %v5941, %v5942
        %v5944 = vrot.slane %v5942, 4
        %v5945 = vrot.slane %v5830, 5
        %v5946 = vsel %vm1645, %v5944, %v5945
        %v5947 = vrot.slane %v5831, 5
        %v5948 = vrot.slane %v5947, 4
        %v5949 = vrot.slane %v5832, 5
        %v5950 = vsel %vm1645, %v5948, %v5949
        %v5951 = vrot.slane %v5949, 4
        %v5952 = vrot.slane %v5833, 5
        %v5953 = vsel %vm1645, %v5951, %v5952
        %v5954 = vrot.slane %v5834, 5
        %v5955 = vrot.slane %v5954, 4
        %v5956 = vrot.slane %v5835, 5
        %v5957 = vsel %vm1645, %v5955, %v5956
        %v5958 = vrot.slane %v5956, 4
        %v5959 = vrot.slane %v5836, 5
        %v5960 = vsel %vm1645, %v5958, %v5959
        %v5961 = vrot.slane %v5837, 5
        %v5962 = vrot.slane %v5961, 4
        %v5963 = vrot.slane %v5838, 5
        %v5964 = vsel %vm1645, %v5962, %v5963
        %v5965 = vrot.slane %v5963, 4
        %v5966 = vrot.slane %v5839, 5
        %v5967 = vsel %vm1645, %v5965, %v5966
        %v5968 = vrot.slane %v5840, 5
        %v5969 = vrot.slane %v5968, 4
        %v5970 = vrot.slane %v5841, 5
        %v5971 = vsel %vm1645, %v5969, %v5970
        %v5972 = vrot.slane %v5970, 4
        %v5973 = vrot.slane %v5842, 5
        %v5974 = vsel %vm1645, %v5972, %v5973
        %v5975 = vrot.slane %v5843, 5
        %v5976 = vrot.slane %v5975, 4
        %v5977 = vrot.slane %v5844, 5
        %v5978 = vsel %vm1645, %v5976, %v5977
        %v5979 = vrot.slane %v5977, 4
        %v5980 = vrot.slane %v5845, 5
        %v5981 = vsel %vm1645, %v5979, %v5980
        %v5982 = vrot.slane %v5846, 5
        %v5983 = vrot.slane %v5982, 4
        %v5984 = vrot.slane %v5847, 5
        %v5985 = vsel %vm1645, %v5983, %v5984
        %v5986 = vrot.slane %v5984, 4
        %v5987 = vrot.slane %v5848, 5
        %v5988 = vsel %vm1645, %v5986, %v5987
        %v5989 = vrot.slane %v5849, 5
        %v5990 = vrot.slane %v5989, 4
        %v5991 = vrot.slane %v5850, 5
        %v5992 = vsel %vm1645, %v5990, %v5991
        %v5993 = vrot.slane %v5991, 4
        %v5994 = vrot.slane %v5851, 5
        %v5995 = vsel %vm1645, %v5993, %v5994
        %v5996 = vrot.slane %v5852, 5
        %v5997 = vrot.slane %v5996, 4
        %v5998 = vrot.slane %v5853, 5
        %v5999 = vsel %vm1645, %v5997, %v5998
        %v6000 = vrot.slane %v5998, 4
        %v6001 = vrot.slane %v5854, 5
        %v6002 = vsel %vm1645, %v6000, %v6001
        %v6003 = vrot.slane %v5855, 5
        %v6004 = vrot.slane %v6003, 4
        %v6005 = vrot.slane %v5856, 5
        %v6006 = vsel %vm1645, %v6004, %v6005
        %v6007 = vrot.slane %v6005, 4
        %v6008 = vrot.slane %v5857, 5
        %v6009 = vsel %vm1645, %v6007, %v6008
        %v6010 = vrot.slane %v5858, 5
        %v6011 = vrot.slane %v6010, 4
        %v6012 = vrot.slane %v5859, 5
        %v6013 = vsel %vm1645, %v6011, %v6012
        %v6014 = vrot.slane %v6012, 4
        %v6015 = vrot.slane %v5860, 5
        %v6016 = vsel %vm1645, %v6014, %v6015
        %v6017 = vrot.slane %v5861, 5
        %v6018 = vrot.slane %v6017, 4
        %v6019 = vrot.slane %v5862, 5
        %v6020 = vsel %vm1645, %v6018, %v6019
        %v6021 = vrot.slane %v6019, 4
        %v6022 = vrot.slane %v5863, 5
        %v6023 = vsel %vm1645, %v6021, %v6022
        %s6024 = scalar_lea.vmem %s1, 16
        %v6025 = vld [vmem:[%s6024] sm:$0x3]
        %v6026 = vunpack.c.l.b16 %v5915
        %v6027 = vunpack.c.l.b16 %v5918
        %v6028 = vunpack.c.l.b16 %v5922
        %v6029 = vunpack.c.l.b16 %v5925
        %v6030 = vunpack.c.l.b16 %v5929
        %v6031 = vunpack.c.l.b16 %v5932
        %v6032 = vunpack.c.l.b16 %v5936
        %v6033 = vunpack.c.l.b16 %v5939
        %v6034 = vunpack.c.l.b16 %v5943
        %v6035 = vunpack.c.l.b16 %v5946
        %v6036 = vunpack.c.l.b16 %v5950
        %v6037 = vunpack.c.l.b16 %v5953
        %v6038 = vunpack.c.l.b16 %v5957
        %v6039 = vunpack.c.l.b16 %v5960
        %v6040 = vunpack.c.l.b16 %v5964
        %v6041 = vunpack.c.l.b16 %v5967
        %v6042 = vunpack.c.l.b16 %v5971
        %v6043 = vunpack.c.l.b16 %v5974
        %v6044 = vunpack.c.l.b16 %v5978
        %v6045 = vunpack.c.l.b16 %v5981
        %v6046 = vunpack.c.l.b16 %v5985
        %v6047 = vunpack.c.l.b16 %v5988
        %v6048 = vunpack.c.l.b16 %v5992
        %v6049 = vunpack.c.l.b16 %v5995
        %v6050 = vunpack.c.l.b16 %v5999
        %v6051 = vunpack.c.l.b16 %v6002
        %v6052 = vunpack.c.l.b16 %v6006
        %v6053 = vunpack.c.l.b16 %v6009
        %v6054 = vunpack.c.l.b16 %v6013
        %v6055 = vunpack.c.l.b16 %v6016
        %v6056 = vunpack.c.l.b16 %v6020
        %v6057 = vunpack.c.l.b16 %v6023
        %v6058 = vpack.c.b16 %v6027, %v6026
        %v6059 = vpack.c.b16 %v6029, %v6028
        %v6060 = vpack.c.b16 %v6031, %v6030
        %v6061 = vpack.c.b16 %v6033, %v6032
        %v6062 = vpack.c.b16 %v6035, %v6034
        %v6063 = vpack.c.b16 %v6037, %v6036
        %v6064 = vpack.c.b16 %v6039, %v6038
        %v6065 = vpack.c.b16 %v6041, %v6040
        %v6066 = vpack.c.b16 %v6043, %v6042
        %v6067 = vpack.c.b16 %v6045, %v6044
        %v6068 = vpack.c.b16 %v6047, %v6046
        %v6069 = vpack.c.b16 %v6049, %v6048
        %v6070 = vpack.c.b16 %v6051, %v6050
        %v6071 = vpack.c.b16 %v6053, %v6052
        %v6072 = vpack.c.b16 %v6055, %v6054
        %v6073 = vpack.c.b16 %v6057, %v6056
        %v6075 = vsel %vm337, %v6058, 0
        %v6078 = vsel %vm337, %v6059, 0
        %v6081 = vsel %vm337, %v6060, 0
        %v6084 = vsel %vm337, %v6061, 0
        %v6087 = vsel %vm337, %v6062, 0
        %v6090 = vsel %vm337, %v6063, 0
        %v6093 = vsel %vm337, %v6064, 0
        %v6096 = vsel %vm337, %v6065, 0
        %v6099 = vsel %vm337, %v6066, 0
        %v6102 = vsel %vm337, %v6067, 0
        %v6105 = vsel %vm337, %v6068, 0
        %v6108 = vsel %vm337, %v6069, 0
        %v6111 = vsel %vm337, %v6070, 0
        %v6114 = vsel %vm337, %v6071, 0
        %v6117 = vsel %vm337, %v6072, 0
        %v6120 = vsel %vm337, %v6073, 0
        %v6123 = vsel %vm386, %v6025, 0
        %6125 = vmatpush.bf16.msra.mxu0 0
        %6126 = vmatpush.bf16.msra.mxu0 0
        %6127 = vmatpush.bf16.msra.mxu0 0
        %6128 = vmatpush.bf16.msra.mxu0 0
        %6129 = vmatpush.bf16.msra.mxu0 0
        %6130 = vmatpush.bf16.msra.mxu0 0
        %6131 = vmatpush.bf16.msra.mxu0 0
        %6132 = vmatpush.bf16.msra.mxu0 %v6123
        %6133 = vmatmul.bf16.gmra.mxu0 %v6075
        %v6134 = vpop.f32.mrf.mxu0
        %v6135 = vadd.f32 0.0, %v6134
        %v6136 = vpop.f32.mrf.mxu0
        %v6137 = vadd.f32 0.0, %v6136
        %6138 = vmatmul.bf16.gmra.mxu0 %v6078
        %v6139 = vpop.f32.mrf.mxu0
        %v6140 = vadd.f32 0.0, %v6139
        %v6141 = vpop.f32.mrf.mxu0
        %v6142 = vadd.f32 0.0, %v6141
        %6143 = vmatmul.bf16.gmra.mxu0 %v6081
        %v6144 = vpop.f32.mrf.mxu0
        %v6145 = vadd.f32 0.0, %v6144
        %v6146 = vpop.f32.mrf.mxu0
        %v6147 = vadd.f32 0.0, %v6146
        %6148 = vmatmul.bf16.gmra.mxu0 %v6084
        %v6149 = vpop.f32.mrf.mxu0
        %v6150 = vadd.f32 0.0, %v6149
        %v6151 = vpop.f32.mrf.mxu0
        %v6152 = vadd.f32 0.0, %v6151
        %6153 = vmatmul.bf16.gmra.mxu0 %v6087
        %v6154 = vpop.f32.mrf.mxu0
        %v6155 = vadd.f32 0.0, %v6154
        %v6156 = vpop.f32.mrf.mxu0
        %v6157 = vadd.f32 0.0, %v6156
        %6158 = vmatmul.bf16.gmra.mxu0 %v6090
        %v6159 = vpop.f32.mrf.mxu0
        %v6160 = vadd.f32 0.0, %v6159
        %v6161 = vpop.f32.mrf.mxu0
        %v6162 = vadd.f32 0.0, %v6161
        %6163 = vmatmul.bf16.gmra.mxu0 %v6093
        %v6164 = vpop.f32.mrf.mxu0
        %v6165 = vadd.f32 0.0, %v6164
        %v6166 = vpop.f32.mrf.mxu0
        %v6167 = vadd.f32 0.0, %v6166
        %6168 = vmatmul.bf16.gmra.mxu0 %v6096
        %v6169 = vpop.f32.mrf.mxu0
        %v6170 = vadd.f32 0.0, %v6169
        %v6171 = vpop.f32.mrf.mxu0
        %v6172 = vadd.f32 0.0, %v6171
        %6173 = vmatmul.bf16.gmra.mxu0 %v6099
        %v6174 = vpop.f32.mrf.mxu0
        %v6175 = vadd.f32 0.0, %v6174
        %v6176 = vpop.f32.mrf.mxu0
        %v6177 = vadd.f32 0.0, %v6176
        %6178 = vmatmul.bf16.gmra.mxu0 %v6102
        %v6179 = vpop.f32.mrf.mxu0
        %v6180 = vadd.f32 0.0, %v6179
        %v6181 = vpop.f32.mrf.mxu0
        %v6182 = vadd.f32 0.0, %v6181
        %6183 = vmatmul.bf16.gmra.mxu0 %v6105
        %v6184 = vpop.f32.mrf.mxu0
        %v6185 = vadd.f32 0.0, %v6184
        %v6186 = vpop.f32.mrf.mxu0
        %v6187 = vadd.f32 0.0, %v6186
        %6188 = vmatmul.bf16.gmra.mxu0 %v6108
        %v6189 = vpop.f32.mrf.mxu0
        %v6190 = vadd.f32 0.0, %v6189
        %v6191 = vpop.f32.mrf.mxu0
        %v6192 = vadd.f32 0.0, %v6191
        %6193 = vmatmul.bf16.gmra.mxu0 %v6111
        %v6194 = vpop.f32.mrf.mxu0
        %v6195 = vadd.f32 0.0, %v6194
        %v6196 = vpop.f32.mrf.mxu0
        %v6197 = vadd.f32 0.0, %v6196
        %6198 = vmatmul.bf16.gmra.mxu0 %v6114
        %v6199 = vpop.f32.mrf.mxu0
        %v6200 = vadd.f32 0.0, %v6199
        %v6201 = vpop.f32.mrf.mxu0
        %v6202 = vadd.f32 0.0, %v6201
        %6203 = vmatmul.bf16.gmra.mxu0 %v6117
        %v6204 = vpop.f32.mrf.mxu0
        %v6205 = vadd.f32 0.0, %v6204
        %v6206 = vpop.f32.mrf.mxu0
        %v6207 = vadd.f32 0.0, %v6206
        %6208 = vmatmul.bf16.gmra.mxu0 %v6120
        %v6209 = vpop.f32.mrf.mxu0
        %v6210 = vadd.f32 0.0, %v6209
        %v6211 = vpop.f32.mrf.mxu0
        %v6212 = vadd.f32 0.0, %v6211
        %6213 = vdwg.mxu0
        %s6214 = scalar_lea.vmem %s2, 16
        %v6215 = vld [vmem:[%s6214] sm:$0x3]
        %v6217 = vsel %vm386, %v6215, 0
        %6219 = vmatpush.bf16.msra.mxu0 0
        %6220 = vmatpush.bf16.msra.mxu0 0
        %6221 = vmatpush.bf16.msra.mxu0 0
        %6222 = vmatpush.bf16.msra.mxu0 0
        %6223 = vmatpush.bf16.msra.mxu0 0
        %6224 = vmatpush.bf16.msra.mxu0 0
        %6225 = vmatpush.bf16.msra.mxu0 0
        %6226 = vmatpush.bf16.msra.mxu0 %v6217
        %6227 = vmatmul.bf16.gmra.mxu0 %v6075
        %v6228 = vpop.f32.mrf.mxu0
        %v6229 = vadd.f32 0.0, %v6228
        %v6230 = vpop.f32.mrf.mxu0
        %v6231 = vadd.f32 0.0, %v6230
        %6232 = vmatmul.bf16.gmra.mxu0 %v6078
        %v6233 = vpop.f32.mrf.mxu0
        %v6234 = vadd.f32 0.0, %v6233
        %v6235 = vpop.f32.mrf.mxu0
        %v6236 = vadd.f32 0.0, %v6235
        %6237 = vmatmul.bf16.gmra.mxu0 %v6081
        %v6238 = vpop.f32.mrf.mxu0
        %v6239 = vadd.f32 0.0, %v6238
        %v6240 = vpop.f32.mrf.mxu0
        %v6241 = vadd.f32 0.0, %v6240
        %6242 = vmatmul.bf16.gmra.mxu0 %v6084
        %v6243 = vpop.f32.mrf.mxu0
        %v6244 = vadd.f32 0.0, %v6243
        %v6245 = vpop.f32.mrf.mxu0
        %v6246 = vadd.f32 0.0, %v6245
        %6247 = vmatmul.bf16.gmra.mxu0 %v6087
        %v6248 = vpop.f32.mrf.mxu0
        %v6249 = vadd.f32 0.0, %v6248
        %v6250 = vpop.f32.mrf.mxu0
        %v6251 = vadd.f32 0.0, %v6250
        %6252 = vmatmul.bf16.gmra.mxu0 %v6090
        %v6253 = vpop.f32.mrf.mxu0
        %v6254 = vadd.f32 0.0, %v6253
        %v6255 = vpop.f32.mrf.mxu0
        %v6256 = vadd.f32 0.0, %v6255
        %6257 = vmatmul.bf16.gmra.mxu0 %v6093
        %v6258 = vpop.f32.mrf.mxu0
        %v6259 = vadd.f32 0.0, %v6258
        %v6260 = vpop.f32.mrf.mxu0
        %v6261 = vadd.f32 0.0, %v6260
        %6262 = vmatmul.bf16.gmra.mxu0 %v6096
        %v6263 = vpop.f32.mrf.mxu0
        %v6264 = vadd.f32 0.0, %v6263
        %v6265 = vpop.f32.mrf.mxu0
        %v6266 = vadd.f32 0.0, %v6265
        %6267 = vmatmul.bf16.gmra.mxu0 %v6099
        %v6268 = vpop.f32.mrf.mxu0
        %v6269 = vadd.f32 0.0, %v6268
        %v6270 = vpop.f32.mrf.mxu0
        %v6271 = vadd.f32 0.0, %v6270
        %6272 = vmatmul.bf16.gmra.mxu0 %v6102
        %v6273 = vpop.f32.mrf.mxu0
        %v6274 = vadd.f32 0.0, %v6273
        %v6275 = vpop.f32.mrf.mxu0
        %v6276 = vadd.f32 0.0, %v6275
        %6277 = vmatmul.bf16.gmra.mxu0 %v6105
        %v6278 = vpop.f32.mrf.mxu0
        %v6279 = vadd.f32 0.0, %v6278
        %v6280 = vpop.f32.mrf.mxu0
        %v6281 = vadd.f32 0.0, %v6280
        %6282 = vmatmul.bf16.gmra.mxu0 %v6108
        %v6283 = vpop.f32.mrf.mxu0
        %v6284 = vadd.f32 0.0, %v6283
        %v6285 = vpop.f32.mrf.mxu0
        %v6286 = vadd.f32 0.0, %v6285
        %6287 = vmatmul.bf16.gmra.mxu0 %v6111
        %v6288 = vpop.f32.mrf.mxu0
        %v6289 = vadd.f32 0.0, %v6288
        %v6290 = vpop.f32.mrf.mxu0
        %v6291 = vadd.f32 0.0, %v6290
        %6292 = vmatmul.bf16.gmra.mxu0 %v6114
        %v6293 = vpop.f32.mrf.mxu0
        %v6294 = vadd.f32 0.0, %v6293
        %v6295 = vpop.f32.mrf.mxu0
        %v6296 = vadd.f32 0.0, %v6295
        %6297 = vmatmul.bf16.gmra.mxu0 %v6117
        %v6298 = vpop.f32.mrf.mxu0
        %v6299 = vadd.f32 0.0, %v6298
        %v6300 = vpop.f32.mrf.mxu0
        %v6301 = vadd.f32 0.0, %v6300
        %6302 = vmatmul.bf16.gmra.mxu0 %v6120
        %v6303 = vpop.f32.mrf.mxu0
        %v6304 = vadd.f32 0.0, %v6303
        %v6305 = vpop.f32.mrf.mxu0
        %v6306 = vadd.f32 0.0, %v6305
        %6307 = vdwg.mxu0
        %v6308 = vld [vmem:[#allocation2] sm:$0xff]
        %v6309 = vld [vmem:[#allocation2 + $0x8] sm:$0xff]
        %v6310 = vld [vmem:[#allocation2 + $0x10] sm:$0xff]
        %v6311 = vld [vmem:[#allocation2 + $0x18] sm:$0xff]
        %v6312 = vld [vmem:[#allocation2 + $0x20] sm:$0xff]
        %v6313 = vld [vmem:[#allocation2 + $0x28] sm:$0xff]
        %v6314 = vld [vmem:[#allocation2 + $0x30] sm:$0xff]
        %v6315 = vld [vmem:[#allocation2 + $0x38] sm:$0xff]
        %v6316 = vld [vmem:[#allocation2 + $0x40] sm:$0xff]
        %v6317 = vld [vmem:[#allocation2 + $0x48] sm:$0xff]
        %v6318 = vld [vmem:[#allocation2 + $0x50] sm:$0xff]
        %v6319 = vld [vmem:[#allocation2 + $0x58] sm:$0xff]
        %v6320 = vld [vmem:[#allocation2 + $0x60] sm:$0xff]
        %v6321 = vld [vmem:[#allocation2 + $0x68] sm:$0xff]
        %v6322 = vld [vmem:[#allocation2 + $0x70] sm:$0xff]
        %v6323 = vld [vmem:[#allocation2 + $0x78] sm:$0xff]
        %v6324 = vld [vmem:[#allocation2 + $0x80] sm:$0xff]
        %v6325 = vld [vmem:[#allocation2 + $0x88] sm:$0xff]
        %v6326 = vld [vmem:[#allocation2 + $0x90] sm:$0xff]
        %v6327 = vld [vmem:[#allocation2 + $0x98] sm:$0xff]
        %v6328 = vld [vmem:[#allocation2 + $0xa0] sm:$0xff]
        %v6329 = vld [vmem:[#allocation2 + $0xa8] sm:$0xff]
        %v6330 = vld [vmem:[#allocation2 + $0xb0] sm:$0xff]
        %v6331 = vld [vmem:[#allocation2 + $0xb8] sm:$0xff]
        %v6332 = vld [vmem:[#allocation2 + $0xc0] sm:$0xff]
        %v6333 = vld [vmem:[#allocation2 + $0xc8] sm:$0xff]
        %v6334 = vld [vmem:[#allocation2 + $0xd0] sm:$0xff]
        %v6335 = vld [vmem:[#allocation2 + $0xd8] sm:$0xff]
        %v6336 = vld [vmem:[#allocation2 + $0xe0] sm:$0xff]
        %v6337 = vld [vmem:[#allocation2 + $0xe8] sm:$0xff]
        %v6338 = vld [vmem:[#allocation2 + $0xf0] sm:$0xff]
        %v6339 = vld [vmem:[#allocation2 + $0xf8] sm:$0xff]
        %v6340 = vadd.f32 %v6308, %v6135
        %v6341 = vadd.f32 %v6309, %v6137
        %v6342 = vadd.f32 %v6310, %v6140
        %v6343 = vadd.f32 %v6311, %v6142
        %v6344 = vadd.f32 %v6312, %v6145
        %v6345 = vadd.f32 %v6313, %v6147
        %v6346 = vadd.f32 %v6314, %v6150
        %v6347 = vadd.f32 %v6315, %v6152
        %v6348 = vadd.f32 %v6316, %v6155
        %v6349 = vadd.f32 %v6317, %v6157
        %v6350 = vadd.f32 %v6318, %v6160
        %v6351 = vadd.f32 %v6319, %v6162
        %v6352 = vadd.f32 %v6320, %v6165
        %v6353 = vadd.f32 %v6321, %v6167
        %v6354 = vadd.f32 %v6322, %v6170
        %v6355 = vadd.f32 %v6323, %v6172
        %v6356 = vadd.f32 %v6324, %v6175
        %v6357 = vadd.f32 %v6325, %v6177
        %v6358 = vadd.f32 %v6326, %v6180
        %v6359 = vadd.f32 %v6327, %v6182
        %v6360 = vadd.f32 %v6328, %v6185
        %v6361 = vadd.f32 %v6329, %v6187
        %v6362 = vadd.f32 %v6330, %v6190
        %v6363 = vadd.f32 %v6331, %v6192
        %v6364 = vadd.f32 %v6332, %v6195
        %v6365 = vadd.f32 %v6333, %v6197
        %v6366 = vadd.f32 %v6334, %v6200
        %v6367 = vadd.f32 %v6335, %v6202
        %v6368 = vadd.f32 %v6336, %v6205
        %v6369 = vadd.f32 %v6337, %v6207
        %v6370 = vadd.f32 %v6338, %v6210
        %v6371 = vadd.f32 %v6339, %v6212
        %6372 = vst [vmem:[#allocation2] sm:$0xff] %v6340
        %6373 = vst [vmem:[#allocation2 + $0x8] sm:$0xff] %v6341
        %6374 = vst [vmem:[#allocation2 + $0x10] sm:$0xff] %v6342
        %6375 = vst [vmem:[#allocation2 + $0x18] sm:$0xff] %v6343
        %6376 = vst [vmem:[#allocation2 + $0x20] sm:$0xff] %v6344
        %6377 = vst [vmem:[#allocation2 + $0x28] sm:$0xff] %v6345
        %6378 = vst [vmem:[#allocation2 + $0x30] sm:$0xff] %v6346
        %6379 = vst [vmem:[#allocation2 + $0x38] sm:$0xff] %v6347
        %6380 = vst [vmem:[#allocation2 + $0x40] sm:$0xff] %v6348
        %6381 = vst [vmem:[#allocation2 + $0x48] sm:$0xff] %v6349
        %6382 = vst [vmem:[#allocation2 + $0x50] sm:$0xff] %v6350
        %6383 = vst [vmem:[#allocation2 + $0x58] sm:$0xff] %v6351
        %6384 = vst [vmem:[#allocation2 + $0x60] sm:$0xff] %v6352
        %6385 = vst [vmem:[#allocation2 + $0x68] sm:$0xff] %v6353
        %6386 = vst [vmem:[#allocation2 + $0x70] sm:$0xff] %v6354
        %6387 = vst [vmem:[#allocation2 + $0x78] sm:$0xff] %v6355
        %6388 = vst [vmem:[#allocation2 + $0x80] sm:$0xff] %v6356
        %6389 = vst [vmem:[#allocation2 + $0x88] sm:$0xff] %v6357
        %6390 = vst [vmem:[#allocation2 + $0x90] sm:$0xff] %v6358
        %6391 = vst [vmem:[#allocation2 + $0x98] sm:$0xff] %v6359
        %6392 = vst [vmem:[#allocation2 + $0xa0] sm:$0xff] %v6360
        %6393 = vst [vmem:[#allocation2 + $0xa8] sm:$0xff] %v6361
        %6394 = vst [vmem:[#allocation2 + $0xb0] sm:$0xff] %v6362
        %6395 = vst [vmem:[#allocation2 + $0xb8] sm:$0xff] %v6363
        %6396 = vst [vmem:[#allocation2 + $0xc0] sm:$0xff] %v6364
        %6397 = vst [vmem:[#allocation2 + $0xc8] sm:$0xff] %v6365
        %6398 = vst [vmem:[#allocation2 + $0xd0] sm:$0xff] %v6366
        %6399 = vst [vmem:[#allocation2 + $0xd8] sm:$0xff] %v6367
        %6400 = vst [vmem:[#allocation2 + $0xe0] sm:$0xff] %v6368
        %6401 = vst [vmem:[#allocation2 + $0xe8] sm:$0xff] %v6369
        %6402 = vst [vmem:[#allocation2 + $0xf0] sm:$0xff] %v6370
        %6403 = vst [vmem:[#allocation2 + $0xf8] sm:$0xff] %v6371
        %v6404 = vld [vmem:[#allocation3] sm:$0xff]
        %v6405 = vld [vmem:[#allocation3 + $0x8] sm:$0xff]
        %v6406 = vld [vmem:[#allocation3 + $0x10] sm:$0xff]
        %v6407 = vld [vmem:[#allocation3 + $0x18] sm:$0xff]
        %v6408 = vld [vmem:[#allocation3 + $0x20] sm:$0xff]
        %v6409 = vld [vmem:[#allocation3 + $0x28] sm:$0xff]
        %v6410 = vld [vmem:[#allocation3 + $0x30] sm:$0xff]
        %v6411 = vld [vmem:[#allocation3 + $0x38] sm:$0xff]
        %v6412 = vld [vmem:[#allocation3 + $0x40] sm:$0xff]
        %v6413 = vld [vmem:[#allocation3 + $0x48] sm:$0xff]
        %v6414 = vld [vmem:[#allocation3 + $0x50] sm:$0xff]
        %v6415 = vld [vmem:[#allocation3 + $0x58] sm:$0xff]
        %v6416 = vld [vmem:[#allocation3 + $0x60] sm:$0xff]
        %v6417 = vld [vmem:[#allocation3 + $0x68] sm:$0xff]
        %v6418 = vld [vmem:[#allocation3 + $0x70] sm:$0xff]
        %v6419 = vld [vmem:[#allocation3 + $0x78] sm:$0xff]
        %v6420 = vld [vmem:[#allocation3 + $0x80] sm:$0xff]
        %v6421 = vld [vmem:[#allocation3 + $0x88] sm:$0xff]
        %v6422 = vld [vmem:[#allocation3 + $0x90] sm:$0xff]
        %v6423 = vld [vmem:[#allocation3 + $0x98] sm:$0xff]
        %v6424 = vld [vmem:[#allocation3 + $0xa0] sm:$0xff]
        %v6425 = vld [vmem:[#allocation3 + $0xa8] sm:$0xff]
        %v6426 = vld [vmem:[#allocation3 + $0xb0] sm:$0xff]
        %v6427 = vld [vmem:[#allocation3 + $0xb8] sm:$0xff]
        %v6428 = vld [vmem:[#allocation3 + $0xc0] sm:$0xff]
        %v6429 = vld [vmem:[#allocation3 + $0xc8] sm:$0xff]
        %v6430 = vld [vmem:[#allocation3 + $0xd0] sm:$0xff]
        %v6431 = vld [vmem:[#allocation3 + $0xd8] sm:$0xff]
        %v6432 = vld [vmem:[#allocation3 + $0xe0] sm:$0xff]
        %v6433 = vld [vmem:[#allocation3 + $0xe8] sm:$0xff]
        %v6434 = vld [vmem:[#allocation3 + $0xf0] sm:$0xff]
        %v6435 = vld [vmem:[#allocation3 + $0xf8] sm:$0xff]
        %v6436 = vadd.f32 %v6404, %v6229
        %v6437 = vadd.f32 %v6405, %v6231
        %v6438 = vadd.f32 %v6406, %v6234
        %v6439 = vadd.f32 %v6407, %v6236
        %v6440 = vadd.f32 %v6408, %v6239
        %v6441 = vadd.f32 %v6409, %v6241
        %v6442 = vadd.f32 %v6410, %v6244
        %v6443 = vadd.f32 %v6411, %v6246
        %v6444 = vadd.f32 %v6412, %v6249
        %v6445 = vadd.f32 %v6413, %v6251
        %v6446 = vadd.f32 %v6414, %v6254
        %v6447 = vadd.f32 %v6415, %v6256
        %v6448 = vadd.f32 %v6416, %v6259
        %v6449 = vadd.f32 %v6417, %v6261
        %v6450 = vadd.f32 %v6418, %v6264
        %v6451 = vadd.f32 %v6419, %v6266
        %v6452 = vadd.f32 %v6420, %v6269
        %v6453 = vadd.f32 %v6421, %v6271
        %v6454 = vadd.f32 %v6422, %v6274
        %v6455 = vadd.f32 %v6423, %v6276
        %v6456 = vadd.f32 %v6424, %v6279
        %v6457 = vadd.f32 %v6425, %v6281
        %v6458 = vadd.f32 %v6426, %v6284
        %v6459 = vadd.f32 %v6427, %v6286
        %v6460 = vadd.f32 %v6428, %v6289
        %v6461 = vadd.f32 %v6429, %v6291
        %v6462 = vadd.f32 %v6430, %v6294
        %v6463 = vadd.f32 %v6431, %v6296
        %v6464 = vadd.f32 %v6432, %v6299
        %v6465 = vadd.f32 %v6433, %v6301
        %v6466 = vadd.f32 %v6434, %v6304
        %v6467 = vadd.f32 %v6435, %v6306
        %6468 = vst [vmem:[#allocation3] sm:$0xff] %v6436
        %6469 = vst [vmem:[#allocation3 + $0x8] sm:$0xff] %v6437
        %6470 = vst [vmem:[#allocation3 + $0x10] sm:$0xff] %v6438
        %6471 = vst [vmem:[#allocation3 + $0x18] sm:$0xff] %v6439
        %6472 = vst [vmem:[#allocation3 + $0x20] sm:$0xff] %v6440
        %6473 = vst [vmem:[#allocation3 + $0x28] sm:$0xff] %v6441
        %6474 = vst [vmem:[#allocation3 + $0x30] sm:$0xff] %v6442
        %6475 = vst [vmem:[#allocation3 + $0x38] sm:$0xff] %v6443
        %6476 = vst [vmem:[#allocation3 + $0x40] sm:$0xff] %v6444
        %6477 = vst [vmem:[#allocation3 + $0x48] sm:$0xff] %v6445
        %6478 = vst [vmem:[#allocation3 + $0x50] sm:$0xff] %v6446
        %6479 = vst [vmem:[#allocation3 + $0x58] sm:$0xff] %v6447
        %6480 = vst [vmem:[#allocation3 + $0x60] sm:$0xff] %v6448
        %6481 = vst [vmem:[#allocation3 + $0x68] sm:$0xff] %v6449
        %6482 = vst [vmem:[#allocation3 + $0x70] sm:$0xff] %v6450
        %6483 = vst [vmem:[#allocation3 + $0x78] sm:$0xff] %v6451
        %6484 = vst [vmem:[#allocation3 + $0x80] sm:$0xff] %v6452
        %6485 = vst [vmem:[#allocation3 + $0x88] sm:$0xff] %v6453
        %6486 = vst [vmem:[#allocation3 + $0x90] sm:$0xff] %v6454
        %6487 = vst [vmem:[#allocation3 + $0x98] sm:$0xff] %v6455
        %6488 = vst [vmem:[#allocation3 + $0xa0] sm:$0xff] %v6456
        %6489 = vst [vmem:[#allocation3 + $0xa8] sm:$0xff] %v6457
        %6490 = vst [vmem:[#allocation3 + $0xb0] sm:$0xff] %v6458
        %6491 = vst [vmem:[#allocation3 + $0xb8] sm:$0xff] %v6459
        %6492 = vst [vmem:[#allocation3 + $0xc0] sm:$0xff] %v6460
        %6493 = vst [vmem:[#allocation3 + $0xc8] sm:$0xff] %v6461
        %6494 = vst [vmem:[#allocation3 + $0xd0] sm:$0xff] %v6462
        %6495 = vst [vmem:[#allocation3 + $0xd8] sm:$0xff] %v6463
        %6496 = vst [vmem:[#allocation3 + $0xe0] sm:$0xff] %v6464
        %6497 = vst [vmem:[#allocation3 + $0xe8] sm:$0xff] %v6465
        %6498 = vst [vmem:[#allocation3 + $0xf0] sm:$0xff] %v6466
        %6499 = vst [vmem:[#allocation3 + $0xf8] sm:$0xff] %v6467
        %v6500 = vld [vmem:[#allocation2] sm:$0xff]
        %v6501 = vld [vmem:[#allocation2 + $0x8] sm:$0xff]
        %v6502 = vld [vmem:[#allocation2 + $0x10] sm:$0xff]
        %v6503 = vld [vmem:[#allocation2 + $0x18] sm:$0xff]
        %v6504 = vld [vmem:[#allocation2 + $0x20] sm:$0xff]
        %v6505 = vld [vmem:[#allocation2 + $0x28] sm:$0xff]
        %v6506 = vld [vmem:[#allocation2 + $0x30] sm:$0xff]
        %v6507 = vld [vmem:[#allocation2 + $0x38] sm:$0xff]
        %v6508 = vld [vmem:[#allocation2 + $0x40] sm:$0xff]
        %v6509 = vld [vmem:[#allocation2 + $0x48] sm:$0xff]
        %v6510 = vld [vmem:[#allocation2 + $0x50] sm:$0xff]
        %v6511 = vld [vmem:[#allocation2 + $0x58] sm:$0xff]
        %v6512 = vld [vmem:[#allocation2 + $0x60] sm:$0xff]
        %v6513 = vld [vmem:[#allocation2 + $0x68] sm:$0xff]
        %v6514 = vld [vmem:[#allocation2 + $0x70] sm:$0xff]
        %v6515 = vld [vmem:[#allocation2 + $0x78] sm:$0xff]
        %v6516 = vld [vmem:[#allocation2 + $0x80] sm:$0xff]
        %v6517 = vld [vmem:[#allocation2 + $0x88] sm:$0xff]
        %v6518 = vld [vmem:[#allocation2 + $0x90] sm:$0xff]
        %v6519 = vld [vmem:[#allocation2 + $0x98] sm:$0xff]
        %v6520 = vld [vmem:[#allocation2 + $0xa0] sm:$0xff]
        %v6521 = vld [vmem:[#allocation2 + $0xa8] sm:$0xff]
        %v6522 = vld [vmem:[#allocation2 + $0xb0] sm:$0xff]
        %v6523 = vld [vmem:[#allocation2 + $0xb8] sm:$0xff]
        %v6524 = vld [vmem:[#allocation2 + $0xc0] sm:$0xff]
        %v6525 = vld [vmem:[#allocation2 + $0xc8] sm:$0xff]
        %v6526 = vld [vmem:[#allocation2 + $0xd0] sm:$0xff]
        %v6527 = vld [vmem:[#allocation2 + $0xd8] sm:$0xff]
        %v6528 = vld [vmem:[#allocation2 + $0xe0] sm:$0xff]
        %v6529 = vld [vmem:[#allocation2 + $0xe8] sm:$0xff]
        %v6530 = vld [vmem:[#allocation2 + $0xf0] sm:$0xff]
        %v6531 = vld [vmem:[#allocation2 + $0xf8] sm:$0xff]
        %v6532 = vld [vmem:[%s3] sm:$0x1]
        %v6534 = vperm.slane %v6532, 0
        %v6536 = vadd.f32 %v6500, %v6534
        %v6537 = vadd.f32 %v6501, %v6534
        %v6538 = vadd.f32 %v6502, %v6534
        %v6539 = vadd.f32 %v6503, %v6534
        %v6540 = vadd.f32 %v6504, %v6534
        %v6541 = vadd.f32 %v6505, %v6534
        %v6542 = vadd.f32 %v6506, %v6534
        %v6543 = vadd.f32 %v6507, %v6534
        %v6544 = vadd.f32 %v6508, %v6534
        %v6545 = vadd.f32 %v6509, %v6534
        %v6546 = vadd.f32 %v6510, %v6534
        %v6547 = vadd.f32 %v6511, %v6534
        %v6548 = vadd.f32 %v6512, %v6534
        %v6549 = vadd.f32 %v6513, %v6534
        %v6550 = vadd.f32 %v6514, %v6534
        %v6551 = vadd.f32 %v6515, %v6534
        %v6552 = vadd.f32 %v6516, %v6534
        %v6553 = vadd.f32 %v6517, %v6534
        %v6554 = vadd.f32 %v6518, %v6534
        %v6555 = vadd.f32 %v6519, %v6534
        %v6556 = vadd.f32 %v6520, %v6534
        %v6557 = vadd.f32 %v6521, %v6534
        %v6558 = vadd.f32 %v6522, %v6534
        %v6559 = vadd.f32 %v6523, %v6534
        %v6560 = vadd.f32 %v6524, %v6534
        %v6561 = vadd.f32 %v6525, %v6534
        %v6562 = vadd.f32 %v6526, %v6534
        %v6563 = vadd.f32 %v6527, %v6534
        %v6564 = vadd.f32 %v6528, %v6534
        %v6565 = vadd.f32 %v6529, %v6534
        %v6566 = vadd.f32 %v6530, %v6534
        %v6567 = vadd.f32 %v6531, %v6534
        %v6568 = vld [vmem:[#allocation3] sm:$0xff]
        %v6569 = vld [vmem:[#allocation3 + $0x8] sm:$0xff]
        %v6570 = vld [vmem:[#allocation3 + $0x10] sm:$0xff]
        %v6571 = vld [vmem:[#allocation3 + $0x18] sm:$0xff]
        %v6572 = vld [vmem:[#allocation3 + $0x20] sm:$0xff]
        %v6573 = vld [vmem:[#allocation3 + $0x28] sm:$0xff]
        %v6574 = vld [vmem:[#allocation3 + $0x30] sm:$0xff]
        %v6575 = vld [vmem:[#allocation3 + $0x38] sm:$0xff]
        %v6576 = vld [vmem:[#allocation3 + $0x40] sm:$0xff]
        %v6577 = vld [vmem:[#allocation3 + $0x48] sm:$0xff]
        %v6578 = vld [vmem:[#allocation3 + $0x50] sm:$0xff]
        %v6579 = vld [vmem:[#allocation3 + $0x58] sm:$0xff]
        %v6580 = vld [vmem:[#allocation3 + $0x60] sm:$0xff]
        %v6581 = vld [vmem:[#allocation3 + $0x68] sm:$0xff]
        %v6582 = vld [vmem:[#allocation3 + $0x70] sm:$0xff]
        %v6583 = vld [vmem:[#allocation3 + $0x78] sm:$0xff]
        %v6584 = vld [vmem:[#allocation3 + $0x80] sm:$0xff]
        %v6585 = vld [vmem:[#allocation3 + $0x88] sm:$0xff]
        %v6586 = vld [vmem:[#allocation3 + $0x90] sm:$0xff]
        %v6587 = vld [vmem:[#allocation3 + $0x98] sm:$0xff]
        %v6588 = vld [vmem:[#allocation3 + $0xa0] sm:$0xff]
        %v6589 = vld [vmem:[#allocation3 + $0xa8] sm:$0xff]
        %v6590 = vld [vmem:[#allocation3 + $0xb0] sm:$0xff]
        %v6591 = vld [vmem:[#allocation3 + $0xb8] sm:$0xff]
        %v6592 = vld [vmem:[#allocation3 + $0xc0] sm:$0xff]
        %v6593 = vld [vmem:[#allocation3 + $0xc8] sm:$0xff]
        %v6594 = vld [vmem:[#allocation3 + $0xd0] sm:$0xff]
        %v6595 = vld [vmem:[#allocation3 + $0xd8] sm:$0xff]
        %v6596 = vld [vmem:[#allocation3 + $0xe0] sm:$0xff]
        %v6597 = vld [vmem:[#allocation3 + $0xe8] sm:$0xff]
        %v6598 = vld [vmem:[#allocation3 + $0xf0] sm:$0xff]
        %v6599 = vld [vmem:[#allocation3 + $0xf8] sm:$0xff]
        %v6600 = vld [vmem:[%s4] sm:$0x1]
        %v6602 = vperm.slane %v6600, 0
        %v6604 = vadd.f32 %v6568, %v6602
        %v6605 = vadd.f32 %v6569, %v6602
        %v6606 = vadd.f32 %v6570, %v6602
        %v6607 = vadd.f32 %v6571, %v6602
        %v6608 = vadd.f32 %v6572, %v6602
        %v6609 = vadd.f32 %v6573, %v6602
        %v6610 = vadd.f32 %v6574, %v6602
        %v6611 = vadd.f32 %v6575, %v6602
        %v6612 = vadd.f32 %v6576, %v6602
        %v6613 = vadd.f32 %v6577, %v6602
        %v6614 = vadd.f32 %v6578, %v6602
        %v6615 = vadd.f32 %v6579, %v6602
        %v6616 = vadd.f32 %v6580, %v6602
        %v6617 = vadd.f32 %v6581, %v6602
        %v6618 = vadd.f32 %v6582, %v6602
        %v6619 = vadd.f32 %v6583, %v6602
        %v6620 = vadd.f32 %v6584, %v6602
        %v6621 = vadd.f32 %v6585, %v6602
        %v6622 = vadd.f32 %v6586, %v6602
        %v6623 = vadd.f32 %v6587, %v6602
        %v6624 = vadd.f32 %v6588, %v6602
        %v6625 = vadd.f32 %v6589, %v6602
        %v6626 = vadd.f32 %v6590, %v6602
        %v6627 = vadd.f32 %v6591, %v6602
        %v6628 = vadd.f32 %v6592, %v6602
        %v6629 = vadd.f32 %v6593, %v6602
        %v6630 = vadd.f32 %v6594, %v6602
        %v6631 = vadd.f32 %v6595, %v6602
        %v6632 = vadd.f32 %v6596, %v6602
        %v6633 = vadd.f32 %v6597, %v6602
        %v6634 = vadd.f32 %v6598, %v6602
        %v6635 = vadd.f32 %v6599, %v6602
        %v6636 = vmax.f32 %v6536, %v6604
        %v6637 = vmax.f32 %v6537, %v6605
        %v6638 = vmax.f32 %v6538, %v6606
        %v6639 = vmax.f32 %v6539, %v6607
        %v6640 = vmax.f32 %v6540, %v6608
        %v6641 = vmax.f32 %v6541, %v6609
        %v6642 = vmax.f32 %v6542, %v6610
        %v6643 = vmax.f32 %v6543, %v6611
        %v6644 = vmax.f32 %v6544, %v6612
        %v6645 = vmax.f32 %v6545, %v6613
        %v6646 = vmax.f32 %v6546, %v6614
        %v6647 = vmax.f32 %v6547, %v6615
        %v6648 = vmax.f32 %v6548, %v6616
        %v6649 = vmax.f32 %v6549, %v6617
        %v6650 = vmax.f32 %v6550, %v6618
        %v6651 = vmax.f32 %v6551, %v6619
        %v6652 = vmax.f32 %v6552, %v6620
        %v6653 = vmax.f32 %v6553, %v6621
        %v6654 = vmax.f32 %v6554, %v6622
        %v6655 = vmax.f32 %v6555, %v6623
        %v6656 = vmax.f32 %v6556, %v6624
        %v6657 = vmax.f32 %v6557, %v6625
        %v6658 = vmax.f32 %v6558, %v6626
        %v6659 = vmax.f32 %v6559, %v6627
        %v6660 = vmax.f32 %v6560, %v6628
        %v6661 = vmax.f32 %v6561, %v6629
        %v6662 = vmax.f32 %v6562, %v6630
        %v6663 = vmax.f32 %v6563, %v6631
        %v6664 = vmax.f32 %v6564, %v6632
        %v6665 = vmax.f32 %v6565, %v6633
        %v6666 = vmax.f32 %v6566, %v6634
        %v6667 = vmax.f32 %v6567, %v6635
        %v6668 = vpack.c.bf16 %v6636, %v6636
        %v6669 = vpack.c.bf16 %v6637, %v6637
        %v6670 = vpack.c.bf16 %v6638, %v6638
        %v6671 = vpack.c.bf16 %v6639, %v6639
        %v6672 = vpack.c.bf16 %v6640, %v6640
        %v6673 = vpack.c.bf16 %v6641, %v6641
        %v6674 = vpack.c.bf16 %v6642, %v6642
        %v6675 = vpack.c.bf16 %v6643, %v6643
        %v6676 = vpack.c.bf16 %v6644, %v6644
        %v6677 = vpack.c.bf16 %v6645, %v6645
        %v6678 = vpack.c.bf16 %v6646, %v6646
        %v6679 = vpack.c.bf16 %v6647, %v6647
        %v6680 = vpack.c.bf16 %v6648, %v6648
        %v6681 = vpack.c.bf16 %v6649, %v6649
        %v6682 = vpack.c.bf16 %v6650, %v6650
        %v6683 = vpack.c.bf16 %v6651, %v6651
        %v6684 = vpack.c.bf16 %v6652, %v6652
        %v6685 = vpack.c.bf16 %v6653, %v6653
        %v6686 = vpack.c.bf16 %v6654, %v6654
        %v6687 = vpack.c.bf16 %v6655, %v6655
        %v6688 = vpack.c.bf16 %v6656, %v6656
        %v6689 = vpack.c.bf16 %v6657, %v6657
        %v6690 = vpack.c.bf16 %v6658, %v6658
        %v6691 = vpack.c.bf16 %v6659, %v6659
        %v6692 = vpack.c.bf16 %v6660, %v6660
        %v6693 = vpack.c.bf16 %v6661, %v6661
        %v6694 = vpack.c.bf16 %v6662, %v6662
        %v6695 = vpack.c.bf16 %v6663, %v6663
        %v6696 = vpack.c.bf16 %v6664, %v6664
        %v6697 = vpack.c.bf16 %v6665, %v6665
        %v6698 = vpack.c.bf16 %v6666, %v6666
        %v6699 = vpack.c.bf16 %v6667, %v6667
        %6700 = vst [vmem:[%s217] sm:$0xf] %v6668
        %6701 = vst [vmem:[%s217 + $0x4] sm:$0xf] %v6669
        %6702 = vst [vmem:[%s217 + $0x8] sm:$0xf] %v6670
        %6703 = vst [vmem:[%s217 + $0xc] sm:$0xf] %v6671
        %6704 = vst [vmem:[%s217 + $0x10] sm:$0xf] %v6672
        %6705 = vst [vmem:[%s217 + $0x14] sm:$0xf] %v6673
        %6706 = vst [vmem:[%s217 + $0x18] sm:$0xf] %v6674
        %6707 = vst [vmem:[%s217 + $0x1c] sm:$0xf] %v6675
        %6708 = vst [vmem:[%s217 + $0x20] sm:$0xf] %v6676
        %6709 = vst [vmem:[%s217 + $0x24] sm:$0xf] %v6677
        %6710 = vst [vmem:[%s217 + $0x28] sm:$0xf] %v6678
        %6711 = vst [vmem:[%s217 + $0x2c] sm:$0xf] %v6679
        %6712 = vst [vmem:[%s217 + $0x30] sm:$0xf] %v6680
        %6713 = vst [vmem:[%s217 + $0x34] sm:$0xf] %v6681
        %6714 = vst [vmem:[%s217 + $0x38] sm:$0xf] %v6682
        %6715 = vst [vmem:[%s217 + $0x3c] sm:$0xf] %v6683
        %6716 = vst [vmem:[%s217 + $0x40] sm:$0xf] %v6684
        %6717 = vst [vmem:[%s217 + $0x44] sm:$0xf] %v6685
        %6718 = vst [vmem:[%s217 + $0x48] sm:$0xf] %v6686
        %6719 = vst [vmem:[%s217 + $0x4c] sm:$0xf] %v6687
        %6720 = vst [vmem:[%s217 + $0x50] sm:$0xf] %v6688
        %6721 = vst [vmem:[%s217 + $0x54] sm:$0xf] %v6689
        %6722 = vst [vmem:[%s217 + $0x58] sm:$0xf] %v6690
        %6723 = vst [vmem:[%s217 + $0x5c] sm:$0xf] %v6691
        %6724 = vst [vmem:[%s217 + $0x60] sm:$0xf] %v6692
        %6725 = vst [vmem:[%s217 + $0x64] sm:$0xf] %v6693
        %6726 = vst [vmem:[%s217 + $0x68] sm:$0xf] %v6694
        %6727 = vst [vmem:[%s217 + $0x6c] sm:$0xf] %v6695
        %6728 = vst [vmem:[%s217 + $0x70] sm:$0xf] %v6696
        %6729 = vst [vmem:[%s217 + $0x74] sm:$0xf] %v6697
        %6730 = vst [vmem:[%s217 + $0x78] sm:$0xf] %v6698
        %6731 = vst [vmem:[%s217 + $0x7c] sm:$0xf] %v6699
        %s6732 = sand.u32 %s137, 1
        %s6733 = scalar_lea.sflag [#allocation5], %s6732
        %s6734 = sand.u32 %s137, 1
        %s6735 = smul.addr %s6734, 128
        %s6736 = scalar_lea.vmem [#allocation4], %s6735
        // Predicated region
        $region41: #{tpu_custom_call.1} parent=39 // pred_check
          %p6737 = pneg %p147
        $region42: #{tpu_custom_call.1} parent=39 // pred_check_branch
          %6739 = sbr.rel (%p6737) target = $region44
        $region43: #{tpu_custom_call.1} parent=39 // pred_region
          %6741 = vsyncadd %s6733, 0
          %s6742 = smul.addr %s19, 32
          %s6743 = smul.addr %s6742, 4
          %s6744 = scalar_lea.hbm %s5, %s6743
          %s6745 = sshll.u32 %s6736, 4
          %s6746 = int_to_ptr.vmem [resolvable:$true] %s6745
          %s6747 = sshll.u32 %s6744, 4
          %s6748 = int_to_ptr.hbm [resolvable:$true] %s6747
          %6753 = dma.vmem_to_hbm [thread:$0]  %s6746, 2048, %s6748, %s6733, 64, 64, 4
        $region44: #{tpu_custom_call.1} parent=39 // pred_fallthru
          _
      $region40: #{tpu_custom_call.1} parent=5 // pred_fallthru
        _
      %p6754 = scmp.le.s32.totalorder 2, %s14
      // Predicated region
      $region45: #{tpu_custom_call.1} parent=5 // pred_check
        %p6755 = pneg %p6754
      $region46: #{tpu_custom_call.1} parent=5 // pred_check_branch
        %6757 = sbr.rel (%p6755) target = $region48
      $region47: #{tpu_custom_call.1} parent=5 // pred_region
        %s6758 = ssub.s32 %s14, 2
        // Predicated region
        $region49: #{tpu_custom_call.1} parent=47 // pred_check
          %p6759 = pneg %p153
        $region50: #{tpu_custom_call.1} parent=47 // pred_check_branch
          %6761 = sbr.rel (%p6759) target = $region52
        $region51: #{tpu_custom_call.1} parent=47 // pred_region
          %s6762 = sand.u32 %s138, 1
          %s6763 = scalar_lea.sflag [#allocation5], %s6762
          %s6764 = sand.u32 %s138, 1
          %s6765 = smul.addr %s6764, 128
          %s6766 = scalar_lea.vmem [#allocation4], %s6765
          %6768 = dma.done %s6763, 2048
        $region52: #{tpu_custom_call.1} parent=47 // pred_fallthru
          _
      $region48: #{tpu_custom_call.1} parent=5 // pred_fallthru
        _
    $region6: #{tpu_custom_call.1} parent=1 // loop_footer
      %s18 = sadd.s32 1, %s14
    $region7: #{tpu_custom_call.1} parent=1 // loop_footer_branch
      %13 = sbr.rel target = $region3
    $region8: #{tpu_custom_call.1} parent=1 // loop_exit
      _
    %6769 = vsyncpa [#allocation5], 1
    %s6770 = scalar_lea.sflag [#allocation5], 1
    %6771 = vsyncpa %s6770, 1

</llo_original>
